<compile_context>
chip_gen: v7x
topology: tpu7x:2x2x1
jax: 0.10.0
libtpu: 0.0.40
codegen_flags: <defaults>
</compile_context>

<pallas_src>
import functools

import jax
import jax.numpy as jnp
from jax.experimental import pallas as pl
from jax.experimental.pallas import tpu as pltpu


def _pick_row_tile(h, cin, cout, w):
    """Row tile rh: divides H, satisfies the (8,128) sublane rule (rh % 8 == 0 or
    rh == H), bounds the unrolled in-kernel loop, keeps blocks well under VMEM."""
    def blk_bytes(d):  # double-buffered f32 input + output blocks
        return 2 * 4 * d * w * (cin + 4 * cout)

    budget = 12 * 2 ** 20  # conservative: leaves plenty of headroom on v7x (64 MiB)
    cands = [d for d in range(8, min(h, 32) + 1, 8)
             if h % d == 0 and blk_bytes(d) <= budget]
    if cands:
        return cands[-1]
    return 8 if h % 8 == 0 else h


def convt_bn_relu_kernel(x_ref, w_ref, d_ref, shift_ref, o_ref, *, rh, cout):
    """One (n, row-tile) step: fused ConvTranspose2d(k=2, s=2) + BN affine + ReLU.

    x_ref:     (1, Cin, rh, W)        input rows, native NCHW layout
    w_ref:     (4*Cout, Cin)          BN-scale-folded weights, row order (kj, ki, c)
    d_ref:     (2, W, 2*W)            0/1 dilation matrices: D[kj, j, 2j+kj] = 1
    shift_ref: (2*Cout, 1)            BN shift, rows (ki, c)
    o_ref:     (1, Cout, 2*rh, 2*W)   output rows, native NCHW layout
    """
    w = w_ref[...]            # (4*Cout, Cin)
    d0 = d_ref[0]             # (W, 2W)
    d1 = d_ref[1]             # (W, 2W)
    shift = shift_ref[...]    # (2*Cout, 1)

    for i in range(rh):       # static unroll; rh is small (<= 32)
        xi = x_ref[0, :, i, :]                                           # (Cin, W)
        # rows of y: (kj, ki, c)
        y = jnp.dot(w, xi, preferred_element_type=jnp.float32)           # (4*Cout, W)
        # width pixel-shuffle on the MXU: acc[:, 2j+kj] = y_kj[:, j]; rows (ki, c)
        acc = (jnp.dot(y[: 2 * cout], d0, preferred_element_type=jnp.float32)
               + jnp.dot(y[2 * cout:], d1, preferred_element_type=jnp.float32))
        acc = jnp.maximum(acc + shift, 0.0)                              # BN shift + ReLU
        # height interleave: output rows 2i (ki=0) and 2i+1 (ki=1)
        o_ref[0, :, 2 * i, :] = acc[:cout]
        o_ref[0, :, 2 * i + 1, :] = acc[cout:]


def trans_conv_bn_relu(x, weight, gamma, beta, eps=1e-5):
    """x: (N, Cin, H, W) f32; weight: (Cin, Cout, 2, 2) f32 (PyTorch ConvTranspose2d)."""
    N, Cin, H, W = x.shape
    Cin_w, Cout, kh, kw = weight.shape
    assert Cin == Cin_w and kh == 2 and kw == 2

    rh = _pick_row_tile(H, Cin, Cout, W)
    grid = (N, H // rh)
    hi = jax.lax.Precision.HIGHEST

    # ---------------- pass 1: batch statistics via Gram-matrix algebra --------------
    # col_sum   = s @ W                (s = per-channel sum of X)
    # col_sumsq = diag(W^T G W)        (G = X^T X, only Cin x Cin)
    xr = x.reshape(N, Cin, H * W)                                   # free reshape
    s = jnp.sum(xr, axis=(0, 2))                                    # (Cin,)
    G = jnp.einsum("ncm,nkm->ck", xr, xr, precision=hi)             # (Cin, Cin)
    wc = weight.reshape(Cin, Cout, kh * kw)                         # (Cin, Cout, 4)
    count = N * H * W * kh * kw
    ch_sum = jnp.einsum("c,ckp->k", s, wc, precision=hi)            # (Cout,)
    gw = jnp.einsum("cd,dkp->ckp", G, wc, precision=hi)             # (Cin, Cout, 4)
    ch_sumsq = jnp.einsum("ckp,ckp->k", wc, gw, precision=hi)       # (Cout,)
    mean = ch_sum / count
    var = jnp.maximum(ch_sumsq / count - mean * mean, 0.0)          # biased, clamped
    inv_std = jax.lax.rsqrt(var + eps)
    scale = gamma * inv_std                                         # (Cout,)
    shift = beta - mean * scale                                     # (Cout,)

    # ------------- fold BN scale into the weights; reorder rows (kj, ki, c) ---------
    w_kkoc = jnp.transpose(weight, (3, 2, 1, 0))                    # (kj, ki, Cout, Cin)
    w_all = (w_kkoc * scale[None, None, :, None]).reshape(4 * Cout, Cin)
    shift2 = jnp.tile(shift, 2)[:, None]                            # (2*Cout, 1), rows (ki, c)

    # ----- constant 0/1 dilation matrices for the width pixel-shuffle (exact) -------
    jj = jnp.arange(W)[:, None]
    pp = jnp.arange(2 * W)[None, :]
    d_mats = jnp.stack([(pp == 2 * jj).astype(jnp.float32),
                        (pp == 2 * jj + 1).astype(jnp.float32)], axis=0)   # (2, W, 2W)

    # -------------------------------- fused pass ------------------------------------
    blk_bytes = 2 * 4 * rh * W * (Cin + 4 * Cout) \
        + 4 * (4 * Cout * Cin + 2 * W * 2 * W + 2 * Cout)
    vmem_limit = int(min(max(8 * blk_bytes, 32 * 2 ** 20), 48 * 2 ** 20))

    flops = 2 * N * H * W * Cin * 4 * Cout + 16 * N * H * Cout * W * W
    bytes_accessed = 4 * (N * Cin * H * W + 4 * N * Cout * H * W
                          + 4 * Cout * Cin + 2 * W * 2 * W + 2 * Cout)

    kernel = functools.partial(convt_bn_relu_kernel, rh=rh, cout=Cout)

    out = pl.pallas_call(
        kernel,
        out_shape=jax.ShapeDtypeStruct((N, Cout, 2 * H, 2 * W), jnp.float32),
        grid_spec=pltpu.PrefetchScalarGridSpec(
            num_scalar_prefetch=0,
            grid=grid,
            in_specs=[
                pl.BlockSpec((1, Cin, rh, W), lambda n, r: (n, 0, r, 0)),
                pl.BlockSpec((4 * Cout, Cin), lambda n, r: (0, 0)),
                pl.BlockSpec((2, W, 2 * W), lambda n, r: (0, 0, 0)),
                pl.BlockSpec((2 * Cout, 1), lambda n, r: (0, 0)),
            ],
            out_specs=pl.BlockSpec((1, Cout, 2 * rh, 2 * W), lambda n, r: (n, 0, r, 0)),
        ),
        compiler_params=pltpu.CompilerParams(
            dimension_semantics=("parallel", "parallel"),
            vmem_limit_bytes=vmem_limit,
        ),
        cost_estimate=pl.CostEstimate(
            flops=int(flops), transcendentals=0, bytes_accessed=int(bytes_accessed)),
    )(x, w_all, d_mats, shift2)

    return out


def reference(x, weight, gamma, beta, eps=1e-5):
    N, Cin, H, W = x.shape
    _, Cout, kh, kw = weight.shape
    conv = jnp.einsum("nihw,iokl->nohkwl", x, weight,
                      precision=jax.lax.Precision.HIGHEST)
    conv = conv.reshape(N, Cout, H * kh, W * kw)
    mean = conv.mean(axis=(0, 2, 3), keepdims=True)
    var = conv.var(axis=(0, 2, 3), keepdims=True)       # biased, as BN training
    bn = (conv - mean) * jax.lax.rsqrt(var + eps)
    bn = bn * gamma.reshape(1, -1, 1, 1) + beta.reshape(1, -1, 1, 1)
    return jnp.maximum(bn, 0.0)


if __name__ == "__main__":
    N, Cin, Cout, H, W = 2, 4, 8, 16, 16
    kh = kw = 2

    key = jax.random.PRNGKey(0)
    kx, kw_key = jax.random.split(key)

    x = jax.random.normal(kx, (N, Cin, H, W), dtype=jnp.float32)

    # Xavier-uniform init for the ConvTranspose2d weight (in_ch, out_ch, kH, kW),
    # matching the PyTorch fan convention: fan_in = Cout*kH*kW, fan_out = Cin*kH*kW.
    fan_in = Cout * kh * kw
    fan_out = Cin * kh * kw
    bound = (6.0 / (fan_in + fan_out)) ** 0.5
    weight = jax.random.uniform(
        kw_key, (Cin, Cout, kh, kw), dtype=jnp.float32, minval=-bound, maxval=bound
    )

    gamma = jnp.ones((Cout,), dtype=jnp.float32)   # bn.weight.fill_(1)
    beta = jnp.zeros((Cout,), dtype=jnp.float32)   # bn.bias.zero_()

    out = trans_conv_bn_relu(x, weight, gamma, beta)
    out = jax.block_until_ready(out)

    ref = reference(x, weight, gamma, beta)
    assert out.shape == (N, Cout, 2 * H, 2 * W), out.shape
    # Tolerance leaves slack for possible reduced-precision MXU passes in f32 matmul
    # paths (kernel vs XLA reference); structural/indexing/stat bugs are O(0.1-1).
    assert jnp.allclose(out, ref, atol=2e-2, rtol=1e-2), float(jnp.max(jnp.abs(out - ref)))

    print("KERNEL_OK")
</pallas_src>

<mosaic_0001>
module attributes {stable_mosaic.version = 11 : i64} {
  func.func @convt_bn_relu_kernel(%arg0: i32, %arg1: i32, %arg2: memref<1x4x16x16xf32, #tpu.memory_space<vmem>>, %arg3: memref<32x4xf32, #tpu.memory_space<vmem>>, %arg4: memref<2x16x32xf32, #tpu.memory_space<vmem>>, %arg5: memref<16x1xf32, #tpu.memory_space<vmem>>, %arg6: memref<1x8x32x32xf32, #tpu.memory_space<vmem>>) attributes {dimension_semantics = [#tpu.dimension_semantics<parallel>, #tpu.dimension_semantics<parallel>], iteration_bounds = array<i64: 2, 1>, scalar_prefetch = 0 : i64, scratch_operands = 0 : i64, tpu.core_type = #tpu.core_type<tc>, window_params = [{transform_indices = @transform_0, window_bounds = array<i64: 1, 4, 16, 16>}, {pipeline_mode = #tpu.pipeline_mode<synchronous>, transform_indices = @transform_1, window_bounds = array<i64: 32, 4>}, {pipeline_mode = #tpu.pipeline_mode<synchronous>, transform_indices = @transform_2, window_bounds = array<i64: 2, 16, 32>}, {pipeline_mode = #tpu.pipeline_mode<synchronous>, transform_indices = @transform_3, window_bounds = array<i64: 16, 1>}, {transform_indices = @transform_4, window_bounds = array<i64: 1, 8, 32, 32>}]} {
    %c0 = arith.constant 0 : index
    %c0_0 = arith.constant 0 : index
    %0 = vector.load %arg3[%c0, %c0_0] : memref<32x4xf32, #tpu.memory_space<vmem>>, vector<32x4xf32>
    %c0_1 = arith.constant 0 : index
    %c0_2 = arith.constant 0 : index
    %c0_3 = arith.constant 0 : index
    %1 = vector.load %arg4[%c0_1, %c0_2, %c0_3] : memref<2x16x32xf32, #tpu.memory_space<vmem>>, vector<1x16x32xf32>
    %2 = vector.shape_cast %1 : vector<1x16x32xf32> to vector<16x32xf32>
    %c1 = arith.constant 1 : index
    %c0_4 = arith.constant 0 : index
    %c0_5 = arith.constant 0 : index
    %3 = vector.load %arg4[%c1, %c0_4, %c0_5] : memref<2x16x32xf32, #tpu.memory_space<vmem>>, vector<1x16x32xf32>
    %4 = vector.shape_cast %3 : vector<1x16x32xf32> to vector<16x32xf32>
    %c0_6 = arith.constant 0 : index
    %c0_7 = arith.constant 0 : index
    %5 = vector.load %arg5[%c0_6, %c0_7] : memref<16x1xf32, #tpu.memory_space<vmem>>, vector<16x1xf32>
    %c0_8 = arith.constant 0 : index
    %c0_9 = arith.constant 0 : index
    %c0_10 = arith.constant 0 : index
    %c0_11 = arith.constant 0 : index
    %6 = vector.load %arg2[%c0_8, %c0_9, %c0_10, %c0_11] : memref<1x4x16x16xf32, #tpu.memory_space<vmem>>, vector<1x4x1x16xf32>
    %7 = vector.shape_cast %6 : vector<1x4x1x16xf32> to vector<4x16xf32>
    %cst = arith.constant dense<0.000000e+00> : vector<32x16xf32>
    %8 = tpu.matmul %0, %7, %cst {dimension_numbers = #tpu.dot_dimension_numbers<[1], [0], [0], [1], [0, 0, 1, 1], [], []>} : vector<32x4xf32>, vector<4x16xf32>, vector<32x16xf32> -> vector<32x16xf32>
    %9 = vector.extract_strided_slice %8 {offsets = [0, 0], sizes = [16, 16], strides = [1, 1]} : vector<32x16xf32> to vector<16x16xf32>
    %cst_12 = arith.constant dense<0.000000e+00> : vector<16x32xf32>
    %10 = tpu.matmul %9, %2, %cst_12 {dimension_numbers = #tpu.dot_dimension_numbers<[1], [0], [0], [1], [0, 0, 1, 1], [], []>} : vector<16x16xf32>, vector<16x32xf32>, vector<16x32xf32> -> vector<16x32xf32>
    %11 = vector.extract_strided_slice %8 {offsets = [16, 0], sizes = [16, 16], strides = [1, 1]} : vector<32x16xf32> to vector<16x16xf32>
    %cst_13 = arith.constant dense<0.000000e+00> : vector<16x32xf32>
    %12 = tpu.matmul %11, %4, %cst_13 {dimension_numbers = #tpu.dot_dimension_numbers<[1], [0], [0], [1], [0, 0, 1, 1], [], []>} : vector<16x16xf32>, vector<16x32xf32>, vector<16x32xf32> -> vector<16x32xf32>
    %13 = arith.addf %10, %12 : vector<16x32xf32>
    %14 = vector.broadcast %5 : vector<16x1xf32> to vector<16x32xf32>
    %15 = arith.addf %13, %14 : vector<16x32xf32>
    %cst_14 = arith.constant 0.000000e+00 : f32
    %16 = vector.broadcast %cst_14 : f32 to vector<16x32xf32>
    %17 = arith.maximumf %15, %16 : vector<16x32xf32>
    %18 = vector.extract_strided_slice %17 {offsets = [0, 0], sizes = [8, 32], strides = [1, 1]} : vector<16x32xf32> to vector<8x32xf32>
    %c0_15 = arith.constant 0 : index
    %c0_16 = arith.constant 0 : index
    %c0_17 = arith.constant 0 : index
    %c0_18 = arith.constant 0 : index
    %19 = vector.load %arg6[%c0_15, %c0_16, %c0_17, %c0_18] : memref<1x8x32x32xf32, #tpu.memory_space<vmem>>, vector<1x8x1x32xf32>
    %20 = vector.shape_cast %19 : vector<1x8x1x32xf32> to vector<8x32xf32>
    %21 = vector.shape_cast %18 : vector<8x32xf32> to vector<1x8x1x32xf32>
    tpu.vector_store %arg6[%c0_15, %c0_16, %c0_17, %c0_18], %21 {strides = array<i32>} : memref<1x8x32x32xf32, #tpu.memory_space<vmem>>, vector<1x8x1x32xf32>,
    %22 = vector.extract_strided_slice %17 {offsets = [8, 0], sizes = [8, 32], strides = [1, 1]} : vector<16x32xf32> to vector<8x32xf32>
    %c0_19 = arith.constant 0 : index
    %c0_20 = arith.constant 0 : index
    %c1_21 = arith.constant 1 : index
    %c0_22 = arith.constant 0 : index
    %23 = vector.load %arg6[%c0_19, %c0_20, %c1_21, %c0_22] : memref<1x8x32x32xf32, #tpu.memory_space<vmem>>, vector<1x8x1x32xf32>
    %24 = vector.shape_cast %23 : vector<1x8x1x32xf32> to vector<8x32xf32>
    %25 = vector.shape_cast %22 : vector<8x32xf32> to vector<1x8x1x32xf32>
    tpu.vector_store %arg6[%c0_19, %c0_20, %c1_21, %c0_22], %25 {strides = array<i32>} : memref<1x8x32x32xf32, #tpu.memory_space<vmem>>, vector<1x8x1x32xf32>,
    %c0_23 = arith.constant 0 : index
    %c0_24 = arith.constant 0 : index
    %c1_25 = arith.constant 1 : index
    %c0_26 = arith.constant 0 : index
    %26 = vector.load %arg2[%c0_23, %c0_24, %c1_25, %c0_26] : memref<1x4x16x16xf32, #tpu.memory_space<vmem>>, vector<1x4x1x16xf32>
    %27 = vector.shape_cast %26 : vector<1x4x1x16xf32> to vector<4x16xf32>
    %cst_27 = arith.constant dense<0.000000e+00> : vector<32x16xf32>
    %28 = tpu.matmul %0, %27, %cst_27 {dimension_numbers = #tpu.dot_dimension_numbers<[1], [0], [0], [1], [0, 0, 1, 1], [], []>} : vector<32x4xf32>, vector<4x16xf32>, vector<32x16xf32> -> vector<32x16xf32>
    %29 = vector.extract_strided_slice %28 {offsets = [0, 0], sizes = [16, 16], strides = [1, 1]} : vector<32x16xf32> to vector<16x16xf32>
    %cst_28 = arith.constant dense<0.000000e+00> : vector<16x32xf32>
    %30 = tpu.matmul %29, %2, %cst_28 {dimension_numbers = #tpu.dot_dimension_numbers<[1], [0], [0], [1], [0, 0, 1, 1], [], []>} : vector<16x16xf32>, vector<16x32xf32>, vector<16x32xf32> -> vector<16x32xf32>
    %31 = vector.extract_strided_slice %28 {offsets = [16, 0], sizes = [16, 16], strides = [1, 1]} : vector<32x16xf32> to vector<16x16xf32>
    %cst_29 = arith.constant dense<0.000000e+00> : vector<16x32xf32>
    %32 = tpu.matmul %31, %4, %cst_29 {dimension_numbers = #tpu.dot_dimension_numbers<[1], [0], [0], [1], [0, 0, 1, 1], [], []>} : vector<16x16xf32>, vector<16x32xf32>, vector<16x32xf32> -> vector<16x32xf32>
    %33 = arith.addf %30, %32 : vector<16x32xf32>
    %34 = vector.broadcast %5 : vector<16x1xf32> to vector<16x32xf32>
    %35 = arith.addf %33, %34 : vector<16x32xf32>
    %cst_30 = arith.constant 0.000000e+00 : f32
    %36 = vector.broadcast %cst_30 : f32 to vector<16x32xf32>
    %37 = arith.maximumf %35, %36 : vector<16x32xf32>
    %38 = vector.extract_strided_slice %37 {offsets = [0, 0], sizes = [8, 32], strides = [1, 1]} : vector<16x32xf32> to vector<8x32xf32>
    %c0_31 = arith.constant 0 : index
    %c0_32 = arith.constant 0 : index
    %c2 = arith.constant 2 : index
    %c0_33 = arith.constant 0 : index
    %39 = vector.load %arg6[%c0_31, %c0_32, %c2, %c0_33] : memref<1x8x32x32xf32, #tpu.memory_space<vmem>>, vector<1x8x1x32xf32>
    %40 = vector.shape_cast %39 : vector<1x8x1x32xf32> to vector<8x32xf32>
    %41 = vector.shape_cast %38 : vector<8x32xf32> to vector<1x8x1x32xf32>
    tpu.vector_store %arg6[%c0_31, %c0_32, %c2, %c0_33], %41 {strides = array<i32>} : memref<1x8x32x32xf32, #tpu.memory_space<vmem>>, vector<1x8x1x32xf32>,
    %42 = vector.extract_strided_slice %37 {offsets = [8, 0], sizes = [8, 32], strides = [1, 1]} : vector<16x32xf32> to vector<8x32xf32>
    %c0_34 = arith.constant 0 : index
    %c0_35 = arith.constant 0 : index
    %c3 = arith.constant 3 : index
    %c0_36 = arith.constant 0 : index
    %43 = vector.load %arg6[%c0_34, %c0_35, %c3, %c0_36] : memref<1x8x32x32xf32, #tpu.memory_space<vmem>>, vector<1x8x1x32xf32>
    %44 = vector.shape_cast %43 : vector<1x8x1x32xf32> to vector<8x32xf32>
    %45 = vector.shape_cast %42 : vector<8x32xf32> to vector<1x8x1x32xf32>
    tpu.vector_store %arg6[%c0_34, %c0_35, %c3, %c0_36], %45 {strides = array<i32>} : memref<1x8x32x32xf32, #tpu.memory_space<vmem>>, vector<1x8x1x32xf32>,
    %c0_37 = arith.constant 0 : index
    %c0_38 = arith.constant 0 : index
    %c2_39 = arith.constant 2 : index
    %c0_40 = arith.constant 0 : index
    %46 = vector.load %arg2[%c0_37, %c0_38, %c2_39, %c0_40] : memref<1x4x16x16xf32, #tpu.memory_space<vmem>>, vector<1x4x1x16xf32>
    %47 = vector.shape_cast %46 : vector<1x4x1x16xf32> to vector<4x16xf32>
    %cst_41 = arith.constant dense<0.000000e+00> : vector<32x16xf32>
    %48 = tpu.matmul %0, %47, %cst_41 {dimension_numbers = #tpu.dot_dimension_numbers<[1], [0], [0], [1], [0, 0, 1, 1], [], []>} : vector<32x4xf32>, vector<4x16xf32>, vector<32x16xf32> -> vector<32x16xf32>
    %49 = vector.extract_strided_slice %48 {offsets = [0, 0], sizes = [16, 16], strides = [1, 1]} : vector<32x16xf32> to vector<16x16xf32>
    %cst_42 = arith.constant dense<0.000000e+00> : vector<16x32xf32>
    %50 = tpu.matmul %49, %2, %cst_42 {dimension_numbers = #tpu.dot_dimension_numbers<[1], [0], [0], [1], [0, 0, 1, 1], [], []>} : vector<16x16xf32>, vector<16x32xf32>, vector<16x32xf32> -> vector<16x32xf32>
    %51 = vector.extract_strided_slice %48 {offsets = [16, 0], sizes = [16, 16], strides = [1, 1]} : vector<32x16xf32> to vector<16x16xf32>
    %cst_43 = arith.constant dense<0.000000e+00> : vector<16x32xf32>
    %52 = tpu.matmul %51, %4, %cst_43 {dimension_numbers = #tpu.dot_dimension_numbers<[1], [0], [0], [1], [0, 0, 1, 1], [], []>} : vector<16x16xf32>, vector<16x32xf32>, vector<16x32xf32> -> vector<16x32xf32>
    %53 = arith.addf %50, %52 : vector<16x32xf32>
    %54 = vector.broadcast %5 : vector<16x1xf32> to vector<16x32xf32>
    %55 = arith.addf %53, %54 : vector<16x32xf32>
    %cst_44 = arith.constant 0.000000e+00 : f32
    %56 = vector.broadcast %cst_44 : f32 to vector<16x32xf32>
    %57 = arith.maximumf %55, %56 : vector<16x32xf32>
    %58 = vector.extract_strided_slice %57 {offsets = [0, 0], sizes = [8, 32], strides = [1, 1]} : vector<16x32xf32> to vector<8x32xf32>
    %c0_45 = arith.constant 0 : index
    %c0_46 = arith.constant 0 : index
    %c4 = arith.constant 4 : index
    %c0_47 = arith.constant 0 : index
    %59 = vector.load %arg6[%c0_45, %c0_46, %c4, %c0_47] : memref<1x8x32x32xf32, #tpu.memory_space<vmem>>, vector<1x8x1x32xf32>
    %60 = vector.shape_cast %59 : vector<1x8x1x32xf32> to vector<8x32xf32>
    %61 = vector.shape_cast %58 : vector<8x32xf32> to vector<1x8x1x32xf32>
    tpu.vector_store %arg6[%c0_45, %c0_46, %c4, %c0_47], %61 {strides = array<i32>} : memref<1x8x32x32xf32, #tpu.memory_space<vmem>>, vector<1x8x1x32xf32>,
    %62 = vector.extract_strided_slice %57 {offsets = [8, 0], sizes = [8, 32], strides = [1, 1]} : vector<16x32xf32> to vector<8x32xf32>
    %c0_48 = arith.constant 0 : index
    %c0_49 = arith.constant 0 : index
    %c5 = arith.constant 5 : index
    %c0_50 = arith.constant 0 : index
    %63 = vector.load %arg6[%c0_48, %c0_49, %c5, %c0_50] : memref<1x8x32x32xf32, #tpu.memory_space<vmem>>, vector<1x8x1x32xf32>
    %64 = vector.shape_cast %63 : vector<1x8x1x32xf32> to vector<8x32xf32>
    %65 = vector.shape_cast %62 : vector<8x32xf32> to vector<1x8x1x32xf32>
    tpu.vector_store %arg6[%c0_48, %c0_49, %c5, %c0_50], %65 {strides = array<i32>} : memref<1x8x32x32xf32, #tpu.memory_space<vmem>>, vector<1x8x1x32xf32>,
    %c0_51 = arith.constant 0 : index
    %c0_52 = arith.constant 0 : index
    %c3_53 = arith.constant 3 : index
    %c0_54 = arith.constant 0 : index
    %66 = vector.load %arg2[%c0_51, %c0_52, %c3_53, %c0_54] : memref<1x4x16x16xf32, #tpu.memory_space<vmem>>, vector<1x4x1x16xf32>
    %67 = vector.shape_cast %66 : vector<1x4x1x16xf32> to vector<4x16xf32>
    %cst_55 = arith.constant dense<0.000000e+00> : vector<32x16xf32>
    %68 = tpu.matmul %0, %67, %cst_55 {dimension_numbers = #tpu.dot_dimension_numbers<[1], [0], [0], [1], [0, 0, 1, 1], [], []>} : vector<32x4xf32>, vector<4x16xf32>, vector<32x16xf32> -> vector<32x16xf32>
    %69 = vector.extract_strided_slice %68 {offsets = [0, 0], sizes = [16, 16], strides = [1, 1]} : vector<32x16xf32> to vector<16x16xf32>
    %cst_56 = arith.constant dense<0.000000e+00> : vector<16x32xf32>
    %70 = tpu.matmul %69, %2, %cst_56 {dimension_numbers = #tpu.dot_dimension_numbers<[1], [0], [0], [1], [0, 0, 1, 1], [], []>} : vector<16x16xf32>, vector<16x32xf32>, vector<16x32xf32> -> vector<16x32xf32>
    %71 = vector.extract_strided_slice %68 {offsets = [16, 0], sizes = [16, 16], strides = [1, 1]} : vector<32x16xf32> to vector<16x16xf32>
    %cst_57 = arith.constant dense<0.000000e+00> : vector<16x32xf32>
    %72 = tpu.matmul %71, %4, %cst_57 {dimension_numbers = #tpu.dot_dimension_numbers<[1], [0], [0], [1], [0, 0, 1, 1], [], []>} : vector<16x16xf32>, vector<16x32xf32>, vector<16x32xf32> -> vector<16x32xf32>
    %73 = arith.addf %70, %72 : vector<16x32xf32>
    %74 = vector.broadcast %5 : vector<16x1xf32> to vector<16x32xf32>
    %75 = arith.addf %73, %74 : vector<16x32xf32>
    %cst_58 = arith.constant 0.000000e+00 : f32
    %76 = vector.broadcast %cst_58 : f32 to vector<16x32xf32>
    %77 = arith.maximumf %75, %76 : vector<16x32xf32>
    %78 = vector.extract_strided_slice %77 {offsets = [0, 0], sizes = [8, 32], strides = [1, 1]} : vector<16x32xf32> to vector<8x32xf32>
    %c0_59 = arith.constant 0 : index
    %c0_60 = arith.constant 0 : index
    %c6 = arith.constant 6 : index
    %c0_61 = arith.constant 0 : index
    %79 = vector.load %arg6[%c0_59, %c0_60, %c6, %c0_61] : memref<1x8x32x32xf32, #tpu.memory_space<vmem>>, vector<1x8x1x32xf32>
    %80 = vector.shape_cast %79 : vector<1x8x1x32xf32> to vector<8x32xf32>
    %81 = vector.shape_cast %78 : vector<8x32xf32> to vector<1x8x1x32xf32>
    tpu.vector_store %arg6[%c0_59, %c0_60, %c6, %c0_61], %81 {strides = array<i32>} : memref<1x8x32x32xf32, #tpu.memory_space<vmem>>, vector<1x8x1x32xf32>,
    %82 = vector.extract_strided_slice %77 {offsets = [8, 0], sizes = [8, 32], strides = [1, 1]} : vector<16x32xf32> to vector<8x32xf32>
    %c0_62 = arith.constant 0 : index
    %c0_63 = arith.constant 0 : index
    %c7 = arith.constant 7 : index
    %c0_64 = arith.constant 0 : index
    %83 = vector.load %arg6[%c0_62, %c0_63, %c7, %c0_64] : memref<1x8x32x32xf32, #tpu.memory_space<vmem>>, vector<1x8x1x32xf32>
    %84 = vector.shape_cast %83 : vector<1x8x1x32xf32> to vector<8x32xf32>
    %85 = vector.shape_cast %82 : vector<8x32xf32> to vector<1x8x1x32xf32>
    tpu.vector_store %arg6[%c0_62, %c0_63, %c7, %c0_64], %85 {strides = array<i32>} : memref<1x8x32x32xf32, #tpu.memory_space<vmem>>, vector<1x8x1x32xf32>,
    %c0_65 = arith.constant 0 : index
    %c0_66 = arith.constant 0 : index
    %c4_67 = arith.constant 4 : index
    %c0_68 = arith.constant 0 : index
    %86 = vector.load %arg2[%c0_65, %c0_66, %c4_67, %c0_68] : memref<1x4x16x16xf32, #tpu.memory_space<vmem>>, vector<1x4x1x16xf32>
    %87 = vector.shape_cast %86 : vector<1x4x1x16xf32> to vector<4x16xf32>
    %cst_69 = arith.constant dense<0.000000e+00> : vector<32x16xf32>
    %88 = tpu.matmul %0, %87, %cst_69 {dimension_numbers = #tpu.dot_dimension_numbers<[1], [0], [0], [1], [0, 0, 1, 1], [], []>} : vector<32x4xf32>, vector<4x16xf32>, vector<32x16xf32> -> vector<32x16xf32>
    %89 = vector.extract_strided_slice %88 {offsets = [0, 0], sizes = [16, 16], strides = [1, 1]} : vector<32x16xf32> to vector<16x16xf32>
    %cst_70 = arith.constant dense<0.000000e+00> : vector<16x32xf32>
    %90 = tpu.matmul %89, %2, %cst_70 {dimension_numbers = #tpu.dot_dimension_numbers<[1], [0], [0], [1], [0, 0, 1, 1], [], []>} : vector<16x16xf32>, vector<16x32xf32>, vector<16x32xf32> -> vector<16x32xf32>
    %91 = vector.extract_strided_slice %88 {offsets = [16, 0], sizes = [16, 16], strides = [1, 1]} : vector<32x16xf32> to vector<16x16xf32>
    %cst_71 = arith.constant dense<0.000000e+00> : vector<16x32xf32>
    %92 = tpu.matmul %91, %4, %cst_71 {dimension_numbers = #tpu.dot_dimension_numbers<[1], [0], [0], [1], [0, 0, 1, 1], [], []>} : vector<16x16xf32>, vector<16x32xf32>, vector<16x32xf32> -> vector<16x32xf32>
    %93 = arith.addf %90, %92 : vector<16x32xf32>
    %94 = vector.broadcast %5 : vector<16x1xf32> to vector<16x32xf32>
    %95 = arith.addf %93, %94 : vector<16x32xf32>
    %cst_72 = arith.constant 0.000000e+00 : f32
    %96 = vector.broadcast %cst_72 : f32 to vector<16x32xf32>
    %97 = arith.maximumf %95, %96 : vector<16x32xf32>
    %98 = vector.extract_strided_slice %97 {offsets = [0, 0], sizes = [8, 32], strides = [1, 1]} : vector<16x32xf32> to vector<8x32xf32>
    %c0_73 = arith.constant 0 : index
    %c0_74 = arith.constant 0 : index
    %c8 = arith.constant 8 : index
    %c0_75 = arith.constant 0 : index
    %99 = vector.load %arg6[%c0_73, %c0_74, %c8, %c0_75] : memref<1x8x32x32xf32, #tpu.memory_space<vmem>>, vector<1x8x1x32xf32>
    %100 = vector.shape_cast %99 : vector<1x8x1x32xf32> to vector<8x32xf32>
    %101 = vector.shape_cast %98 : vector<8x32xf32> to vector<1x8x1x32xf32>
    tpu.vector_store %arg6[%c0_73, %c0_74, %c8, %c0_75], %101 {strides = array<i32>} : memref<1x8x32x32xf32, #tpu.memory_space<vmem>>, vector<1x8x1x32xf32>,
    %102 = vector.extract_strided_slice %97 {offsets = [8, 0], sizes = [8, 32], strides = [1, 1]} : vector<16x32xf32> to vector<8x32xf32>
    %c0_76 = arith.constant 0 : index
    %c0_77 = arith.constant 0 : index
    %c9 = arith.constant 9 : index
    %c0_78 = arith.constant 0 : index
    %103 = vector.load %arg6[%c0_76, %c0_77, %c9, %c0_78] : memref<1x8x32x32xf32, #tpu.memory_space<vmem>>, vector<1x8x1x32xf32>
    %104 = vector.shape_cast %103 : vector<1x8x1x32xf32> to vector<8x32xf32>
    %105 = vector.shape_cast %102 : vector<8x32xf32> to vector<1x8x1x32xf32>
    tpu.vector_store %arg6[%c0_76, %c0_77, %c9, %c0_78], %105 {strides = array<i32>} : memref<1x8x32x32xf32, #tpu.memory_space<vmem>>, vector<1x8x1x32xf32>,
    %c0_79 = arith.constant 0 : index
    %c0_80 = arith.constant 0 : index
    %c5_81 = arith.constant 5 : index
    %c0_82 = arith.constant 0 : index
    %106 = vector.load %arg2[%c0_79, %c0_80, %c5_81, %c0_82] : memref<1x4x16x16xf32, #tpu.memory_space<vmem>>, vector<1x4x1x16xf32>
    %107 = vector.shape_cast %106 : vector<1x4x1x16xf32> to vector<4x16xf32>
    %cst_83 = arith.constant dense<0.000000e+00> : vector<32x16xf32>
    %108 = tpu.matmul %0, %107, %cst_83 {dimension_numbers = #tpu.dot_dimension_numbers<[1], [0], [0], [1], [0, 0, 1, 1], [], []>} : vector<32x4xf32>, vector<4x16xf32>, vector<32x16xf32> -> vector<32x16xf32>
    %109 = vector.extract_strided_slice %108 {offsets = [0, 0], sizes = [16, 16], strides = [1, 1]} : vector<32x16xf32> to vector<16x16xf32>
    %cst_84 = arith.constant dense<0.000000e+00> : vector<16x32xf32>
    %110 = tpu.matmul %109, %2, %cst_84 {dimension_numbers = #tpu.dot_dimension_numbers<[1], [0], [0], [1], [0, 0, 1, 1], [], []>} : vector<16x16xf32>, vector<16x32xf32>, vector<16x32xf32> -> vector<16x32xf32>
    %111 = vector.extract_strided_slice %108 {offsets = [16, 0], sizes = [16, 16], strides = [1, 1]} : vector<32x16xf32> to vector<16x16xf32>
    %cst_85 = arith.constant dense<0.000000e+00> : vector<16x32xf32>
    %112 = tpu.matmul %111, %4, %cst_85 {dimension_numbers = #tpu.dot_dimension_numbers<[1], [0], [0], [1], [0, 0, 1, 1], [], []>} : vector<16x16xf32>, vector<16x32xf32>, vector<16x32xf32> -> vector<16x32xf32>
    %113 = arith.addf %110, %112 : vector<16x32xf32>
    %114 = vector.broadcast %5 : vector<16x1xf32> to vector<16x32xf32>
    %115 = arith.addf %113, %114 : vector<16x32xf32>
    %cst_86 = arith.constant 0.000000e+00 : f32
    %116 = vector.broadcast %cst_86 : f32 to vector<16x32xf32>
    %117 = arith.maximumf %115, %116 : vector<16x32xf32>
    %118 = vector.extract_strided_slice %117 {offsets = [0, 0], sizes = [8, 32], strides = [1, 1]} : vector<16x32xf32> to vector<8x32xf32>
    %c0_87 = arith.constant 0 : index
    %c0_88 = arith.constant 0 : index
    %c10 = arith.constant 10 : index
    %c0_89 = arith.constant 0 : index
    %119 = vector.load %arg6[%c0_87, %c0_88, %c10, %c0_89] : memref<1x8x32x32xf32, #tpu.memory_space<vmem>>, vector<1x8x1x32xf32>
    %120 = vector.shape_cast %119 : vector<1x8x1x32xf32> to vector<8x32xf32>
    %121 = vector.shape_cast %118 : vector<8x32xf32> to vector<1x8x1x32xf32>
    tpu.vector_store %arg6[%c0_87, %c0_88, %c10, %c0_89], %121 {strides = array<i32>} : memref<1x8x32x32xf32, #tpu.memory_space<vmem>>, vector<1x8x1x32xf32>,
    %122 = vector.extract_strided_slice %117 {offsets = [8, 0], sizes = [8, 32], strides = [1, 1]} : vector<16x32xf32> to vector<8x32xf32>
    %c0_90 = arith.constant 0 : index
    %c0_91 = arith.constant 0 : index
    %c11 = arith.constant 11 : index
    %c0_92 = arith.constant 0 : index
    %123 = vector.load %arg6[%c0_90, %c0_91, %c11, %c0_92] : memref<1x8x32x32xf32, #tpu.memory_space<vmem>>, vector<1x8x1x32xf32>
    %124 = vector.shape_cast %123 : vector<1x8x1x32xf32> to vector<8x32xf32>
    %125 = vector.shape_cast %122 : vector<8x32xf32> to vector<1x8x1x32xf32>
    tpu.vector_store %arg6[%c0_90, %c0_91, %c11, %c0_92], %125 {strides = array<i32>} : memref<1x8x32x32xf32, #tpu.memory_space<vmem>>, vector<1x8x1x32xf32>,
    %c0_93 = arith.constant 0 : index
    %c0_94 = arith.constant 0 : index
    %c6_95 = arith.constant 6 : index
    %c0_96 = arith.constant 0 : index
    %126 = vector.load %arg2[%c0_93, %c0_94, %c6_95, %c0_96] : memref<1x4x16x16xf32, #tpu.memory_space<vmem>>, vector<1x4x1x16xf32>
    %127 = vector.shape_cast %126 : vector<1x4x1x16xf32> to vector<4x16xf32>
    %cst_97 = arith.constant dense<0.000000e+00> : vector<32x16xf32>
    %128 = tpu.matmul %0, %127, %cst_97 {dimension_numbers = #tpu.dot_dimension_numbers<[1], [0], [0], [1], [0, 0, 1, 1], [], []>} : vector<32x4xf32>, vector<4x16xf32>, vector<32x16xf32> -> vector<32x16xf32>
    %129 = vector.extract_strided_slice %128 {offsets = [0, 0], sizes = [16, 16], strides = [1, 1]} : vector<32x16xf32> to vector<16x16xf32>
    %cst_98 = arith.constant dense<0.000000e+00> : vector<16x32xf32>
    %130 = tpu.matmul %129, %2, %cst_98 {dimension_numbers = #tpu.dot_dimension_numbers<[1], [0], [0], [1], [0, 0, 1, 1], [], []>} : vector<16x16xf32>, vector<16x32xf32>, vector<16x32xf32> -> vector<16x32xf32>
    %131 = vector.extract_strided_slice %128 {offsets = [16, 0], sizes = [16, 16], strides = [1, 1]} : vector<32x16xf32> to vector<16x16xf32>
    %cst_99 = arith.constant dense<0.000000e+00> : vector<16x32xf32>
    %132 = tpu.matmul %131, %4, %cst_99 {dimension_numbers = #tpu.dot_dimension_numbers<[1], [0], [0], [1], [0, 0, 1, 1], [], []>} : vector<16x16xf32>, vector<16x32xf32>, vector<16x32xf32> -> vector<16x32xf32>
    %133 = arith.addf %130, %132 : vector<16x32xf32>
    %134 = vector.broadcast %5 : vector<16x1xf32> to vector<16x32xf32>
    %135 = arith.addf %133, %134 : vector<16x32xf32>
    %cst_100 = arith.constant 0.000000e+00 : f32
    %136 = vector.broadcast %cst_100 : f32 to vector<16x32xf32>
    %137 = arith.maximumf %135, %136 : vector<16x32xf32>
    %138 = vector.extract_strided_slice %137 {offsets = [0, 0], sizes = [8, 32], strides = [1, 1]} : vector<16x32xf32> to vector<8x32xf32>
    %c0_101 = arith.constant 0 : index
    %c0_102 = arith.constant 0 : index
    %c12 = arith.constant 12 : index
    %c0_103 = arith.constant 0 : index
    %139 = vector.load %arg6[%c0_101, %c0_102, %c12, %c0_103] : memref<1x8x32x32xf32, #tpu.memory_space<vmem>>, vector<1x8x1x32xf32>
    %140 = vector.shape_cast %139 : vector<1x8x1x32xf32> to vector<8x32xf32>
    %141 = vector.shape_cast %138 : vector<8x32xf32> to vector<1x8x1x32xf32>
    tpu.vector_store %arg6[%c0_101, %c0_102, %c12, %c0_103], %141 {strides = array<i32>} : memref<1x8x32x32xf32, #tpu.memory_space<vmem>>, vector<1x8x1x32xf32>,
    %142 = vector.extract_strided_slice %137 {offsets = [8, 0], sizes = [8, 32], strides = [1, 1]} : vector<16x32xf32> to vector<8x32xf32>
    %c0_104 = arith.constant 0 : index
    %c0_105 = arith.constant 0 : index
    %c13 = arith.constant 13 : index
    %c0_106 = arith.constant 0 : index
    %143 = vector.load %arg6[%c0_104, %c0_105, %c13, %c0_106] : memref<1x8x32x32xf32, #tpu.memory_space<vmem>>, vector<1x8x1x32xf32>
    %144 = vector.shape_cast %143 : vector<1x8x1x32xf32> to vector<8x32xf32>
    %145 = vector.shape_cast %142 : vector<8x32xf32> to vector<1x8x1x32xf32>
    tpu.vector_store %arg6[%c0_104, %c0_105, %c13, %c0_106], %145 {strides = array<i32>} : memref<1x8x32x32xf32, #tpu.memory_space<vmem>>, vector<1x8x1x32xf32>,
    %c0_107 = arith.constant 0 : index
    %c0_108 = arith.constant 0 : index
    %c7_109 = arith.constant 7 : index
    %c0_110 = arith.constant 0 : index
    %146 = vector.load %arg2[%c0_107, %c0_108, %c7_109, %c0_110] : memref<1x4x16x16xf32, #tpu.memory_space<vmem>>, vector<1x4x1x16xf32>
    %147 = vector.shape_cast %146 : vector<1x4x1x16xf32> to vector<4x16xf32>
    %cst_111 = arith.constant dense<0.000000e+00> : vector<32x16xf32>
    %148 = tpu.matmul %0, %147, %cst_111 {dimension_numbers = #tpu.dot_dimension_numbers<[1], [0], [0], [1], [0, 0, 1, 1], [], []>} : vector<32x4xf32>, vector<4x16xf32>, vector<32x16xf32> -> vector<32x16xf32>
    %149 = vector.extract_strided_slice %148 {offsets = [0, 0], sizes = [16, 16], strides = [1, 1]} : vector<32x16xf32> to vector<16x16xf32>
    %cst_112 = arith.constant dense<0.000000e+00> : vector<16x32xf32>
    %150 = tpu.matmul %149, %2, %cst_112 {dimension_numbers = #tpu.dot_dimension_numbers<[1], [0], [0], [1], [0, 0, 1, 1], [], []>} : vector<16x16xf32>, vector<16x32xf32>, vector<16x32xf32> -> vector<16x32xf32>
    %151 = vector.extract_strided_slice %148 {offsets = [16, 0], sizes = [16, 16], strides = [1, 1]} : vector<32x16xf32> to vector<16x16xf32>
    %cst_113 = arith.constant dense<0.000000e+00> : vector<16x32xf32>
    %152 = tpu.matmul %151, %4, %cst_113 {dimension_numbers = #tpu.dot_dimension_numbers<[1], [0], [0], [1], [0, 0, 1, 1], [], []>} : vector<16x16xf32>, vector<16x32xf32>, vector<16x32xf32> -> vector<16x32xf32>
    %153 = arith.addf %150, %152 : vector<16x32xf32>
    %154 = vector.broadcast %5 : vector<16x1xf32> to vector<16x32xf32>
    %155 = arith.addf %153, %154 : vector<16x32xf32>
    %cst_114 = arith.constant 0.000000e+00 : f32
    %156 = vector.broadcast %cst_114 : f32 to vector<16x32xf32>
    %157 = arith.maximumf %155, %156 : vector<16x32xf32>
    %158 = vector.extract_strided_slice %157 {offsets = [0, 0], sizes = [8, 32], strides = [1, 1]} : vector<16x32xf32> to vector<8x32xf32>
    %c0_115 = arith.constant 0 : index
    %c0_116 = arith.constant 0 : index
    %c14 = arith.constant 14 : index
    %c0_117 = arith.constant 0 : index
    %159 = vector.load %arg6[%c0_115, %c0_116, %c14, %c0_117] : memref<1x8x32x32xf32, #tpu.memory_space<vmem>>, vector<1x8x1x32xf32>
    %160 = vector.shape_cast %159 : vector<1x8x1x32xf32> to vector<8x32xf32>
    %161 = vector.shape_cast %158 : vector<8x32xf32> to vector<1x8x1x32xf32>
    tpu.vector_store %arg6[%c0_115, %c0_116, %c14, %c0_117], %161 {strides = array<i32>} : memref<1x8x32x32xf32, #tpu.memory_space<vmem>>, vector<1x8x1x32xf32>,
    %162 = vector.extract_strided_slice %157 {offsets = [8, 0], sizes = [8, 32], strides = [1, 1]} : vector<16x32xf32> to vector<8x32xf32>
    %c0_118 = arith.constant 0 : index
    %c0_119 = arith.constant 0 : index
    %c15 = arith.constant 15 : index
    %c0_120 = arith.constant 0 : index
    %163 = vector.load %arg6[%c0_118, %c0_119, %c15, %c0_120] : memref<1x8x32x32xf32, #tpu.memory_space<vmem>>, vector<1x8x1x32xf32>
    %164 = vector.shape_cast %163 : vector<1x8x1x32xf32> to vector<8x32xf32>
    %165 = vector.shape_cast %162 : vector<8x32xf32> to vector<1x8x1x32xf32>
    tpu.vector_store %arg6[%c0_118, %c0_119, %c15, %c0_120], %165 {strides = array<i32>} : memref<1x8x32x32xf32, #tpu.memory_space<vmem>>, vector<1x8x1x32xf32>,
    %c0_121 = arith.constant 0 : index
    %c0_122 = arith.constant 0 : index
    %c8_123 = arith.constant 8 : index
    %c0_124 = arith.constant 0 : index
    %166 = vector.load %arg2[%c0_121, %c0_122, %c8_123, %c0_124] : memref<1x4x16x16xf32, #tpu.memory_space<vmem>>, vector<1x4x1x16xf32>
    %167 = vector.shape_cast %166 : vector<1x4x1x16xf32> to vector<4x16xf32>
    %cst_125 = arith.constant dense<0.000000e+00> : vector<32x16xf32>
    %168 = tpu.matmul %0, %167, %cst_125 {dimension_numbers = #tpu.dot_dimension_numbers<[1], [0], [0], [1], [0, 0, 1, 1], [], []>} : vector<32x4xf32>, vector<4x16xf32>, vector<32x16xf32> -> vector<32x16xf32>
    %169 = vector.extract_strided_slice %168 {offsets = [0, 0], sizes = [16, 16], strides = [1, 1]} : vector<32x16xf32> to vector<16x16xf32>
    %cst_126 = arith.constant dense<0.000000e+00> : vector<16x32xf32>
    %170 = tpu.matmul %169, %2, %cst_126 {dimension_numbers = #tpu.dot_dimension_numbers<[1], [0], [0], [1], [0, 0, 1, 1], [], []>} : vector<16x16xf32>, vector<16x32xf32>, vector<16x32xf32> -> vector<16x32xf32>
    %171 = vector.extract_strided_slice %168 {offsets = [16, 0], sizes = [16, 16], strides = [1, 1]} : vector<32x16xf32> to vector<16x16xf32>
    %cst_127 = arith.constant dense<0.000000e+00> : vector<16x32xf32>
    %172 = tpu.matmul %171, %4, %cst_127 {dimension_numbers = #tpu.dot_dimension_numbers<[1], [0], [0], [1], [0, 0, 1, 1], [], []>} : vector<16x16xf32>, vector<16x32xf32>, vector<16x32xf32> -> vector<16x32xf32>
    %173 = arith.addf %170, %172 : vector<16x32xf32>
    %174 = vector.broadcast %5 : vector<16x1xf32> to vector<16x32xf32>
    %175 = arith.addf %173, %174 : vector<16x32xf32>
    %cst_128 = arith.constant 0.000000e+00 : f32
    %176 = vector.broadcast %cst_128 : f32 to vector<16x32xf32>
    %177 = arith.maximumf %175, %176 : vector<16x32xf32>
    %178 = vector.extract_strided_slice %177 {offsets = [0, 0], sizes = [8, 32], strides = [1, 1]} : vector<16x32xf32> to vector<8x32xf32>
    %c0_129 = arith.constant 0 : index
    %c0_130 = arith.constant 0 : index
    %c16 = arith.constant 16 : index
    %c0_131 = arith.constant 0 : index
    %179 = vector.load %arg6[%c0_129, %c0_130, %c16, %c0_131] : memref<1x8x32x32xf32, #tpu.memory_space<vmem>>, vector<1x8x1x32xf32>
    %180 = vector.shape_cast %179 : vector<1x8x1x32xf32> to vector<8x32xf32>
    %181 = vector.shape_cast %178 : vector<8x32xf32> to vector<1x8x1x32xf32>
    tpu.vector_store %arg6[%c0_129, %c0_130, %c16, %c0_131], %181 {strides = array<i32>} : memref<1x8x32x32xf32, #tpu.memory_space<vmem>>, vector<1x8x1x32xf32>,
    %182 = vector.extract_strided_slice %177 {offsets = [8, 0], sizes = [8, 32], strides = [1, 1]} : vector<16x32xf32> to vector<8x32xf32>
    %c0_132 = arith.constant 0 : index
    %c0_133 = arith.constant 0 : index
    %c17 = arith.constant 17 : index
    %c0_134 = arith.constant 0 : index
    %183 = vector.load %arg6[%c0_132, %c0_133, %c17, %c0_134] : memref<1x8x32x32xf32, #tpu.memory_space<vmem>>, vector<1x8x1x32xf32>
    %184 = vector.shape_cast %183 : vector<1x8x1x32xf32> to vector<8x32xf32>
    %185 = vector.shape_cast %182 : vector<8x32xf32> to vector<1x8x1x32xf32>
    tpu.vector_store %arg6[%c0_132, %c0_133, %c17, %c0_134], %185 {strides = array<i32>} : memref<1x8x32x32xf32, #tpu.memory_space<vmem>>, vector<1x8x1x32xf32>,
    %c0_135 = arith.constant 0 : index
    %c0_136 = arith.constant 0 : index
    %c9_137 = arith.constant 9 : index
    %c0_138 = arith.constant 0 : index
    %186 = vector.load %arg2[%c0_135, %c0_136, %c9_137, %c0_138] : memref<1x4x16x16xf32, #tpu.memory_space<vmem>>, vector<1x4x1x16xf32>
    %187 = vector.shape_cast %186 : vector<1x4x1x16xf32> to vector<4x16xf32>
    %cst_139 = arith.constant dense<0.000000e+00> : vector<32x16xf32>
    %188 = tpu.matmul %0, %187, %cst_139 {dimension_numbers = #tpu.dot_dimension_numbers<[1], [0], [0], [1], [0, 0, 1, 1], [], []>} : vector<32x4xf32>, vector<4x16xf32>, vector<32x16xf32> -> vector<32x16xf32>
    %189 = vector.extract_strided_slice %188 {offsets = [0, 0], sizes = [16, 16], strides = [1, 1]} : vector<32x16xf32> to vector<16x16xf32>
    %cst_140 = arith.constant dense<0.000000e+00> : vector<16x32xf32>
    %190 = tpu.matmul %189, %2, %cst_140 {dimension_numbers = #tpu.dot_dimension_numbers<[1], [0], [0], [1], [0, 0, 1, 1], [], []>} : vector<16x16xf32>, vector<16x32xf32>, vector<16x32xf32> -> vector<16x32xf32>
    %191 = vector.extract_strided_slice %188 {offsets = [16, 0], sizes = [16, 16], strides = [1, 1]} : vector<32x16xf32> to vector<16x16xf32>
    %cst_141 = arith.constant dense<0.000000e+00> : vector<16x32xf32>
    %192 = tpu.matmul %191, %4, %cst_141 {dimension_numbers = #tpu.dot_dimension_numbers<[1], [0], [0], [1], [0, 0, 1, 1], [], []>} : vector<16x16xf32>, vector<16x32xf32>, vector<16x32xf32> -> vector<16x32xf32>
    %193 = arith.addf %190, %192 : vector<16x32xf32>
    %194 = vector.broadcast %5 : vector<16x1xf32> to vector<16x32xf32>
    %195 = arith.addf %193, %194 : vector<16x32xf32>
    %cst_142 = arith.constant 0.000000e+00 : f32
    %196 = vector.broadcast %cst_142 : f32 to vector<16x32xf32>
    %197 = arith.maximumf %195, %196 : vector<16x32xf32>
    %198 = vector.extract_strided_slice %197 {offsets = [0, 0], sizes = [8, 32], strides = [1, 1]} : vector<16x32xf32> to vector<8x32xf32>
    %c0_143 = arith.constant 0 : index
    %c0_144 = arith.constant 0 : index
    %c18 = arith.constant 18 : index
    %c0_145 = arith.constant 0 : index
    %199 = vector.load %arg6[%c0_143, %c0_144, %c18, %c0_145] : memref<1x8x32x32xf32, #tpu.memory_space<vmem>>, vector<1x8x1x32xf32>
    %200 = vector.shape_cast %199 : vector<1x8x1x32xf32> to vector<8x32xf32>
    %201 = vector.shape_cast %198 : vector<8x32xf32> to vector<1x8x1x32xf32>
    tpu.vector_store %arg6[%c0_143, %c0_144, %c18, %c0_145], %201 {strides = array<i32>} : memref<1x8x32x32xf32, #tpu.memory_space<vmem>>, vector<1x8x1x32xf32>,
    %202 = vector.extract_strided_slice %197 {offsets = [8, 0], sizes = [8, 32], strides = [1, 1]} : vector<16x32xf32> to vector<8x32xf32>
    %c0_146 = arith.constant 0 : index
    %c0_147 = arith.constant 0 : index
    %c19 = arith.constant 19 : index
    %c0_148 = arith.constant 0 : index
    %203 = vector.load %arg6[%c0_146, %c0_147, %c19, %c0_148] : memref<1x8x32x32xf32, #tpu.memory_space<vmem>>, vector<1x8x1x32xf32>
    %204 = vector.shape_cast %203 : vector<1x8x1x32xf32> to vector<8x32xf32>
    %205 = vector.shape_cast %202 : vector<8x32xf32> to vector<1x8x1x32xf32>
    tpu.vector_store %arg6[%c0_146, %c0_147, %c19, %c0_148], %205 {strides = array<i32>} : memref<1x8x32x32xf32, #tpu.memory_space<vmem>>, vector<1x8x1x32xf32>,
    %c0_149 = arith.constant 0 : index
    %c0_150 = arith.constant 0 : index
    %c10_151 = arith.constant 10 : index
    %c0_152 = arith.constant 0 : index
    %206 = vector.load %arg2[%c0_149, %c0_150, %c10_151, %c0_152] : memref<1x4x16x16xf32, #tpu.memory_space<vmem>>, vector<1x4x1x16xf32>
    %207 = vector.shape_cast %206 : vector<1x4x1x16xf32> to vector<4x16xf32>
    %cst_153 = arith.constant dense<0.000000e+00> : vector<32x16xf32>
    %208 = tpu.matmul %0, %207, %cst_153 {dimension_numbers = #tpu.dot_dimension_numbers<[1], [0], [0], [1], [0, 0, 1, 1], [], []>} : vector<32x4xf32>, vector<4x16xf32>, vector<32x16xf32> -> vector<32x16xf32>
    %209 = vector.extract_strided_slice %208 {offsets = [0, 0], sizes = [16, 16], strides = [1, 1]} : vector<32x16xf32> to vector<16x16xf32>
    %cst_154 = arith.constant dense<0.000000e+00> : vector<16x32xf32>
    %210 = tpu.matmul %209, %2, %cst_154 {dimension_numbers = #tpu.dot_dimension_numbers<[1], [0], [0], [1], [0, 0, 1, 1], [], []>} : vector<16x16xf32>, vector<16x32xf32>, vector<16x32xf32> -> vector<16x32xf32>
    %211 = vector.extract_strided_slice %208 {offsets = [16, 0], sizes = [16, 16], strides = [1, 1]} : vector<32x16xf32> to vector<16x16xf32>
    %cst_155 = arith.constant dense<0.000000e+00> : vector<16x32xf32>
    %212 = tpu.matmul %211, %4, %cst_155 {dimension_numbers = #tpu.dot_dimension_numbers<[1], [0], [0], [1], [0, 0, 1, 1], [], []>} : vector<16x16xf32>, vector<16x32xf32>, vector<16x32xf32> -> vector<16x32xf32>
    %213 = arith.addf %210, %212 : vector<16x32xf32>
    %214 = vector.broadcast %5 : vector<16x1xf32> to vector<16x32xf32>
    %215 = arith.addf %213, %214 : vector<16x32xf32>
    %cst_156 = arith.constant 0.000000e+00 : f32
    %216 = vector.broadcast %cst_156 : f32 to vector<16x32xf32>
    %217 = arith.maximumf %215, %216 : vector<16x32xf32>
    %218 = vector.extract_strided_slice %217 {offsets = [0, 0], sizes = [8, 32], strides = [1, 1]} : vector<16x32xf32> to vector<8x32xf32>
    %c0_157 = arith.constant 0 : index
    %c0_158 = arith.constant 0 : index
    %c20 = arith.constant 20 : index
    %c0_159 = arith.constant 0 : index
    %219 = vector.load %arg6[%c0_157, %c0_158, %c20, %c0_159] : memref<1x8x32x32xf32, #tpu.memory_space<vmem>>, vector<1x8x1x32xf32>
    %220 = vector.shape_cast %219 : vector<1x8x1x32xf32> to vector<8x32xf32>
    %221 = vector.shape_cast %218 : vector<8x32xf32> to vector<1x8x1x32xf32>
    tpu.vector_store %arg6[%c0_157, %c0_158, %c20, %c0_159], %221 {strides = array<i32>} : memref<1x8x32x32xf32, #tpu.memory_space<vmem>>, vector<1x8x1x32xf32>,
    %222 = vector.extract_strided_slice %217 {offsets = [8, 0], sizes = [8, 32], strides = [1, 1]} : vector<16x32xf32> to vector<8x32xf32>
    %c0_160 = arith.constant 0 : index
    %c0_161 = arith.constant 0 : index
    %c21 = arith.constant 21 : index
    %c0_162 = arith.constant 0 : index
    %223 = vector.load %arg6[%c0_160, %c0_161, %c21, %c0_162] : memref<1x8x32x32xf32, #tpu.memory_space<vmem>>, vector<1x8x1x32xf32>
    %224 = vector.shape_cast %223 : vector<1x8x1x32xf32> to vector<8x32xf32>
    %225 = vector.shape_cast %222 : vector<8x32xf32> to vector<1x8x1x32xf32>
    tpu.vector_store %arg6[%c0_160, %c0_161, %c21, %c0_162], %225 {strides = array<i32>} : memref<1x8x32x32xf32, #tpu.memory_space<vmem>>, vector<1x8x1x32xf32>,
    %c0_163 = arith.constant 0 : index
    %c0_164 = arith.constant 0 : index
    %c11_165 = arith.constant 11 : index
    %c0_166 = arith.constant 0 : index
    %226 = vector.load %arg2[%c0_163, %c0_164, %c11_165, %c0_166] : memref<1x4x16x16xf32, #tpu.memory_space<vmem>>, vector<1x4x1x16xf32>
    %227 = vector.shape_cast %226 : vector<1x4x1x16xf32> to vector<4x16xf32>
    %cst_167 = arith.constant dense<0.000000e+00> : vector<32x16xf32>
    %228 = tpu.matmul %0, %227, %cst_167 {dimension_numbers = #tpu.dot_dimension_numbers<[1], [0], [0], [1], [0, 0, 1, 1], [], []>} : vector<32x4xf32>, vector<4x16xf32>, vector<32x16xf32> -> vector<32x16xf32>
    %229 = vector.extract_strided_slice %228 {offsets = [0, 0], sizes = [16, 16], strides = [1, 1]} : vector<32x16xf32> to vector<16x16xf32>
    %cst_168 = arith.constant dense<0.000000e+00> : vector<16x32xf32>
    %230 = tpu.matmul %229, %2, %cst_168 {dimension_numbers = #tpu.dot_dimension_numbers<[1], [0], [0], [1], [0, 0, 1, 1], [], []>} : vector<16x16xf32>, vector<16x32xf32>, vector<16x32xf32> -> vector<16x32xf32>
    %231 = vector.extract_strided_slice %228 {offsets = [16, 0], sizes = [16, 16], strides = [1, 1]} : vector<32x16xf32> to vector<16x16xf32>
    %cst_169 = arith.constant dense<0.000000e+00> : vector<16x32xf32>
    %232 = tpu.matmul %231, %4, %cst_169 {dimension_numbers = #tpu.dot_dimension_numbers<[1], [0], [0], [1], [0, 0, 1, 1], [], []>} : vector<16x16xf32>, vector<16x32xf32>, vector<16x32xf32> -> vector<16x32xf32>
    %233 = arith.addf %230, %232 : vector<16x32xf32>
    %234 = vector.broadcast %5 : vector<16x1xf32> to vector<16x32xf32>
    %235 = arith.addf %233, %234 : vector<16x32xf32>
    %cst_170 = arith.constant 0.000000e+00 : f32
    %236 = vector.broadcast %cst_170 : f32 to vector<16x32xf32>
    %237 = arith.maximumf %235, %236 : vector<16x32xf32>
    %238 = vector.extract_strided_slice %237 {offsets = [0, 0], sizes = [8, 32], strides = [1, 1]} : vector<16x32xf32> to vector<8x32xf32>
    %c0_171 = arith.constant 0 : index
    %c0_172 = arith.constant 0 : index
    %c22 = arith.constant 22 : index
    %c0_173 = arith.constant 0 : index
    %239 = vector.load %arg6[%c0_171, %c0_172, %c22, %c0_173] : memref<1x8x32x32xf32, #tpu.memory_space<vmem>>, vector<1x8x1x32xf32>
    %240 = vector.shape_cast %239 : vector<1x8x1x32xf32> to vector<8x32xf32>
    %241 = vector.shape_cast %238 : vector<8x32xf32> to vector<1x8x1x32xf32>
    tpu.vector_store %arg6[%c0_171, %c0_172, %c22, %c0_173], %241 {strides = array<i32>} : memref<1x8x32x32xf32, #tpu.memory_space<vmem>>, vector<1x8x1x32xf32>,
    %242 = vector.extract_strided_slice %237 {offsets = [8, 0], sizes = [8, 32], strides = [1, 1]} : vector<16x32xf32> to vector<8x32xf32>
    %c0_174 = arith.constant 0 : index
    %c0_175 = arith.constant 0 : index
    %c23 = arith.constant 23 : index
    %c0_176 = arith.constant 0 : index
    %243 = vector.load %arg6[%c0_174, %c0_175, %c23, %c0_176] : memref<1x8x32x32xf32, #tpu.memory_space<vmem>>, vector<1x8x1x32xf32>
    %244 = vector.shape_cast %243 : vector<1x8x1x32xf32> to vector<8x32xf32>
    %245 = vector.shape_cast %242 : vector<8x32xf32> to vector<1x8x1x32xf32>
    tpu.vector_store %arg6[%c0_174, %c0_175, %c23, %c0_176], %245 {strides = array<i32>} : memref<1x8x32x32xf32, #tpu.memory_space<vmem>>, vector<1x8x1x32xf32>,
    %c0_177 = arith.constant 0 : index
    %c0_178 = arith.constant 0 : index
    %c12_179 = arith.constant 12 : index
    %c0_180 = arith.constant 0 : index
    %246 = vector.load %arg2[%c0_177, %c0_178, %c12_179, %c0_180] : memref<1x4x16x16xf32, #tpu.memory_space<vmem>>, vector<1x4x1x16xf32>
    %247 = vector.shape_cast %246 : vector<1x4x1x16xf32> to vector<4x16xf32>
    %cst_181 = arith.constant dense<0.000000e+00> : vector<32x16xf32>
    %248 = tpu.matmul %0, %247, %cst_181 {dimension_numbers = #tpu.dot_dimension_numbers<[1], [0], [0], [1], [0, 0, 1, 1], [], []>} : vector<32x4xf32>, vector<4x16xf32>, vector<32x16xf32> -> vector<32x16xf32>
    %249 = vector.extract_strided_slice %248 {offsets = [0, 0], sizes = [16, 16], strides = [1, 1]} : vector<32x16xf32> to vector<16x16xf32>
    %cst_182 = arith.constant dense<0.000000e+00> : vector<16x32xf32>
    %250 = tpu.matmul %249, %2, %cst_182 {dimension_numbers = #tpu.dot_dimension_numbers<[1], [0], [0], [1], [0, 0, 1, 1], [], []>} : vector<16x16xf32>, vector<16x32xf32>, vector<16x32xf32> -> vector<16x32xf32>
    %251 = vector.extract_strided_slice %248 {offsets = [16, 0], sizes = [16, 16], strides = [1, 1]} : vector<32x16xf32> to vector<16x16xf32>
    %cst_183 = arith.constant dense<0.000000e+00> : vector<16x32xf32>
    %252 = tpu.matmul %251, %4, %cst_183 {dimension_numbers = #tpu.dot_dimension_numbers<[1], [0], [0], [1], [0, 0, 1, 1], [], []>} : vector<16x16xf32>, vector<16x32xf32>, vector<16x32xf32> -> vector<16x32xf32>
    %253 = arith.addf %250, %252 : vector<16x32xf32>
    %254 = vector.broadcast %5 : vector<16x1xf32> to vector<16x32xf32>
    %255 = arith.addf %253, %254 : vector<16x32xf32>
    %cst_184 = arith.constant 0.000000e+00 : f32
    %256 = vector.broadcast %cst_184 : f32 to vector<16x32xf32>
    %257 = arith.maximumf %255, %256 : vector<16x32xf32>
    %258 = vector.extract_strided_slice %257 {offsets = [0, 0], sizes = [8, 32], strides = [1, 1]} : vector<16x32xf32> to vector<8x32xf32>
    %c0_185 = arith.constant 0 : index
    %c0_186 = arith.constant 0 : index
    %c24 = arith.constant 24 : index
    %c0_187 = arith.constant 0 : index
    %259 = vector.load %arg6[%c0_185, %c0_186, %c24, %c0_187] : memref<1x8x32x32xf32, #tpu.memory_space<vmem>>, vector<1x8x1x32xf32>
    %260 = vector.shape_cast %259 : vector<1x8x1x32xf32> to vector<8x32xf32>
    %261 = vector.shape_cast %258 : vector<8x32xf32> to vector<1x8x1x32xf32>
    tpu.vector_store %arg6[%c0_185, %c0_186, %c24, %c0_187], %261 {strides = array<i32>} : memref<1x8x32x32xf32, #tpu.memory_space<vmem>>, vector<1x8x1x32xf32>,
    %262 = vector.extract_strided_slice %257 {offsets = [8, 0], sizes = [8, 32], strides = [1, 1]} : vector<16x32xf32> to vector<8x32xf32>
    %c0_188 = arith.constant 0 : index
    %c0_189 = arith.constant 0 : index
    %c25 = arith.constant 25 : index
    %c0_190 = arith.constant 0 : index
    %263 = vector.load %arg6[%c0_188, %c0_189, %c25, %c0_190] : memref<1x8x32x32xf32, #tpu.memory_space<vmem>>, vector<1x8x1x32xf32>
    %264 = vector.shape_cast %263 : vector<1x8x1x32xf32> to vector<8x32xf32>
    %265 = vector.shape_cast %262 : vector<8x32xf32> to vector<1x8x1x32xf32>
    tpu.vector_store %arg6[%c0_188, %c0_189, %c25, %c0_190], %265 {strides = array<i32>} : memref<1x8x32x32xf32, #tpu.memory_space<vmem>>, vector<1x8x1x32xf32>,
    %c0_191 = arith.constant 0 : index
    %c0_192 = arith.constant 0 : index
    %c13_193 = arith.constant 13 : index
    %c0_194 = arith.constant 0 : index
    %266 = vector.load %arg2[%c0_191, %c0_192, %c13_193, %c0_194] : memref<1x4x16x16xf32, #tpu.memory_space<vmem>>, vector<1x4x1x16xf32>
    %267 = vector.shape_cast %266 : vector<1x4x1x16xf32> to vector<4x16xf32>
    %cst_195 = arith.constant dense<0.000000e+00> : vector<32x16xf32>
    %268 = tpu.matmul %0, %267, %cst_195 {dimension_numbers = #tpu.dot_dimension_numbers<[1], [0], [0], [1], [0, 0, 1, 1], [], []>} : vector<32x4xf32>, vector<4x16xf32>, vector<32x16xf32> -> vector<32x16xf32>
    %269 = vector.extract_strided_slice %268 {offsets = [0, 0], sizes = [16, 16], strides = [1, 1]} : vector<32x16xf32> to vector<16x16xf32>
    %cst_196 = arith.constant dense<0.000000e+00> : vector<16x32xf32>
    %270 = tpu.matmul %269, %2, %cst_196 {dimension_numbers = #tpu.dot_dimension_numbers<[1], [0], [0], [1], [0, 0, 1, 1], [], []>} : vector<16x16xf32>, vector<16x32xf32>, vector<16x32xf32> -> vector<16x32xf32>
    %271 = vector.extract_strided_slice %268 {offsets = [16, 0], sizes = [16, 16], strides = [1, 1]} : vector<32x16xf32> to vector<16x16xf32>
    %cst_197 = arith.constant dense<0.000000e+00> : vector<16x32xf32>
    %272 = tpu.matmul %271, %4, %cst_197 {dimension_numbers = #tpu.dot_dimension_numbers<[1], [0], [0], [1], [0, 0, 1, 1], [], []>} : vector<16x16xf32>, vector<16x32xf32>, vector<16x32xf32> -> vector<16x32xf32>
    %273 = arith.addf %270, %272 : vector<16x32xf32>
    %274 = vector.broadcast %5 : vector<16x1xf32> to vector<16x32xf32>
    %275 = arith.addf %273, %274 : vector<16x32xf32>
    %cst_198 = arith.constant 0.000000e+00 : f32
    %276 = vector.broadcast %cst_198 : f32 to vector<16x32xf32>
    %277 = arith.maximumf %275, %276 : vector<16x32xf32>
    %278 = vector.extract_strided_slice %277 {offsets = [0, 0], sizes = [8, 32], strides = [1, 1]} : vector<16x32xf32> to vector<8x32xf32>
    %c0_199 = arith.constant 0 : index
    %c0_200 = arith.constant 0 : index
    %c26 = arith.constant 26 : index
    %c0_201 = arith.constant 0 : index
    %279 = vector.load %arg6[%c0_199, %c0_200, %c26, %c0_201] : memref<1x8x32x32xf32, #tpu.memory_space<vmem>>, vector<1x8x1x32xf32>
    %280 = vector.shape_cast %279 : vector<1x8x1x32xf32> to vector<8x32xf32>
    %281 = vector.shape_cast %278 : vector<8x32xf32> to vector<1x8x1x32xf32>
    tpu.vector_store %arg6[%c0_199, %c0_200, %c26, %c0_201], %281 {strides = array<i32>} : memref<1x8x32x32xf32, #tpu.memory_space<vmem>>, vector<1x8x1x32xf32>,
    %282 = vector.extract_strided_slice %277 {offsets = [8, 0], sizes = [8, 32], strides = [1, 1]} : vector<16x32xf32> to vector<8x32xf32>
    %c0_202 = arith.constant 0 : index
    %c0_203 = arith.constant 0 : index
    %c27 = arith.constant 27 : index
    %c0_204 = arith.constant 0 : index
    %283 = vector.load %arg6[%c0_202, %c0_203, %c27, %c0_204] : memref<1x8x32x32xf32, #tpu.memory_space<vmem>>, vector<1x8x1x32xf32>
    %284 = vector.shape_cast %283 : vector<1x8x1x32xf32> to vector<8x32xf32>
    %285 = vector.shape_cast %282 : vector<8x32xf32> to vector<1x8x1x32xf32>
    tpu.vector_store %arg6[%c0_202, %c0_203, %c27, %c0_204], %285 {strides = array<i32>} : memref<1x8x32x32xf32, #tpu.memory_space<vmem>>, vector<1x8x1x32xf32>,
    %c0_205 = arith.constant 0 : index
    %c0_206 = arith.constant 0 : index
    %c14_207 = arith.constant 14 : index
    %c0_208 = arith.constant 0 : index
    %286 = vector.load %arg2[%c0_205, %c0_206, %c14_207, %c0_208] : memref<1x4x16x16xf32, #tpu.memory_space<vmem>>, vector<1x4x1x16xf32>
    %287 = vector.shape_cast %286 : vector<1x4x1x16xf32> to vector<4x16xf32>
    %cst_209 = arith.constant dense<0.000000e+00> : vector<32x16xf32>
    %288 = tpu.matmul %0, %287, %cst_209 {dimension_numbers = #tpu.dot_dimension_numbers<[1], [0], [0], [1], [0, 0, 1, 1], [], []>} : vector<32x4xf32>, vector<4x16xf32>, vector<32x16xf32> -> vector<32x16xf32>
    %289 = vector.extract_strided_slice %288 {offsets = [0, 0], sizes = [16, 16], strides = [1, 1]} : vector<32x16xf32> to vector<16x16xf32>
    %cst_210 = arith.constant dense<0.000000e+00> : vector<16x32xf32>
    %290 = tpu.matmul %289, %2, %cst_210 {dimension_numbers = #tpu.dot_dimension_numbers<[1], [0], [0], [1], [0, 0, 1, 1], [], []>} : vector<16x16xf32>, vector<16x32xf32>, vector<16x32xf32> -> vector<16x32xf32>
    %291 = vector.extract_strided_slice %288 {offsets = [16, 0], sizes = [16, 16], strides = [1, 1]} : vector<32x16xf32> to vector<16x16xf32>
    %cst_211 = arith.constant dense<0.000000e+00> : vector<16x32xf32>
    %292 = tpu.matmul %291, %4, %cst_211 {dimension_numbers = #tpu.dot_dimension_numbers<[1], [0], [0], [1], [0, 0, 1, 1], [], []>} : vector<16x16xf32>, vector<16x32xf32>, vector<16x32xf32> -> vector<16x32xf32>
    %293 = arith.addf %290, %292 : vector<16x32xf32>
    %294 = vector.broadcast %5 : vector<16x1xf32> to vector<16x32xf32>
    %295 = arith.addf %293, %294 : vector<16x32xf32>
    %cst_212 = arith.constant 0.000000e+00 : f32
    %296 = vector.broadcast %cst_212 : f32 to vector<16x32xf32>
    %297 = arith.maximumf %295, %296 : vector<16x32xf32>
    %298 = vector.extract_strided_slice %297 {offsets = [0, 0], sizes = [8, 32], strides = [1, 1]} : vector<16x32xf32> to vector<8x32xf32>
    %c0_213 = arith.constant 0 : index
    %c0_214 = arith.constant 0 : index
    %c28 = arith.constant 28 : index
    %c0_215 = arith.constant 0 : index
    %299 = vector.load %arg6[%c0_213, %c0_214, %c28, %c0_215] : memref<1x8x32x32xf32, #tpu.memory_space<vmem>>, vector<1x8x1x32xf32>
    %300 = vector.shape_cast %299 : vector<1x8x1x32xf32> to vector<8x32xf32>
    %301 = vector.shape_cast %298 : vector<8x32xf32> to vector<1x8x1x32xf32>
    tpu.vector_store %arg6[%c0_213, %c0_214, %c28, %c0_215], %301 {strides = array<i32>} : memref<1x8x32x32xf32, #tpu.memory_space<vmem>>, vector<1x8x1x32xf32>,
    %302 = vector.extract_strided_slice %297 {offsets = [8, 0], sizes = [8, 32], strides = [1, 1]} : vector<16x32xf32> to vector<8x32xf32>
    %c0_216 = arith.constant 0 : index
    %c0_217 = arith.constant 0 : index
    %c29 = arith.constant 29 : index
    %c0_218 = arith.constant 0 : index
    %303 = vector.load %arg6[%c0_216, %c0_217, %c29, %c0_218] : memref<1x8x32x32xf32, #tpu.memory_space<vmem>>, vector<1x8x1x32xf32>
    %304 = vector.shape_cast %303 : vector<1x8x1x32xf32> to vector<8x32xf32>
    %305 = vector.shape_cast %302 : vector<8x32xf32> to vector<1x8x1x32xf32>
    tpu.vector_store %arg6[%c0_216, %c0_217, %c29, %c0_218], %305 {strides = array<i32>} : memref<1x8x32x32xf32, #tpu.memory_space<vmem>>, vector<1x8x1x32xf32>,
    %c0_219 = arith.constant 0 : index
    %c0_220 = arith.constant 0 : index
    %c15_221 = arith.constant 15 : index
    %c0_222 = arith.constant 0 : index
    %306 = vector.load %arg2[%c0_219, %c0_220, %c15_221, %c0_222] : memref<1x4x16x16xf32, #tpu.memory_space<vmem>>, vector<1x4x1x16xf32>
    %307 = vector.shape_cast %306 : vector<1x4x1x16xf32> to vector<4x16xf32>
    %cst_223 = arith.constant dense<0.000000e+00> : vector<32x16xf32>
    %308 = tpu.matmul %0, %307, %cst_223 {dimension_numbers = #tpu.dot_dimension_numbers<[1], [0], [0], [1], [0, 0, 1, 1], [], []>} : vector<32x4xf32>, vector<4x16xf32>, vector<32x16xf32> -> vector<32x16xf32>
    %309 = vector.extract_strided_slice %308 {offsets = [0, 0], sizes = [16, 16], strides = [1, 1]} : vector<32x16xf32> to vector<16x16xf32>
    %cst_224 = arith.constant dense<0.000000e+00> : vector<16x32xf32>
    %310 = tpu.matmul %309, %2, %cst_224 {dimension_numbers = #tpu.dot_dimension_numbers<[1], [0], [0], [1], [0, 0, 1, 1], [], []>} : vector<16x16xf32>, vector<16x32xf32>, vector<16x32xf32> -> vector<16x32xf32>
    %311 = vector.extract_strided_slice %308 {offsets = [16, 0], sizes = [16, 16], strides = [1, 1]} : vector<32x16xf32> to vector<16x16xf32>
    %cst_225 = arith.constant dense<0.000000e+00> : vector<16x32xf32>
    %312 = tpu.matmul %311, %4, %cst_225 {dimension_numbers = #tpu.dot_dimension_numbers<[1], [0], [0], [1], [0, 0, 1, 1], [], []>} : vector<16x16xf32>, vector<16x32xf32>, vector<16x32xf32> -> vector<16x32xf32>
    %313 = arith.addf %310, %312 : vector<16x32xf32>
    %314 = vector.broadcast %5 : vector<16x1xf32> to vector<16x32xf32>
    %315 = arith.addf %313, %314 : vector<16x32xf32>
    %cst_226 = arith.constant 0.000000e+00 : f32
    %316 = vector.broadcast %cst_226 : f32 to vector<16x32xf32>
    %317 = arith.maximumf %315, %316 : vector<16x32xf32>
    %318 = vector.extract_strided_slice %317 {offsets = [0, 0], sizes = [8, 32], strides = [1, 1]} : vector<16x32xf32> to vector<8x32xf32>
    %c0_227 = arith.constant 0 : index
    %c0_228 = arith.constant 0 : index
    %c30 = arith.constant 30 : index
    %c0_229 = arith.constant 0 : index
    %319 = vector.load %arg6[%c0_227, %c0_228, %c30, %c0_229] : memref<1x8x32x32xf32, #tpu.memory_space<vmem>>, vector<1x8x1x32xf32>
    %320 = vector.shape_cast %319 : vector<1x8x1x32xf32> to vector<8x32xf32>
    %321 = vector.shape_cast %318 : vector<8x32xf32> to vector<1x8x1x32xf32>
    tpu.vector_store %arg6[%c0_227, %c0_228, %c30, %c0_229], %321 {strides = array<i32>} : memref<1x8x32x32xf32, #tpu.memory_space<vmem>>, vector<1x8x1x32xf32>,
    %322 = vector.extract_strided_slice %317 {offsets = [8, 0], sizes = [8, 32], strides = [1, 1]} : vector<16x32xf32> to vector<8x32xf32>
    %c0_230 = arith.constant 0 : index
    %c0_231 = arith.constant 0 : index
    %c31 = arith.constant 31 : index
    %c0_232 = arith.constant 0 : index
    %323 = vector.load %arg6[%c0_230, %c0_231, %c31, %c0_232] : memref<1x8x32x32xf32, #tpu.memory_space<vmem>>, vector<1x8x1x32xf32>
    %324 = vector.shape_cast %323 : vector<1x8x1x32xf32> to vector<8x32xf32>
    %325 = vector.shape_cast %322 : vector<8x32xf32> to vector<1x8x1x32xf32>
    tpu.vector_store %arg6[%c0_230, %c0_231, %c31, %c0_232], %325 {strides = array<i32>} : memref<1x8x32x32xf32, #tpu.memory_space<vmem>>, vector<1x8x1x32xf32>,
    return
  }
  func.func @transform_0(%arg0: i32, %arg1: i32) -> (i32, i32, i32, i32) {
    %c0_i32 = arith.constant 0 : i32
    %c0_i32_0 = arith.constant 0 : i32
    %c0_i32_1 = arith.constant 0 : i32
    return %arg0, %c0_i32, %arg1, %c0_i32_0 : i32, i32, i32, i32
  }
  func.func @transform_1(%arg0: i32, %arg1: i32) -> (i32, i32) {
    %c0_i32 = arith.constant 0 : i32
    %c0_i32_0 = arith.constant 0 : i32
    %c0_i32_1 = arith.constant 0 : i32
    return %c0_i32, %c0_i32_0 : i32, i32
  }
  func.func @transform_2(%arg0: i32, %arg1: i32) -> (i32, i32, i32) {
    %c0_i32 = arith.constant 0 : i32
    %c0_i32_0 = arith.constant 0 : i32
    %c0_i32_1 = arith.constant 0 : i32
    %c0_i32_2 = arith.constant 0 : i32
    return %c0_i32, %c0_i32_0, %c0_i32_1 : i32, i32, i32
  }
  func.func @transform_3(%arg0: i32, %arg1: i32) -> (i32, i32) {
    %c0_i32 = arith.constant 0 : i32
    %c0_i32_0 = arith.constant 0 : i32
    %c0_i32_1 = arith.constant 0 : i32
    return %c0_i32, %c0_i32_0 : i32, i32
  }
  func.func @transform_4(%arg0: i32, %arg1: i32) -> (i32, i32, i32, i32) {
    %c0_i32 = arith.constant 0 : i32
    %c0_i32_0 = arith.constant 0 : i32
    %c0_i32_1 = arith.constant 0 : i32
    return %arg0, %c0_i32, %arg1, %c0_i32_0 : i32, i32, i32, i32
  }
}

</mosaic_0001>

<llo_original>
// kernel: tpu_custom_call.1
$region0: #{tpu_custom_call.1}
  #allocation0 [shape = 'u32[]', space=smem, size = 0x4, offset = 0x4, fixed_abs, tag = 'smem constant byte address 0x4 - core index']
  #allocation1 [shape = 'u32[144,128]{1,0:T(1,128)}', space=vmem, size = 0x12000, scoped, tag = 'internal scratch']
  %s0 = inlined_call_operand.hbm [shape: f32[2,4,16,16], index: 0, kind: input, shape index: {}]
  %s1 = inlined_call_operand.vmem [shape: f32[32,4], index: 1, kind: input, shape index: {}]
  %s2 = inlined_call_operand.vmem [shape: f32[2,16,32], index: 2, kind: input, shape index: {}]
  %s3 = inlined_call_operand.vmem [shape: f32[16,1], index: 3, kind: input, shape index: {}]
  %s4 = inlined_call_operand.hbm [shape: f32[2,8,32,32], index: 4, kind: output, shape index: {}]
  %s5 = sld [smem:[#allocation0]]
  $region53: #{tpu_custom_call.1} parent=0
    _
  %s7 = ssub.s32 1, %s5
  %s8 = scalar_select 0, %s7, %s5
  $region1: #{tpu_custom_call.1} parent=0
    #allocation2 [shape = 'u8[65536]{0}', space=vmem, size = 0x10000, scoped, tag = 'input window, operand 0']
    #allocation3 [shape = 's32[2]{0}', space=sflag, size = 0x8, scoped, tag = 'scoped memory for tpu_custom_call.1']
    #allocation4 [shape = 's32[2]{0}', space=sflag, size = 0x8, scoped, tag = 'scoped memory for tpu_custom_call.1']
    #allocation5 [shape = 'u8[262144]{0}', space=vmem, size = 0x40000, scoped, tag = 'output window, operand 0']
    %9 = vsyncpa [#allocation3], 0
    %s10 = scalar_lea.sflag [#allocation3], 1
    %11 = vsyncpa %s10, 0
    %12 = vsyncpa [#allocation4], 0
    %s13 = scalar_lea.sflag [#allocation4], 1
    %14 = vsyncpa %s13, 0
    loop: start=0, step=1, limit=4
    $region2: #{tpu_custom_call.1} parent=1 // loop_pre_header
      _
    $region3: #{tpu_custom_call.1} parent=1 // loop_header
      %s16 = sphi 0, %s20
      %p17 = scmp.ge.s32.totalorder %s16, 4
      %s23 = sphi 0, %s35
      %s24 = sphi 0, %s31
      %s25 = sphi 0, %s23
      %s26 = sphi 0, %s24
      %s27 = sphi 0, %s25
      %s28 = sphi 0, %s26
      %s40 = sphi 0, %s42
      %s43 = sphi 0, %s40
      %s44 = sphi 0, %s43
      %s60 = sphi 0, %s44
      %s64 = sphi 0, %s64
      %s66 = sphi 0, %s64
      %s67 = sphi 0, %s66
      %s81 = sphi 0, %s67
      %s85 = sphi 0, %s85
      %s87 = sphi 0, %s85
      %s88 = sphi 0, %s87
      %s102 = sphi 0, %s88
      %s106 = sphi 0, %s106
      %s108 = sphi 0, %s106
      %s109 = sphi 0, %s108
      %s123 = sphi 0, %s109
      %s131 = sphi 0, %s133
      %s134 = sphi 0, %s131
      %s135 = sphi 0, %s134
      %s151 = sphi 0, %s135
    $region4: #{tpu_custom_call.1} parent=1 // loop_header_branch
      %19 = sbr.rel (%p17) target = $region8
    $region5: #{tpu_custom_call.1} parent=1 // loop_body
      %s21 = ssub.s32 %s16, 1
      %s22 = ssub.s32 %s16, 2
      %s29 = sadd.s32 1, %s24
      %p30 = scmp.ge.s32.totalorder %s29, 1
      %s31 = scalar_select %p30, 0, %s29
      %s32 = sadd.s32 1, %s23
      %s33 = scalar_select %p30, %s32, %s23
      %p34 = scmp.ge.s32.totalorder %s33, 2
      %s35 = scalar_select %p34, 0, %s33
      %s36 = ssub.s32 %s23, %s35
      %s37 = ssub.s32 %s24, %s31
      %s38 = sor.u32 %s36, %s37
      %p39 = scmp.eq.s32.totalorder %s38, 0
      %s41 = sadd.s32 %s40, 1
      %s42 = scalar_select %p39, %s40, %s41
      %p45 = pneg %p39
      %p46 = scmp.eq.s32.totalorder %s16, 1
      %p47 = por %p45, %p46
      %p48 = scmp.ne.s32.totalorder %s40, %s43
      %p49 = scmp.eq.s32.totalorder %s16, 0
      %p50 = por %p48, %p49
      %p51 = scmp.ne.s32.totalorder %s40, %s43
      %p52 = scmp.eq.s32.totalorder %s21, 1
      %p53 = por %p51, %p52
      %p54 = scmp.ne.s32.totalorder %s43, %s44
      %p55 = scmp.eq.s32.totalorder %s21, 0
      %p56 = por %p54, %p55
      %p57 = scmp.ne.s32.totalorder %s43, %s44
      %p58 = scmp.eq.s32.totalorder %s22, 1
      %p59 = por %p57, %p58
      %p61 = scmp.ne.s32.totalorder %s44, %s60
      %p62 = scmp.eq.s32.totalorder %s22, 0
      %p63 = por %p61, %p62
      %s65 = sadd.s32 %s64, 1
      %p68 = scmp.eq.s32.totalorder %s16, 1
      %p69 = scmp.ne.s32.totalorder %s64, %s66
      %p70 = scmp.eq.s32.totalorder %s16, 0
      %p71 = por %p69, %p70
      %p72 = scmp.ne.s32.totalorder %s64, %s66
      %p73 = scmp.eq.s32.totalorder %s21, 1
      %p74 = por %p72, %p73
      %p75 = scmp.ne.s32.totalorder %s66, %s67
      %p76 = scmp.eq.s32.totalorder %s21, 0
      %p77 = por %p75, %p76
      %p78 = scmp.ne.s32.totalorder %s66, %s67
      %p79 = scmp.eq.s32.totalorder %s22, 1
      %p80 = por %p78, %p79
      %p82 = scmp.ne.s32.totalorder %s67, %s81
      %p83 = scmp.eq.s32.totalorder %s22, 0
      %p84 = por %p82, %p83
      %s86 = sadd.s32 %s85, 1
      %p89 = scmp.eq.s32.totalorder %s16, 1
      %p90 = scmp.ne.s32.totalorder %s85, %s87
      %p91 = scmp.eq.s32.totalorder %s16, 0
      %p92 = por %p90, %p91
      %p93 = scmp.ne.s32.totalorder %s85, %s87
      %p94 = scmp.eq.s32.totalorder %s21, 1
      %p95 = por %p93, %p94
      %p96 = scmp.ne.s32.totalorder %s87, %s88
      %p97 = scmp.eq.s32.totalorder %s21, 0
      %p98 = por %p96, %p97
      %p99 = scmp.ne.s32.totalorder %s87, %s88
      %p100 = scmp.eq.s32.totalorder %s22, 1
      %p101 = por %p99, %p100
      %p103 = scmp.ne.s32.totalorder %s88, %s102
      %p104 = scmp.eq.s32.totalorder %s22, 0
      %p105 = por %p103, %p104
      %s107 = sadd.s32 %s106, 1
      %p110 = scmp.eq.s32.totalorder %s16, 1
      %p111 = scmp.ne.s32.totalorder %s106, %s108
      %p112 = scmp.eq.s32.totalorder %s16, 0
      %p113 = por %p111, %p112
      %p114 = scmp.ne.s32.totalorder %s106, %s108
      %p115 = scmp.eq.s32.totalorder %s21, 1
      %p116 = por %p114, %p115
      %p117 = scmp.ne.s32.totalorder %s108, %s109
      %p118 = scmp.eq.s32.totalorder %s21, 0
      %p119 = por %p117, %p118
      %p120 = scmp.ne.s32.totalorder %s108, %s109
      %p121 = scmp.eq.s32.totalorder %s22, 1
      %p122 = por %p120, %p121
      %p124 = scmp.ne.s32.totalorder %s109, %s123
      %p125 = scmp.eq.s32.totalorder %s22, 0
      %p126 = por %p124, %p125
      %s127 = ssub.s32 %s23, %s35
      %s128 = ssub.s32 %s24, %s31
      %s129 = sor.u32 %s127, %s128
      %p130 = scmp.eq.s32.totalorder %s129, 0
      %s132 = sadd.s32 %s131, 1
      %s133 = scalar_select %p130, %s131, %s132
      %p136 = pneg %p130
      %p137 = scmp.eq.s32.totalorder %s16, 1
      %p138 = por %p136, %p137
      %p139 = scmp.ne.s32.totalorder %s131, %s134
      %p140 = scmp.eq.s32.totalorder %s16, 0
      %p141 = por %p139, %p140
      %p142 = scmp.ne.s32.totalorder %s131, %s134
      %p143 = scmp.eq.s32.totalorder %s21, 1
      %p144 = por %p142, %p143
      %p145 = scmp.ne.s32.totalorder %s134, %s135
      %p146 = scmp.eq.s32.totalorder %s21, 0
      %p147 = por %p145, %p146
      %p148 = scmp.ne.s32.totalorder %s134, %s135
      %p149 = scmp.eq.s32.totalorder %s22, 1
      %p150 = por %p148, %p149
      %p152 = scmp.ne.s32.totalorder %s135, %s151
      %p153 = scmp.eq.s32.totalorder %s22, 0
      %p154 = por %p152, %p153
      %p155 = scmp.le.s32.totalorder 1, %s16
      %p156 = scmp.lt.s32.totalorder %s16, 3
      %p157 = pnand %p155, %p156
      %p158 = pneg %p157
      // Predicated region
      $region9: #{tpu_custom_call.1} parent=5 // pred_check
        _
      $region10: #{tpu_custom_call.1} parent=5 // pred_check_branch
        %160 = sbr.rel (%p157) target = $region12
      $region11: #{tpu_custom_call.1} parent=5 // pred_region
        %s161 = ssub.s32 %s16, 1
        // Predicated region
        $region13: #{tpu_custom_call.1} parent=11 // pred_check
          %p162 = pneg %p77
        $region14: #{tpu_custom_call.1} parent=11 // pred_check_branch
          %164 = sbr.rel (%p162) target = $region16
        $region15: #{tpu_custom_call.1} parent=11 // pred_region
          _
        $region16: #{tpu_custom_call.1} parent=11 // pred_fallthru
          _
        // Predicated region
        $region17: #{tpu_custom_call.1} parent=11 // pred_check
          %p165 = pneg %p98
        $region18: #{tpu_custom_call.1} parent=11 // pred_check_branch
          %167 = sbr.rel (%p165) target = $region20
        $region19: #{tpu_custom_call.1} parent=11 // pred_region
          _
        $region20: #{tpu_custom_call.1} parent=11 // pred_fallthru
          _
        // Predicated region
        $region21: #{tpu_custom_call.1} parent=11 // pred_check
          %p168 = pneg %p119
        $region22: #{tpu_custom_call.1} parent=11 // pred_check_branch
          %170 = sbr.rel (%p168) target = $region24
        $region23: #{tpu_custom_call.1} parent=11 // pred_region
          _
        $region24: #{tpu_custom_call.1} parent=11 // pred_fallthru
          _
      $region12: #{tpu_custom_call.1} parent=5 // pred_fallthru
        _
      %p171 = scmp.lt.s32.totalorder %s16, 2
      // Predicated region
      $region25: #{tpu_custom_call.1} parent=5 // pred_check
        %p172 = pneg %p171
      $region26: #{tpu_custom_call.1} parent=5 // pred_check_branch
        %174 = sbr.rel (%p172) target = $region28
      $region27: #{tpu_custom_call.1} parent=5 // pred_region
        // Predicated region
        $region29: #{tpu_custom_call.1} parent=27 // pred_check
          %p175 = pneg %p50
        $region30: #{tpu_custom_call.1} parent=27 // pred_check_branch
          %177 = sbr.rel (%p175) target = $region32
        $region31: #{tpu_custom_call.1} parent=27 // pred_region
          %s178 = sand.u32 %s40, 1
          %s179 = scalar_lea.sflag [#allocation3], %s178
          %s180 = sand.u32 %s40, 1
          %s181 = smul.addr %s180, 64
          %s182 = scalar_lea.vmem [#allocation2], %s181
          %s183 = smul.u32 2, %s24
          %s185 = ssub.s32 1024, 1024
          %186 = vsyncadd %s179, %s185
          %s187 = smul.addr %s23, 8
          %s188 = sadd.s32 %s183, %s187
          %s189 = smul.addr %s188, 128
          %s190 = scalar_lea.hbm %s0, %s189
          %s191 = sshll.u32 %s182, 4
          %s192 = int_to_ptr.vmem [resolvable:$true] %s191
          %197 = dma.hbm_to_vmem [thread:$0]  %s190, 1024, %s192, %s179, 128, 128, 8
        $region32: #{tpu_custom_call.1} parent=27 // pred_fallthru
          _
      $region28: #{tpu_custom_call.1} parent=5 // pred_fallthru
        _
      %p198 = scmp.le.s32.totalorder 1, %s16
      %p199 = scmp.lt.s32.totalorder %s16, 3
      %p200 = pnand %p198, %p199
      %p201 = pneg %p200
      // Predicated region
      $region33: #{tpu_custom_call.1} parent=5 // pred_check
        _
      $region34: #{tpu_custom_call.1} parent=5 // pred_check_branch
        %203 = sbr.rel (%p200) target = $region36
      $region35: #{tpu_custom_call.1} parent=5 // pred_region
        %s204 = ssub.s32 %s16, 1
        %s205 = sand.u32 %s43, 1
        %s206 = scalar_lea.sflag [#allocation3], %s205
        %s207 = sand.u32 %s43, 1
        %s208 = smul.addr %s207, 64
        %s209 = scalar_lea.vmem [#allocation2], %s208
        // Predicated region
        $region37: #{tpu_custom_call.1} parent=35 // pred_check
          %p210 = pneg %p56
        $region38: #{tpu_custom_call.1} parent=35 // pred_check_branch
          %212 = sbr.rel (%p210) target = $region40
        $region39: #{tpu_custom_call.1} parent=35 // pred_region
          %213 = dma.done %s206, 1024
        $region40: #{tpu_custom_call.1} parent=35 // pred_fallthru
          _
        %s214 = sand.u32 %s43, 1
        %s215 = scalar_lea.sflag [#allocation3], %s214
        %s216 = sand.u32 %s43, 1
        %s217 = smul.addr %s216, 64
        %s218 = scalar_lea.vmem [#allocation2], %s217
        %p219 = pneg %p56
        %p220 = pneg %p53
        %p221 = pneg %p77
        %p222 = pneg %p74
        %p223 = pneg %p98
        %p224 = pneg %p95
        %p225 = pneg %p119
        %p226 = pneg %p116
        %p227 = pneg %p147
        %p228 = pneg %p144
        %s229 = sand.u32 %s134, 1
        %s230 = scalar_lea.sflag [#allocation4], %s229
        %s231 = sand.u32 %s134, 1
        %s232 = smul.addr %s231, 256
        %s233 = scalar_lea.vmem [#allocation5], %s232
        %s234 = smul.u32 2, %s26
        %s235 = smul.u32 4, %s26
        %v236 = vld [vmem:[%s1] sm:$0xff]
        %v237 = vld [vmem:[%s1 + $0x8] sm:$0xff]
        %v238 = vld [vmem:[%s1 + $0x10] sm:$0xff]
        %v239 = vld [vmem:[%s1 + $0x18] sm:$0xff]
        %v240 = vld [vmem:[%s2] sm:$0xff]
        %v241 = vld [vmem:[%s2 + $0x8] sm:$0xff]
        %s242 = scalar_lea.vmem %s2, 16
        %v243 = vld [vmem:[%s242] sm:$0xff]
        %v244 = vld [vmem:[%s242 + $0x8] sm:$0xff]
        %v245 = vld [vmem:[%s3] sm:$0xff]
        %v246 = vld [vmem:[%s3 + $0x8] sm:$0xff]
        %v247 = vld [vmem:[%s209] sm:$0x1]
        %v248 = vld [vmem:[%s209 + $0x10] sm:$0x1]
        %v249 = vld [vmem:[%s209 + $0x20] sm:$0x1]
        %v250 = vld [vmem:[%s209 + $0x30] sm:$0x1]
        %v255 = vrot.slane %v248, 7
        %vm256 = vcmask 1041409
        %v257 = vsel %vm256, %v255, %v247
        %v258 = vrot.slane %v249, 6
        %vm259 = vcmask 1042434
        %v260 = vsel %vm259, %v258, %v257
        %v261 = vrot.slane %v250, 5
        %vm262 = vcmask 1043459
        %v263 = vsel %vm262, %v261, %v260
        %vm264 = vcmask 31744
        %v266 = vsel %vm264, %v236, 0
        %v269 = vsel %vm264, %v237, 0
        %v272 = vsel %vm264, %v238, 0
        %v275 = vsel %vm264, %v239, 0
        %vm277 = vcmask 1043456
        %v278 = vsel %vm277, %v263, 0
        %280 = vmatprep.subr.mxu0 0.0
        %281 = vmatpush1.msra.mxu0 %v278
        %282 = vmatprep.subr.mxu0 0.0
        %283 = vmatpush1.msra.mxu0 0.0
        %284 = vmatprep.subr.mxu0 0.0
        %285 = vmatpush1.msra.mxu0 0.0
        %286 = vmatprep.subr.mxu0 0.0
        %287 = vmatpush1.msra.mxu0 0.0
        %288 = vmatprep.subr.mxu0 0.0
        %289 = vmatpush1.msra.mxu0 0.0
        %290 = vmatprep.subr.mxu0 0.0
        %291 = vmatpush1.msra.mxu0 0.0
        %292 = vmatprep.subr.mxu0 0.0
        %293 = vmatpush1.msra.mxu0 0.0
        %294 = vmatprep.subr.mxu0 0.0
        %295 = vmatpush1.msra.mxu0 0.0
        %296 = vmatprep.subr.mxu0 0.0
        %297 = vmatpush1.msra.mxu0 0.0
        %298 = vmatprep.subr.mxu0 0.0
        %299 = vmatpush1.msra.mxu0 0.0
        %300 = vmatprep.subr.mxu0 0.0
        %301 = vmatpush1.msra.mxu0 0.0
        %302 = vmatprep.subr.mxu0 0.0
        %303 = vmatpush1.msra.mxu0 0.0
        %304 = vmatprep.subr.mxu0 0.0
        %305 = vmatpush1.msra.mxu0 0.0
        %306 = vmatprep.subr.mxu0 0.0
        %307 = vmatpush1.msra.mxu0 0.0
        %308 = vmatprep.subr.mxu0 0.0
        %309 = vmatpush1.msra.mxu0 0.0
        %310 = vmatprep.subr.mxu0 0.0
        %311 = vmatpush1.msra.mxu0 0.0
        %312 = vmatprep.subr.mxu0 0.0
        %313 = vmatpush1.msra.mxu0 0.0
        %314 = vmatprep.subr.mxu0 0.0
        %315 = vmatpush1.msra.mxu0 0.0
        %316 = vmatprep.subr.mxu0 0.0
        %317 = vmatpush1.msra.mxu0 0.0
        %318 = vmatprep.subr.mxu0 0.0
        %319 = vmatpush1.msra.mxu0 0.0
        %320 = vmatprep.subr.mxu0 0.0
        %321 = vmatpush1.msra.mxu0 0.0
        %322 = vmatprep.subr.mxu0 0.0
        %323 = vmatpush1.msra.mxu0 0.0
        %324 = vmatprep.subr.mxu0 0.0
        %325 = vmatpush1.msra.mxu0 0.0
        %326 = vmatprep.subr.mxu0 0.0
        %327 = vmatpush1.msra.mxu0 0.0
        %328 = vmatprep.subr.mxu0 0.0
        %329 = vmatpush1.msra.mxu0 0.0
        %330 = vmatprep.subr.mxu0 0.0
        %331 = vmatpush1.msra.mxu0 0.0
        %332 = vmatprep.subr.mxu0 0.0
        %333 = vmatpush1.msra.mxu0 0.0
        %334 = vmatprep.subr.mxu0 0.0
        %335 = vmatpush1.msra.mxu0 0.0
        %336 = vmatprep.subr.mxu0 0.0
        %337 = vmatpush1.msra.mxu0 0.0
        %338 = vmatprep.subr.mxu0 0.0
        %339 = vmatpush1.msra.mxu0 0.0
        %340 = vmatprep.subr.mxu0 0.0
        %341 = vmatpush1.msra.mxu0 0.0
        %342 = vmatprep.subr.mxu0 0.0
        %343 = vmatpush1.msra.mxu0 0.0
        %344 = vmatprep.mubr.f32.mxu0 0.0
        %345 = vmatmul.mubr.f32.gmra.mrb[0].mxu0 %v266
        %v346 = vpop.f32.mrb[0].mxu0
        %v347 = vadd.f32 0.0, %v346
        %v348 = vpop.f32.mrb[0].mxu0
        %349 = vmatprep.mubr.f32.mxu0 0.0
        %350 = vmatmul.mubr.f32.gmra.mrb[0].mxu0 %v269
        %v351 = vpop.f32.mrb[0].mxu0
        %v352 = vadd.f32 0.0, %v351
        %v353 = vpop.f32.mrb[0].mxu0
        %354 = vmatprep.mubr.f32.mxu0 0.0
        %355 = vmatmul.mubr.f32.gmra.mrb[0].mxu0 %v272
        %v356 = vpop.f32.mrb[0].mxu0
        %v357 = vadd.f32 0.0, %v356
        %v358 = vpop.f32.mrb[0].mxu0
        %359 = vmatprep.mubr.f32.mxu0 0.0
        %360 = vmatmul.mubr.f32.gmra.mrb[0].mxu0 %v275
        %v361 = vpop.f32.mrb[0].mxu0
        %v362 = vadd.f32 0.0, %v361
        %v363 = vpop.f32.mrb[0].mxu0
        %364 = vdwg.mxu0
        %vm365 = vcmask 130048
        %v367 = vsel %vm365, %v357, 0
        %v370 = vsel %vm365, %v362, 0
        %372 = vmatprep.subr.mxu0 0.0
        %373 = vmatpush1.msra.mxu0 %v243
        %374 = vmatprep.subr.mxu0 0.0
        %375 = vmatpush1.msra.mxu0 %v244
        %376 = vmatprep.subr.mxu0 0.0
        %377 = vmatpush1.msra.mxu0 0.0
        %378 = vmatprep.subr.mxu0 0.0
        %379 = vmatpush1.msra.mxu0 0.0
        %380 = vmatprep.subr.mxu0 0.0
        %381 = vmatpush1.msra.mxu0 0.0
        %382 = vmatprep.subr.mxu0 0.0
        %383 = vmatpush1.msra.mxu0 0.0
        %384 = vmatprep.subr.mxu0 0.0
        %385 = vmatpush1.msra.mxu0 0.0
        %386 = vmatprep.subr.mxu0 0.0
        %387 = vmatpush1.msra.mxu0 0.0
        %388 = vmatprep.subr.mxu0 0.0
        %389 = vmatpush1.msra.mxu0 0.0
        %390 = vmatprep.subr.mxu0 0.0
        %391 = vmatpush1.msra.mxu0 0.0
        %392 = vmatprep.subr.mxu0 0.0
        %393 = vmatpush1.msra.mxu0 0.0
        %394 = vmatprep.subr.mxu0 0.0
        %395 = vmatpush1.msra.mxu0 0.0
        %396 = vmatprep.subr.mxu0 0.0
        %397 = vmatpush1.msra.mxu0 0.0
        %398 = vmatprep.subr.mxu0 0.0
        %399 = vmatpush1.msra.mxu0 0.0
        %400 = vmatprep.subr.mxu0 0.0
        %401 = vmatpush1.msra.mxu0 0.0
        %402 = vmatprep.subr.mxu0 0.0
        %403 = vmatpush1.msra.mxu0 0.0
        %404 = vmatprep.subr.mxu0 0.0
        %405 = vmatpush1.msra.mxu0 0.0
        %406 = vmatprep.subr.mxu0 0.0
        %407 = vmatpush1.msra.mxu0 0.0
        %408 = vmatprep.subr.mxu0 0.0
        %409 = vmatpush1.msra.mxu0 0.0
        %410 = vmatprep.subr.mxu0 0.0
        %411 = vmatpush1.msra.mxu0 0.0
        %412 = vmatprep.subr.mxu0 0.0
        %413 = vmatpush1.msra.mxu0 0.0
        %414 = vmatprep.subr.mxu0 0.0
        %415 = vmatpush1.msra.mxu0 0.0
        %416 = vmatprep.subr.mxu0 0.0
        %417 = vmatpush1.msra.mxu0 0.0
        %418 = vmatprep.subr.mxu0 0.0
        %419 = vmatpush1.msra.mxu0 0.0
        %420 = vmatprep.subr.mxu0 0.0
        %421 = vmatpush1.msra.mxu0 0.0
        %422 = vmatprep.subr.mxu0 0.0
        %423 = vmatpush1.msra.mxu0 0.0
        %424 = vmatprep.subr.mxu0 0.0
        %425 = vmatpush1.msra.mxu0 0.0
        %426 = vmatprep.subr.mxu0 0.0
        %427 = vmatpush1.msra.mxu0 0.0
        %428 = vmatprep.subr.mxu0 0.0
        %429 = vmatpush1.msra.mxu0 0.0
        %430 = vmatprep.subr.mxu0 0.0
        %431 = vmatpush1.msra.mxu0 0.0
        %432 = vmatprep.subr.mxu0 0.0
        %433 = vmatpush1.msra.mxu0 0.0
        %434 = vmatprep.subr.mxu0 0.0
        %435 = vmatpush1.msra.mxu0 0.0
        %436 = vmatprep.mubr.f32.mxu0 0.0
        %437 = vmatmul.mubr.f32.gmra.mrb[0].mxu0 %v367
        %v438 = vpop.f32.mrb[0].mxu0
        %v439 = vadd.f32 0.0, %v438
        %v440 = vpop.f32.mrb[0].mxu0
        %441 = vmatprep.mubr.f32.mxu0 0.0
        %442 = vmatmul.mubr.f32.gmra.mrb[0].mxu0 %v370
        %v443 = vpop.f32.mrb[0].mxu0
        %v444 = vadd.f32 0.0, %v443
        %v445 = vpop.f32.mrb[0].mxu0
        %446 = vdwg.mxu0
        %v448 = vsel %vm365, %v347, 0
        %v451 = vsel %vm365, %v352, 0
        %453 = vmatprep.subr.mxu0 0.0
        %454 = vmatpush1.msra.mxu0 %v240
        %455 = vmatprep.subr.mxu0 0.0
        %456 = vmatpush1.msra.mxu0 %v241
        %457 = vmatprep.subr.mxu0 0.0
        %458 = vmatpush1.msra.mxu0 0.0
        %459 = vmatprep.subr.mxu0 0.0
        %460 = vmatpush1.msra.mxu0 0.0
        %461 = vmatprep.subr.mxu0 0.0
        %462 = vmatpush1.msra.mxu0 0.0
        %463 = vmatprep.subr.mxu0 0.0
        %464 = vmatpush1.msra.mxu0 0.0
        %465 = vmatprep.subr.mxu0 0.0
        %466 = vmatpush1.msra.mxu0 0.0
        %467 = vmatprep.subr.mxu0 0.0
        %468 = vmatpush1.msra.mxu0 0.0
        %469 = vmatprep.subr.mxu0 0.0
        %470 = vmatpush1.msra.mxu0 0.0
        %471 = vmatprep.subr.mxu0 0.0
        %472 = vmatpush1.msra.mxu0 0.0
        %473 = vmatprep.subr.mxu0 0.0
        %474 = vmatpush1.msra.mxu0 0.0
        %475 = vmatprep.subr.mxu0 0.0
        %476 = vmatpush1.msra.mxu0 0.0
        %477 = vmatprep.subr.mxu0 0.0
        %478 = vmatpush1.msra.mxu0 0.0
        %479 = vmatprep.subr.mxu0 0.0
        %480 = vmatpush1.msra.mxu0 0.0
        %481 = vmatprep.subr.mxu0 0.0
        %482 = vmatpush1.msra.mxu0 0.0
        %483 = vmatprep.subr.mxu0 0.0
        %484 = vmatpush1.msra.mxu0 0.0
        %485 = vmatprep.subr.mxu0 0.0
        %486 = vmatpush1.msra.mxu0 0.0
        %487 = vmatprep.subr.mxu0 0.0
        %488 = vmatpush1.msra.mxu0 0.0
        %489 = vmatprep.subr.mxu0 0.0
        %490 = vmatpush1.msra.mxu0 0.0
        %491 = vmatprep.subr.mxu0 0.0
        %492 = vmatpush1.msra.mxu0 0.0
        %493 = vmatprep.subr.mxu0 0.0
        %494 = vmatpush1.msra.mxu0 0.0
        %495 = vmatprep.subr.mxu0 0.0
        %496 = vmatpush1.msra.mxu0 0.0
        %497 = vmatprep.subr.mxu0 0.0
        %498 = vmatpush1.msra.mxu0 0.0
        %499 = vmatprep.subr.mxu0 0.0
        %500 = vmatpush1.msra.mxu0 0.0
        %501 = vmatprep.subr.mxu0 0.0
        %502 = vmatpush1.msra.mxu0 0.0
        %503 = vmatprep.subr.mxu0 0.0
        %504 = vmatpush1.msra.mxu0 0.0
        %505 = vmatprep.subr.mxu0 0.0
        %506 = vmatpush1.msra.mxu0 0.0
        %507 = vmatprep.subr.mxu0 0.0
        %508 = vmatpush1.msra.mxu0 0.0
        %509 = vmatprep.subr.mxu0 0.0
        %510 = vmatpush1.msra.mxu0 0.0
        %511 = vmatprep.subr.mxu0 0.0
        %512 = vmatpush1.msra.mxu0 0.0
        %513 = vmatprep.subr.mxu0 0.0
        %514 = vmatpush1.msra.mxu0 0.0
        %515 = vmatprep.subr.mxu0 0.0
        %516 = vmatpush1.msra.mxu0 0.0
        %517 = vmatprep.mubr.f32.mxu0 0.0
        %518 = vmatmul.mubr.f32.gmra.mrb[0].mxu0 %v448
        %v519 = vpop.f32.mrb[0].mxu0
        %v520 = vadd.f32 %v439, %v519
        %v521 = vpop.f32.mrb[0].mxu0
        %522 = vmatprep.mubr.f32.mxu0 0.0
        %523 = vmatmul.mubr.f32.gmra.mrb[0].mxu0 %v451
        %v524 = vpop.f32.mrb[0].mxu0
        %v525 = vadd.f32 %v444, %v524
        %v526 = vpop.f32.mrb[0].mxu0
        %527 = vdwg.mxu0
        %529 = vset.pattern.permute.xlu0 0
        %530 = vperm.xlu0 %529, %v245
        %v531 = vpop.permute.xlu0 %530
        %534 = vset.pattern.permute.xlu0 0
        %535 = vperm.xlu0 %534, %v246
        %v536 = vpop.permute.xlu0 %535
        %v538 = vadd.f32 %v520, %v531
        %v539 = vadd.f32 %v525, %v536
        %v540 = vmax.f32 %v538, 0.0
        %v541 = vmax.f32 %v539, 0.0
        %v543 = vcombine.high %v540, %v540
        %v545 = vunpack.c.l.s4 1966171168
        %v546 = vunpack.c.0.s8 %v545
        %v547 = vlaneseq
        %v548 = vshrl.u32 %v547, 7
        %v549 = vsub.s32 %v546, %v548
        %v550 = vrot.slane %v540, %v549
        %v552 = vunpack.c.l.s4 1966171168
        %v553 = vunpack.c.0.s8 %v552
        %v554 = vlaneseq
        %v555 = vshrl.u32 %v554, 7
        %v556 = vsub.s32 %v553, %v555
        %v557 = vrot.slane %v543, %v556
        %v558 = vcombine.high %v550, %v550
        %v559 = vcombine.high %v557, %v557
        %v561 = vunpack.c.l.s4 1966171168
        %v562 = vunpack.c.0.s8 %v561
        %v563 = vlaneseq
        %v564 = vshrl.u32 %v563, 7
        %v565 = vsub.s32 %v562, %v564
        %v566 = vrot.slane %v550, %v565
        %v568 = vunpack.c.l.s4 1966171168
        %v569 = vunpack.c.0.s8 %v568
        %v570 = vlaneseq
        %v571 = vshrl.u32 %v570, 7
        %v572 = vsub.s32 %v569, %v571
        %v573 = vrot.slane %v557, %v572
        %v575 = vunpack.c.l.s4 1966171168
        %v576 = vunpack.c.0.s8 %v575
        %v577 = vlaneseq
        %v578 = vshrl.u32 %v577, 7
        %v579 = vsub.s32 %v576, %v578
        %v580 = vrot.slane %v558, %v579
        %v582 = vunpack.c.l.s4 1966171168
        %v583 = vunpack.c.0.s8 %v582
        %v584 = vlaneseq
        %v585 = vshrl.u32 %v584, 7
        %v586 = vsub.s32 %v583, %v585
        %v587 = vrot.slane %v559, %v586
        %v588 = vcombine.high %v566, %v566
        %v589 = vcombine.high %v573, %v573
        %v590 = vcombine.high %v580, %v580
        %v591 = vcombine.high %v587, %v587
        %vm600 = vcmask 253952
        %601 = vst.msk [vmem:[%s233] sm:$0x1] %vm600, %v566
        %602 = vst.msk [vmem:[%s233 + $0x20] sm:$0x1] %vm600, %v580
        %603 = vst.msk [vmem:[%s233 + $0x40] sm:$0x1] %vm600, %v588
        %604 = vst.msk [vmem:[%s233 + $0x60] sm:$0x1] %vm600, %v590
        %605 = vst.msk [vmem:[%s233 + $0x80] sm:$0x1] %vm600, %v573
        %606 = vst.msk [vmem:[%s233 + $0xa0] sm:$0x1] %vm600, %v587
        %607 = vst.msk [vmem:[%s233 + $0xc0] sm:$0x1] %vm600, %v589
        %608 = vst.msk [vmem:[%s233 + $0xe0] sm:$0x1] %vm600, %v591
        %v610 = vcombine.high %v541, %v541
        %v612 = vunpack.c.l.s4 1966171168
        %v613 = vunpack.c.0.s8 %v612
        %v614 = vlaneseq
        %v615 = vshrl.u32 %v614, 7
        %v616 = vsub.s32 %v613, %v615
        %v617 = vrot.slane %v541, %v616
        %v619 = vunpack.c.l.s4 1966171168
        %v620 = vunpack.c.0.s8 %v619
        %v621 = vlaneseq
        %v622 = vshrl.u32 %v621, 7
        %v623 = vsub.s32 %v620, %v622
        %v624 = vrot.slane %v610, %v623
        %v625 = vcombine.high %v617, %v617
        %v626 = vcombine.high %v624, %v624
        %v628 = vunpack.c.l.s4 1966171168
        %v629 = vunpack.c.0.s8 %v628
        %v630 = vlaneseq
        %v631 = vshrl.u32 %v630, 7
        %v632 = vsub.s32 %v629, %v631
        %v633 = vrot.slane %v617, %v632
        %v635 = vunpack.c.l.s4 1966171168
        %v636 = vunpack.c.0.s8 %v635
        %v637 = vlaneseq
        %v638 = vshrl.u32 %v637, 7
        %v639 = vsub.s32 %v636, %v638
        %v640 = vrot.slane %v624, %v639
        %v642 = vunpack.c.l.s4 1966171168
        %v643 = vunpack.c.0.s8 %v642
        %v644 = vlaneseq
        %v645 = vshrl.u32 %v644, 7
        %v646 = vsub.s32 %v643, %v645
        %v647 = vrot.slane %v625, %v646
        %v649 = vunpack.c.l.s4 1966171168
        %v650 = vunpack.c.0.s8 %v649
        %v651 = vlaneseq
        %v652 = vshrl.u32 %v651, 7
        %v653 = vsub.s32 %v650, %v652
        %v654 = vrot.slane %v626, %v653
        %v655 = vcombine.high %v633, %v633
        %v656 = vcombine.high %v640, %v640
        %v657 = vcombine.high %v647, %v647
        %v658 = vcombine.high %v654, %v654
        %667 = vst.msk [vmem:[%s233 + $0x1] sm:$0x1] %vm600, %v633
        %668 = vst.msk [vmem:[%s233 + $0x21] sm:$0x1] %vm600, %v647
        %669 = vst.msk [vmem:[%s233 + $0x41] sm:$0x1] %vm600, %v655
        %670 = vst.msk [vmem:[%s233 + $0x61] sm:$0x1] %vm600, %v657
        %671 = vst.msk [vmem:[%s233 + $0x81] sm:$0x1] %vm600, %v640
        %672 = vst.msk [vmem:[%s233 + $0xa1] sm:$0x1] %vm600, %v654
        %673 = vst.msk [vmem:[%s233 + $0xc1] sm:$0x1] %vm600, %v656
        %674 = vst.msk [vmem:[%s233 + $0xe1] sm:$0x1] %vm600, %v658
        %v675 = vld [vmem:[%s209 + $0x1] sm:$0x1]
        %v676 = vld [vmem:[%s209 + $0x11] sm:$0x1]
        %v677 = vld [vmem:[%s209 + $0x21] sm:$0x1]
        %v678 = vld [vmem:[%s209 + $0x31] sm:$0x1]
        %v683 = vrot.slane %v676, 7
        %v684 = vsel %vm256, %v683, %v675
        %v685 = vrot.slane %v677, 6
        %v686 = vsel %vm259, %v685, %v684
        %v687 = vrot.slane %v678, 5
        %v688 = vsel %vm262, %v687, %v686
        %v689 = vsel %vm277, %v688, 0
        %691 = vmatprep.subr.mxu0 0.0
        %692 = vmatpush1.msra.mxu0 %v689
        %693 = vmatprep.subr.mxu0 0.0
        %694 = vmatpush1.msra.mxu0 0.0
        %695 = vmatprep.subr.mxu0 0.0
        %696 = vmatpush1.msra.mxu0 0.0
        %697 = vmatprep.subr.mxu0 0.0
        %698 = vmatpush1.msra.mxu0 0.0
        %699 = vmatprep.subr.mxu0 0.0
        %700 = vmatpush1.msra.mxu0 0.0
        %701 = vmatprep.subr.mxu0 0.0
        %702 = vmatpush1.msra.mxu0 0.0
        %703 = vmatprep.subr.mxu0 0.0
        %704 = vmatpush1.msra.mxu0 0.0
        %705 = vmatprep.subr.mxu0 0.0
        %706 = vmatpush1.msra.mxu0 0.0
        %707 = vmatprep.subr.mxu0 0.0
        %708 = vmatpush1.msra.mxu0 0.0
        %709 = vmatprep.subr.mxu0 0.0
        %710 = vmatpush1.msra.mxu0 0.0
        %711 = vmatprep.subr.mxu0 0.0
        %712 = vmatpush1.msra.mxu0 0.0
        %713 = vmatprep.subr.mxu0 0.0
        %714 = vmatpush1.msra.mxu0 0.0
        %715 = vmatprep.subr.mxu0 0.0
        %716 = vmatpush1.msra.mxu0 0.0
        %717 = vmatprep.subr.mxu0 0.0
        %718 = vmatpush1.msra.mxu0 0.0
        %719 = vmatprep.subr.mxu0 0.0
        %720 = vmatpush1.msra.mxu0 0.0
        %721 = vmatprep.subr.mxu0 0.0
        %722 = vmatpush1.msra.mxu0 0.0
        %723 = vmatprep.subr.mxu0 0.0
        %724 = vmatpush1.msra.mxu0 0.0
        %725 = vmatprep.subr.mxu0 0.0
        %726 = vmatpush1.msra.mxu0 0.0
        %727 = vmatprep.subr.mxu0 0.0
        %728 = vmatpush1.msra.mxu0 0.0
        %729 = vmatprep.subr.mxu0 0.0
        %730 = vmatpush1.msra.mxu0 0.0
        %731 = vmatprep.subr.mxu0 0.0
        %732 = vmatpush1.msra.mxu0 0.0
        %733 = vmatprep.subr.mxu0 0.0
        %734 = vmatpush1.msra.mxu0 0.0
        %735 = vmatprep.subr.mxu0 0.0
        %736 = vmatpush1.msra.mxu0 0.0
        %737 = vmatprep.subr.mxu0 0.0
        %738 = vmatpush1.msra.mxu0 0.0
        %739 = vmatprep.subr.mxu0 0.0
        %740 = vmatpush1.msra.mxu0 0.0
        %741 = vmatprep.subr.mxu0 0.0
        %742 = vmatpush1.msra.mxu0 0.0
        %743 = vmatprep.subr.mxu0 0.0
        %744 = vmatpush1.msra.mxu0 0.0
        %745 = vmatprep.subr.mxu0 0.0
        %746 = vmatpush1.msra.mxu0 0.0
        %747 = vmatprep.subr.mxu0 0.0
        %748 = vmatpush1.msra.mxu0 0.0
        %749 = vmatprep.subr.mxu0 0.0
        %750 = vmatpush1.msra.mxu0 0.0
        %751 = vmatprep.subr.mxu0 0.0
        %752 = vmatpush1.msra.mxu0 0.0
        %753 = vmatprep.subr.mxu0 0.0
        %754 = vmatpush1.msra.mxu0 0.0
        %755 = vmatprep.mubr.f32.mxu0 0.0
        %756 = vmatmul.mubr.f32.gmra.mrb[0].mxu0 %v266
        %v757 = vpop.f32.mrb[0].mxu0
        %v758 = vadd.f32 0.0, %v757
        %v759 = vpop.f32.mrb[0].mxu0
        %760 = vmatprep.mubr.f32.mxu0 0.0
        %761 = vmatmul.mubr.f32.gmra.mrb[0].mxu0 %v269
        %v762 = vpop.f32.mrb[0].mxu0
        %v763 = vadd.f32 0.0, %v762
        %v764 = vpop.f32.mrb[0].mxu0
        %765 = vmatprep.mubr.f32.mxu0 0.0
        %766 = vmatmul.mubr.f32.gmra.mrb[0].mxu0 %v272
        %v767 = vpop.f32.mrb[0].mxu0
        %v768 = vadd.f32 0.0, %v767
        %v769 = vpop.f32.mrb[0].mxu0
        %770 = vmatprep.mubr.f32.mxu0 0.0
        %771 = vmatmul.mubr.f32.gmra.mrb[0].mxu0 %v275
        %v772 = vpop.f32.mrb[0].mxu0
        %v773 = vadd.f32 0.0, %v772
        %v774 = vpop.f32.mrb[0].mxu0
        %775 = vdwg.mxu0
        %v777 = vsel %vm365, %v768, 0
        %v780 = vsel %vm365, %v773, 0
        %782 = vmatprep.subr.mxu0 0.0
        %783 = vmatpush1.msra.mxu0 %v243
        %784 = vmatprep.subr.mxu0 0.0
        %785 = vmatpush1.msra.mxu0 %v244
        %786 = vmatprep.subr.mxu0 0.0
        %787 = vmatpush1.msra.mxu0 0.0
        %788 = vmatprep.subr.mxu0 0.0
        %789 = vmatpush1.msra.mxu0 0.0
        %790 = vmatprep.subr.mxu0 0.0
        %791 = vmatpush1.msra.mxu0 0.0
        %792 = vmatprep.subr.mxu0 0.0
        %793 = vmatpush1.msra.mxu0 0.0
        %794 = vmatprep.subr.mxu0 0.0
        %795 = vmatpush1.msra.mxu0 0.0
        %796 = vmatprep.subr.mxu0 0.0
        %797 = vmatpush1.msra.mxu0 0.0
        %798 = vmatprep.subr.mxu0 0.0
        %799 = vmatpush1.msra.mxu0 0.0
        %800 = vmatprep.subr.mxu0 0.0
        %801 = vmatpush1.msra.mxu0 0.0
        %802 = vmatprep.subr.mxu0 0.0
        %803 = vmatpush1.msra.mxu0 0.0
        %804 = vmatprep.subr.mxu0 0.0
        %805 = vmatpush1.msra.mxu0 0.0
        %806 = vmatprep.subr.mxu0 0.0
        %807 = vmatpush1.msra.mxu0 0.0
        %808 = vmatprep.subr.mxu0 0.0
        %809 = vmatpush1.msra.mxu0 0.0
        %810 = vmatprep.subr.mxu0 0.0
        %811 = vmatpush1.msra.mxu0 0.0
        %812 = vmatprep.subr.mxu0 0.0
        %813 = vmatpush1.msra.mxu0 0.0
        %814 = vmatprep.subr.mxu0 0.0
        %815 = vmatpush1.msra.mxu0 0.0
        %816 = vmatprep.subr.mxu0 0.0
        %817 = vmatpush1.msra.mxu0 0.0
        %818 = vmatprep.subr.mxu0 0.0
        %819 = vmatpush1.msra.mxu0 0.0
        %820 = vmatprep.subr.mxu0 0.0
        %821 = vmatpush1.msra.mxu0 0.0
        %822 = vmatprep.subr.mxu0 0.0
        %823 = vmatpush1.msra.mxu0 0.0
        %824 = vmatprep.subr.mxu0 0.0
        %825 = vmatpush1.msra.mxu0 0.0
        %826 = vmatprep.subr.mxu0 0.0
        %827 = vmatpush1.msra.mxu0 0.0
        %828 = vmatprep.subr.mxu0 0.0
        %829 = vmatpush1.msra.mxu0 0.0
        %830 = vmatprep.subr.mxu0 0.0
        %831 = vmatpush1.msra.mxu0 0.0
        %832 = vmatprep.subr.mxu0 0.0
        %833 = vmatpush1.msra.mxu0 0.0
        %834 = vmatprep.subr.mxu0 0.0
        %835 = vmatpush1.msra.mxu0 0.0
        %836 = vmatprep.subr.mxu0 0.0
        %837 = vmatpush1.msra.mxu0 0.0
        %838 = vmatprep.subr.mxu0 0.0
        %839 = vmatpush1.msra.mxu0 0.0
        %840 = vmatprep.subr.mxu0 0.0
        %841 = vmatpush1.msra.mxu0 0.0
        %842 = vmatprep.subr.mxu0 0.0
        %843 = vmatpush1.msra.mxu0 0.0
        %844 = vmatprep.subr.mxu0 0.0
        %845 = vmatpush1.msra.mxu0 0.0
        %846 = vmatprep.mubr.f32.mxu0 0.0
        %847 = vmatmul.mubr.f32.gmra.mrb[0].mxu0 %v777
        %v848 = vpop.f32.mrb[0].mxu0
        %v849 = vadd.f32 0.0, %v848
        %v850 = vpop.f32.mrb[0].mxu0
        %851 = vmatprep.mubr.f32.mxu0 0.0
        %852 = vmatmul.mubr.f32.gmra.mrb[0].mxu0 %v780
        %v853 = vpop.f32.mrb[0].mxu0
        %v854 = vadd.f32 0.0, %v853
        %v855 = vpop.f32.mrb[0].mxu0
        %856 = vdwg.mxu0
        %v858 = vsel %vm365, %v758, 0
        %v861 = vsel %vm365, %v763, 0
        %863 = vmatprep.subr.mxu0 0.0
        %864 = vmatpush1.msra.mxu0 %v240
        %865 = vmatprep.subr.mxu0 0.0
        %866 = vmatpush1.msra.mxu0 %v241
        %867 = vmatprep.subr.mxu0 0.0
        %868 = vmatpush1.msra.mxu0 0.0
        %869 = vmatprep.subr.mxu0 0.0
        %870 = vmatpush1.msra.mxu0 0.0
        %871 = vmatprep.subr.mxu0 0.0
        %872 = vmatpush1.msra.mxu0 0.0
        %873 = vmatprep.subr.mxu0 0.0
        %874 = vmatpush1.msra.mxu0 0.0
        %875 = vmatprep.subr.mxu0 0.0
        %876 = vmatpush1.msra.mxu0 0.0
        %877 = vmatprep.subr.mxu0 0.0
        %878 = vmatpush1.msra.mxu0 0.0
        %879 = vmatprep.subr.mxu0 0.0
        %880 = vmatpush1.msra.mxu0 0.0
        %881 = vmatprep.subr.mxu0 0.0
        %882 = vmatpush1.msra.mxu0 0.0
        %883 = vmatprep.subr.mxu0 0.0
        %884 = vmatpush1.msra.mxu0 0.0
        %885 = vmatprep.subr.mxu0 0.0
        %886 = vmatpush1.msra.mxu0 0.0
        %887 = vmatprep.subr.mxu0 0.0
        %888 = vmatpush1.msra.mxu0 0.0
        %889 = vmatprep.subr.mxu0 0.0
        %890 = vmatpush1.msra.mxu0 0.0
        %891 = vmatprep.subr.mxu0 0.0
        %892 = vmatpush1.msra.mxu0 0.0
        %893 = vmatprep.subr.mxu0 0.0
        %894 = vmatpush1.msra.mxu0 0.0
        %895 = vmatprep.subr.mxu0 0.0
        %896 = vmatpush1.msra.mxu0 0.0
        %897 = vmatprep.subr.mxu0 0.0
        %898 = vmatpush1.msra.mxu0 0.0
        %899 = vmatprep.subr.mxu0 0.0
        %900 = vmatpush1.msra.mxu0 0.0
        %901 = vmatprep.subr.mxu0 0.0
        %902 = vmatpush1.msra.mxu0 0.0
        %903 = vmatprep.subr.mxu0 0.0
        %904 = vmatpush1.msra.mxu0 0.0
        %905 = vmatprep.subr.mxu0 0.0
        %906 = vmatpush1.msra.mxu0 0.0
        %907 = vmatprep.subr.mxu0 0.0
        %908 = vmatpush1.msra.mxu0 0.0
        %909 = vmatprep.subr.mxu0 0.0
        %910 = vmatpush1.msra.mxu0 0.0
        %911 = vmatprep.subr.mxu0 0.0
        %912 = vmatpush1.msra.mxu0 0.0
        %913 = vmatprep.subr.mxu0 0.0
        %914 = vmatpush1.msra.mxu0 0.0
        %915 = vmatprep.subr.mxu0 0.0
        %916 = vmatpush1.msra.mxu0 0.0
        %917 = vmatprep.subr.mxu0 0.0
        %918 = vmatpush1.msra.mxu0 0.0
        %919 = vmatprep.subr.mxu0 0.0
        %920 = vmatpush1.msra.mxu0 0.0
        %921 = vmatprep.subr.mxu0 0.0
        %922 = vmatpush1.msra.mxu0 0.0
        %923 = vmatprep.subr.mxu0 0.0
        %924 = vmatpush1.msra.mxu0 0.0
        %925 = vmatprep.subr.mxu0 0.0
        %926 = vmatpush1.msra.mxu0 0.0
        %927 = vmatprep.mubr.f32.mxu0 0.0
        %928 = vmatmul.mubr.f32.gmra.mrb[0].mxu0 %v858
        %v929 = vpop.f32.mrb[0].mxu0
        %v930 = vadd.f32 %v849, %v929
        %v931 = vpop.f32.mrb[0].mxu0
        %932 = vmatprep.mubr.f32.mxu0 0.0
        %933 = vmatmul.mubr.f32.gmra.mrb[0].mxu0 %v861
        %v934 = vpop.f32.mrb[0].mxu0
        %v935 = vadd.f32 %v854, %v934
        %v936 = vpop.f32.mrb[0].mxu0
        %937 = vdwg.mxu0
        %v938 = vadd.f32 %v930, %v531
        %v939 = vadd.f32 %v935, %v536
        %v940 = vmax.f32 %v938, 0.0
        %v941 = vmax.f32 %v939, 0.0
        %v943 = vcombine.high %v940, %v940
        %v945 = vunpack.c.l.s4 1966171168
        %v946 = vunpack.c.0.s8 %v945
        %v947 = vlaneseq
        %v948 = vshrl.u32 %v947, 7
        %v949 = vsub.s32 %v946, %v948
        %v950 = vrot.slane %v940, %v949
        %v952 = vunpack.c.l.s4 1966171168
        %v953 = vunpack.c.0.s8 %v952
        %v954 = vlaneseq
        %v955 = vshrl.u32 %v954, 7
        %v956 = vsub.s32 %v953, %v955
        %v957 = vrot.slane %v943, %v956
        %v958 = vcombine.high %v950, %v950
        %v959 = vcombine.high %v957, %v957
        %v961 = vunpack.c.l.s4 1966171168
        %v962 = vunpack.c.0.s8 %v961
        %v963 = vlaneseq
        %v964 = vshrl.u32 %v963, 7
        %v965 = vsub.s32 %v962, %v964
        %v966 = vrot.slane %v950, %v965
        %v968 = vunpack.c.l.s4 1966171168
        %v969 = vunpack.c.0.s8 %v968
        %v970 = vlaneseq
        %v971 = vshrl.u32 %v970, 7
        %v972 = vsub.s32 %v969, %v971
        %v973 = vrot.slane %v957, %v972
        %v975 = vunpack.c.l.s4 1966171168
        %v976 = vunpack.c.0.s8 %v975
        %v977 = vlaneseq
        %v978 = vshrl.u32 %v977, 7
        %v979 = vsub.s32 %v976, %v978
        %v980 = vrot.slane %v958, %v979
        %v982 = vunpack.c.l.s4 1966171168
        %v983 = vunpack.c.0.s8 %v982
        %v984 = vlaneseq
        %v985 = vshrl.u32 %v984, 7
        %v986 = vsub.s32 %v983, %v985
        %v987 = vrot.slane %v959, %v986
        %v988 = vcombine.high %v966, %v966
        %v989 = vcombine.high %v973, %v973
        %v990 = vcombine.high %v980, %v980
        %v991 = vcombine.high %v987, %v987
        %1000 = vst.msk [vmem:[%s233 + $0x2] sm:$0x1] %vm600, %v966
        %1001 = vst.msk [vmem:[%s233 + $0x22] sm:$0x1] %vm600, %v980
        %1002 = vst.msk [vmem:[%s233 + $0x42] sm:$0x1] %vm600, %v988
        %1003 = vst.msk [vmem:[%s233 + $0x62] sm:$0x1] %vm600, %v990
        %1004 = vst.msk [vmem:[%s233 + $0x82] sm:$0x1] %vm600, %v973
        %1005 = vst.msk [vmem:[%s233 + $0xa2] sm:$0x1] %vm600, %v987
        %1006 = vst.msk [vmem:[%s233 + $0xc2] sm:$0x1] %vm600, %v989
        %1007 = vst.msk [vmem:[%s233 + $0xe2] sm:$0x1] %vm600, %v991
        %v1009 = vcombine.high %v941, %v941
        %v1011 = vunpack.c.l.s4 1966171168
        %v1012 = vunpack.c.0.s8 %v1011
        %v1013 = vlaneseq
        %v1014 = vshrl.u32 %v1013, 7
        %v1015 = vsub.s32 %v1012, %v1014
        %v1016 = vrot.slane %v941, %v1015
        %v1018 = vunpack.c.l.s4 1966171168
        %v1019 = vunpack.c.0.s8 %v1018
        %v1020 = vlaneseq
        %v1021 = vshrl.u32 %v1020, 7
        %v1022 = vsub.s32 %v1019, %v1021
        %v1023 = vrot.slane %v1009, %v1022
        %v1024 = vcombine.high %v1016, %v1016
        %v1025 = vcombine.high %v1023, %v1023
        %v1027 = vunpack.c.l.s4 1966171168
        %v1028 = vunpack.c.0.s8 %v1027
        %v1029 = vlaneseq
        %v1030 = vshrl.u32 %v1029, 7
        %v1031 = vsub.s32 %v1028, %v1030
        %v1032 = vrot.slane %v1016, %v1031
        %v1034 = vunpack.c.l.s4 1966171168
        %v1035 = vunpack.c.0.s8 %v1034
        %v1036 = vlaneseq
        %v1037 = vshrl.u32 %v1036, 7
        %v1038 = vsub.s32 %v1035, %v1037
        %v1039 = vrot.slane %v1023, %v1038
        %v1041 = vunpack.c.l.s4 1966171168
        %v1042 = vunpack.c.0.s8 %v1041
        %v1043 = vlaneseq
        %v1044 = vshrl.u32 %v1043, 7
        %v1045 = vsub.s32 %v1042, %v1044
        %v1046 = vrot.slane %v1024, %v1045
        %v1048 = vunpack.c.l.s4 1966171168
        %v1049 = vunpack.c.0.s8 %v1048
        %v1050 = vlaneseq
        %v1051 = vshrl.u32 %v1050, 7
        %v1052 = vsub.s32 %v1049, %v1051
        %v1053 = vrot.slane %v1025, %v1052
        %v1054 = vcombine.high %v1032, %v1032
        %v1055 = vcombine.high %v1039, %v1039
        %v1056 = vcombine.high %v1046, %v1046
        %v1057 = vcombine.high %v1053, %v1053
        %1066 = vst.msk [vmem:[%s233 + $0x3] sm:$0x1] %vm600, %v1032
        %1067 = vst.msk [vmem:[%s233 + $0x23] sm:$0x1] %vm600, %v1046
        %1068 = vst.msk [vmem:[%s233 + $0x43] sm:$0x1] %vm600, %v1054
        %1069 = vst.msk [vmem:[%s233 + $0x63] sm:$0x1] %vm600, %v1056
        %1070 = vst.msk [vmem:[%s233 + $0x83] sm:$0x1] %vm600, %v1039
        %1071 = vst.msk [vmem:[%s233 + $0xa3] sm:$0x1] %vm600, %v1053
        %1072 = vst.msk [vmem:[%s233 + $0xc3] sm:$0x1] %vm600, %v1055
        %1073 = vst.msk [vmem:[%s233 + $0xe3] sm:$0x1] %vm600, %v1057
        %v1074 = vld [vmem:[%s209 + $0x2] sm:$0x1]
        %v1075 = vld [vmem:[%s209 + $0x12] sm:$0x1]
        %v1076 = vld [vmem:[%s209 + $0x22] sm:$0x1]
        %v1077 = vld [vmem:[%s209 + $0x32] sm:$0x1]
        %v1082 = vrot.slane %v1075, 7
        %v1083 = vsel %vm256, %v1082, %v1074
        %v1084 = vrot.slane %v1076, 6
        %v1085 = vsel %vm259, %v1084, %v1083
        %v1086 = vrot.slane %v1077, 5
        %v1087 = vsel %vm262, %v1086, %v1085
        %v1088 = vsel %vm277, %v1087, 0
        %1090 = vmatprep.subr.mxu0 0.0
        %1091 = vmatpush1.msra.mxu0 %v1088
        %1092 = vmatprep.subr.mxu0 0.0
        %1093 = vmatpush1.msra.mxu0 0.0
        %1094 = vmatprep.subr.mxu0 0.0
        %1095 = vmatpush1.msra.mxu0 0.0
        %1096 = vmatprep.subr.mxu0 0.0
        %1097 = vmatpush1.msra.mxu0 0.0
        %1098 = vmatprep.subr.mxu0 0.0
        %1099 = vmatpush1.msra.mxu0 0.0
        %1100 = vmatprep.subr.mxu0 0.0
        %1101 = vmatpush1.msra.mxu0 0.0
        %1102 = vmatprep.subr.mxu0 0.0
        %1103 = vmatpush1.msra.mxu0 0.0
        %1104 = vmatprep.subr.mxu0 0.0
        %1105 = vmatpush1.msra.mxu0 0.0
        %1106 = vmatprep.subr.mxu0 0.0
        %1107 = vmatpush1.msra.mxu0 0.0
        %1108 = vmatprep.subr.mxu0 0.0
        %1109 = vmatpush1.msra.mxu0 0.0
        %1110 = vmatprep.subr.mxu0 0.0
        %1111 = vmatpush1.msra.mxu0 0.0
        %1112 = vmatprep.subr.mxu0 0.0
        %1113 = vmatpush1.msra.mxu0 0.0
        %1114 = vmatprep.subr.mxu0 0.0
        %1115 = vmatpush1.msra.mxu0 0.0
        %1116 = vmatprep.subr.mxu0 0.0
        %1117 = vmatpush1.msra.mxu0 0.0
        %1118 = vmatprep.subr.mxu0 0.0
        %1119 = vmatpush1.msra.mxu0 0.0
        %1120 = vmatprep.subr.mxu0 0.0
        %1121 = vmatpush1.msra.mxu0 0.0
        %1122 = vmatprep.subr.mxu0 0.0
        %1123 = vmatpush1.msra.mxu0 0.0
        %1124 = vmatprep.subr.mxu0 0.0
        %1125 = vmatpush1.msra.mxu0 0.0
        %1126 = vmatprep.subr.mxu0 0.0
        %1127 = vmatpush1.msra.mxu0 0.0
        %1128 = vmatprep.subr.mxu0 0.0
        %1129 = vmatpush1.msra.mxu0 0.0
        %1130 = vmatprep.subr.mxu0 0.0
        %1131 = vmatpush1.msra.mxu0 0.0
        %1132 = vmatprep.subr.mxu0 0.0
        %1133 = vmatpush1.msra.mxu0 0.0
        %1134 = vmatprep.subr.mxu0 0.0
        %1135 = vmatpush1.msra.mxu0 0.0
        %1136 = vmatprep.subr.mxu0 0.0
        %1137 = vmatpush1.msra.mxu0 0.0
        %1138 = vmatprep.subr.mxu0 0.0
        %1139 = vmatpush1.msra.mxu0 0.0
        %1140 = vmatprep.subr.mxu0 0.0
        %1141 = vmatpush1.msra.mxu0 0.0
        %1142 = vmatprep.subr.mxu0 0.0
        %1143 = vmatpush1.msra.mxu0 0.0
        %1144 = vmatprep.subr.mxu0 0.0
        %1145 = vmatpush1.msra.mxu0 0.0
        %1146 = vmatprep.subr.mxu0 0.0
        %1147 = vmatpush1.msra.mxu0 0.0
        %1148 = vmatprep.subr.mxu0 0.0
        %1149 = vmatpush1.msra.mxu0 0.0
        %1150 = vmatprep.subr.mxu0 0.0
        %1151 = vmatpush1.msra.mxu0 0.0
        %1152 = vmatprep.subr.mxu0 0.0
        %1153 = vmatpush1.msra.mxu0 0.0
        %1154 = vmatprep.mubr.f32.mxu0 0.0
        %1155 = vmatmul.mubr.f32.gmra.mrb[0].mxu0 %v266
        %v1156 = vpop.f32.mrb[0].mxu0
        %v1157 = vadd.f32 0.0, %v1156
        %v1158 = vpop.f32.mrb[0].mxu0
        %1159 = vmatprep.mubr.f32.mxu0 0.0
        %1160 = vmatmul.mubr.f32.gmra.mrb[0].mxu0 %v269
        %v1161 = vpop.f32.mrb[0].mxu0
        %v1162 = vadd.f32 0.0, %v1161
        %v1163 = vpop.f32.mrb[0].mxu0
        %1164 = vmatprep.mubr.f32.mxu0 0.0
        %1165 = vmatmul.mubr.f32.gmra.mrb[0].mxu0 %v272
        %v1166 = vpop.f32.mrb[0].mxu0
        %v1167 = vadd.f32 0.0, %v1166
        %v1168 = vpop.f32.mrb[0].mxu0
        %1169 = vmatprep.mubr.f32.mxu0 0.0
        %1170 = vmatmul.mubr.f32.gmra.mrb[0].mxu0 %v275
        %v1171 = vpop.f32.mrb[0].mxu0
        %v1172 = vadd.f32 0.0, %v1171
        %v1173 = vpop.f32.mrb[0].mxu0
        %1174 = vdwg.mxu0
        %v1176 = vsel %vm365, %v1167, 0
        %v1179 = vsel %vm365, %v1172, 0
        %1181 = vmatprep.subr.mxu0 0.0
        %1182 = vmatpush1.msra.mxu0 %v243
        %1183 = vmatprep.subr.mxu0 0.0
        %1184 = vmatpush1.msra.mxu0 %v244
        %1185 = vmatprep.subr.mxu0 0.0
        %1186 = vmatpush1.msra.mxu0 0.0
        %1187 = vmatprep.subr.mxu0 0.0
        %1188 = vmatpush1.msra.mxu0 0.0
        %1189 = vmatprep.subr.mxu0 0.0
        %1190 = vmatpush1.msra.mxu0 0.0
        %1191 = vmatprep.subr.mxu0 0.0
        %1192 = vmatpush1.msra.mxu0 0.0
        %1193 = vmatprep.subr.mxu0 0.0
        %1194 = vmatpush1.msra.mxu0 0.0
        %1195 = vmatprep.subr.mxu0 0.0
        %1196 = vmatpush1.msra.mxu0 0.0
        %1197 = vmatprep.subr.mxu0 0.0
        %1198 = vmatpush1.msra.mxu0 0.0
        %1199 = vmatprep.subr.mxu0 0.0
        %1200 = vmatpush1.msra.mxu0 0.0
        %1201 = vmatprep.subr.mxu0 0.0
        %1202 = vmatpush1.msra.mxu0 0.0
        %1203 = vmatprep.subr.mxu0 0.0
        %1204 = vmatpush1.msra.mxu0 0.0
        %1205 = vmatprep.subr.mxu0 0.0
        %1206 = vmatpush1.msra.mxu0 0.0
        %1207 = vmatprep.subr.mxu0 0.0
        %1208 = vmatpush1.msra.mxu0 0.0
        %1209 = vmatprep.subr.mxu0 0.0
        %1210 = vmatpush1.msra.mxu0 0.0
        %1211 = vmatprep.subr.mxu0 0.0
        %1212 = vmatpush1.msra.mxu0 0.0
        %1213 = vmatprep.subr.mxu0 0.0
        %1214 = vmatpush1.msra.mxu0 0.0
        %1215 = vmatprep.subr.mxu0 0.0
        %1216 = vmatpush1.msra.mxu0 0.0
        %1217 = vmatprep.subr.mxu0 0.0
        %1218 = vmatpush1.msra.mxu0 0.0
        %1219 = vmatprep.subr.mxu0 0.0
        %1220 = vmatpush1.msra.mxu0 0.0
        %1221 = vmatprep.subr.mxu0 0.0
        %1222 = vmatpush1.msra.mxu0 0.0
        %1223 = vmatprep.subr.mxu0 0.0
        %1224 = vmatpush1.msra.mxu0 0.0
        %1225 = vmatprep.subr.mxu0 0.0
        %1226 = vmatpush1.msra.mxu0 0.0
        %1227 = vmatprep.subr.mxu0 0.0
        %1228 = vmatpush1.msra.mxu0 0.0
        %1229 = vmatprep.subr.mxu0 0.0
        %1230 = vmatpush1.msra.mxu0 0.0
        %1231 = vmatprep.subr.mxu0 0.0
        %1232 = vmatpush1.msra.mxu0 0.0
        %1233 = vmatprep.subr.mxu0 0.0
        %1234 = vmatpush1.msra.mxu0 0.0
        %1235 = vmatprep.subr.mxu0 0.0
        %1236 = vmatpush1.msra.mxu0 0.0
        %1237 = vmatprep.subr.mxu0 0.0
        %1238 = vmatpush1.msra.mxu0 0.0
        %1239 = vmatprep.subr.mxu0 0.0
        %1240 = vmatpush1.msra.mxu0 0.0
        %1241 = vmatprep.subr.mxu0 0.0
        %1242 = vmatpush1.msra.mxu0 0.0
        %1243 = vmatprep.subr.mxu0 0.0
        %1244 = vmatpush1.msra.mxu0 0.0
        %1245 = vmatprep.mubr.f32.mxu0 0.0
        %1246 = vmatmul.mubr.f32.gmra.mrb[0].mxu0 %v1176
        %v1247 = vpop.f32.mrb[0].mxu0
        %v1248 = vadd.f32 0.0, %v1247
        %v1249 = vpop.f32.mrb[0].mxu0
        %1250 = vmatprep.mubr.f32.mxu0 0.0
        %1251 = vmatmul.mubr.f32.gmra.mrb[0].mxu0 %v1179
        %v1252 = vpop.f32.mrb[0].mxu0
        %v1253 = vadd.f32 0.0, %v1252
        %v1254 = vpop.f32.mrb[0].mxu0
        %1255 = vdwg.mxu0
        %v1257 = vsel %vm365, %v1157, 0
        %v1260 = vsel %vm365, %v1162, 0
        %1262 = vmatprep.subr.mxu0 0.0
        %1263 = vmatpush1.msra.mxu0 %v240
        %1264 = vmatprep.subr.mxu0 0.0
        %1265 = vmatpush1.msra.mxu0 %v241
        %1266 = vmatprep.subr.mxu0 0.0
        %1267 = vmatpush1.msra.mxu0 0.0
        %1268 = vmatprep.subr.mxu0 0.0
        %1269 = vmatpush1.msra.mxu0 0.0
        %1270 = vmatprep.subr.mxu0 0.0
        %1271 = vmatpush1.msra.mxu0 0.0
        %1272 = vmatprep.subr.mxu0 0.0
        %1273 = vmatpush1.msra.mxu0 0.0
        %1274 = vmatprep.subr.mxu0 0.0
        %1275 = vmatpush1.msra.mxu0 0.0
        %1276 = vmatprep.subr.mxu0 0.0
        %1277 = vmatpush1.msra.mxu0 0.0
        %1278 = vmatprep.subr.mxu0 0.0
        %1279 = vmatpush1.msra.mxu0 0.0
        %1280 = vmatprep.subr.mxu0 0.0
        %1281 = vmatpush1.msra.mxu0 0.0
        %1282 = vmatprep.subr.mxu0 0.0
        %1283 = vmatpush1.msra.mxu0 0.0
        %1284 = vmatprep.subr.mxu0 0.0
        %1285 = vmatpush1.msra.mxu0 0.0
        %1286 = vmatprep.subr.mxu0 0.0
        %1287 = vmatpush1.msra.mxu0 0.0
        %1288 = vmatprep.subr.mxu0 0.0
        %1289 = vmatpush1.msra.mxu0 0.0
        %1290 = vmatprep.subr.mxu0 0.0
        %1291 = vmatpush1.msra.mxu0 0.0
        %1292 = vmatprep.subr.mxu0 0.0
        %1293 = vmatpush1.msra.mxu0 0.0
        %1294 = vmatprep.subr.mxu0 0.0
        %1295 = vmatpush1.msra.mxu0 0.0
        %1296 = vmatprep.subr.mxu0 0.0
        %1297 = vmatpush1.msra.mxu0 0.0
        %1298 = vmatprep.subr.mxu0 0.0
        %1299 = vmatpush1.msra.mxu0 0.0
        %1300 = vmatprep.subr.mxu0 0.0
        %1301 = vmatpush1.msra.mxu0 0.0
        %1302 = vmatprep.subr.mxu0 0.0
        %1303 = vmatpush1.msra.mxu0 0.0
        %1304 = vmatprep.subr.mxu0 0.0
        %1305 = vmatpush1.msra.mxu0 0.0
        %1306 = vmatprep.subr.mxu0 0.0
        %1307 = vmatpush1.msra.mxu0 0.0
        %1308 = vmatprep.subr.mxu0 0.0
        %1309 = vmatpush1.msra.mxu0 0.0
        %1310 = vmatprep.subr.mxu0 0.0
        %1311 = vmatpush1.msra.mxu0 0.0
        %1312 = vmatprep.subr.mxu0 0.0
        %1313 = vmatpush1.msra.mxu0 0.0
        %1314 = vmatprep.subr.mxu0 0.0
        %1315 = vmatpush1.msra.mxu0 0.0
        %1316 = vmatprep.subr.mxu0 0.0
        %1317 = vmatpush1.msra.mxu0 0.0
        %1318 = vmatprep.subr.mxu0 0.0
        %1319 = vmatpush1.msra.mxu0 0.0
        %1320 = vmatprep.subr.mxu0 0.0
        %1321 = vmatpush1.msra.mxu0 0.0
        %1322 = vmatprep.subr.mxu0 0.0
        %1323 = vmatpush1.msra.mxu0 0.0
        %1324 = vmatprep.subr.mxu0 0.0
        %1325 = vmatpush1.msra.mxu0 0.0
        %1326 = vmatprep.mubr.f32.mxu0 0.0
        %1327 = vmatmul.mubr.f32.gmra.mrb[0].mxu0 %v1257
        %v1328 = vpop.f32.mrb[0].mxu0
        %v1329 = vadd.f32 %v1248, %v1328
        %v1330 = vpop.f32.mrb[0].mxu0
        %1331 = vmatprep.mubr.f32.mxu0 0.0
        %1332 = vmatmul.mubr.f32.gmra.mrb[0].mxu0 %v1260
        %v1333 = vpop.f32.mrb[0].mxu0
        %v1334 = vadd.f32 %v1253, %v1333
        %v1335 = vpop.f32.mrb[0].mxu0
        %1336 = vdwg.mxu0
        %v1337 = vadd.f32 %v1329, %v531
        %v1338 = vadd.f32 %v1334, %v536
        %v1339 = vmax.f32 %v1337, 0.0
        %v1340 = vmax.f32 %v1338, 0.0
        %v1342 = vcombine.high %v1339, %v1339
        %v1344 = vunpack.c.l.s4 1966171168
        %v1345 = vunpack.c.0.s8 %v1344
        %v1346 = vlaneseq
        %v1347 = vshrl.u32 %v1346, 7
        %v1348 = vsub.s32 %v1345, %v1347
        %v1349 = vrot.slane %v1339, %v1348
        %v1351 = vunpack.c.l.s4 1966171168
        %v1352 = vunpack.c.0.s8 %v1351
        %v1353 = vlaneseq
        %v1354 = vshrl.u32 %v1353, 7
        %v1355 = vsub.s32 %v1352, %v1354
        %v1356 = vrot.slane %v1342, %v1355
        %v1357 = vcombine.high %v1349, %v1349
        %v1358 = vcombine.high %v1356, %v1356
        %v1360 = vunpack.c.l.s4 1966171168
        %v1361 = vunpack.c.0.s8 %v1360
        %v1362 = vlaneseq
        %v1363 = vshrl.u32 %v1362, 7
        %v1364 = vsub.s32 %v1361, %v1363
        %v1365 = vrot.slane %v1349, %v1364
        %v1367 = vunpack.c.l.s4 1966171168
        %v1368 = vunpack.c.0.s8 %v1367
        %v1369 = vlaneseq
        %v1370 = vshrl.u32 %v1369, 7
        %v1371 = vsub.s32 %v1368, %v1370
        %v1372 = vrot.slane %v1356, %v1371
        %v1374 = vunpack.c.l.s4 1966171168
        %v1375 = vunpack.c.0.s8 %v1374
        %v1376 = vlaneseq
        %v1377 = vshrl.u32 %v1376, 7
        %v1378 = vsub.s32 %v1375, %v1377
        %v1379 = vrot.slane %v1357, %v1378
        %v1381 = vunpack.c.l.s4 1966171168
        %v1382 = vunpack.c.0.s8 %v1381
        %v1383 = vlaneseq
        %v1384 = vshrl.u32 %v1383, 7
        %v1385 = vsub.s32 %v1382, %v1384
        %v1386 = vrot.slane %v1358, %v1385
        %v1387 = vcombine.high %v1365, %v1365
        %v1388 = vcombine.high %v1372, %v1372
        %v1389 = vcombine.high %v1379, %v1379
        %v1390 = vcombine.high %v1386, %v1386
        %1399 = vst.msk [vmem:[%s233 + $0x4] sm:$0x1] %vm600, %v1365
        %1400 = vst.msk [vmem:[%s233 + $0x24] sm:$0x1] %vm600, %v1379
        %1401 = vst.msk [vmem:[%s233 + $0x44] sm:$0x1] %vm600, %v1387
        %1402 = vst.msk [vmem:[%s233 + $0x64] sm:$0x1] %vm600, %v1389
        %1403 = vst.msk [vmem:[%s233 + $0x84] sm:$0x1] %vm600, %v1372
        %1404 = vst.msk [vmem:[%s233 + $0xa4] sm:$0x1] %vm600, %v1386
        %1405 = vst.msk [vmem:[%s233 + $0xc4] sm:$0x1] %vm600, %v1388
        %1406 = vst.msk [vmem:[%s233 + $0xe4] sm:$0x1] %vm600, %v1390
        %v1408 = vcombine.high %v1340, %v1340
        %v1410 = vunpack.c.l.s4 1966171168
        %v1411 = vunpack.c.0.s8 %v1410
        %v1412 = vlaneseq
        %v1413 = vshrl.u32 %v1412, 7
        %v1414 = vsub.s32 %v1411, %v1413
        %v1415 = vrot.slane %v1340, %v1414
        %v1417 = vunpack.c.l.s4 1966171168
        %v1418 = vunpack.c.0.s8 %v1417
        %v1419 = vlaneseq
        %v1420 = vshrl.u32 %v1419, 7
        %v1421 = vsub.s32 %v1418, %v1420
        %v1422 = vrot.slane %v1408, %v1421
        %v1423 = vcombine.high %v1415, %v1415
        %v1424 = vcombine.high %v1422, %v1422
        %v1426 = vunpack.c.l.s4 1966171168
        %v1427 = vunpack.c.0.s8 %v1426
        %v1428 = vlaneseq
        %v1429 = vshrl.u32 %v1428, 7
        %v1430 = vsub.s32 %v1427, %v1429
        %v1431 = vrot.slane %v1415, %v1430
        %v1433 = vunpack.c.l.s4 1966171168
        %v1434 = vunpack.c.0.s8 %v1433
        %v1435 = vlaneseq
        %v1436 = vshrl.u32 %v1435, 7
        %v1437 = vsub.s32 %v1434, %v1436
        %v1438 = vrot.slane %v1422, %v1437
        %v1440 = vunpack.c.l.s4 1966171168
        %v1441 = vunpack.c.0.s8 %v1440
        %v1442 = vlaneseq
        %v1443 = vshrl.u32 %v1442, 7
        %v1444 = vsub.s32 %v1441, %v1443
        %v1445 = vrot.slane %v1423, %v1444
        %v1447 = vunpack.c.l.s4 1966171168
        %v1448 = vunpack.c.0.s8 %v1447
        %v1449 = vlaneseq
        %v1450 = vshrl.u32 %v1449, 7
        %v1451 = vsub.s32 %v1448, %v1450
        %v1452 = vrot.slane %v1424, %v1451
        %v1453 = vcombine.high %v1431, %v1431
        %v1454 = vcombine.high %v1438, %v1438
        %v1455 = vcombine.high %v1445, %v1445
        %v1456 = vcombine.high %v1452, %v1452
        %1465 = vst.msk [vmem:[%s233 + $0x5] sm:$0x1] %vm600, %v1431
        %1466 = vst.msk [vmem:[%s233 + $0x25] sm:$0x1] %vm600, %v1445
        %1467 = vst.msk [vmem:[%s233 + $0x45] sm:$0x1] %vm600, %v1453
        %1468 = vst.msk [vmem:[%s233 + $0x65] sm:$0x1] %vm600, %v1455
        %1469 = vst.msk [vmem:[%s233 + $0x85] sm:$0x1] %vm600, %v1438
        %1470 = vst.msk [vmem:[%s233 + $0xa5] sm:$0x1] %vm600, %v1452
        %1471 = vst.msk [vmem:[%s233 + $0xc5] sm:$0x1] %vm600, %v1454
        %1472 = vst.msk [vmem:[%s233 + $0xe5] sm:$0x1] %vm600, %v1456
        %v1473 = vld [vmem:[%s209 + $0x3] sm:$0x1]
        %v1474 = vld [vmem:[%s209 + $0x13] sm:$0x1]
        %v1475 = vld [vmem:[%s209 + $0x23] sm:$0x1]
        %v1476 = vld [vmem:[%s209 + $0x33] sm:$0x1]
        %v1481 = vrot.slane %v1474, 7
        %v1482 = vsel %vm256, %v1481, %v1473
        %v1483 = vrot.slane %v1475, 6
        %v1484 = vsel %vm259, %v1483, %v1482
        %v1485 = vrot.slane %v1476, 5
        %v1486 = vsel %vm262, %v1485, %v1484
        %v1487 = vsel %vm277, %v1486, 0
        %1489 = vmatprep.subr.mxu0 0.0
        %1490 = vmatpush1.msra.mxu0 %v1487
        %1491 = vmatprep.subr.mxu0 0.0
        %1492 = vmatpush1.msra.mxu0 0.0
        %1493 = vmatprep.subr.mxu0 0.0
        %1494 = vmatpush1.msra.mxu0 0.0
        %1495 = vmatprep.subr.mxu0 0.0
        %1496 = vmatpush1.msra.mxu0 0.0
        %1497 = vmatprep.subr.mxu0 0.0
        %1498 = vmatpush1.msra.mxu0 0.0
        %1499 = vmatprep.subr.mxu0 0.0
        %1500 = vmatpush1.msra.mxu0 0.0
        %1501 = vmatprep.subr.mxu0 0.0
        %1502 = vmatpush1.msra.mxu0 0.0
        %1503 = vmatprep.subr.mxu0 0.0
        %1504 = vmatpush1.msra.mxu0 0.0
        %1505 = vmatprep.subr.mxu0 0.0
        %1506 = vmatpush1.msra.mxu0 0.0
        %1507 = vmatprep.subr.mxu0 0.0
        %1508 = vmatpush1.msra.mxu0 0.0
        %1509 = vmatprep.subr.mxu0 0.0
        %1510 = vmatpush1.msra.mxu0 0.0
        %1511 = vmatprep.subr.mxu0 0.0
        %1512 = vmatpush1.msra.mxu0 0.0
        %1513 = vmatprep.subr.mxu0 0.0
        %1514 = vmatpush1.msra.mxu0 0.0
        %1515 = vmatprep.subr.mxu0 0.0
        %1516 = vmatpush1.msra.mxu0 0.0
        %1517 = vmatprep.subr.mxu0 0.0
        %1518 = vmatpush1.msra.mxu0 0.0
        %1519 = vmatprep.subr.mxu0 0.0
        %1520 = vmatpush1.msra.mxu0 0.0
        %1521 = vmatprep.subr.mxu0 0.0
        %1522 = vmatpush1.msra.mxu0 0.0
        %1523 = vmatprep.subr.mxu0 0.0
        %1524 = vmatpush1.msra.mxu0 0.0
        %1525 = vmatprep.subr.mxu0 0.0
        %1526 = vmatpush1.msra.mxu0 0.0
        %1527 = vmatprep.subr.mxu0 0.0
        %1528 = vmatpush1.msra.mxu0 0.0
        %1529 = vmatprep.subr.mxu0 0.0
        %1530 = vmatpush1.msra.mxu0 0.0
        %1531 = vmatprep.subr.mxu0 0.0
        %1532 = vmatpush1.msra.mxu0 0.0
        %1533 = vmatprep.subr.mxu0 0.0
        %1534 = vmatpush1.msra.mxu0 0.0
        %1535 = vmatprep.subr.mxu0 0.0
        %1536 = vmatpush1.msra.mxu0 0.0
        %1537 = vmatprep.subr.mxu0 0.0
        %1538 = vmatpush1.msra.mxu0 0.0
        %1539 = vmatprep.subr.mxu0 0.0
        %1540 = vmatpush1.msra.mxu0 0.0
        %1541 = vmatprep.subr.mxu0 0.0
        %1542 = vmatpush1.msra.mxu0 0.0
        %1543 = vmatprep.subr.mxu0 0.0
        %1544 = vmatpush1.msra.mxu0 0.0
        %1545 = vmatprep.subr.mxu0 0.0
        %1546 = vmatpush1.msra.mxu0 0.0
        %1547 = vmatprep.subr.mxu0 0.0
        %1548 = vmatpush1.msra.mxu0 0.0
        %1549 = vmatprep.subr.mxu0 0.0
        %1550 = vmatpush1.msra.mxu0 0.0
        %1551 = vmatprep.subr.mxu0 0.0
        %1552 = vmatpush1.msra.mxu0 0.0
        %1553 = vmatprep.mubr.f32.mxu0 0.0
        %1554 = vmatmul.mubr.f32.gmra.mrb[0].mxu0 %v266
        %v1555 = vpop.f32.mrb[0].mxu0
        %v1556 = vadd.f32 0.0, %v1555
        %v1557 = vpop.f32.mrb[0].mxu0
        %1558 = vmatprep.mubr.f32.mxu0 0.0
        %1559 = vmatmul.mubr.f32.gmra.mrb[0].mxu0 %v269
        %v1560 = vpop.f32.mrb[0].mxu0
        %v1561 = vadd.f32 0.0, %v1560
        %v1562 = vpop.f32.mrb[0].mxu0
        %1563 = vmatprep.mubr.f32.mxu0 0.0
        %1564 = vmatmul.mubr.f32.gmra.mrb[0].mxu0 %v272
        %v1565 = vpop.f32.mrb[0].mxu0
        %v1566 = vadd.f32 0.0, %v1565
        %v1567 = vpop.f32.mrb[0].mxu0
        %1568 = vmatprep.mubr.f32.mxu0 0.0
        %1569 = vmatmul.mubr.f32.gmra.mrb[0].mxu0 %v275
        %v1570 = vpop.f32.mrb[0].mxu0
        %v1571 = vadd.f32 0.0, %v1570
        %v1572 = vpop.f32.mrb[0].mxu0
        %1573 = vdwg.mxu0
        %v1575 = vsel %vm365, %v1566, 0
        %v1578 = vsel %vm365, %v1571, 0
        %1580 = vmatprep.subr.mxu0 0.0
        %1581 = vmatpush1.msra.mxu0 %v243
        %1582 = vmatprep.subr.mxu0 0.0
        %1583 = vmatpush1.msra.mxu0 %v244
        %1584 = vmatprep.subr.mxu0 0.0
        %1585 = vmatpush1.msra.mxu0 0.0
        %1586 = vmatprep.subr.mxu0 0.0
        %1587 = vmatpush1.msra.mxu0 0.0
        %1588 = vmatprep.subr.mxu0 0.0
        %1589 = vmatpush1.msra.mxu0 0.0
        %1590 = vmatprep.subr.mxu0 0.0
        %1591 = vmatpush1.msra.mxu0 0.0
        %1592 = vmatprep.subr.mxu0 0.0
        %1593 = vmatpush1.msra.mxu0 0.0
        %1594 = vmatprep.subr.mxu0 0.0
        %1595 = vmatpush1.msra.mxu0 0.0
        %1596 = vmatprep.subr.mxu0 0.0
        %1597 = vmatpush1.msra.mxu0 0.0
        %1598 = vmatprep.subr.mxu0 0.0
        %1599 = vmatpush1.msra.mxu0 0.0
        %1600 = vmatprep.subr.mxu0 0.0
        %1601 = vmatpush1.msra.mxu0 0.0
        %1602 = vmatprep.subr.mxu0 0.0
        %1603 = vmatpush1.msra.mxu0 0.0
        %1604 = vmatprep.subr.mxu0 0.0
        %1605 = vmatpush1.msra.mxu0 0.0
        %1606 = vmatprep.subr.mxu0 0.0
        %1607 = vmatpush1.msra.mxu0 0.0
        %1608 = vmatprep.subr.mxu0 0.0
        %1609 = vmatpush1.msra.mxu0 0.0
        %1610 = vmatprep.subr.mxu0 0.0
        %1611 = vmatpush1.msra.mxu0 0.0
        %1612 = vmatprep.subr.mxu0 0.0
        %1613 = vmatpush1.msra.mxu0 0.0
        %1614 = vmatprep.subr.mxu0 0.0
        %1615 = vmatpush1.msra.mxu0 0.0
        %1616 = vmatprep.subr.mxu0 0.0
        %1617 = vmatpush1.msra.mxu0 0.0
        %1618 = vmatprep.subr.mxu0 0.0
        %1619 = vmatpush1.msra.mxu0 0.0
        %1620 = vmatprep.subr.mxu0 0.0
        %1621 = vmatpush1.msra.mxu0 0.0
        %1622 = vmatprep.subr.mxu0 0.0
        %1623 = vmatpush1.msra.mxu0 0.0
        %1624 = vmatprep.subr.mxu0 0.0
        %1625 = vmatpush1.msra.mxu0 0.0
        %1626 = vmatprep.subr.mxu0 0.0
        %1627 = vmatpush1.msra.mxu0 0.0
        %1628 = vmatprep.subr.mxu0 0.0
        %1629 = vmatpush1.msra.mxu0 0.0
        %1630 = vmatprep.subr.mxu0 0.0
        %1631 = vmatpush1.msra.mxu0 0.0
        %1632 = vmatprep.subr.mxu0 0.0
        %1633 = vmatpush1.msra.mxu0 0.0
        %1634 = vmatprep.subr.mxu0 0.0
        %1635 = vmatpush1.msra.mxu0 0.0
        %1636 = vmatprep.subr.mxu0 0.0
        %1637 = vmatpush1.msra.mxu0 0.0
        %1638 = vmatprep.subr.mxu0 0.0
        %1639 = vmatpush1.msra.mxu0 0.0
        %1640 = vmatprep.subr.mxu0 0.0
        %1641 = vmatpush1.msra.mxu0 0.0
        %1642 = vmatprep.subr.mxu0 0.0
        %1643 = vmatpush1.msra.mxu0 0.0
        %1644 = vmatprep.mubr.f32.mxu0 0.0
        %1645 = vmatmul.mubr.f32.gmra.mrb[0].mxu0 %v1575
        %v1646 = vpop.f32.mrb[0].mxu0
        %v1647 = vadd.f32 0.0, %v1646
        %v1648 = vpop.f32.mrb[0].mxu0
        %1649 = vmatprep.mubr.f32.mxu0 0.0
        %1650 = vmatmul.mubr.f32.gmra.mrb[0].mxu0 %v1578
        %v1651 = vpop.f32.mrb[0].mxu0
        %v1652 = vadd.f32 0.0, %v1651
        %v1653 = vpop.f32.mrb[0].mxu0
        %1654 = vdwg.mxu0
        %v1656 = vsel %vm365, %v1556, 0
        %v1659 = vsel %vm365, %v1561, 0
        %1661 = vmatprep.subr.mxu0 0.0
        %1662 = vmatpush1.msra.mxu0 %v240
        %1663 = vmatprep.subr.mxu0 0.0
        %1664 = vmatpush1.msra.mxu0 %v241
        %1665 = vmatprep.subr.mxu0 0.0
        %1666 = vmatpush1.msra.mxu0 0.0
        %1667 = vmatprep.subr.mxu0 0.0
        %1668 = vmatpush1.msra.mxu0 0.0
        %1669 = vmatprep.subr.mxu0 0.0
        %1670 = vmatpush1.msra.mxu0 0.0
        %1671 = vmatprep.subr.mxu0 0.0
        %1672 = vmatpush1.msra.mxu0 0.0
        %1673 = vmatprep.subr.mxu0 0.0
        %1674 = vmatpush1.msra.mxu0 0.0
        %1675 = vmatprep.subr.mxu0 0.0
        %1676 = vmatpush1.msra.mxu0 0.0
        %1677 = vmatprep.subr.mxu0 0.0
        %1678 = vmatpush1.msra.mxu0 0.0
        %1679 = vmatprep.subr.mxu0 0.0
        %1680 = vmatpush1.msra.mxu0 0.0
        %1681 = vmatprep.subr.mxu0 0.0
        %1682 = vmatpush1.msra.mxu0 0.0
        %1683 = vmatprep.subr.mxu0 0.0
        %1684 = vmatpush1.msra.mxu0 0.0
        %1685 = vmatprep.subr.mxu0 0.0
        %1686 = vmatpush1.msra.mxu0 0.0
        %1687 = vmatprep.subr.mxu0 0.0
        %1688 = vmatpush1.msra.mxu0 0.0
        %1689 = vmatprep.subr.mxu0 0.0
        %1690 = vmatpush1.msra.mxu0 0.0
        %1691 = vmatprep.subr.mxu0 0.0
        %1692 = vmatpush1.msra.mxu0 0.0
        %1693 = vmatprep.subr.mxu0 0.0
        %1694 = vmatpush1.msra.mxu0 0.0
        %1695 = vmatprep.subr.mxu0 0.0
        %1696 = vmatpush1.msra.mxu0 0.0
        %1697 = vmatprep.subr.mxu0 0.0
        %1698 = vmatpush1.msra.mxu0 0.0
        %1699 = vmatprep.subr.mxu0 0.0
        %1700 = vmatpush1.msra.mxu0 0.0
        %1701 = vmatprep.subr.mxu0 0.0
        %1702 = vmatpush1.msra.mxu0 0.0
        %1703 = vmatprep.subr.mxu0 0.0
        %1704 = vmatpush1.msra.mxu0 0.0
        %1705 = vmatprep.subr.mxu0 0.0
        %1706 = vmatpush1.msra.mxu0 0.0
        %1707 = vmatprep.subr.mxu0 0.0
        %1708 = vmatpush1.msra.mxu0 0.0
        %1709 = vmatprep.subr.mxu0 0.0
        %1710 = vmatpush1.msra.mxu0 0.0
        %1711 = vmatprep.subr.mxu0 0.0
        %1712 = vmatpush1.msra.mxu0 0.0
        %1713 = vmatprep.subr.mxu0 0.0
        %1714 = vmatpush1.msra.mxu0 0.0
        %1715 = vmatprep.subr.mxu0 0.0
        %1716 = vmatpush1.msra.mxu0 0.0
        %1717 = vmatprep.subr.mxu0 0.0
        %1718 = vmatpush1.msra.mxu0 0.0
        %1719 = vmatprep.subr.mxu0 0.0
        %1720 = vmatpush1.msra.mxu0 0.0
        %1721 = vmatprep.subr.mxu0 0.0
        %1722 = vmatpush1.msra.mxu0 0.0
        %1723 = vmatprep.subr.mxu0 0.0
        %1724 = vmatpush1.msra.mxu0 0.0
        %1725 = vmatprep.mubr.f32.mxu0 0.0
        %1726 = vmatmul.mubr.f32.gmra.mrb[0].mxu0 %v1656
        %v1727 = vpop.f32.mrb[0].mxu0
        %v1728 = vadd.f32 %v1647, %v1727
        %v1729 = vpop.f32.mrb[0].mxu0
        %1730 = vmatprep.mubr.f32.mxu0 0.0
        %1731 = vmatmul.mubr.f32.gmra.mrb[0].mxu0 %v1659
        %v1732 = vpop.f32.mrb[0].mxu0
        %v1733 = vadd.f32 %v1652, %v1732
        %v1734 = vpop.f32.mrb[0].mxu0
        %1735 = vdwg.mxu0
        %v1736 = vadd.f32 %v1728, %v531
        %v1737 = vadd.f32 %v1733, %v536
        %v1738 = vmax.f32 %v1736, 0.0
        %v1739 = vmax.f32 %v1737, 0.0
        %v1741 = vcombine.high %v1738, %v1738
        %v1743 = vunpack.c.l.s4 1966171168
        %v1744 = vunpack.c.0.s8 %v1743
        %v1745 = vlaneseq
        %v1746 = vshrl.u32 %v1745, 7
        %v1747 = vsub.s32 %v1744, %v1746
        %v1748 = vrot.slane %v1738, %v1747
        %v1750 = vunpack.c.l.s4 1966171168
        %v1751 = vunpack.c.0.s8 %v1750
        %v1752 = vlaneseq
        %v1753 = vshrl.u32 %v1752, 7
        %v1754 = vsub.s32 %v1751, %v1753
        %v1755 = vrot.slane %v1741, %v1754
        %v1756 = vcombine.high %v1748, %v1748
        %v1757 = vcombine.high %v1755, %v1755
        %v1759 = vunpack.c.l.s4 1966171168
        %v1760 = vunpack.c.0.s8 %v1759
        %v1761 = vlaneseq
        %v1762 = vshrl.u32 %v1761, 7
        %v1763 = vsub.s32 %v1760, %v1762
        %v1764 = vrot.slane %v1748, %v1763
        %v1766 = vunpack.c.l.s4 1966171168
        %v1767 = vunpack.c.0.s8 %v1766
        %v1768 = vlaneseq
        %v1769 = vshrl.u32 %v1768, 7
        %v1770 = vsub.s32 %v1767, %v1769
        %v1771 = vrot.slane %v1755, %v1770
        %v1773 = vunpack.c.l.s4 1966171168
        %v1774 = vunpack.c.0.s8 %v1773
        %v1775 = vlaneseq
        %v1776 = vshrl.u32 %v1775, 7
        %v1777 = vsub.s32 %v1774, %v1776
        %v1778 = vrot.slane %v1756, %v1777
        %v1780 = vunpack.c.l.s4 1966171168
        %v1781 = vunpack.c.0.s8 %v1780
        %v1782 = vlaneseq
        %v1783 = vshrl.u32 %v1782, 7
        %v1784 = vsub.s32 %v1781, %v1783
        %v1785 = vrot.slane %v1757, %v1784
        %v1786 = vcombine.high %v1764, %v1764
        %v1787 = vcombine.high %v1771, %v1771
        %v1788 = vcombine.high %v1778, %v1778
        %v1789 = vcombine.high %v1785, %v1785
        %1798 = vst.msk [vmem:[%s233 + $0x6] sm:$0x1] %vm600, %v1764
        %1799 = vst.msk [vmem:[%s233 + $0x26] sm:$0x1] %vm600, %v1778
        %1800 = vst.msk [vmem:[%s233 + $0x46] sm:$0x1] %vm600, %v1786
        %1801 = vst.msk [vmem:[%s233 + $0x66] sm:$0x1] %vm600, %v1788
        %1802 = vst.msk [vmem:[%s233 + $0x86] sm:$0x1] %vm600, %v1771
        %1803 = vst.msk [vmem:[%s233 + $0xa6] sm:$0x1] %vm600, %v1785
        %1804 = vst.msk [vmem:[%s233 + $0xc6] sm:$0x1] %vm600, %v1787
        %1805 = vst.msk [vmem:[%s233 + $0xe6] sm:$0x1] %vm600, %v1789
        %v1807 = vcombine.high %v1739, %v1739
        %v1809 = vunpack.c.l.s4 1966171168
        %v1810 = vunpack.c.0.s8 %v1809
        %v1811 = vlaneseq
        %v1812 = vshrl.u32 %v1811, 7
        %v1813 = vsub.s32 %v1810, %v1812
        %v1814 = vrot.slane %v1739, %v1813
        %v1816 = vunpack.c.l.s4 1966171168
        %v1817 = vunpack.c.0.s8 %v1816
        %v1818 = vlaneseq
        %v1819 = vshrl.u32 %v1818, 7
        %v1820 = vsub.s32 %v1817, %v1819
        %v1821 = vrot.slane %v1807, %v1820
        %v1822 = vcombine.high %v1814, %v1814
        %v1823 = vcombine.high %v1821, %v1821
        %v1825 = vunpack.c.l.s4 1966171168
        %v1826 = vunpack.c.0.s8 %v1825
        %v1827 = vlaneseq
        %v1828 = vshrl.u32 %v1827, 7
        %v1829 = vsub.s32 %v1826, %v1828
        %v1830 = vrot.slane %v1814, %v1829
        %v1832 = vunpack.c.l.s4 1966171168
        %v1833 = vunpack.c.0.s8 %v1832
        %v1834 = vlaneseq
        %v1835 = vshrl.u32 %v1834, 7
        %v1836 = vsub.s32 %v1833, %v1835
        %v1837 = vrot.slane %v1821, %v1836
        %v1839 = vunpack.c.l.s4 1966171168
        %v1840 = vunpack.c.0.s8 %v1839
        %v1841 = vlaneseq
        %v1842 = vshrl.u32 %v1841, 7
        %v1843 = vsub.s32 %v1840, %v1842
        %v1844 = vrot.slane %v1822, %v1843
        %v1846 = vunpack.c.l.s4 1966171168
        %v1847 = vunpack.c.0.s8 %v1846
        %v1848 = vlaneseq
        %v1849 = vshrl.u32 %v1848, 7
        %v1850 = vsub.s32 %v1847, %v1849
        %v1851 = vrot.slane %v1823, %v1850
        %v1852 = vcombine.high %v1830, %v1830
        %v1853 = vcombine.high %v1837, %v1837
        %v1854 = vcombine.high %v1844, %v1844
        %v1855 = vcombine.high %v1851, %v1851
        %1864 = vst.msk [vmem:[%s233 + $0x7] sm:$0x1] %vm600, %v1830
        %1865 = vst.msk [vmem:[%s233 + $0x27] sm:$0x1] %vm600, %v1844
        %1866 = vst.msk [vmem:[%s233 + $0x47] sm:$0x1] %vm600, %v1852
        %1867 = vst.msk [vmem:[%s233 + $0x67] sm:$0x1] %vm600, %v1854
        %1868 = vst.msk [vmem:[%s233 + $0x87] sm:$0x1] %vm600, %v1837
        %1869 = vst.msk [vmem:[%s233 + $0xa7] sm:$0x1] %vm600, %v1851
        %1870 = vst.msk [vmem:[%s233 + $0xc7] sm:$0x1] %vm600, %v1853
        %1871 = vst.msk [vmem:[%s233 + $0xe7] sm:$0x1] %vm600, %v1855
        %v1872 = vld [vmem:[%s209 + $0x4] sm:$0x1]
        %v1873 = vld [vmem:[%s209 + $0x14] sm:$0x1]
        %v1874 = vld [vmem:[%s209 + $0x24] sm:$0x1]
        %v1875 = vld [vmem:[%s209 + $0x34] sm:$0x1]
        %v1880 = vrot.slane %v1873, 7
        %v1881 = vsel %vm256, %v1880, %v1872
        %v1882 = vrot.slane %v1874, 6
        %v1883 = vsel %vm259, %v1882, %v1881
        %v1884 = vrot.slane %v1875, 5
        %v1885 = vsel %vm262, %v1884, %v1883
        %v1886 = vsel %vm277, %v1885, 0
        %1888 = vmatprep.subr.mxu0 0.0
        %1889 = vmatpush1.msra.mxu0 %v1886
        %1890 = vmatprep.subr.mxu0 0.0
        %1891 = vmatpush1.msra.mxu0 0.0
        %1892 = vmatprep.subr.mxu0 0.0
        %1893 = vmatpush1.msra.mxu0 0.0
        %1894 = vmatprep.subr.mxu0 0.0
        %1895 = vmatpush1.msra.mxu0 0.0
        %1896 = vmatprep.subr.mxu0 0.0
        %1897 = vmatpush1.msra.mxu0 0.0
        %1898 = vmatprep.subr.mxu0 0.0
        %1899 = vmatpush1.msra.mxu0 0.0
        %1900 = vmatprep.subr.mxu0 0.0
        %1901 = vmatpush1.msra.mxu0 0.0
        %1902 = vmatprep.subr.mxu0 0.0
        %1903 = vmatpush1.msra.mxu0 0.0
        %1904 = vmatprep.subr.mxu0 0.0
        %1905 = vmatpush1.msra.mxu0 0.0
        %1906 = vmatprep.subr.mxu0 0.0
        %1907 = vmatpush1.msra.mxu0 0.0
        %1908 = vmatprep.subr.mxu0 0.0
        %1909 = vmatpush1.msra.mxu0 0.0
        %1910 = vmatprep.subr.mxu0 0.0
        %1911 = vmatpush1.msra.mxu0 0.0
        %1912 = vmatprep.subr.mxu0 0.0
        %1913 = vmatpush1.msra.mxu0 0.0
        %1914 = vmatprep.subr.mxu0 0.0
        %1915 = vmatpush1.msra.mxu0 0.0
        %1916 = vmatprep.subr.mxu0 0.0
        %1917 = vmatpush1.msra.mxu0 0.0
        %1918 = vmatprep.subr.mxu0 0.0
        %1919 = vmatpush1.msra.mxu0 0.0
        %1920 = vmatprep.subr.mxu0 0.0
        %1921 = vmatpush1.msra.mxu0 0.0
        %1922 = vmatprep.subr.mxu0 0.0
        %1923 = vmatpush1.msra.mxu0 0.0
        %1924 = vmatprep.subr.mxu0 0.0
        %1925 = vmatpush1.msra.mxu0 0.0
        %1926 = vmatprep.subr.mxu0 0.0
        %1927 = vmatpush1.msra.mxu0 0.0
        %1928 = vmatprep.subr.mxu0 0.0
        %1929 = vmatpush1.msra.mxu0 0.0
        %1930 = vmatprep.subr.mxu0 0.0
        %1931 = vmatpush1.msra.mxu0 0.0
        %1932 = vmatprep.subr.mxu0 0.0
        %1933 = vmatpush1.msra.mxu0 0.0
        %1934 = vmatprep.subr.mxu0 0.0
        %1935 = vmatpush1.msra.mxu0 0.0
        %1936 = vmatprep.subr.mxu0 0.0
        %1937 = vmatpush1.msra.mxu0 0.0
        %1938 = vmatprep.subr.mxu0 0.0
        %1939 = vmatpush1.msra.mxu0 0.0
        %1940 = vmatprep.subr.mxu0 0.0
        %1941 = vmatpush1.msra.mxu0 0.0
        %1942 = vmatprep.subr.mxu0 0.0
        %1943 = vmatpush1.msra.mxu0 0.0
        %1944 = vmatprep.subr.mxu0 0.0
        %1945 = vmatpush1.msra.mxu0 0.0
        %1946 = vmatprep.subr.mxu0 0.0
        %1947 = vmatpush1.msra.mxu0 0.0
        %1948 = vmatprep.subr.mxu0 0.0
        %1949 = vmatpush1.msra.mxu0 0.0
        %1950 = vmatprep.subr.mxu0 0.0
        %1951 = vmatpush1.msra.mxu0 0.0
        %1952 = vmatprep.mubr.f32.mxu0 0.0
        %1953 = vmatmul.mubr.f32.gmra.mrb[0].mxu0 %v266
        %v1954 = vpop.f32.mrb[0].mxu0
        %v1955 = vadd.f32 0.0, %v1954
        %v1956 = vpop.f32.mrb[0].mxu0
        %1957 = vmatprep.mubr.f32.mxu0 0.0
        %1958 = vmatmul.mubr.f32.gmra.mrb[0].mxu0 %v269
        %v1959 = vpop.f32.mrb[0].mxu0
        %v1960 = vadd.f32 0.0, %v1959
        %v1961 = vpop.f32.mrb[0].mxu0
        %1962 = vmatprep.mubr.f32.mxu0 0.0
        %1963 = vmatmul.mubr.f32.gmra.mrb[0].mxu0 %v272
        %v1964 = vpop.f32.mrb[0].mxu0
        %v1965 = vadd.f32 0.0, %v1964
        %v1966 = vpop.f32.mrb[0].mxu0
        %1967 = vmatprep.mubr.f32.mxu0 0.0
        %1968 = vmatmul.mubr.f32.gmra.mrb[0].mxu0 %v275
        %v1969 = vpop.f32.mrb[0].mxu0
        %v1970 = vadd.f32 0.0, %v1969
        %v1971 = vpop.f32.mrb[0].mxu0
        %1972 = vdwg.mxu0
        %v1974 = vsel %vm365, %v1965, 0
        %v1977 = vsel %vm365, %v1970, 0
        %1979 = vmatprep.subr.mxu0 0.0
        %1980 = vmatpush1.msra.mxu0 %v243
        %1981 = vmatprep.subr.mxu0 0.0
        %1982 = vmatpush1.msra.mxu0 %v244
        %1983 = vmatprep.subr.mxu0 0.0
        %1984 = vmatpush1.msra.mxu0 0.0
        %1985 = vmatprep.subr.mxu0 0.0
        %1986 = vmatpush1.msra.mxu0 0.0
        %1987 = vmatprep.subr.mxu0 0.0
        %1988 = vmatpush1.msra.mxu0 0.0
        %1989 = vmatprep.subr.mxu0 0.0
        %1990 = vmatpush1.msra.mxu0 0.0
        %1991 = vmatprep.subr.mxu0 0.0
        %1992 = vmatpush1.msra.mxu0 0.0
        %1993 = vmatprep.subr.mxu0 0.0
        %1994 = vmatpush1.msra.mxu0 0.0
        %1995 = vmatprep.subr.mxu0 0.0
        %1996 = vmatpush1.msra.mxu0 0.0
        %1997 = vmatprep.subr.mxu0 0.0
        %1998 = vmatpush1.msra.mxu0 0.0
        %1999 = vmatprep.subr.mxu0 0.0
        %2000 = vmatpush1.msra.mxu0 0.0
        %2001 = vmatprep.subr.mxu0 0.0
        %2002 = vmatpush1.msra.mxu0 0.0
        %2003 = vmatprep.subr.mxu0 0.0
        %2004 = vmatpush1.msra.mxu0 0.0
        %2005 = vmatprep.subr.mxu0 0.0
        %2006 = vmatpush1.msra.mxu0 0.0
        %2007 = vmatprep.subr.mxu0 0.0
        %2008 = vmatpush1.msra.mxu0 0.0
        %2009 = vmatprep.subr.mxu0 0.0
        %2010 = vmatpush1.msra.mxu0 0.0
        %2011 = vmatprep.subr.mxu0 0.0
        %2012 = vmatpush1.msra.mxu0 0.0
        %2013 = vmatprep.subr.mxu0 0.0
        %2014 = vmatpush1.msra.mxu0 0.0
        %2015 = vmatprep.subr.mxu0 0.0
        %2016 = vmatpush1.msra.mxu0 0.0
        %2017 = vmatprep.subr.mxu0 0.0
        %2018 = vmatpush1.msra.mxu0 0.0
        %2019 = vmatprep.subr.mxu0 0.0
        %2020 = vmatpush1.msra.mxu0 0.0
        %2021 = vmatprep.subr.mxu0 0.0
        %2022 = vmatpush1.msra.mxu0 0.0
        %2023 = vmatprep.subr.mxu0 0.0
        %2024 = vmatpush1.msra.mxu0 0.0
        %2025 = vmatprep.subr.mxu0 0.0
        %2026 = vmatpush1.msra.mxu0 0.0
        %2027 = vmatprep.subr.mxu0 0.0
        %2028 = vmatpush1.msra.mxu0 0.0
        %2029 = vmatprep.subr.mxu0 0.0
        %2030 = vmatpush1.msra.mxu0 0.0
        %2031 = vmatprep.subr.mxu0 0.0
        %2032 = vmatpush1.msra.mxu0 0.0
        %2033 = vmatprep.subr.mxu0 0.0
        %2034 = vmatpush1.msra.mxu0 0.0
        %2035 = vmatprep.subr.mxu0 0.0
        %2036 = vmatpush1.msra.mxu0 0.0
        %2037 = vmatprep.subr.mxu0 0.0
        %2038 = vmatpush1.msra.mxu0 0.0
        %2039 = vmatprep.subr.mxu0 0.0
        %2040 = vmatpush1.msra.mxu0 0.0
        %2041 = vmatprep.subr.mxu0 0.0
        %2042 = vmatpush1.msra.mxu0 0.0
        %2043 = vmatprep.mubr.f32.mxu0 0.0
        %2044 = vmatmul.mubr.f32.gmra.mrb[0].mxu0 %v1974
        %v2045 = vpop.f32.mrb[0].mxu0
        %v2046 = vadd.f32 0.0, %v2045
        %v2047 = vpop.f32.mrb[0].mxu0
        %2048 = vmatprep.mubr.f32.mxu0 0.0
        %2049 = vmatmul.mubr.f32.gmra.mrb[0].mxu0 %v1977
        %v2050 = vpop.f32.mrb[0].mxu0
        %v2051 = vadd.f32 0.0, %v2050
        %v2052 = vpop.f32.mrb[0].mxu0
        %2053 = vdwg.mxu0
        %v2055 = vsel %vm365, %v1955, 0
        %v2058 = vsel %vm365, %v1960, 0
        %2060 = vmatprep.subr.mxu0 0.0
        %2061 = vmatpush1.msra.mxu0 %v240
        %2062 = vmatprep.subr.mxu0 0.0
        %2063 = vmatpush1.msra.mxu0 %v241
        %2064 = vmatprep.subr.mxu0 0.0
        %2065 = vmatpush1.msra.mxu0 0.0
        %2066 = vmatprep.subr.mxu0 0.0
        %2067 = vmatpush1.msra.mxu0 0.0
        %2068 = vmatprep.subr.mxu0 0.0
        %2069 = vmatpush1.msra.mxu0 0.0
        %2070 = vmatprep.subr.mxu0 0.0
        %2071 = vmatpush1.msra.mxu0 0.0
        %2072 = vmatprep.subr.mxu0 0.0
        %2073 = vmatpush1.msra.mxu0 0.0
        %2074 = vmatprep.subr.mxu0 0.0
        %2075 = vmatpush1.msra.mxu0 0.0
        %2076 = vmatprep.subr.mxu0 0.0
        %2077 = vmatpush1.msra.mxu0 0.0
        %2078 = vmatprep.subr.mxu0 0.0
        %2079 = vmatpush1.msra.mxu0 0.0
        %2080 = vmatprep.subr.mxu0 0.0
        %2081 = vmatpush1.msra.mxu0 0.0
        %2082 = vmatprep.subr.mxu0 0.0
        %2083 = vmatpush1.msra.mxu0 0.0
        %2084 = vmatprep.subr.mxu0 0.0
        %2085 = vmatpush1.msra.mxu0 0.0
        %2086 = vmatprep.subr.mxu0 0.0
        %2087 = vmatpush1.msra.mxu0 0.0
        %2088 = vmatprep.subr.mxu0 0.0
        %2089 = vmatpush1.msra.mxu0 0.0
        %2090 = vmatprep.subr.mxu0 0.0
        %2091 = vmatpush1.msra.mxu0 0.0
        %2092 = vmatprep.subr.mxu0 0.0
        %2093 = vmatpush1.msra.mxu0 0.0
        %2094 = vmatprep.subr.mxu0 0.0
        %2095 = vmatpush1.msra.mxu0 0.0
        %2096 = vmatprep.subr.mxu0 0.0
        %2097 = vmatpush1.msra.mxu0 0.0
        %2098 = vmatprep.subr.mxu0 0.0
        %2099 = vmatpush1.msra.mxu0 0.0
        %2100 = vmatprep.subr.mxu0 0.0
        %2101 = vmatpush1.msra.mxu0 0.0
        %2102 = vmatprep.subr.mxu0 0.0
        %2103 = vmatpush1.msra.mxu0 0.0
        %2104 = vmatprep.subr.mxu0 0.0
        %2105 = vmatpush1.msra.mxu0 0.0
        %2106 = vmatprep.subr.mxu0 0.0
        %2107 = vmatpush1.msra.mxu0 0.0
        %2108 = vmatprep.subr.mxu0 0.0
        %2109 = vmatpush1.msra.mxu0 0.0
        %2110 = vmatprep.subr.mxu0 0.0
        %2111 = vmatpush1.msra.mxu0 0.0
        %2112 = vmatprep.subr.mxu0 0.0
        %2113 = vmatpush1.msra.mxu0 0.0
        %2114 = vmatprep.subr.mxu0 0.0
        %2115 = vmatpush1.msra.mxu0 0.0
        %2116 = vmatprep.subr.mxu0 0.0
        %2117 = vmatpush1.msra.mxu0 0.0
        %2118 = vmatprep.subr.mxu0 0.0
        %2119 = vmatpush1.msra.mxu0 0.0
        %2120 = vmatprep.subr.mxu0 0.0
        %2121 = vmatpush1.msra.mxu0 0.0
        %2122 = vmatprep.subr.mxu0 0.0
        %2123 = vmatpush1.msra.mxu0 0.0
        %2124 = vmatprep.mubr.f32.mxu0 0.0
        %2125 = vmatmul.mubr.f32.gmra.mrb[0].mxu0 %v2055
        %v2126 = vpop.f32.mrb[0].mxu0
        %v2127 = vadd.f32 %v2046, %v2126
        %v2128 = vpop.f32.mrb[0].mxu0
        %2129 = vmatprep.mubr.f32.mxu0 0.0
        %2130 = vmatmul.mubr.f32.gmra.mrb[0].mxu0 %v2058
        %v2131 = vpop.f32.mrb[0].mxu0
        %v2132 = vadd.f32 %v2051, %v2131
        %v2133 = vpop.f32.mrb[0].mxu0
        %2134 = vdwg.mxu0
        %v2135 = vadd.f32 %v2127, %v531
        %v2136 = vadd.f32 %v2132, %v536
        %v2137 = vmax.f32 %v2135, 0.0
        %v2138 = vmax.f32 %v2136, 0.0
        %v2140 = vcombine.high %v2137, %v2137
        %v2142 = vunpack.c.l.s4 1966171168
        %v2143 = vunpack.c.0.s8 %v2142
        %v2144 = vlaneseq
        %v2145 = vshrl.u32 %v2144, 7
        %v2146 = vsub.s32 %v2143, %v2145
        %v2147 = vrot.slane %v2137, %v2146
        %v2149 = vunpack.c.l.s4 1966171168
        %v2150 = vunpack.c.0.s8 %v2149
        %v2151 = vlaneseq
        %v2152 = vshrl.u32 %v2151, 7
        %v2153 = vsub.s32 %v2150, %v2152
        %v2154 = vrot.slane %v2140, %v2153
        %v2155 = vcombine.high %v2147, %v2147
        %v2156 = vcombine.high %v2154, %v2154
        %v2158 = vunpack.c.l.s4 1966171168
        %v2159 = vunpack.c.0.s8 %v2158
        %v2160 = vlaneseq
        %v2161 = vshrl.u32 %v2160, 7
        %v2162 = vsub.s32 %v2159, %v2161
        %v2163 = vrot.slane %v2147, %v2162
        %v2165 = vunpack.c.l.s4 1966171168
        %v2166 = vunpack.c.0.s8 %v2165
        %v2167 = vlaneseq
        %v2168 = vshrl.u32 %v2167, 7
        %v2169 = vsub.s32 %v2166, %v2168
        %v2170 = vrot.slane %v2154, %v2169
        %v2172 = vunpack.c.l.s4 1966171168
        %v2173 = vunpack.c.0.s8 %v2172
        %v2174 = vlaneseq
        %v2175 = vshrl.u32 %v2174, 7
        %v2176 = vsub.s32 %v2173, %v2175
        %v2177 = vrot.slane %v2155, %v2176
        %v2179 = vunpack.c.l.s4 1966171168
        %v2180 = vunpack.c.0.s8 %v2179
        %v2181 = vlaneseq
        %v2182 = vshrl.u32 %v2181, 7
        %v2183 = vsub.s32 %v2180, %v2182
        %v2184 = vrot.slane %v2156, %v2183
        %v2185 = vcombine.high %v2163, %v2163
        %v2186 = vcombine.high %v2170, %v2170
        %v2187 = vcombine.high %v2177, %v2177
        %v2188 = vcombine.high %v2184, %v2184
        %2197 = vst.msk [vmem:[%s233 + $0x8] sm:$0x1] %vm600, %v2163
        %2198 = vst.msk [vmem:[%s233 + $0x28] sm:$0x1] %vm600, %v2177
        %2199 = vst.msk [vmem:[%s233 + $0x48] sm:$0x1] %vm600, %v2185
        %2200 = vst.msk [vmem:[%s233 + $0x68] sm:$0x1] %vm600, %v2187
        %2201 = vst.msk [vmem:[%s233 + $0x88] sm:$0x1] %vm600, %v2170
        %2202 = vst.msk [vmem:[%s233 + $0xa8] sm:$0x1] %vm600, %v2184
        %2203 = vst.msk [vmem:[%s233 + $0xc8] sm:$0x1] %vm600, %v2186
        %2204 = vst.msk [vmem:[%s233 + $0xe8] sm:$0x1] %vm600, %v2188
        %v2206 = vcombine.high %v2138, %v2138
        %v2208 = vunpack.c.l.s4 1966171168
        %v2209 = vunpack.c.0.s8 %v2208
        %v2210 = vlaneseq
        %v2211 = vshrl.u32 %v2210, 7
        %v2212 = vsub.s32 %v2209, %v2211
        %v2213 = vrot.slane %v2138, %v2212
        %v2215 = vunpack.c.l.s4 1966171168
        %v2216 = vunpack.c.0.s8 %v2215
        %v2217 = vlaneseq
        %v2218 = vshrl.u32 %v2217, 7
        %v2219 = vsub.s32 %v2216, %v2218
        %v2220 = vrot.slane %v2206, %v2219
        %v2221 = vcombine.high %v2213, %v2213
        %v2222 = vcombine.high %v2220, %v2220
        %v2224 = vunpack.c.l.s4 1966171168
        %v2225 = vunpack.c.0.s8 %v2224
        %v2226 = vlaneseq
        %v2227 = vshrl.u32 %v2226, 7
        %v2228 = vsub.s32 %v2225, %v2227
        %v2229 = vrot.slane %v2213, %v2228
        %v2231 = vunpack.c.l.s4 1966171168
        %v2232 = vunpack.c.0.s8 %v2231
        %v2233 = vlaneseq
        %v2234 = vshrl.u32 %v2233, 7
        %v2235 = vsub.s32 %v2232, %v2234
        %v2236 = vrot.slane %v2220, %v2235
        %v2238 = vunpack.c.l.s4 1966171168
        %v2239 = vunpack.c.0.s8 %v2238
        %v2240 = vlaneseq
        %v2241 = vshrl.u32 %v2240, 7
        %v2242 = vsub.s32 %v2239, %v2241
        %v2243 = vrot.slane %v2221, %v2242
        %v2245 = vunpack.c.l.s4 1966171168
        %v2246 = vunpack.c.0.s8 %v2245
        %v2247 = vlaneseq
        %v2248 = vshrl.u32 %v2247, 7
        %v2249 = vsub.s32 %v2246, %v2248
        %v2250 = vrot.slane %v2222, %v2249
        %v2251 = vcombine.high %v2229, %v2229
        %v2252 = vcombine.high %v2236, %v2236
        %v2253 = vcombine.high %v2243, %v2243
        %v2254 = vcombine.high %v2250, %v2250
        %2263 = vst.msk [vmem:[%s233 + $0x9] sm:$0x1] %vm600, %v2229
        %2264 = vst.msk [vmem:[%s233 + $0x29] sm:$0x1] %vm600, %v2243
        %2265 = vst.msk [vmem:[%s233 + $0x49] sm:$0x1] %vm600, %v2251
        %2266 = vst.msk [vmem:[%s233 + $0x69] sm:$0x1] %vm600, %v2253
        %2267 = vst.msk [vmem:[%s233 + $0x89] sm:$0x1] %vm600, %v2236
        %2268 = vst.msk [vmem:[%s233 + $0xa9] sm:$0x1] %vm600, %v2250
        %2269 = vst.msk [vmem:[%s233 + $0xc9] sm:$0x1] %vm600, %v2252
        %2270 = vst.msk [vmem:[%s233 + $0xe9] sm:$0x1] %vm600, %v2254
        %v2271 = vld [vmem:[%s209 + $0x5] sm:$0x1]
        %v2272 = vld [vmem:[%s209 + $0x15] sm:$0x1]
        %v2273 = vld [vmem:[%s209 + $0x25] sm:$0x1]
        %v2274 = vld [vmem:[%s209 + $0x35] sm:$0x1]
        %v2279 = vrot.slane %v2272, 7
        %v2280 = vsel %vm256, %v2279, %v2271
        %v2281 = vrot.slane %v2273, 6
        %v2282 = vsel %vm259, %v2281, %v2280
        %v2283 = vrot.slane %v2274, 5
        %v2284 = vsel %vm262, %v2283, %v2282
        %v2285 = vsel %vm277, %v2284, 0
        %2287 = vmatprep.subr.mxu0 0.0
        %2288 = vmatpush1.msra.mxu0 %v2285
        %2289 = vmatprep.subr.mxu0 0.0
        %2290 = vmatpush1.msra.mxu0 0.0
        %2291 = vmatprep.subr.mxu0 0.0
        %2292 = vmatpush1.msra.mxu0 0.0
        %2293 = vmatprep.subr.mxu0 0.0
        %2294 = vmatpush1.msra.mxu0 0.0
        %2295 = vmatprep.subr.mxu0 0.0
        %2296 = vmatpush1.msra.mxu0 0.0
        %2297 = vmatprep.subr.mxu0 0.0
        %2298 = vmatpush1.msra.mxu0 0.0
        %2299 = vmatprep.subr.mxu0 0.0
        %2300 = vmatpush1.msra.mxu0 0.0
        %2301 = vmatprep.subr.mxu0 0.0
        %2302 = vmatpush1.msra.mxu0 0.0
        %2303 = vmatprep.subr.mxu0 0.0
        %2304 = vmatpush1.msra.mxu0 0.0
        %2305 = vmatprep.subr.mxu0 0.0
        %2306 = vmatpush1.msra.mxu0 0.0
        %2307 = vmatprep.subr.mxu0 0.0
        %2308 = vmatpush1.msra.mxu0 0.0
        %2309 = vmatprep.subr.mxu0 0.0
        %2310 = vmatpush1.msra.mxu0 0.0
        %2311 = vmatprep.subr.mxu0 0.0
        %2312 = vmatpush1.msra.mxu0 0.0
        %2313 = vmatprep.subr.mxu0 0.0
        %2314 = vmatpush1.msra.mxu0 0.0
        %2315 = vmatprep.subr.mxu0 0.0
        %2316 = vmatpush1.msra.mxu0 0.0
        %2317 = vmatprep.subr.mxu0 0.0
        %2318 = vmatpush1.msra.mxu0 0.0
        %2319 = vmatprep.subr.mxu0 0.0
        %2320 = vmatpush1.msra.mxu0 0.0
        %2321 = vmatprep.subr.mxu0 0.0
        %2322 = vmatpush1.msra.mxu0 0.0
        %2323 = vmatprep.subr.mxu0 0.0
        %2324 = vmatpush1.msra.mxu0 0.0
        %2325 = vmatprep.subr.mxu0 0.0
        %2326 = vmatpush1.msra.mxu0 0.0
        %2327 = vmatprep.subr.mxu0 0.0
        %2328 = vmatpush1.msra.mxu0 0.0
        %2329 = vmatprep.subr.mxu0 0.0
        %2330 = vmatpush1.msra.mxu0 0.0
        %2331 = vmatprep.subr.mxu0 0.0
        %2332 = vmatpush1.msra.mxu0 0.0
        %2333 = vmatprep.subr.mxu0 0.0
        %2334 = vmatpush1.msra.mxu0 0.0
        %2335 = vmatprep.subr.mxu0 0.0
        %2336 = vmatpush1.msra.mxu0 0.0
        %2337 = vmatprep.subr.mxu0 0.0
        %2338 = vmatpush1.msra.mxu0 0.0
        %2339 = vmatprep.subr.mxu0 0.0
        %2340 = vmatpush1.msra.mxu0 0.0
        %2341 = vmatprep.subr.mxu0 0.0
        %2342 = vmatpush1.msra.mxu0 0.0
        %2343 = vmatprep.subr.mxu0 0.0
        %2344 = vmatpush1.msra.mxu0 0.0
        %2345 = vmatprep.subr.mxu0 0.0
        %2346 = vmatpush1.msra.mxu0 0.0
        %2347 = vmatprep.subr.mxu0 0.0
        %2348 = vmatpush1.msra.mxu0 0.0
        %2349 = vmatprep.subr.mxu0 0.0
        %2350 = vmatpush1.msra.mxu0 0.0
        %2351 = vmatprep.mubr.f32.mxu0 0.0
        %2352 = vmatmul.mubr.f32.gmra.mrb[0].mxu0 %v266
        %v2353 = vpop.f32.mrb[0].mxu0
        %v2354 = vadd.f32 0.0, %v2353
        %v2355 = vpop.f32.mrb[0].mxu0
        %2356 = vmatprep.mubr.f32.mxu0 0.0
        %2357 = vmatmul.mubr.f32.gmra.mrb[0].mxu0 %v269
        %v2358 = vpop.f32.mrb[0].mxu0
        %v2359 = vadd.f32 0.0, %v2358
        %v2360 = vpop.f32.mrb[0].mxu0
        %2361 = vmatprep.mubr.f32.mxu0 0.0
        %2362 = vmatmul.mubr.f32.gmra.mrb[0].mxu0 %v272
        %v2363 = vpop.f32.mrb[0].mxu0
        %v2364 = vadd.f32 0.0, %v2363
        %v2365 = vpop.f32.mrb[0].mxu0
        %2366 = vmatprep.mubr.f32.mxu0 0.0
        %2367 = vmatmul.mubr.f32.gmra.mrb[0].mxu0 %v275
        %v2368 = vpop.f32.mrb[0].mxu0
        %v2369 = vadd.f32 0.0, %v2368
        %v2370 = vpop.f32.mrb[0].mxu0
        %2371 = vdwg.mxu0
        %v2373 = vsel %vm365, %v2364, 0
        %v2376 = vsel %vm365, %v2369, 0
        %2378 = vmatprep.subr.mxu0 0.0
        %2379 = vmatpush1.msra.mxu0 %v243
        %2380 = vmatprep.subr.mxu0 0.0
        %2381 = vmatpush1.msra.mxu0 %v244
        %2382 = vmatprep.subr.mxu0 0.0
        %2383 = vmatpush1.msra.mxu0 0.0
        %2384 = vmatprep.subr.mxu0 0.0
        %2385 = vmatpush1.msra.mxu0 0.0
        %2386 = vmatprep.subr.mxu0 0.0
        %2387 = vmatpush1.msra.mxu0 0.0
        %2388 = vmatprep.subr.mxu0 0.0
        %2389 = vmatpush1.msra.mxu0 0.0
        %2390 = vmatprep.subr.mxu0 0.0
        %2391 = vmatpush1.msra.mxu0 0.0
        %2392 = vmatprep.subr.mxu0 0.0
        %2393 = vmatpush1.msra.mxu0 0.0
        %2394 = vmatprep.subr.mxu0 0.0
        %2395 = vmatpush1.msra.mxu0 0.0
        %2396 = vmatprep.subr.mxu0 0.0
        %2397 = vmatpush1.msra.mxu0 0.0
        %2398 = vmatprep.subr.mxu0 0.0
        %2399 = vmatpush1.msra.mxu0 0.0
        %2400 = vmatprep.subr.mxu0 0.0
        %2401 = vmatpush1.msra.mxu0 0.0
        %2402 = vmatprep.subr.mxu0 0.0
        %2403 = vmatpush1.msra.mxu0 0.0
        %2404 = vmatprep.subr.mxu0 0.0
        %2405 = vmatpush1.msra.mxu0 0.0
        %2406 = vmatprep.subr.mxu0 0.0
        %2407 = vmatpush1.msra.mxu0 0.0
        %2408 = vmatprep.subr.mxu0 0.0
        %2409 = vmatpush1.msra.mxu0 0.0
        %2410 = vmatprep.subr.mxu0 0.0
        %2411 = vmatpush1.msra.mxu0 0.0
        %2412 = vmatprep.subr.mxu0 0.0
        %2413 = vmatpush1.msra.mxu0 0.0
        %2414 = vmatprep.subr.mxu0 0.0
        %2415 = vmatpush1.msra.mxu0 0.0
        %2416 = vmatprep.subr.mxu0 0.0
        %2417 = vmatpush1.msra.mxu0 0.0
        %2418 = vmatprep.subr.mxu0 0.0
        %2419 = vmatpush1.msra.mxu0 0.0
        %2420 = vmatprep.subr.mxu0 0.0
        %2421 = vmatpush1.msra.mxu0 0.0
        %2422 = vmatprep.subr.mxu0 0.0
        %2423 = vmatpush1.msra.mxu0 0.0
        %2424 = vmatprep.subr.mxu0 0.0
        %2425 = vmatpush1.msra.mxu0 0.0
        %2426 = vmatprep.subr.mxu0 0.0
        %2427 = vmatpush1.msra.mxu0 0.0
        %2428 = vmatprep.subr.mxu0 0.0
        %2429 = vmatpush1.msra.mxu0 0.0
        %2430 = vmatprep.subr.mxu0 0.0
        %2431 = vmatpush1.msra.mxu0 0.0
        %2432 = vmatprep.subr.mxu0 0.0
        %2433 = vmatpush1.msra.mxu0 0.0
        %2434 = vmatprep.subr.mxu0 0.0
        %2435 = vmatpush1.msra.mxu0 0.0
        %2436 = vmatprep.subr.mxu0 0.0
        %2437 = vmatpush1.msra.mxu0 0.0
        %2438 = vmatprep.subr.mxu0 0.0
        %2439 = vmatpush1.msra.mxu0 0.0
        %2440 = vmatprep.subr.mxu0 0.0
        %2441 = vmatpush1.msra.mxu0 0.0
        %2442 = vmatprep.mubr.f32.mxu0 0.0
        %2443 = vmatmul.mubr.f32.gmra.mrb[0].mxu0 %v2373
        %v2444 = vpop.f32.mrb[0].mxu0
        %v2445 = vadd.f32 0.0, %v2444
        %v2446 = vpop.f32.mrb[0].mxu0
        %2447 = vmatprep.mubr.f32.mxu0 0.0
        %2448 = vmatmul.mubr.f32.gmra.mrb[0].mxu0 %v2376
        %v2449 = vpop.f32.mrb[0].mxu0
        %v2450 = vadd.f32 0.0, %v2449
        %v2451 = vpop.f32.mrb[0].mxu0
        %2452 = vdwg.mxu0
        %v2454 = vsel %vm365, %v2354, 0
        %v2457 = vsel %vm365, %v2359, 0
        %2459 = vmatprep.subr.mxu0 0.0
        %2460 = vmatpush1.msra.mxu0 %v240
        %2461 = vmatprep.subr.mxu0 0.0
        %2462 = vmatpush1.msra.mxu0 %v241
        %2463 = vmatprep.subr.mxu0 0.0
        %2464 = vmatpush1.msra.mxu0 0.0
        %2465 = vmatprep.subr.mxu0 0.0
        %2466 = vmatpush1.msra.mxu0 0.0
        %2467 = vmatprep.subr.mxu0 0.0
        %2468 = vmatpush1.msra.mxu0 0.0
        %2469 = vmatprep.subr.mxu0 0.0
        %2470 = vmatpush1.msra.mxu0 0.0
        %2471 = vmatprep.subr.mxu0 0.0
        %2472 = vmatpush1.msra.mxu0 0.0
        %2473 = vmatprep.subr.mxu0 0.0
        %2474 = vmatpush1.msra.mxu0 0.0
        %2475 = vmatprep.subr.mxu0 0.0
        %2476 = vmatpush1.msra.mxu0 0.0
        %2477 = vmatprep.subr.mxu0 0.0
        %2478 = vmatpush1.msra.mxu0 0.0
        %2479 = vmatprep.subr.mxu0 0.0
        %2480 = vmatpush1.msra.mxu0 0.0
        %2481 = vmatprep.subr.mxu0 0.0
        %2482 = vmatpush1.msra.mxu0 0.0
        %2483 = vmatprep.subr.mxu0 0.0
        %2484 = vmatpush1.msra.mxu0 0.0
        %2485 = vmatprep.subr.mxu0 0.0
        %2486 = vmatpush1.msra.mxu0 0.0
        %2487 = vmatprep.subr.mxu0 0.0
        %2488 = vmatpush1.msra.mxu0 0.0
        %2489 = vmatprep.subr.mxu0 0.0
        %2490 = vmatpush1.msra.mxu0 0.0
        %2491 = vmatprep.subr.mxu0 0.0
        %2492 = vmatpush1.msra.mxu0 0.0
        %2493 = vmatprep.subr.mxu0 0.0
        %2494 = vmatpush1.msra.mxu0 0.0
        %2495 = vmatprep.subr.mxu0 0.0
        %2496 = vmatpush1.msra.mxu0 0.0
        %2497 = vmatprep.subr.mxu0 0.0
        %2498 = vmatpush1.msra.mxu0 0.0
        %2499 = vmatprep.subr.mxu0 0.0
        %2500 = vmatpush1.msra.mxu0 0.0
        %2501 = vmatprep.subr.mxu0 0.0
        %2502 = vmatpush1.msra.mxu0 0.0
        %2503 = vmatprep.subr.mxu0 0.0
        %2504 = vmatpush1.msra.mxu0 0.0
        %2505 = vmatprep.subr.mxu0 0.0
        %2506 = vmatpush1.msra.mxu0 0.0
        %2507 = vmatprep.subr.mxu0 0.0
        %2508 = vmatpush1.msra.mxu0 0.0
        %2509 = vmatprep.subr.mxu0 0.0
        %2510 = vmatpush1.msra.mxu0 0.0
        %2511 = vmatprep.subr.mxu0 0.0
        %2512 = vmatpush1.msra.mxu0 0.0
        %2513 = vmatprep.subr.mxu0 0.0
        %2514 = vmatpush1.msra.mxu0 0.0
        %2515 = vmatprep.subr.mxu0 0.0
        %2516 = vmatpush1.msra.mxu0 0.0
        %2517 = vmatprep.subr.mxu0 0.0
        %2518 = vmatpush1.msra.mxu0 0.0
        %2519 = vmatprep.subr.mxu0 0.0
        %2520 = vmatpush1.msra.mxu0 0.0
        %2521 = vmatprep.subr.mxu0 0.0
        %2522 = vmatpush1.msra.mxu0 0.0
        %2523 = vmatprep.mubr.f32.mxu0 0.0
        %2524 = vmatmul.mubr.f32.gmra.mrb[0].mxu0 %v2454
        %v2525 = vpop.f32.mrb[0].mxu0
        %v2526 = vadd.f32 %v2445, %v2525
        %v2527 = vpop.f32.mrb[0].mxu0
        %2528 = vmatprep.mubr.f32.mxu0 0.0
        %2529 = vmatmul.mubr.f32.gmra.mrb[0].mxu0 %v2457
        %v2530 = vpop.f32.mrb[0].mxu0
        %v2531 = vadd.f32 %v2450, %v2530
        %v2532 = vpop.f32.mrb[0].mxu0
        %2533 = vdwg.mxu0
        %v2534 = vadd.f32 %v2526, %v531
        %v2535 = vadd.f32 %v2531, %v536
        %v2536 = vmax.f32 %v2534, 0.0
        %v2537 = vmax.f32 %v2535, 0.0
        %v2539 = vcombine.high %v2536, %v2536
        %v2541 = vunpack.c.l.s4 1966171168
        %v2542 = vunpack.c.0.s8 %v2541
        %v2543 = vlaneseq
        %v2544 = vshrl.u32 %v2543, 7
        %v2545 = vsub.s32 %v2542, %v2544
        %v2546 = vrot.slane %v2536, %v2545
        %v2548 = vunpack.c.l.s4 1966171168
        %v2549 = vunpack.c.0.s8 %v2548
        %v2550 = vlaneseq
        %v2551 = vshrl.u32 %v2550, 7
        %v2552 = vsub.s32 %v2549, %v2551
        %v2553 = vrot.slane %v2539, %v2552
        %v2554 = vcombine.high %v2546, %v2546
        %v2555 = vcombine.high %v2553, %v2553
        %v2557 = vunpack.c.l.s4 1966171168
        %v2558 = vunpack.c.0.s8 %v2557
        %v2559 = vlaneseq
        %v2560 = vshrl.u32 %v2559, 7
        %v2561 = vsub.s32 %v2558, %v2560
        %v2562 = vrot.slane %v2546, %v2561
        %v2564 = vunpack.c.l.s4 1966171168
        %v2565 = vunpack.c.0.s8 %v2564
        %v2566 = vlaneseq
        %v2567 = vshrl.u32 %v2566, 7
        %v2568 = vsub.s32 %v2565, %v2567
        %v2569 = vrot.slane %v2553, %v2568
        %v2571 = vunpack.c.l.s4 1966171168
        %v2572 = vunpack.c.0.s8 %v2571
        %v2573 = vlaneseq
        %v2574 = vshrl.u32 %v2573, 7
        %v2575 = vsub.s32 %v2572, %v2574
        %v2576 = vrot.slane %v2554, %v2575
        %v2578 = vunpack.c.l.s4 1966171168
        %v2579 = vunpack.c.0.s8 %v2578
        %v2580 = vlaneseq
        %v2581 = vshrl.u32 %v2580, 7
        %v2582 = vsub.s32 %v2579, %v2581
        %v2583 = vrot.slane %v2555, %v2582
        %v2584 = vcombine.high %v2562, %v2562
        %v2585 = vcombine.high %v2569, %v2569
        %v2586 = vcombine.high %v2576, %v2576
        %v2587 = vcombine.high %v2583, %v2583
        %2596 = vst.msk [vmem:[%s233 + $0xa] sm:$0x1] %vm600, %v2562
        %2597 = vst.msk [vmem:[%s233 + $0x2a] sm:$0x1] %vm600, %v2576
        %2598 = vst.msk [vmem:[%s233 + $0x4a] sm:$0x1] %vm600, %v2584
        %2599 = vst.msk [vmem:[%s233 + $0x6a] sm:$0x1] %vm600, %v2586
        %2600 = vst.msk [vmem:[%s233 + $0x8a] sm:$0x1] %vm600, %v2569
        %2601 = vst.msk [vmem:[%s233 + $0xaa] sm:$0x1] %vm600, %v2583
        %2602 = vst.msk [vmem:[%s233 + $0xca] sm:$0x1] %vm600, %v2585
        %2603 = vst.msk [vmem:[%s233 + $0xea] sm:$0x1] %vm600, %v2587
        %v2605 = vcombine.high %v2537, %v2537
        %v2607 = vunpack.c.l.s4 1966171168
        %v2608 = vunpack.c.0.s8 %v2607
        %v2609 = vlaneseq
        %v2610 = vshrl.u32 %v2609, 7
        %v2611 = vsub.s32 %v2608, %v2610
        %v2612 = vrot.slane %v2537, %v2611
        %v2614 = vunpack.c.l.s4 1966171168
        %v2615 = vunpack.c.0.s8 %v2614
        %v2616 = vlaneseq
        %v2617 = vshrl.u32 %v2616, 7
        %v2618 = vsub.s32 %v2615, %v2617
        %v2619 = vrot.slane %v2605, %v2618
        %v2620 = vcombine.high %v2612, %v2612
        %v2621 = vcombine.high %v2619, %v2619
        %v2623 = vunpack.c.l.s4 1966171168
        %v2624 = vunpack.c.0.s8 %v2623
        %v2625 = vlaneseq
        %v2626 = vshrl.u32 %v2625, 7
        %v2627 = vsub.s32 %v2624, %v2626
        %v2628 = vrot.slane %v2612, %v2627
        %v2630 = vunpack.c.l.s4 1966171168
        %v2631 = vunpack.c.0.s8 %v2630
        %v2632 = vlaneseq
        %v2633 = vshrl.u32 %v2632, 7
        %v2634 = vsub.s32 %v2631, %v2633
        %v2635 = vrot.slane %v2619, %v2634
        %v2637 = vunpack.c.l.s4 1966171168
        %v2638 = vunpack.c.0.s8 %v2637
        %v2639 = vlaneseq
        %v2640 = vshrl.u32 %v2639, 7
        %v2641 = vsub.s32 %v2638, %v2640
        %v2642 = vrot.slane %v2620, %v2641
        %v2644 = vunpack.c.l.s4 1966171168
        %v2645 = vunpack.c.0.s8 %v2644
        %v2646 = vlaneseq
        %v2647 = vshrl.u32 %v2646, 7
        %v2648 = vsub.s32 %v2645, %v2647
        %v2649 = vrot.slane %v2621, %v2648
        %v2650 = vcombine.high %v2628, %v2628
        %v2651 = vcombine.high %v2635, %v2635
        %v2652 = vcombine.high %v2642, %v2642
        %v2653 = vcombine.high %v2649, %v2649
        %2662 = vst.msk [vmem:[%s233 + $0xb] sm:$0x1] %vm600, %v2628
        %2663 = vst.msk [vmem:[%s233 + $0x2b] sm:$0x1] %vm600, %v2642
        %2664 = vst.msk [vmem:[%s233 + $0x4b] sm:$0x1] %vm600, %v2650
        %2665 = vst.msk [vmem:[%s233 + $0x6b] sm:$0x1] %vm600, %v2652
        %2666 = vst.msk [vmem:[%s233 + $0x8b] sm:$0x1] %vm600, %v2635
        %2667 = vst.msk [vmem:[%s233 + $0xab] sm:$0x1] %vm600, %v2649
        %2668 = vst.msk [vmem:[%s233 + $0xcb] sm:$0x1] %vm600, %v2651
        %2669 = vst.msk [vmem:[%s233 + $0xeb] sm:$0x1] %vm600, %v2653
        %v2670 = vld [vmem:[%s209 + $0x6] sm:$0x1]
        %v2671 = vld [vmem:[%s209 + $0x16] sm:$0x1]
        %v2672 = vld [vmem:[%s209 + $0x26] sm:$0x1]
        %v2673 = vld [vmem:[%s209 + $0x36] sm:$0x1]
        %v2678 = vrot.slane %v2671, 7
        %v2679 = vsel %vm256, %v2678, %v2670
        %v2680 = vrot.slane %v2672, 6
        %v2681 = vsel %vm259, %v2680, %v2679
        %v2682 = vrot.slane %v2673, 5
        %v2683 = vsel %vm262, %v2682, %v2681
        %v2684 = vsel %vm277, %v2683, 0
        %2686 = vmatprep.subr.mxu0 0.0
        %2687 = vmatpush1.msra.mxu0 %v2684
        %2688 = vmatprep.subr.mxu0 0.0
        %2689 = vmatpush1.msra.mxu0 0.0
        %2690 = vmatprep.subr.mxu0 0.0
        %2691 = vmatpush1.msra.mxu0 0.0
        %2692 = vmatprep.subr.mxu0 0.0
        %2693 = vmatpush1.msra.mxu0 0.0
        %2694 = vmatprep.subr.mxu0 0.0
        %2695 = vmatpush1.msra.mxu0 0.0
        %2696 = vmatprep.subr.mxu0 0.0
        %2697 = vmatpush1.msra.mxu0 0.0
        %2698 = vmatprep.subr.mxu0 0.0
        %2699 = vmatpush1.msra.mxu0 0.0
        %2700 = vmatprep.subr.mxu0 0.0
        %2701 = vmatpush1.msra.mxu0 0.0
        %2702 = vmatprep.subr.mxu0 0.0
        %2703 = vmatpush1.msra.mxu0 0.0
        %2704 = vmatprep.subr.mxu0 0.0
        %2705 = vmatpush1.msra.mxu0 0.0
        %2706 = vmatprep.subr.mxu0 0.0
        %2707 = vmatpush1.msra.mxu0 0.0
        %2708 = vmatprep.subr.mxu0 0.0
        %2709 = vmatpush1.msra.mxu0 0.0
        %2710 = vmatprep.subr.mxu0 0.0
        %2711 = vmatpush1.msra.mxu0 0.0
        %2712 = vmatprep.subr.mxu0 0.0
        %2713 = vmatpush1.msra.mxu0 0.0
        %2714 = vmatprep.subr.mxu0 0.0
        %2715 = vmatpush1.msra.mxu0 0.0
        %2716 = vmatprep.subr.mxu0 0.0
        %2717 = vmatpush1.msra.mxu0 0.0
        %2718 = vmatprep.subr.mxu0 0.0
        %2719 = vmatpush1.msra.mxu0 0.0
        %2720 = vmatprep.subr.mxu0 0.0
        %2721 = vmatpush1.msra.mxu0 0.0
        %2722 = vmatprep.subr.mxu0 0.0
        %2723 = vmatpush1.msra.mxu0 0.0
        %2724 = vmatprep.subr.mxu0 0.0
        %2725 = vmatpush1.msra.mxu0 0.0
        %2726 = vmatprep.subr.mxu0 0.0
        %2727 = vmatpush1.msra.mxu0 0.0
        %2728 = vmatprep.subr.mxu0 0.0
        %2729 = vmatpush1.msra.mxu0 0.0
        %2730 = vmatprep.subr.mxu0 0.0
        %2731 = vmatpush1.msra.mxu0 0.0
        %2732 = vmatprep.subr.mxu0 0.0
        %2733 = vmatpush1.msra.mxu0 0.0
        %2734 = vmatprep.subr.mxu0 0.0
        %2735 = vmatpush1.msra.mxu0 0.0
        %2736 = vmatprep.subr.mxu0 0.0
        %2737 = vmatpush1.msra.mxu0 0.0
        %2738 = vmatprep.subr.mxu0 0.0
        %2739 = vmatpush1.msra.mxu0 0.0
        %2740 = vmatprep.subr.mxu0 0.0
        %2741 = vmatpush1.msra.mxu0 0.0
        %2742 = vmatprep.subr.mxu0 0.0
        %2743 = vmatpush1.msra.mxu0 0.0
        %2744 = vmatprep.subr.mxu0 0.0
        %2745 = vmatpush1.msra.mxu0 0.0
        %2746 = vmatprep.subr.mxu0 0.0
        %2747 = vmatpush1.msra.mxu0 0.0
        %2748 = vmatprep.subr.mxu0 0.0
        %2749 = vmatpush1.msra.mxu0 0.0
        %2750 = vmatprep.mubr.f32.mxu0 0.0
        %2751 = vmatmul.mubr.f32.gmra.mrb[0].mxu0 %v266
        %v2752 = vpop.f32.mrb[0].mxu0
        %v2753 = vadd.f32 0.0, %v2752
        %v2754 = vpop.f32.mrb[0].mxu0
        %2755 = vmatprep.mubr.f32.mxu0 0.0
        %2756 = vmatmul.mubr.f32.gmra.mrb[0].mxu0 %v269
        %v2757 = vpop.f32.mrb[0].mxu0
        %v2758 = vadd.f32 0.0, %v2757
        %v2759 = vpop.f32.mrb[0].mxu0
        %2760 = vmatprep.mubr.f32.mxu0 0.0
        %2761 = vmatmul.mubr.f32.gmra.mrb[0].mxu0 %v272
        %v2762 = vpop.f32.mrb[0].mxu0
        %v2763 = vadd.f32 0.0, %v2762
        %v2764 = vpop.f32.mrb[0].mxu0
        %2765 = vmatprep.mubr.f32.mxu0 0.0
        %2766 = vmatmul.mubr.f32.gmra.mrb[0].mxu0 %v275
        %v2767 = vpop.f32.mrb[0].mxu0
        %v2768 = vadd.f32 0.0, %v2767
        %v2769 = vpop.f32.mrb[0].mxu0
        %2770 = vdwg.mxu0
        %v2772 = vsel %vm365, %v2763, 0
        %v2775 = vsel %vm365, %v2768, 0
        %2777 = vmatprep.subr.mxu0 0.0
        %2778 = vmatpush1.msra.mxu0 %v243
        %2779 = vmatprep.subr.mxu0 0.0
        %2780 = vmatpush1.msra.mxu0 %v244
        %2781 = vmatprep.subr.mxu0 0.0
        %2782 = vmatpush1.msra.mxu0 0.0
        %2783 = vmatprep.subr.mxu0 0.0
        %2784 = vmatpush1.msra.mxu0 0.0
        %2785 = vmatprep.subr.mxu0 0.0
        %2786 = vmatpush1.msra.mxu0 0.0
        %2787 = vmatprep.subr.mxu0 0.0
        %2788 = vmatpush1.msra.mxu0 0.0
        %2789 = vmatprep.subr.mxu0 0.0
        %2790 = vmatpush1.msra.mxu0 0.0
        %2791 = vmatprep.subr.mxu0 0.0
        %2792 = vmatpush1.msra.mxu0 0.0
        %2793 = vmatprep.subr.mxu0 0.0
        %2794 = vmatpush1.msra.mxu0 0.0
        %2795 = vmatprep.subr.mxu0 0.0
        %2796 = vmatpush1.msra.mxu0 0.0
        %2797 = vmatprep.subr.mxu0 0.0
        %2798 = vmatpush1.msra.mxu0 0.0
        %2799 = vmatprep.subr.mxu0 0.0
        %2800 = vmatpush1.msra.mxu0 0.0
        %2801 = vmatprep.subr.mxu0 0.0
        %2802 = vmatpush1.msra.mxu0 0.0
        %2803 = vmatprep.subr.mxu0 0.0
        %2804 = vmatpush1.msra.mxu0 0.0
        %2805 = vmatprep.subr.mxu0 0.0
        %2806 = vmatpush1.msra.mxu0 0.0
        %2807 = vmatprep.subr.mxu0 0.0
        %2808 = vmatpush1.msra.mxu0 0.0
        %2809 = vmatprep.subr.mxu0 0.0
        %2810 = vmatpush1.msra.mxu0 0.0
        %2811 = vmatprep.subr.mxu0 0.0
        %2812 = vmatpush1.msra.mxu0 0.0
        %2813 = vmatprep.subr.mxu0 0.0
        %2814 = vmatpush1.msra.mxu0 0.0
        %2815 = vmatprep.subr.mxu0 0.0
        %2816 = vmatpush1.msra.mxu0 0.0
        %2817 = vmatprep.subr.mxu0 0.0
        %2818 = vmatpush1.msra.mxu0 0.0
        %2819 = vmatprep.subr.mxu0 0.0
        %2820 = vmatpush1.msra.mxu0 0.0
        %2821 = vmatprep.subr.mxu0 0.0
        %2822 = vmatpush1.msra.mxu0 0.0
        %2823 = vmatprep.subr.mxu0 0.0
        %2824 = vmatpush1.msra.mxu0 0.0
        %2825 = vmatprep.subr.mxu0 0.0
        %2826 = vmatpush1.msra.mxu0 0.0
        %2827 = vmatprep.subr.mxu0 0.0
        %2828 = vmatpush1.msra.mxu0 0.0
        %2829 = vmatprep.subr.mxu0 0.0
        %2830 = vmatpush1.msra.mxu0 0.0
        %2831 = vmatprep.subr.mxu0 0.0
        %2832 = vmatpush1.msra.mxu0 0.0
        %2833 = vmatprep.subr.mxu0 0.0
        %2834 = vmatpush1.msra.mxu0 0.0
        %2835 = vmatprep.subr.mxu0 0.0
        %2836 = vmatpush1.msra.mxu0 0.0
        %2837 = vmatprep.subr.mxu0 0.0
        %2838 = vmatpush1.msra.mxu0 0.0
        %2839 = vmatprep.subr.mxu0 0.0
        %2840 = vmatpush1.msra.mxu0 0.0
        %2841 = vmatprep.mubr.f32.mxu0 0.0
        %2842 = vmatmul.mubr.f32.gmra.mrb[0].mxu0 %v2772
        %v2843 = vpop.f32.mrb[0].mxu0
        %v2844 = vadd.f32 0.0, %v2843
        %v2845 = vpop.f32.mrb[0].mxu0
        %2846 = vmatprep.mubr.f32.mxu0 0.0
        %2847 = vmatmul.mubr.f32.gmra.mrb[0].mxu0 %v2775
        %v2848 = vpop.f32.mrb[0].mxu0
        %v2849 = vadd.f32 0.0, %v2848
        %v2850 = vpop.f32.mrb[0].mxu0
        %2851 = vdwg.mxu0
        %v2853 = vsel %vm365, %v2753, 0
        %v2856 = vsel %vm365, %v2758, 0
        %2858 = vmatprep.subr.mxu0 0.0
        %2859 = vmatpush1.msra.mxu0 %v240
        %2860 = vmatprep.subr.mxu0 0.0
        %2861 = vmatpush1.msra.mxu0 %v241
        %2862 = vmatprep.subr.mxu0 0.0
        %2863 = vmatpush1.msra.mxu0 0.0
        %2864 = vmatprep.subr.mxu0 0.0
        %2865 = vmatpush1.msra.mxu0 0.0
        %2866 = vmatprep.subr.mxu0 0.0
        %2867 = vmatpush1.msra.mxu0 0.0
        %2868 = vmatprep.subr.mxu0 0.0
        %2869 = vmatpush1.msra.mxu0 0.0
        %2870 = vmatprep.subr.mxu0 0.0
        %2871 = vmatpush1.msra.mxu0 0.0
        %2872 = vmatprep.subr.mxu0 0.0
        %2873 = vmatpush1.msra.mxu0 0.0
        %2874 = vmatprep.subr.mxu0 0.0
        %2875 = vmatpush1.msra.mxu0 0.0
        %2876 = vmatprep.subr.mxu0 0.0
        %2877 = vmatpush1.msra.mxu0 0.0
        %2878 = vmatprep.subr.mxu0 0.0
        %2879 = vmatpush1.msra.mxu0 0.0
        %2880 = vmatprep.subr.mxu0 0.0
        %2881 = vmatpush1.msra.mxu0 0.0
        %2882 = vmatprep.subr.mxu0 0.0
        %2883 = vmatpush1.msra.mxu0 0.0
        %2884 = vmatprep.subr.mxu0 0.0
        %2885 = vmatpush1.msra.mxu0 0.0
        %2886 = vmatprep.subr.mxu0 0.0
        %2887 = vmatpush1.msra.mxu0 0.0
        %2888 = vmatprep.subr.mxu0 0.0
        %2889 = vmatpush1.msra.mxu0 0.0
        %2890 = vmatprep.subr.mxu0 0.0
        %2891 = vmatpush1.msra.mxu0 0.0
        %2892 = vmatprep.subr.mxu0 0.0
        %2893 = vmatpush1.msra.mxu0 0.0
        %2894 = vmatprep.subr.mxu0 0.0
        %2895 = vmatpush1.msra.mxu0 0.0
        %2896 = vmatprep.subr.mxu0 0.0
        %2897 = vmatpush1.msra.mxu0 0.0
        %2898 = vmatprep.subr.mxu0 0.0
        %2899 = vmatpush1.msra.mxu0 0.0
        %2900 = vmatprep.subr.mxu0 0.0
        %2901 = vmatpush1.msra.mxu0 0.0
        %2902 = vmatprep.subr.mxu0 0.0
        %2903 = vmatpush1.msra.mxu0 0.0
        %2904 = vmatprep.subr.mxu0 0.0
        %2905 = vmatpush1.msra.mxu0 0.0
        %2906 = vmatprep.subr.mxu0 0.0
        %2907 = vmatpush1.msra.mxu0 0.0
        %2908 = vmatprep.subr.mxu0 0.0
        %2909 = vmatpush1.msra.mxu0 0.0
        %2910 = vmatprep.subr.mxu0 0.0
        %2911 = vmatpush1.msra.mxu0 0.0
        %2912 = vmatprep.subr.mxu0 0.0
        %2913 = vmatpush1.msra.mxu0 0.0
        %2914 = vmatprep.subr.mxu0 0.0
        %2915 = vmatpush1.msra.mxu0 0.0
        %2916 = vmatprep.subr.mxu0 0.0
        %2917 = vmatpush1.msra.mxu0 0.0
        %2918 = vmatprep.subr.mxu0 0.0
        %2919 = vmatpush1.msra.mxu0 0.0
        %2920 = vmatprep.subr.mxu0 0.0
        %2921 = vmatpush1.msra.mxu0 0.0
        %2922 = vmatprep.mubr.f32.mxu0 0.0
        %2923 = vmatmul.mubr.f32.gmra.mrb[0].mxu0 %v2853
        %v2924 = vpop.f32.mrb[0].mxu0
        %v2925 = vadd.f32 %v2844, %v2924
        %v2926 = vpop.f32.mrb[0].mxu0
        %2927 = vmatprep.mubr.f32.mxu0 0.0
        %2928 = vmatmul.mubr.f32.gmra.mrb[0].mxu0 %v2856
        %v2929 = vpop.f32.mrb[0].mxu0
        %v2930 = vadd.f32 %v2849, %v2929
        %v2931 = vpop.f32.mrb[0].mxu0
        %2932 = vdwg.mxu0
        %v2933 = vadd.f32 %v2925, %v531
        %v2934 = vadd.f32 %v2930, %v536
        %v2935 = vmax.f32 %v2933, 0.0
        %v2936 = vmax.f32 %v2934, 0.0
        %v2938 = vcombine.high %v2935, %v2935
        %v2940 = vunpack.c.l.s4 1966171168
        %v2941 = vunpack.c.0.s8 %v2940
        %v2942 = vlaneseq
        %v2943 = vshrl.u32 %v2942, 7
        %v2944 = vsub.s32 %v2941, %v2943
        %v2945 = vrot.slane %v2935, %v2944
        %v2947 = vunpack.c.l.s4 1966171168
        %v2948 = vunpack.c.0.s8 %v2947
        %v2949 = vlaneseq
        %v2950 = vshrl.u32 %v2949, 7
        %v2951 = vsub.s32 %v2948, %v2950
        %v2952 = vrot.slane %v2938, %v2951
        %v2953 = vcombine.high %v2945, %v2945
        %v2954 = vcombine.high %v2952, %v2952
        %v2956 = vunpack.c.l.s4 1966171168
        %v2957 = vunpack.c.0.s8 %v2956
        %v2958 = vlaneseq
        %v2959 = vshrl.u32 %v2958, 7
        %v2960 = vsub.s32 %v2957, %v2959
        %v2961 = vrot.slane %v2945, %v2960
        %v2963 = vunpack.c.l.s4 1966171168
        %v2964 = vunpack.c.0.s8 %v2963
        %v2965 = vlaneseq
        %v2966 = vshrl.u32 %v2965, 7
        %v2967 = vsub.s32 %v2964, %v2966
        %v2968 = vrot.slane %v2952, %v2967
        %v2970 = vunpack.c.l.s4 1966171168
        %v2971 = vunpack.c.0.s8 %v2970
        %v2972 = vlaneseq
        %v2973 = vshrl.u32 %v2972, 7
        %v2974 = vsub.s32 %v2971, %v2973
        %v2975 = vrot.slane %v2953, %v2974
        %v2977 = vunpack.c.l.s4 1966171168
        %v2978 = vunpack.c.0.s8 %v2977
        %v2979 = vlaneseq
        %v2980 = vshrl.u32 %v2979, 7
        %v2981 = vsub.s32 %v2978, %v2980
        %v2982 = vrot.slane %v2954, %v2981
        %v2983 = vcombine.high %v2961, %v2961
        %v2984 = vcombine.high %v2968, %v2968
        %v2985 = vcombine.high %v2975, %v2975
        %v2986 = vcombine.high %v2982, %v2982
        %2995 = vst.msk [vmem:[%s233 + $0xc] sm:$0x1] %vm600, %v2961
        %2996 = vst.msk [vmem:[%s233 + $0x2c] sm:$0x1] %vm600, %v2975
        %2997 = vst.msk [vmem:[%s233 + $0x4c] sm:$0x1] %vm600, %v2983
        %2998 = vst.msk [vmem:[%s233 + $0x6c] sm:$0x1] %vm600, %v2985
        %2999 = vst.msk [vmem:[%s233 + $0x8c] sm:$0x1] %vm600, %v2968
        %3000 = vst.msk [vmem:[%s233 + $0xac] sm:$0x1] %vm600, %v2982
        %3001 = vst.msk [vmem:[%s233 + $0xcc] sm:$0x1] %vm600, %v2984
        %3002 = vst.msk [vmem:[%s233 + $0xec] sm:$0x1] %vm600, %v2986
        %v3004 = vcombine.high %v2936, %v2936
        %v3006 = vunpack.c.l.s4 1966171168
        %v3007 = vunpack.c.0.s8 %v3006
        %v3008 = vlaneseq
        %v3009 = vshrl.u32 %v3008, 7
        %v3010 = vsub.s32 %v3007, %v3009
        %v3011 = vrot.slane %v2936, %v3010
        %v3013 = vunpack.c.l.s4 1966171168
        %v3014 = vunpack.c.0.s8 %v3013
        %v3015 = vlaneseq
        %v3016 = vshrl.u32 %v3015, 7
        %v3017 = vsub.s32 %v3014, %v3016
        %v3018 = vrot.slane %v3004, %v3017
        %v3019 = vcombine.high %v3011, %v3011
        %v3020 = vcombine.high %v3018, %v3018
        %v3022 = vunpack.c.l.s4 1966171168
        %v3023 = vunpack.c.0.s8 %v3022
        %v3024 = vlaneseq
        %v3025 = vshrl.u32 %v3024, 7
        %v3026 = vsub.s32 %v3023, %v3025
        %v3027 = vrot.slane %v3011, %v3026
        %v3029 = vunpack.c.l.s4 1966171168
        %v3030 = vunpack.c.0.s8 %v3029
        %v3031 = vlaneseq
        %v3032 = vshrl.u32 %v3031, 7
        %v3033 = vsub.s32 %v3030, %v3032
        %v3034 = vrot.slane %v3018, %v3033
        %v3036 = vunpack.c.l.s4 1966171168
        %v3037 = vunpack.c.0.s8 %v3036
        %v3038 = vlaneseq
        %v3039 = vshrl.u32 %v3038, 7
        %v3040 = vsub.s32 %v3037, %v3039
        %v3041 = vrot.slane %v3019, %v3040
        %v3043 = vunpack.c.l.s4 1966171168
        %v3044 = vunpack.c.0.s8 %v3043
        %v3045 = vlaneseq
        %v3046 = vshrl.u32 %v3045, 7
        %v3047 = vsub.s32 %v3044, %v3046
        %v3048 = vrot.slane %v3020, %v3047
        %v3049 = vcombine.high %v3027, %v3027
        %v3050 = vcombine.high %v3034, %v3034
        %v3051 = vcombine.high %v3041, %v3041
        %v3052 = vcombine.high %v3048, %v3048
        %3061 = vst.msk [vmem:[%s233 + $0xd] sm:$0x1] %vm600, %v3027
        %3062 = vst.msk [vmem:[%s233 + $0x2d] sm:$0x1] %vm600, %v3041
        %3063 = vst.msk [vmem:[%s233 + $0x4d] sm:$0x1] %vm600, %v3049
        %3064 = vst.msk [vmem:[%s233 + $0x6d] sm:$0x1] %vm600, %v3051
        %3065 = vst.msk [vmem:[%s233 + $0x8d] sm:$0x1] %vm600, %v3034
        %3066 = vst.msk [vmem:[%s233 + $0xad] sm:$0x1] %vm600, %v3048
        %3067 = vst.msk [vmem:[%s233 + $0xcd] sm:$0x1] %vm600, %v3050
        %3068 = vst.msk [vmem:[%s233 + $0xed] sm:$0x1] %vm600, %v3052
        %v3069 = vld [vmem:[%s209 + $0x7] sm:$0x1]
        %v3070 = vld [vmem:[%s209 + $0x17] sm:$0x1]
        %v3071 = vld [vmem:[%s209 + $0x27] sm:$0x1]
        %v3072 = vld [vmem:[%s209 + $0x37] sm:$0x1]
        %v3077 = vrot.slane %v3070, 7
        %v3078 = vsel %vm256, %v3077, %v3069
        %v3079 = vrot.slane %v3071, 6
        %v3080 = vsel %vm259, %v3079, %v3078
        %v3081 = vrot.slane %v3072, 5
        %v3082 = vsel %vm262, %v3081, %v3080
        %v3083 = vsel %vm277, %v3082, 0
        %3085 = vmatprep.subr.mxu0 0.0
        %3086 = vmatpush1.msra.mxu0 %v3083
        %3087 = vmatprep.subr.mxu0 0.0
        %3088 = vmatpush1.msra.mxu0 0.0
        %3089 = vmatprep.subr.mxu0 0.0
        %3090 = vmatpush1.msra.mxu0 0.0
        %3091 = vmatprep.subr.mxu0 0.0
        %3092 = vmatpush1.msra.mxu0 0.0
        %3093 = vmatprep.subr.mxu0 0.0
        %3094 = vmatpush1.msra.mxu0 0.0
        %3095 = vmatprep.subr.mxu0 0.0
        %3096 = vmatpush1.msra.mxu0 0.0
        %3097 = vmatprep.subr.mxu0 0.0
        %3098 = vmatpush1.msra.mxu0 0.0
        %3099 = vmatprep.subr.mxu0 0.0
        %3100 = vmatpush1.msra.mxu0 0.0
        %3101 = vmatprep.subr.mxu0 0.0
        %3102 = vmatpush1.msra.mxu0 0.0
        %3103 = vmatprep.subr.mxu0 0.0
        %3104 = vmatpush1.msra.mxu0 0.0
        %3105 = vmatprep.subr.mxu0 0.0
        %3106 = vmatpush1.msra.mxu0 0.0
        %3107 = vmatprep.subr.mxu0 0.0
        %3108 = vmatpush1.msra.mxu0 0.0
        %3109 = vmatprep.subr.mxu0 0.0
        %3110 = vmatpush1.msra.mxu0 0.0
        %3111 = vmatprep.subr.mxu0 0.0
        %3112 = vmatpush1.msra.mxu0 0.0
        %3113 = vmatprep.subr.mxu0 0.0
        %3114 = vmatpush1.msra.mxu0 0.0
        %3115 = vmatprep.subr.mxu0 0.0
        %3116 = vmatpush1.msra.mxu0 0.0
        %3117 = vmatprep.subr.mxu0 0.0
        %3118 = vmatpush1.msra.mxu0 0.0
        %3119 = vmatprep.subr.mxu0 0.0
        %3120 = vmatpush1.msra.mxu0 0.0
        %3121 = vmatprep.subr.mxu0 0.0
        %3122 = vmatpush1.msra.mxu0 0.0
        %3123 = vmatprep.subr.mxu0 0.0
        %3124 = vmatpush1.msra.mxu0 0.0
        %3125 = vmatprep.subr.mxu0 0.0
        %3126 = vmatpush1.msra.mxu0 0.0
        %3127 = vmatprep.subr.mxu0 0.0
        %3128 = vmatpush1.msra.mxu0 0.0
        %3129 = vmatprep.subr.mxu0 0.0
        %3130 = vmatpush1.msra.mxu0 0.0
        %3131 = vmatprep.subr.mxu0 0.0
        %3132 = vmatpush1.msra.mxu0 0.0
        %3133 = vmatprep.subr.mxu0 0.0
        %3134 = vmatpush1.msra.mxu0 0.0
        %3135 = vmatprep.subr.mxu0 0.0
        %3136 = vmatpush1.msra.mxu0 0.0
        %3137 = vmatprep.subr.mxu0 0.0
        %3138 = vmatpush1.msra.mxu0 0.0
        %3139 = vmatprep.subr.mxu0 0.0
        %3140 = vmatpush1.msra.mxu0 0.0
        %3141 = vmatprep.subr.mxu0 0.0
        %3142 = vmatpush1.msra.mxu0 0.0
        %3143 = vmatprep.subr.mxu0 0.0
        %3144 = vmatpush1.msra.mxu0 0.0
        %3145 = vmatprep.subr.mxu0 0.0
        %3146 = vmatpush1.msra.mxu0 0.0
        %3147 = vmatprep.subr.mxu0 0.0
        %3148 = vmatpush1.msra.mxu0 0.0
        %3149 = vmatprep.mubr.f32.mxu0 0.0
        %3150 = vmatmul.mubr.f32.gmra.mrb[0].mxu0 %v266
        %v3151 = vpop.f32.mrb[0].mxu0
        %v3152 = vadd.f32 0.0, %v3151
        %v3153 = vpop.f32.mrb[0].mxu0
        %3154 = vmatprep.mubr.f32.mxu0 0.0
        %3155 = vmatmul.mubr.f32.gmra.mrb[0].mxu0 %v269
        %v3156 = vpop.f32.mrb[0].mxu0
        %v3157 = vadd.f32 0.0, %v3156
        %v3158 = vpop.f32.mrb[0].mxu0
        %3159 = vmatprep.mubr.f32.mxu0 0.0
        %3160 = vmatmul.mubr.f32.gmra.mrb[0].mxu0 %v272
        %v3161 = vpop.f32.mrb[0].mxu0
        %v3162 = vadd.f32 0.0, %v3161
        %v3163 = vpop.f32.mrb[0].mxu0
        %3164 = vmatprep.mubr.f32.mxu0 0.0
        %3165 = vmatmul.mubr.f32.gmra.mrb[0].mxu0 %v275
        %v3166 = vpop.f32.mrb[0].mxu0
        %v3167 = vadd.f32 0.0, %v3166
        %v3168 = vpop.f32.mrb[0].mxu0
        %3169 = vdwg.mxu0
        %v3171 = vsel %vm365, %v3162, 0
        %v3174 = vsel %vm365, %v3167, 0
        %3176 = vmatprep.subr.mxu0 0.0
        %3177 = vmatpush1.msra.mxu0 %v243
        %3178 = vmatprep.subr.mxu0 0.0
        %3179 = vmatpush1.msra.mxu0 %v244
        %3180 = vmatprep.subr.mxu0 0.0
        %3181 = vmatpush1.msra.mxu0 0.0
        %3182 = vmatprep.subr.mxu0 0.0
        %3183 = vmatpush1.msra.mxu0 0.0
        %3184 = vmatprep.subr.mxu0 0.0
        %3185 = vmatpush1.msra.mxu0 0.0
        %3186 = vmatprep.subr.mxu0 0.0
        %3187 = vmatpush1.msra.mxu0 0.0
        %3188 = vmatprep.subr.mxu0 0.0
        %3189 = vmatpush1.msra.mxu0 0.0
        %3190 = vmatprep.subr.mxu0 0.0
        %3191 = vmatpush1.msra.mxu0 0.0
        %3192 = vmatprep.subr.mxu0 0.0
        %3193 = vmatpush1.msra.mxu0 0.0
        %3194 = vmatprep.subr.mxu0 0.0
        %3195 = vmatpush1.msra.mxu0 0.0
        %3196 = vmatprep.subr.mxu0 0.0
        %3197 = vmatpush1.msra.mxu0 0.0
        %3198 = vmatprep.subr.mxu0 0.0
        %3199 = vmatpush1.msra.mxu0 0.0
        %3200 = vmatprep.subr.mxu0 0.0
        %3201 = vmatpush1.msra.mxu0 0.0
        %3202 = vmatprep.subr.mxu0 0.0
        %3203 = vmatpush1.msra.mxu0 0.0
        %3204 = vmatprep.subr.mxu0 0.0
        %3205 = vmatpush1.msra.mxu0 0.0
        %3206 = vmatprep.subr.mxu0 0.0
        %3207 = vmatpush1.msra.mxu0 0.0
        %3208 = vmatprep.subr.mxu0 0.0
        %3209 = vmatpush1.msra.mxu0 0.0
        %3210 = vmatprep.subr.mxu0 0.0
        %3211 = vmatpush1.msra.mxu0 0.0
        %3212 = vmatprep.subr.mxu0 0.0
        %3213 = vmatpush1.msra.mxu0 0.0
        %3214 = vmatprep.subr.mxu0 0.0
        %3215 = vmatpush1.msra.mxu0 0.0
        %3216 = vmatprep.subr.mxu0 0.0
        %3217 = vmatpush1.msra.mxu0 0.0
        %3218 = vmatprep.subr.mxu0 0.0
        %3219 = vmatpush1.msra.mxu0 0.0
        %3220 = vmatprep.subr.mxu0 0.0
        %3221 = vmatpush1.msra.mxu0 0.0
        %3222 = vmatprep.subr.mxu0 0.0
        %3223 = vmatpush1.msra.mxu0 0.0
        %3224 = vmatprep.subr.mxu0 0.0
        %3225 = vmatpush1.msra.mxu0 0.0
        %3226 = vmatprep.subr.mxu0 0.0
        %3227 = vmatpush1.msra.mxu0 0.0
        %3228 = vmatprep.subr.mxu0 0.0
        %3229 = vmatpush1.msra.mxu0 0.0
        %3230 = vmatprep.subr.mxu0 0.0
        %3231 = vmatpush1.msra.mxu0 0.0
        %3232 = vmatprep.subr.mxu0 0.0
        %3233 = vmatpush1.msra.mxu0 0.0
        %3234 = vmatprep.subr.mxu0 0.0
        %3235 = vmatpush1.msra.mxu0 0.0
        %3236 = vmatprep.subr.mxu0 0.0
        %3237 = vmatpush1.msra.mxu0 0.0
        %3238 = vmatprep.subr.mxu0 0.0
        %3239 = vmatpush1.msra.mxu0 0.0
        %3240 = vmatprep.mubr.f32.mxu0 0.0
        %3241 = vmatmul.mubr.f32.gmra.mrb[0].mxu0 %v3171
        %v3242 = vpop.f32.mrb[0].mxu0
        %v3243 = vadd.f32 0.0, %v3242
        %v3244 = vpop.f32.mrb[0].mxu0
        %3245 = vmatprep.mubr.f32.mxu0 0.0
        %3246 = vmatmul.mubr.f32.gmra.mrb[0].mxu0 %v3174
        %v3247 = vpop.f32.mrb[0].mxu0
        %v3248 = vadd.f32 0.0, %v3247
        %v3249 = vpop.f32.mrb[0].mxu0
        %3250 = vdwg.mxu0
        %v3252 = vsel %vm365, %v3152, 0
        %v3255 = vsel %vm365, %v3157, 0
        %3257 = vmatprep.subr.mxu0 0.0
        %3258 = vmatpush1.msra.mxu0 %v240
        %3259 = vmatprep.subr.mxu0 0.0
        %3260 = vmatpush1.msra.mxu0 %v241
        %3261 = vmatprep.subr.mxu0 0.0
        %3262 = vmatpush1.msra.mxu0 0.0
        %3263 = vmatprep.subr.mxu0 0.0
        %3264 = vmatpush1.msra.mxu0 0.0
        %3265 = vmatprep.subr.mxu0 0.0
        %3266 = vmatpush1.msra.mxu0 0.0
        %3267 = vmatprep.subr.mxu0 0.0
        %3268 = vmatpush1.msra.mxu0 0.0
        %3269 = vmatprep.subr.mxu0 0.0
        %3270 = vmatpush1.msra.mxu0 0.0
        %3271 = vmatprep.subr.mxu0 0.0
        %3272 = vmatpush1.msra.mxu0 0.0
        %3273 = vmatprep.subr.mxu0 0.0
        %3274 = vmatpush1.msra.mxu0 0.0
        %3275 = vmatprep.subr.mxu0 0.0
        %3276 = vmatpush1.msra.mxu0 0.0
        %3277 = vmatprep.subr.mxu0 0.0
        %3278 = vmatpush1.msra.mxu0 0.0
        %3279 = vmatprep.subr.mxu0 0.0
        %3280 = vmatpush1.msra.mxu0 0.0
        %3281 = vmatprep.subr.mxu0 0.0
        %3282 = vmatpush1.msra.mxu0 0.0
        %3283 = vmatprep.subr.mxu0 0.0
        %3284 = vmatpush1.msra.mxu0 0.0
        %3285 = vmatprep.subr.mxu0 0.0
        %3286 = vmatpush1.msra.mxu0 0.0
        %3287 = vmatprep.subr.mxu0 0.0
        %3288 = vmatpush1.msra.mxu0 0.0
        %3289 = vmatprep.subr.mxu0 0.0
        %3290 = vmatpush1.msra.mxu0 0.0
        %3291 = vmatprep.subr.mxu0 0.0
        %3292 = vmatpush1.msra.mxu0 0.0
        %3293 = vmatprep.subr.mxu0 0.0
        %3294 = vmatpush1.msra.mxu0 0.0
        %3295 = vmatprep.subr.mxu0 0.0
        %3296 = vmatpush1.msra.mxu0 0.0
        %3297 = vmatprep.subr.mxu0 0.0
        %3298 = vmatpush1.msra.mxu0 0.0
        %3299 = vmatprep.subr.mxu0 0.0
        %3300 = vmatpush1.msra.mxu0 0.0
        %3301 = vmatprep.subr.mxu0 0.0
        %3302 = vmatpush1.msra.mxu0 0.0
        %3303 = vmatprep.subr.mxu0 0.0
        %3304 = vmatpush1.msra.mxu0 0.0
        %3305 = vmatprep.subr.mxu0 0.0
        %3306 = vmatpush1.msra.mxu0 0.0
        %3307 = vmatprep.subr.mxu0 0.0
        %3308 = vmatpush1.msra.mxu0 0.0
        %3309 = vmatprep.subr.mxu0 0.0
        %3310 = vmatpush1.msra.mxu0 0.0
        %3311 = vmatprep.subr.mxu0 0.0
        %3312 = vmatpush1.msra.mxu0 0.0
        %3313 = vmatprep.subr.mxu0 0.0
        %3314 = vmatpush1.msra.mxu0 0.0
        %3315 = vmatprep.subr.mxu0 0.0
        %3316 = vmatpush1.msra.mxu0 0.0
        %3317 = vmatprep.subr.mxu0 0.0
        %3318 = vmatpush1.msra.mxu0 0.0
        %3319 = vmatprep.subr.mxu0 0.0
        %3320 = vmatpush1.msra.mxu0 0.0
        %3321 = vmatprep.mubr.f32.mxu0 0.0
        %3322 = vmatmul.mubr.f32.gmra.mrb[0].mxu0 %v3252
        %v3323 = vpop.f32.mrb[0].mxu0
        %v3324 = vadd.f32 %v3243, %v3323
        %v3325 = vpop.f32.mrb[0].mxu0
        %3326 = vmatprep.mubr.f32.mxu0 0.0
        %3327 = vmatmul.mubr.f32.gmra.mrb[0].mxu0 %v3255
        %v3328 = vpop.f32.mrb[0].mxu0
        %v3329 = vadd.f32 %v3248, %v3328
        %v3330 = vpop.f32.mrb[0].mxu0
        %3331 = vdwg.mxu0
        %v3332 = vadd.f32 %v3324, %v531
        %v3333 = vadd.f32 %v3329, %v536
        %v3334 = vmax.f32 %v3332, 0.0
        %v3335 = vmax.f32 %v3333, 0.0
        %v3337 = vcombine.high %v3334, %v3334
        %v3339 = vunpack.c.l.s4 1966171168
        %v3340 = vunpack.c.0.s8 %v3339
        %v3341 = vlaneseq
        %v3342 = vshrl.u32 %v3341, 7
        %v3343 = vsub.s32 %v3340, %v3342
        %v3344 = vrot.slane %v3334, %v3343
        %v3346 = vunpack.c.l.s4 1966171168
        %v3347 = vunpack.c.0.s8 %v3346
        %v3348 = vlaneseq
        %v3349 = vshrl.u32 %v3348, 7
        %v3350 = vsub.s32 %v3347, %v3349
        %v3351 = vrot.slane %v3337, %v3350
        %v3352 = vcombine.high %v3344, %v3344
        %v3353 = vcombine.high %v3351, %v3351
        %v3355 = vunpack.c.l.s4 1966171168
        %v3356 = vunpack.c.0.s8 %v3355
        %v3357 = vlaneseq
        %v3358 = vshrl.u32 %v3357, 7
        %v3359 = vsub.s32 %v3356, %v3358
        %v3360 = vrot.slane %v3344, %v3359
        %v3362 = vunpack.c.l.s4 1966171168
        %v3363 = vunpack.c.0.s8 %v3362
        %v3364 = vlaneseq
        %v3365 = vshrl.u32 %v3364, 7
        %v3366 = vsub.s32 %v3363, %v3365
        %v3367 = vrot.slane %v3351, %v3366
        %v3369 = vunpack.c.l.s4 1966171168
        %v3370 = vunpack.c.0.s8 %v3369
        %v3371 = vlaneseq
        %v3372 = vshrl.u32 %v3371, 7
        %v3373 = vsub.s32 %v3370, %v3372
        %v3374 = vrot.slane %v3352, %v3373
        %v3376 = vunpack.c.l.s4 1966171168
        %v3377 = vunpack.c.0.s8 %v3376
        %v3378 = vlaneseq
        %v3379 = vshrl.u32 %v3378, 7
        %v3380 = vsub.s32 %v3377, %v3379
        %v3381 = vrot.slane %v3353, %v3380
        %v3382 = vcombine.high %v3360, %v3360
        %v3383 = vcombine.high %v3367, %v3367
        %v3384 = vcombine.high %v3374, %v3374
        %v3385 = vcombine.high %v3381, %v3381
        %3394 = vst.msk [vmem:[%s233 + $0xe] sm:$0x1] %vm600, %v3360
        %3395 = vst.msk [vmem:[%s233 + $0x2e] sm:$0x1] %vm600, %v3374
        %3396 = vst.msk [vmem:[%s233 + $0x4e] sm:$0x1] %vm600, %v3382
        %3397 = vst.msk [vmem:[%s233 + $0x6e] sm:$0x1] %vm600, %v3384
        %3398 = vst.msk [vmem:[%s233 + $0x8e] sm:$0x1] %vm600, %v3367
        %3399 = vst.msk [vmem:[%s233 + $0xae] sm:$0x1] %vm600, %v3381
        %3400 = vst.msk [vmem:[%s233 + $0xce] sm:$0x1] %vm600, %v3383
        %3401 = vst.msk [vmem:[%s233 + $0xee] sm:$0x1] %vm600, %v3385
        %v3403 = vcombine.high %v3335, %v3335
        %v3405 = vunpack.c.l.s4 1966171168
        %v3406 = vunpack.c.0.s8 %v3405
        %v3407 = vlaneseq
        %v3408 = vshrl.u32 %v3407, 7
        %v3409 = vsub.s32 %v3406, %v3408
        %v3410 = vrot.slane %v3335, %v3409
        %v3412 = vunpack.c.l.s4 1966171168
        %v3413 = vunpack.c.0.s8 %v3412
        %v3414 = vlaneseq
        %v3415 = vshrl.u32 %v3414, 7
        %v3416 = vsub.s32 %v3413, %v3415
        %v3417 = vrot.slane %v3403, %v3416
        %v3418 = vcombine.high %v3410, %v3410
        %v3419 = vcombine.high %v3417, %v3417
        %v3421 = vunpack.c.l.s4 1966171168
        %v3422 = vunpack.c.0.s8 %v3421
        %v3423 = vlaneseq
        %v3424 = vshrl.u32 %v3423, 7
        %v3425 = vsub.s32 %v3422, %v3424
        %v3426 = vrot.slane %v3410, %v3425
        %v3428 = vunpack.c.l.s4 1966171168
        %v3429 = vunpack.c.0.s8 %v3428
        %v3430 = vlaneseq
        %v3431 = vshrl.u32 %v3430, 7
        %v3432 = vsub.s32 %v3429, %v3431
        %v3433 = vrot.slane %v3417, %v3432
        %v3435 = vunpack.c.l.s4 1966171168
        %v3436 = vunpack.c.0.s8 %v3435
        %v3437 = vlaneseq
        %v3438 = vshrl.u32 %v3437, 7
        %v3439 = vsub.s32 %v3436, %v3438
        %v3440 = vrot.slane %v3418, %v3439
        %v3442 = vunpack.c.l.s4 1966171168
        %v3443 = vunpack.c.0.s8 %v3442
        %v3444 = vlaneseq
        %v3445 = vshrl.u32 %v3444, 7
        %v3446 = vsub.s32 %v3443, %v3445
        %v3447 = vrot.slane %v3419, %v3446
        %v3448 = vcombine.high %v3426, %v3426
        %v3449 = vcombine.high %v3433, %v3433
        %v3450 = vcombine.high %v3440, %v3440
        %v3451 = vcombine.high %v3447, %v3447
        %3460 = vst.msk [vmem:[%s233 + $0xf] sm:$0x1] %vm600, %v3426
        %3461 = vst.msk [vmem:[%s233 + $0x2f] sm:$0x1] %vm600, %v3440
        %3462 = vst.msk [vmem:[%s233 + $0x4f] sm:$0x1] %vm600, %v3448
        %3463 = vst.msk [vmem:[%s233 + $0x6f] sm:$0x1] %vm600, %v3450
        %3464 = vst.msk [vmem:[%s233 + $0x8f] sm:$0x1] %vm600, %v3433
        %3465 = vst.msk [vmem:[%s233 + $0xaf] sm:$0x1] %vm600, %v3447
        %3466 = vst.msk [vmem:[%s233 + $0xcf] sm:$0x1] %vm600, %v3449
        %3467 = vst.msk [vmem:[%s233 + $0xef] sm:$0x1] %vm600, %v3451
        %v3468 = vld [vmem:[%s209 + $0x8] sm:$0x1]
        %v3469 = vld [vmem:[%s209 + $0x18] sm:$0x1]
        %v3470 = vld [vmem:[%s209 + $0x28] sm:$0x1]
        %v3471 = vld [vmem:[%s209 + $0x38] sm:$0x1]
        %v3476 = vrot.slane %v3469, 7
        %v3477 = vsel %vm256, %v3476, %v3468
        %v3478 = vrot.slane %v3470, 6
        %v3479 = vsel %vm259, %v3478, %v3477
        %v3480 = vrot.slane %v3471, 5
        %v3481 = vsel %vm262, %v3480, %v3479
        %v3482 = vsel %vm277, %v3481, 0
        %3484 = vmatprep.subr.mxu0 0.0
        %3485 = vmatpush1.msra.mxu0 %v3482
        %3486 = vmatprep.subr.mxu0 0.0
        %3487 = vmatpush1.msra.mxu0 0.0
        %3488 = vmatprep.subr.mxu0 0.0
        %3489 = vmatpush1.msra.mxu0 0.0
        %3490 = vmatprep.subr.mxu0 0.0
        %3491 = vmatpush1.msra.mxu0 0.0
        %3492 = vmatprep.subr.mxu0 0.0
        %3493 = vmatpush1.msra.mxu0 0.0
        %3494 = vmatprep.subr.mxu0 0.0
        %3495 = vmatpush1.msra.mxu0 0.0
        %3496 = vmatprep.subr.mxu0 0.0
        %3497 = vmatpush1.msra.mxu0 0.0
        %3498 = vmatprep.subr.mxu0 0.0
        %3499 = vmatpush1.msra.mxu0 0.0
        %3500 = vmatprep.subr.mxu0 0.0
        %3501 = vmatpush1.msra.mxu0 0.0
        %3502 = vmatprep.subr.mxu0 0.0
        %3503 = vmatpush1.msra.mxu0 0.0
        %3504 = vmatprep.subr.mxu0 0.0
        %3505 = vmatpush1.msra.mxu0 0.0
        %3506 = vmatprep.subr.mxu0 0.0
        %3507 = vmatpush1.msra.mxu0 0.0
        %3508 = vmatprep.subr.mxu0 0.0
        %3509 = vmatpush1.msra.mxu0 0.0
        %3510 = vmatprep.subr.mxu0 0.0
        %3511 = vmatpush1.msra.mxu0 0.0
        %3512 = vmatprep.subr.mxu0 0.0
        %3513 = vmatpush1.msra.mxu0 0.0
        %3514 = vmatprep.subr.mxu0 0.0
        %3515 = vmatpush1.msra.mxu0 0.0
        %3516 = vmatprep.subr.mxu0 0.0
        %3517 = vmatpush1.msra.mxu0 0.0
        %3518 = vmatprep.subr.mxu0 0.0
        %3519 = vmatpush1.msra.mxu0 0.0
        %3520 = vmatprep.subr.mxu0 0.0
        %3521 = vmatpush1.msra.mxu0 0.0
        %3522 = vmatprep.subr.mxu0 0.0
        %3523 = vmatpush1.msra.mxu0 0.0
        %3524 = vmatprep.subr.mxu0 0.0
        %3525 = vmatpush1.msra.mxu0 0.0
        %3526 = vmatprep.subr.mxu0 0.0
        %3527 = vmatpush1.msra.mxu0 0.0
        %3528 = vmatprep.subr.mxu0 0.0
        %3529 = vmatpush1.msra.mxu0 0.0
        %3530 = vmatprep.subr.mxu0 0.0
        %3531 = vmatpush1.msra.mxu0 0.0
        %3532 = vmatprep.subr.mxu0 0.0
        %3533 = vmatpush1.msra.mxu0 0.0
        %3534 = vmatprep.subr.mxu0 0.0
        %3535 = vmatpush1.msra.mxu0 0.0
        %3536 = vmatprep.subr.mxu0 0.0
        %3537 = vmatpush1.msra.mxu0 0.0
        %3538 = vmatprep.subr.mxu0 0.0
        %3539 = vmatpush1.msra.mxu0 0.0
        %3540 = vmatprep.subr.mxu0 0.0
        %3541 = vmatpush1.msra.mxu0 0.0
        %3542 = vmatprep.subr.mxu0 0.0
        %3543 = vmatpush1.msra.mxu0 0.0
        %3544 = vmatprep.subr.mxu0 0.0
        %3545 = vmatpush1.msra.mxu0 0.0
        %3546 = vmatprep.subr.mxu0 0.0
        %3547 = vmatpush1.msra.mxu0 0.0
        %3548 = vmatprep.mubr.f32.mxu0 0.0
        %3549 = vmatmul.mubr.f32.gmra.mrb[0].mxu0 %v266
        %v3550 = vpop.f32.mrb[0].mxu0
        %v3551 = vadd.f32 0.0, %v3550
        %v3552 = vpop.f32.mrb[0].mxu0
        %3553 = vmatprep.mubr.f32.mxu0 0.0
        %3554 = vmatmul.mubr.f32.gmra.mrb[0].mxu0 %v269
        %v3555 = vpop.f32.mrb[0].mxu0
        %v3556 = vadd.f32 0.0, %v3555
        %v3557 = vpop.f32.mrb[0].mxu0
        %3558 = vmatprep.mubr.f32.mxu0 0.0
        %3559 = vmatmul.mubr.f32.gmra.mrb[0].mxu0 %v272
        %v3560 = vpop.f32.mrb[0].mxu0
        %v3561 = vadd.f32 0.0, %v3560
        %v3562 = vpop.f32.mrb[0].mxu0
        %3563 = vmatprep.mubr.f32.mxu0 0.0
        %3564 = vmatmul.mubr.f32.gmra.mrb[0].mxu0 %v275
        %v3565 = vpop.f32.mrb[0].mxu0
        %v3566 = vadd.f32 0.0, %v3565
        %v3567 = vpop.f32.mrb[0].mxu0
        %3568 = vdwg.mxu0
        %v3570 = vsel %vm365, %v3561, 0
        %v3573 = vsel %vm365, %v3566, 0
        %3575 = vmatprep.subr.mxu0 0.0
        %3576 = vmatpush1.msra.mxu0 %v243
        %3577 = vmatprep.subr.mxu0 0.0
        %3578 = vmatpush1.msra.mxu0 %v244
        %3579 = vmatprep.subr.mxu0 0.0
        %3580 = vmatpush1.msra.mxu0 0.0
        %3581 = vmatprep.subr.mxu0 0.0
        %3582 = vmatpush1.msra.mxu0 0.0
        %3583 = vmatprep.subr.mxu0 0.0
        %3584 = vmatpush1.msra.mxu0 0.0
        %3585 = vmatprep.subr.mxu0 0.0
        %3586 = vmatpush1.msra.mxu0 0.0
        %3587 = vmatprep.subr.mxu0 0.0
        %3588 = vmatpush1.msra.mxu0 0.0
        %3589 = vmatprep.subr.mxu0 0.0
        %3590 = vmatpush1.msra.mxu0 0.0
        %3591 = vmatprep.subr.mxu0 0.0
        %3592 = vmatpush1.msra.mxu0 0.0
        %3593 = vmatprep.subr.mxu0 0.0
        %3594 = vmatpush1.msra.mxu0 0.0
        %3595 = vmatprep.subr.mxu0 0.0
        %3596 = vmatpush1.msra.mxu0 0.0
        %3597 = vmatprep.subr.mxu0 0.0
        %3598 = vmatpush1.msra.mxu0 0.0
        %3599 = vmatprep.subr.mxu0 0.0
        %3600 = vmatpush1.msra.mxu0 0.0
        %3601 = vmatprep.subr.mxu0 0.0
        %3602 = vmatpush1.msra.mxu0 0.0
        %3603 = vmatprep.subr.mxu0 0.0
        %3604 = vmatpush1.msra.mxu0 0.0
        %3605 = vmatprep.subr.mxu0 0.0
        %3606 = vmatpush1.msra.mxu0 0.0
        %3607 = vmatprep.subr.mxu0 0.0
        %3608 = vmatpush1.msra.mxu0 0.0
        %3609 = vmatprep.subr.mxu0 0.0
        %3610 = vmatpush1.msra.mxu0 0.0
        %3611 = vmatprep.subr.mxu0 0.0
        %3612 = vmatpush1.msra.mxu0 0.0
        %3613 = vmatprep.subr.mxu0 0.0
        %3614 = vmatpush1.msra.mxu0 0.0
        %3615 = vmatprep.subr.mxu0 0.0
        %3616 = vmatpush1.msra.mxu0 0.0
        %3617 = vmatprep.subr.mxu0 0.0
        %3618 = vmatpush1.msra.mxu0 0.0
        %3619 = vmatprep.subr.mxu0 0.0
        %3620 = vmatpush1.msra.mxu0 0.0
        %3621 = vmatprep.subr.mxu0 0.0
        %3622 = vmatpush1.msra.mxu0 0.0
        %3623 = vmatprep.subr.mxu0 0.0
        %3624 = vmatpush1.msra.mxu0 0.0
        %3625 = vmatprep.subr.mxu0 0.0
        %3626 = vmatpush1.msra.mxu0 0.0
        %3627 = vmatprep.subr.mxu0 0.0
        %3628 = vmatpush1.msra.mxu0 0.0
        %3629 = vmatprep.subr.mxu0 0.0
        %3630 = vmatpush1.msra.mxu0 0.0
        %3631 = vmatprep.subr.mxu0 0.0
        %3632 = vmatpush1.msra.mxu0 0.0
        %3633 = vmatprep.subr.mxu0 0.0
        %3634 = vmatpush1.msra.mxu0 0.0
        %3635 = vmatprep.subr.mxu0 0.0
        %3636 = vmatpush1.msra.mxu0 0.0
        %3637 = vmatprep.subr.mxu0 0.0
        %3638 = vmatpush1.msra.mxu0 0.0
        %3639 = vmatprep.mubr.f32.mxu0 0.0
        %3640 = vmatmul.mubr.f32.gmra.mrb[0].mxu0 %v3570
        %v3641 = vpop.f32.mrb[0].mxu0
        %v3642 = vadd.f32 0.0, %v3641
        %v3643 = vpop.f32.mrb[0].mxu0
        %3644 = vmatprep.mubr.f32.mxu0 0.0
        %3645 = vmatmul.mubr.f32.gmra.mrb[0].mxu0 %v3573
        %v3646 = vpop.f32.mrb[0].mxu0
        %v3647 = vadd.f32 0.0, %v3646
        %v3648 = vpop.f32.mrb[0].mxu0
        %3649 = vdwg.mxu0
        %v3651 = vsel %vm365, %v3551, 0
        %v3654 = vsel %vm365, %v3556, 0
        %3656 = vmatprep.subr.mxu0 0.0
        %3657 = vmatpush1.msra.mxu0 %v240
        %3658 = vmatprep.subr.mxu0 0.0
        %3659 = vmatpush1.msra.mxu0 %v241
        %3660 = vmatprep.subr.mxu0 0.0
        %3661 = vmatpush1.msra.mxu0 0.0
        %3662 = vmatprep.subr.mxu0 0.0
        %3663 = vmatpush1.msra.mxu0 0.0
        %3664 = vmatprep.subr.mxu0 0.0
        %3665 = vmatpush1.msra.mxu0 0.0
        %3666 = vmatprep.subr.mxu0 0.0
        %3667 = vmatpush1.msra.mxu0 0.0
        %3668 = vmatprep.subr.mxu0 0.0
        %3669 = vmatpush1.msra.mxu0 0.0
        %3670 = vmatprep.subr.mxu0 0.0
        %3671 = vmatpush1.msra.mxu0 0.0
        %3672 = vmatprep.subr.mxu0 0.0
        %3673 = vmatpush1.msra.mxu0 0.0
        %3674 = vmatprep.subr.mxu0 0.0
        %3675 = vmatpush1.msra.mxu0 0.0
        %3676 = vmatprep.subr.mxu0 0.0
        %3677 = vmatpush1.msra.mxu0 0.0
        %3678 = vmatprep.subr.mxu0 0.0
        %3679 = vmatpush1.msra.mxu0 0.0
        %3680 = vmatprep.subr.mxu0 0.0
        %3681 = vmatpush1.msra.mxu0 0.0
        %3682 = vmatprep.subr.mxu0 0.0
        %3683 = vmatpush1.msra.mxu0 0.0
        %3684 = vmatprep.subr.mxu0 0.0
        %3685 = vmatpush1.msra.mxu0 0.0
        %3686 = vmatprep.subr.mxu0 0.0
        %3687 = vmatpush1.msra.mxu0 0.0
        %3688 = vmatprep.subr.mxu0 0.0
        %3689 = vmatpush1.msra.mxu0 0.0
        %3690 = vmatprep.subr.mxu0 0.0
        %3691 = vmatpush1.msra.mxu0 0.0
        %3692 = vmatprep.subr.mxu0 0.0
        %3693 = vmatpush1.msra.mxu0 0.0
        %3694 = vmatprep.subr.mxu0 0.0
        %3695 = vmatpush1.msra.mxu0 0.0
        %3696 = vmatprep.subr.mxu0 0.0
        %3697 = vmatpush1.msra.mxu0 0.0
        %3698 = vmatprep.subr.mxu0 0.0
        %3699 = vmatpush1.msra.mxu0 0.0
        %3700 = vmatprep.subr.mxu0 0.0
        %3701 = vmatpush1.msra.mxu0 0.0
        %3702 = vmatprep.subr.mxu0 0.0
        %3703 = vmatpush1.msra.mxu0 0.0
        %3704 = vmatprep.subr.mxu0 0.0
        %3705 = vmatpush1.msra.mxu0 0.0
        %3706 = vmatprep.subr.mxu0 0.0
        %3707 = vmatpush1.msra.mxu0 0.0
        %3708 = vmatprep.subr.mxu0 0.0
        %3709 = vmatpush1.msra.mxu0 0.0
        %3710 = vmatprep.subr.mxu0 0.0
        %3711 = vmatpush1.msra.mxu0 0.0
        %3712 = vmatprep.subr.mxu0 0.0
        %3713 = vmatpush1.msra.mxu0 0.0
        %3714 = vmatprep.subr.mxu0 0.0
        %3715 = vmatpush1.msra.mxu0 0.0
        %3716 = vmatprep.subr.mxu0 0.0
        %3717 = vmatpush1.msra.mxu0 0.0
        %3718 = vmatprep.subr.mxu0 0.0
        %3719 = vmatpush1.msra.mxu0 0.0
        %3720 = vmatprep.mubr.f32.mxu0 0.0
        %3721 = vmatmul.mubr.f32.gmra.mrb[0].mxu0 %v3651
        %v3722 = vpop.f32.mrb[0].mxu0
        %v3723 = vadd.f32 %v3642, %v3722
        %v3724 = vpop.f32.mrb[0].mxu0
        %3725 = vmatprep.mubr.f32.mxu0 0.0
        %3726 = vmatmul.mubr.f32.gmra.mrb[0].mxu0 %v3654
        %v3727 = vpop.f32.mrb[0].mxu0
        %v3728 = vadd.f32 %v3647, %v3727
        %v3729 = vpop.f32.mrb[0].mxu0
        %3730 = vdwg.mxu0
        %v3731 = vadd.f32 %v3723, %v531
        %v3732 = vadd.f32 %v3728, %v536
        %v3733 = vmax.f32 %v3731, 0.0
        %v3734 = vmax.f32 %v3732, 0.0
        %v3736 = vcombine.high %v3733, %v3733
        %v3738 = vunpack.c.l.s4 1966171168
        %v3739 = vunpack.c.0.s8 %v3738
        %v3740 = vlaneseq
        %v3741 = vshrl.u32 %v3740, 7
        %v3742 = vsub.s32 %v3739, %v3741
        %v3743 = vrot.slane %v3733, %v3742
        %v3745 = vunpack.c.l.s4 1966171168
        %v3746 = vunpack.c.0.s8 %v3745
        %v3747 = vlaneseq
        %v3748 = vshrl.u32 %v3747, 7
        %v3749 = vsub.s32 %v3746, %v3748
        %v3750 = vrot.slane %v3736, %v3749
        %v3751 = vcombine.high %v3743, %v3743
        %v3752 = vcombine.high %v3750, %v3750
        %v3754 = vunpack.c.l.s4 1966171168
        %v3755 = vunpack.c.0.s8 %v3754
        %v3756 = vlaneseq
        %v3757 = vshrl.u32 %v3756, 7
        %v3758 = vsub.s32 %v3755, %v3757
        %v3759 = vrot.slane %v3743, %v3758
        %v3761 = vunpack.c.l.s4 1966171168
        %v3762 = vunpack.c.0.s8 %v3761
        %v3763 = vlaneseq
        %v3764 = vshrl.u32 %v3763, 7
        %v3765 = vsub.s32 %v3762, %v3764
        %v3766 = vrot.slane %v3750, %v3765
        %v3768 = vunpack.c.l.s4 1966171168
        %v3769 = vunpack.c.0.s8 %v3768
        %v3770 = vlaneseq
        %v3771 = vshrl.u32 %v3770, 7
        %v3772 = vsub.s32 %v3769, %v3771
        %v3773 = vrot.slane %v3751, %v3772
        %v3775 = vunpack.c.l.s4 1966171168
        %v3776 = vunpack.c.0.s8 %v3775
        %v3777 = vlaneseq
        %v3778 = vshrl.u32 %v3777, 7
        %v3779 = vsub.s32 %v3776, %v3778
        %v3780 = vrot.slane %v3752, %v3779
        %v3781 = vcombine.high %v3759, %v3759
        %v3782 = vcombine.high %v3766, %v3766
        %v3783 = vcombine.high %v3773, %v3773
        %v3784 = vcombine.high %v3780, %v3780
        %3793 = vst.msk [vmem:[%s233 + $0x10] sm:$0x1] %vm600, %v3759
        %3794 = vst.msk [vmem:[%s233 + $0x30] sm:$0x1] %vm600, %v3773
        %3795 = vst.msk [vmem:[%s233 + $0x50] sm:$0x1] %vm600, %v3781
        %3796 = vst.msk [vmem:[%s233 + $0x70] sm:$0x1] %vm600, %v3783
        %3797 = vst.msk [vmem:[%s233 + $0x90] sm:$0x1] %vm600, %v3766
        %3798 = vst.msk [vmem:[%s233 + $0xb0] sm:$0x1] %vm600, %v3780
        %3799 = vst.msk [vmem:[%s233 + $0xd0] sm:$0x1] %vm600, %v3782
        %3800 = vst.msk [vmem:[%s233 + $0xf0] sm:$0x1] %vm600, %v3784
        %v3802 = vcombine.high %v3734, %v3734
        %v3804 = vunpack.c.l.s4 1966171168
        %v3805 = vunpack.c.0.s8 %v3804
        %v3806 = vlaneseq
        %v3807 = vshrl.u32 %v3806, 7
        %v3808 = vsub.s32 %v3805, %v3807
        %v3809 = vrot.slane %v3734, %v3808
        %v3811 = vunpack.c.l.s4 1966171168
        %v3812 = vunpack.c.0.s8 %v3811
        %v3813 = vlaneseq
        %v3814 = vshrl.u32 %v3813, 7
        %v3815 = vsub.s32 %v3812, %v3814
        %v3816 = vrot.slane %v3802, %v3815
        %v3817 = vcombine.high %v3809, %v3809
        %v3818 = vcombine.high %v3816, %v3816
        %v3820 = vunpack.c.l.s4 1966171168
        %v3821 = vunpack.c.0.s8 %v3820
        %v3822 = vlaneseq
        %v3823 = vshrl.u32 %v3822, 7
        %v3824 = vsub.s32 %v3821, %v3823
        %v3825 = vrot.slane %v3809, %v3824
        %v3827 = vunpack.c.l.s4 1966171168
        %v3828 = vunpack.c.0.s8 %v3827
        %v3829 = vlaneseq
        %v3830 = vshrl.u32 %v3829, 7
        %v3831 = vsub.s32 %v3828, %v3830
        %v3832 = vrot.slane %v3816, %v3831
        %v3834 = vunpack.c.l.s4 1966171168
        %v3835 = vunpack.c.0.s8 %v3834
        %v3836 = vlaneseq
        %v3837 = vshrl.u32 %v3836, 7
        %v3838 = vsub.s32 %v3835, %v3837
        %v3839 = vrot.slane %v3817, %v3838
        %v3841 = vunpack.c.l.s4 1966171168
        %v3842 = vunpack.c.0.s8 %v3841
        %v3843 = vlaneseq
        %v3844 = vshrl.u32 %v3843, 7
        %v3845 = vsub.s32 %v3842, %v3844
        %v3846 = vrot.slane %v3818, %v3845
        %v3847 = vcombine.high %v3825, %v3825
        %v3848 = vcombine.high %v3832, %v3832
        %v3849 = vcombine.high %v3839, %v3839
        %v3850 = vcombine.high %v3846, %v3846
        %3859 = vst.msk [vmem:[%s233 + $0x11] sm:$0x1] %vm600, %v3825
        %3860 = vst.msk [vmem:[%s233 + $0x31] sm:$0x1] %vm600, %v3839
        %3861 = vst.msk [vmem:[%s233 + $0x51] sm:$0x1] %vm600, %v3847
        %3862 = vst.msk [vmem:[%s233 + $0x71] sm:$0x1] %vm600, %v3849
        %3863 = vst.msk [vmem:[%s233 + $0x91] sm:$0x1] %vm600, %v3832
        %3864 = vst.msk [vmem:[%s233 + $0xb1] sm:$0x1] %vm600, %v3846
        %3865 = vst.msk [vmem:[%s233 + $0xd1] sm:$0x1] %vm600, %v3848
        %3866 = vst.msk [vmem:[%s233 + $0xf1] sm:$0x1] %vm600, %v3850
        %v3867 = vld [vmem:[%s209 + $0x9] sm:$0x1]
        %v3868 = vld [vmem:[%s209 + $0x19] sm:$0x1]
        %v3869 = vld [vmem:[%s209 + $0x29] sm:$0x1]
        %v3870 = vld [vmem:[%s209 + $0x39] sm:$0x1]
        %v3875 = vrot.slane %v3868, 7
        %v3876 = vsel %vm256, %v3875, %v3867
        %v3877 = vrot.slane %v3869, 6
        %v3878 = vsel %vm259, %v3877, %v3876
        %v3879 = vrot.slane %v3870, 5
        %v3880 = vsel %vm262, %v3879, %v3878
        %v3881 = vsel %vm277, %v3880, 0
        %3883 = vmatprep.subr.mxu0 0.0
        %3884 = vmatpush1.msra.mxu0 %v3881
        %3885 = vmatprep.subr.mxu0 0.0
        %3886 = vmatpush1.msra.mxu0 0.0
        %3887 = vmatprep.subr.mxu0 0.0
        %3888 = vmatpush1.msra.mxu0 0.0
        %3889 = vmatprep.subr.mxu0 0.0
        %3890 = vmatpush1.msra.mxu0 0.0
        %3891 = vmatprep.subr.mxu0 0.0
        %3892 = vmatpush1.msra.mxu0 0.0
        %3893 = vmatprep.subr.mxu0 0.0
        %3894 = vmatpush1.msra.mxu0 0.0
        %3895 = vmatprep.subr.mxu0 0.0
        %3896 = vmatpush1.msra.mxu0 0.0
        %3897 = vmatprep.subr.mxu0 0.0
        %3898 = vmatpush1.msra.mxu0 0.0
        %3899 = vmatprep.subr.mxu0 0.0
        %3900 = vmatpush1.msra.mxu0 0.0
        %3901 = vmatprep.subr.mxu0 0.0
        %3902 = vmatpush1.msra.mxu0 0.0
        %3903 = vmatprep.subr.mxu0 0.0
        %3904 = vmatpush1.msra.mxu0 0.0
        %3905 = vmatprep.subr.mxu0 0.0
        %3906 = vmatpush1.msra.mxu0 0.0
        %3907 = vmatprep.subr.mxu0 0.0
        %3908 = vmatpush1.msra.mxu0 0.0
        %3909 = vmatprep.subr.mxu0 0.0
        %3910 = vmatpush1.msra.mxu0 0.0
        %3911 = vmatprep.subr.mxu0 0.0
        %3912 = vmatpush1.msra.mxu0 0.0
        %3913 = vmatprep.subr.mxu0 0.0
        %3914 = vmatpush1.msra.mxu0 0.0
        %3915 = vmatprep.subr.mxu0 0.0
        %3916 = vmatpush1.msra.mxu0 0.0
        %3917 = vmatprep.subr.mxu0 0.0
        %3918 = vmatpush1.msra.mxu0 0.0
        %3919 = vmatprep.subr.mxu0 0.0
        %3920 = vmatpush1.msra.mxu0 0.0
        %3921 = vmatprep.subr.mxu0 0.0
        %3922 = vmatpush1.msra.mxu0 0.0
        %3923 = vmatprep.subr.mxu0 0.0
        %3924 = vmatpush1.msra.mxu0 0.0
        %3925 = vmatprep.subr.mxu0 0.0
        %3926 = vmatpush1.msra.mxu0 0.0
        %3927 = vmatprep.subr.mxu0 0.0
        %3928 = vmatpush1.msra.mxu0 0.0
        %3929 = vmatprep.subr.mxu0 0.0
        %3930 = vmatpush1.msra.mxu0 0.0
        %3931 = vmatprep.subr.mxu0 0.0
        %3932 = vmatpush1.msra.mxu0 0.0
        %3933 = vmatprep.subr.mxu0 0.0
        %3934 = vmatpush1.msra.mxu0 0.0
        %3935 = vmatprep.subr.mxu0 0.0
        %3936 = vmatpush1.msra.mxu0 0.0
        %3937 = vmatprep.subr.mxu0 0.0
        %3938 = vmatpush1.msra.mxu0 0.0
        %3939 = vmatprep.subr.mxu0 0.0
        %3940 = vmatpush1.msra.mxu0 0.0
        %3941 = vmatprep.subr.mxu0 0.0
        %3942 = vmatpush1.msra.mxu0 0.0
        %3943 = vmatprep.subr.mxu0 0.0
        %3944 = vmatpush1.msra.mxu0 0.0
        %3945 = vmatprep.subr.mxu0 0.0
        %3946 = vmatpush1.msra.mxu0 0.0
        %3947 = vmatprep.mubr.f32.mxu0 0.0
        %3948 = vmatmul.mubr.f32.gmra.mrb[0].mxu0 %v266
        %v3949 = vpop.f32.mrb[0].mxu0
        %v3950 = vadd.f32 0.0, %v3949
        %v3951 = vpop.f32.mrb[0].mxu0
        %3952 = vmatprep.mubr.f32.mxu0 0.0
        %3953 = vmatmul.mubr.f32.gmra.mrb[0].mxu0 %v269
        %v3954 = vpop.f32.mrb[0].mxu0
        %v3955 = vadd.f32 0.0, %v3954
        %v3956 = vpop.f32.mrb[0].mxu0
        %3957 = vmatprep.mubr.f32.mxu0 0.0
        %3958 = vmatmul.mubr.f32.gmra.mrb[0].mxu0 %v272
        %v3959 = vpop.f32.mrb[0].mxu0
        %v3960 = vadd.f32 0.0, %v3959
        %v3961 = vpop.f32.mrb[0].mxu0
        %3962 = vmatprep.mubr.f32.mxu0 0.0
        %3963 = vmatmul.mubr.f32.gmra.mrb[0].mxu0 %v275
        %v3964 = vpop.f32.mrb[0].mxu0
        %v3965 = vadd.f32 0.0, %v3964
        %v3966 = vpop.f32.mrb[0].mxu0
        %3967 = vdwg.mxu0
        %v3969 = vsel %vm365, %v3960, 0
        %v3972 = vsel %vm365, %v3965, 0
        %3974 = vmatprep.subr.mxu0 0.0
        %3975 = vmatpush1.msra.mxu0 %v243
        %3976 = vmatprep.subr.mxu0 0.0
        %3977 = vmatpush1.msra.mxu0 %v244
        %3978 = vmatprep.subr.mxu0 0.0
        %3979 = vmatpush1.msra.mxu0 0.0
        %3980 = vmatprep.subr.mxu0 0.0
        %3981 = vmatpush1.msra.mxu0 0.0
        %3982 = vmatprep.subr.mxu0 0.0
        %3983 = vmatpush1.msra.mxu0 0.0
        %3984 = vmatprep.subr.mxu0 0.0
        %3985 = vmatpush1.msra.mxu0 0.0
        %3986 = vmatprep.subr.mxu0 0.0
        %3987 = vmatpush1.msra.mxu0 0.0
        %3988 = vmatprep.subr.mxu0 0.0
        %3989 = vmatpush1.msra.mxu0 0.0
        %3990 = vmatprep.subr.mxu0 0.0
        %3991 = vmatpush1.msra.mxu0 0.0
        %3992 = vmatprep.subr.mxu0 0.0
        %3993 = vmatpush1.msra.mxu0 0.0
        %3994 = vmatprep.subr.mxu0 0.0
        %3995 = vmatpush1.msra.mxu0 0.0
        %3996 = vmatprep.subr.mxu0 0.0
        %3997 = vmatpush1.msra.mxu0 0.0
        %3998 = vmatprep.subr.mxu0 0.0
        %3999 = vmatpush1.msra.mxu0 0.0
        %4000 = vmatprep.subr.mxu0 0.0
        %4001 = vmatpush1.msra.mxu0 0.0
        %4002 = vmatprep.subr.mxu0 0.0
        %4003 = vmatpush1.msra.mxu0 0.0
        %4004 = vmatprep.subr.mxu0 0.0
        %4005 = vmatpush1.msra.mxu0 0.0
        %4006 = vmatprep.subr.mxu0 0.0
        %4007 = vmatpush1.msra.mxu0 0.0
        %4008 = vmatprep.subr.mxu0 0.0
        %4009 = vmatpush1.msra.mxu0 0.0
        %4010 = vmatprep.subr.mxu0 0.0
        %4011 = vmatpush1.msra.mxu0 0.0
        %4012 = vmatprep.subr.mxu0 0.0
        %4013 = vmatpush1.msra.mxu0 0.0
        %4014 = vmatprep.subr.mxu0 0.0
        %4015 = vmatpush1.msra.mxu0 0.0
        %4016 = vmatprep.subr.mxu0 0.0
        %4017 = vmatpush1.msra.mxu0 0.0
        %4018 = vmatprep.subr.mxu0 0.0
        %4019 = vmatpush1.msra.mxu0 0.0
        %4020 = vmatprep.subr.mxu0 0.0
        %4021 = vmatpush1.msra.mxu0 0.0
        %4022 = vmatprep.subr.mxu0 0.0
        %4023 = vmatpush1.msra.mxu0 0.0
        %4024 = vmatprep.subr.mxu0 0.0
        %4025 = vmatpush1.msra.mxu0 0.0
        %4026 = vmatprep.subr.mxu0 0.0
        %4027 = vmatpush1.msra.mxu0 0.0
        %4028 = vmatprep.subr.mxu0 0.0
        %4029 = vmatpush1.msra.mxu0 0.0
        %4030 = vmatprep.subr.mxu0 0.0
        %4031 = vmatpush1.msra.mxu0 0.0
        %4032 = vmatprep.subr.mxu0 0.0
        %4033 = vmatpush1.msra.mxu0 0.0
        %4034 = vmatprep.subr.mxu0 0.0
        %4035 = vmatpush1.msra.mxu0 0.0
        %4036 = vmatprep.subr.mxu0 0.0
        %4037 = vmatpush1.msra.mxu0 0.0
        %4038 = vmatprep.mubr.f32.mxu0 0.0
        %4039 = vmatmul.mubr.f32.gmra.mrb[0].mxu0 %v3969
        %v4040 = vpop.f32.mrb[0].mxu0
        %v4041 = vadd.f32 0.0, %v4040
        %v4042 = vpop.f32.mrb[0].mxu0
        %4043 = vmatprep.mubr.f32.mxu0 0.0
        %4044 = vmatmul.mubr.f32.gmra.mrb[0].mxu0 %v3972
        %v4045 = vpop.f32.mrb[0].mxu0
        %v4046 = vadd.f32 0.0, %v4045
        %v4047 = vpop.f32.mrb[0].mxu0
        %4048 = vdwg.mxu0
        %v4050 = vsel %vm365, %v3950, 0
        %v4053 = vsel %vm365, %v3955, 0
        %4055 = vmatprep.subr.mxu0 0.0
        %4056 = vmatpush1.msra.mxu0 %v240
        %4057 = vmatprep.subr.mxu0 0.0
        %4058 = vmatpush1.msra.mxu0 %v241
        %4059 = vmatprep.subr.mxu0 0.0
        %4060 = vmatpush1.msra.mxu0 0.0
        %4061 = vmatprep.subr.mxu0 0.0
        %4062 = vmatpush1.msra.mxu0 0.0
        %4063 = vmatprep.subr.mxu0 0.0
        %4064 = vmatpush1.msra.mxu0 0.0
        %4065 = vmatprep.subr.mxu0 0.0
        %4066 = vmatpush1.msra.mxu0 0.0
        %4067 = vmatprep.subr.mxu0 0.0
        %4068 = vmatpush1.msra.mxu0 0.0
        %4069 = vmatprep.subr.mxu0 0.0
        %4070 = vmatpush1.msra.mxu0 0.0
        %4071 = vmatprep.subr.mxu0 0.0
        %4072 = vmatpush1.msra.mxu0 0.0
        %4073 = vmatprep.subr.mxu0 0.0
        %4074 = vmatpush1.msra.mxu0 0.0
        %4075 = vmatprep.subr.mxu0 0.0
        %4076 = vmatpush1.msra.mxu0 0.0
        %4077 = vmatprep.subr.mxu0 0.0
        %4078 = vmatpush1.msra.mxu0 0.0
        %4079 = vmatprep.subr.mxu0 0.0
        %4080 = vmatpush1.msra.mxu0 0.0
        %4081 = vmatprep.subr.mxu0 0.0
        %4082 = vmatpush1.msra.mxu0 0.0
        %4083 = vmatprep.subr.mxu0 0.0
        %4084 = vmatpush1.msra.mxu0 0.0
        %4085 = vmatprep.subr.mxu0 0.0
        %4086 = vmatpush1.msra.mxu0 0.0
        %4087 = vmatprep.subr.mxu0 0.0
        %4088 = vmatpush1.msra.mxu0 0.0
        %4089 = vmatprep.subr.mxu0 0.0
        %4090 = vmatpush1.msra.mxu0 0.0
        %4091 = vmatprep.subr.mxu0 0.0
        %4092 = vmatpush1.msra.mxu0 0.0
        %4093 = vmatprep.subr.mxu0 0.0
        %4094 = vmatpush1.msra.mxu0 0.0
        %4095 = vmatprep.subr.mxu0 0.0
        %4096 = vmatpush1.msra.mxu0 0.0
        %4097 = vmatprep.subr.mxu0 0.0
        %4098 = vmatpush1.msra.mxu0 0.0
        %4099 = vmatprep.subr.mxu0 0.0
        %4100 = vmatpush1.msra.mxu0 0.0
        %4101 = vmatprep.subr.mxu0 0.0
        %4102 = vmatpush1.msra.mxu0 0.0
        %4103 = vmatprep.subr.mxu0 0.0
        %4104 = vmatpush1.msra.mxu0 0.0
        %4105 = vmatprep.subr.mxu0 0.0
        %4106 = vmatpush1.msra.mxu0 0.0
        %4107 = vmatprep.subr.mxu0 0.0
        %4108 = vmatpush1.msra.mxu0 0.0
        %4109 = vmatprep.subr.mxu0 0.0
        %4110 = vmatpush1.msra.mxu0 0.0
        %4111 = vmatprep.subr.mxu0 0.0
        %4112 = vmatpush1.msra.mxu0 0.0
        %4113 = vmatprep.subr.mxu0 0.0
        %4114 = vmatpush1.msra.mxu0 0.0
        %4115 = vmatprep.subr.mxu0 0.0
        %4116 = vmatpush1.msra.mxu0 0.0
        %4117 = vmatprep.subr.mxu0 0.0
        %4118 = vmatpush1.msra.mxu0 0.0
        %4119 = vmatprep.mubr.f32.mxu0 0.0
        %4120 = vmatmul.mubr.f32.gmra.mrb[0].mxu0 %v4050
        %v4121 = vpop.f32.mrb[0].mxu0
        %v4122 = vadd.f32 %v4041, %v4121
        %v4123 = vpop.f32.mrb[0].mxu0
        %4124 = vmatprep.mubr.f32.mxu0 0.0
        %4125 = vmatmul.mubr.f32.gmra.mrb[0].mxu0 %v4053
        %v4126 = vpop.f32.mrb[0].mxu0
        %v4127 = vadd.f32 %v4046, %v4126
        %v4128 = vpop.f32.mrb[0].mxu0
        %4129 = vdwg.mxu0
        %v4130 = vadd.f32 %v4122, %v531
        %v4131 = vadd.f32 %v4127, %v536
        %v4132 = vmax.f32 %v4130, 0.0
        %v4133 = vmax.f32 %v4131, 0.0
        %v4135 = vcombine.high %v4132, %v4132
        %v4137 = vunpack.c.l.s4 1966171168
        %v4138 = vunpack.c.0.s8 %v4137
        %v4139 = vlaneseq
        %v4140 = vshrl.u32 %v4139, 7
        %v4141 = vsub.s32 %v4138, %v4140
        %v4142 = vrot.slane %v4132, %v4141
        %v4144 = vunpack.c.l.s4 1966171168
        %v4145 = vunpack.c.0.s8 %v4144
        %v4146 = vlaneseq
        %v4147 = vshrl.u32 %v4146, 7
        %v4148 = vsub.s32 %v4145, %v4147
        %v4149 = vrot.slane %v4135, %v4148
        %v4150 = vcombine.high %v4142, %v4142
        %v4151 = vcombine.high %v4149, %v4149
        %v4153 = vunpack.c.l.s4 1966171168
        %v4154 = vunpack.c.0.s8 %v4153
        %v4155 = vlaneseq
        %v4156 = vshrl.u32 %v4155, 7
        %v4157 = vsub.s32 %v4154, %v4156
        %v4158 = vrot.slane %v4142, %v4157
        %v4160 = vunpack.c.l.s4 1966171168
        %v4161 = vunpack.c.0.s8 %v4160
        %v4162 = vlaneseq
        %v4163 = vshrl.u32 %v4162, 7
        %v4164 = vsub.s32 %v4161, %v4163
        %v4165 = vrot.slane %v4149, %v4164
        %v4167 = vunpack.c.l.s4 1966171168
        %v4168 = vunpack.c.0.s8 %v4167
        %v4169 = vlaneseq
        %v4170 = vshrl.u32 %v4169, 7
        %v4171 = vsub.s32 %v4168, %v4170
        %v4172 = vrot.slane %v4150, %v4171
        %v4174 = vunpack.c.l.s4 1966171168
        %v4175 = vunpack.c.0.s8 %v4174
        %v4176 = vlaneseq
        %v4177 = vshrl.u32 %v4176, 7
        %v4178 = vsub.s32 %v4175, %v4177
        %v4179 = vrot.slane %v4151, %v4178
        %v4180 = vcombine.high %v4158, %v4158
        %v4181 = vcombine.high %v4165, %v4165
        %v4182 = vcombine.high %v4172, %v4172
        %v4183 = vcombine.high %v4179, %v4179
        %4192 = vst.msk [vmem:[%s233 + $0x12] sm:$0x1] %vm600, %v4158
        %4193 = vst.msk [vmem:[%s233 + $0x32] sm:$0x1] %vm600, %v4172
        %4194 = vst.msk [vmem:[%s233 + $0x52] sm:$0x1] %vm600, %v4180
        %4195 = vst.msk [vmem:[%s233 + $0x72] sm:$0x1] %vm600, %v4182
        %4196 = vst.msk [vmem:[%s233 + $0x92] sm:$0x1] %vm600, %v4165
        %4197 = vst.msk [vmem:[%s233 + $0xb2] sm:$0x1] %vm600, %v4179
        %4198 = vst.msk [vmem:[%s233 + $0xd2] sm:$0x1] %vm600, %v4181
        %4199 = vst.msk [vmem:[%s233 + $0xf2] sm:$0x1] %vm600, %v4183
        %v4201 = vcombine.high %v4133, %v4133
        %v4203 = vunpack.c.l.s4 1966171168
        %v4204 = vunpack.c.0.s8 %v4203
        %v4205 = vlaneseq
        %v4206 = vshrl.u32 %v4205, 7
        %v4207 = vsub.s32 %v4204, %v4206
        %v4208 = vrot.slane %v4133, %v4207
        %v4210 = vunpack.c.l.s4 1966171168
        %v4211 = vunpack.c.0.s8 %v4210
        %v4212 = vlaneseq
        %v4213 = vshrl.u32 %v4212, 7
        %v4214 = vsub.s32 %v4211, %v4213
        %v4215 = vrot.slane %v4201, %v4214
        %v4216 = vcombine.high %v4208, %v4208
        %v4217 = vcombine.high %v4215, %v4215
        %v4219 = vunpack.c.l.s4 1966171168
        %v4220 = vunpack.c.0.s8 %v4219
        %v4221 = vlaneseq
        %v4222 = vshrl.u32 %v4221, 7
        %v4223 = vsub.s32 %v4220, %v4222
        %v4224 = vrot.slane %v4208, %v4223
        %v4226 = vunpack.c.l.s4 1966171168
        %v4227 = vunpack.c.0.s8 %v4226
        %v4228 = vlaneseq
        %v4229 = vshrl.u32 %v4228, 7
        %v4230 = vsub.s32 %v4227, %v4229
        %v4231 = vrot.slane %v4215, %v4230
        %v4233 = vunpack.c.l.s4 1966171168
        %v4234 = vunpack.c.0.s8 %v4233
        %v4235 = vlaneseq
        %v4236 = vshrl.u32 %v4235, 7
        %v4237 = vsub.s32 %v4234, %v4236
        %v4238 = vrot.slane %v4216, %v4237
        %v4240 = vunpack.c.l.s4 1966171168
        %v4241 = vunpack.c.0.s8 %v4240
        %v4242 = vlaneseq
        %v4243 = vshrl.u32 %v4242, 7
        %v4244 = vsub.s32 %v4241, %v4243
        %v4245 = vrot.slane %v4217, %v4244
        %v4246 = vcombine.high %v4224, %v4224
        %v4247 = vcombine.high %v4231, %v4231
        %v4248 = vcombine.high %v4238, %v4238
        %v4249 = vcombine.high %v4245, %v4245
        %4258 = vst.msk [vmem:[%s233 + $0x13] sm:$0x1] %vm600, %v4224
        %4259 = vst.msk [vmem:[%s233 + $0x33] sm:$0x1] %vm600, %v4238
        %4260 = vst.msk [vmem:[%s233 + $0x53] sm:$0x1] %vm600, %v4246
        %4261 = vst.msk [vmem:[%s233 + $0x73] sm:$0x1] %vm600, %v4248
        %4262 = vst.msk [vmem:[%s233 + $0x93] sm:$0x1] %vm600, %v4231
        %4263 = vst.msk [vmem:[%s233 + $0xb3] sm:$0x1] %vm600, %v4245
        %4264 = vst.msk [vmem:[%s233 + $0xd3] sm:$0x1] %vm600, %v4247
        %4265 = vst.msk [vmem:[%s233 + $0xf3] sm:$0x1] %vm600, %v4249
        %v4266 = vld [vmem:[%s209 + $0xa] sm:$0x1]
        %v4267 = vld [vmem:[%s209 + $0x1a] sm:$0x1]
        %v4268 = vld [vmem:[%s209 + $0x2a] sm:$0x1]
        %v4269 = vld [vmem:[%s209 + $0x3a] sm:$0x1]
        %v4274 = vrot.slane %v4267, 7
        %v4275 = vsel %vm256, %v4274, %v4266
        %v4276 = vrot.slane %v4268, 6
        %v4277 = vsel %vm259, %v4276, %v4275
        %v4278 = vrot.slane %v4269, 5
        %v4279 = vsel %vm262, %v4278, %v4277
        %v4280 = vsel %vm277, %v4279, 0
        %4282 = vmatprep.subr.mxu0 0.0
        %4283 = vmatpush1.msra.mxu0 %v4280
        %4284 = vmatprep.subr.mxu0 0.0
        %4285 = vmatpush1.msra.mxu0 0.0
        %4286 = vmatprep.subr.mxu0 0.0
        %4287 = vmatpush1.msra.mxu0 0.0
        %4288 = vmatprep.subr.mxu0 0.0
        %4289 = vmatpush1.msra.mxu0 0.0
        %4290 = vmatprep.subr.mxu0 0.0
        %4291 = vmatpush1.msra.mxu0 0.0
        %4292 = vmatprep.subr.mxu0 0.0
        %4293 = vmatpush1.msra.mxu0 0.0
        %4294 = vmatprep.subr.mxu0 0.0
        %4295 = vmatpush1.msra.mxu0 0.0
        %4296 = vmatprep.subr.mxu0 0.0
        %4297 = vmatpush1.msra.mxu0 0.0
        %4298 = vmatprep.subr.mxu0 0.0
        %4299 = vmatpush1.msra.mxu0 0.0
        %4300 = vmatprep.subr.mxu0 0.0
        %4301 = vmatpush1.msra.mxu0 0.0
        %4302 = vmatprep.subr.mxu0 0.0
        %4303 = vmatpush1.msra.mxu0 0.0
        %4304 = vmatprep.subr.mxu0 0.0
        %4305 = vmatpush1.msra.mxu0 0.0
        %4306 = vmatprep.subr.mxu0 0.0
        %4307 = vmatpush1.msra.mxu0 0.0
        %4308 = vmatprep.subr.mxu0 0.0
        %4309 = vmatpush1.msra.mxu0 0.0
        %4310 = vmatprep.subr.mxu0 0.0
        %4311 = vmatpush1.msra.mxu0 0.0
        %4312 = vmatprep.subr.mxu0 0.0
        %4313 = vmatpush1.msra.mxu0 0.0
        %4314 = vmatprep.subr.mxu0 0.0
        %4315 = vmatpush1.msra.mxu0 0.0
        %4316 = vmatprep.subr.mxu0 0.0
        %4317 = vmatpush1.msra.mxu0 0.0
        %4318 = vmatprep.subr.mxu0 0.0
        %4319 = vmatpush1.msra.mxu0 0.0
        %4320 = vmatprep.subr.mxu0 0.0
        %4321 = vmatpush1.msra.mxu0 0.0
        %4322 = vmatprep.subr.mxu0 0.0
        %4323 = vmatpush1.msra.mxu0 0.0
        %4324 = vmatprep.subr.mxu0 0.0
        %4325 = vmatpush1.msra.mxu0 0.0
        %4326 = vmatprep.subr.mxu0 0.0
        %4327 = vmatpush1.msra.mxu0 0.0
        %4328 = vmatprep.subr.mxu0 0.0
        %4329 = vmatpush1.msra.mxu0 0.0
        %4330 = vmatprep.subr.mxu0 0.0
        %4331 = vmatpush1.msra.mxu0 0.0
        %4332 = vmatprep.subr.mxu0 0.0
        %4333 = vmatpush1.msra.mxu0 0.0
        %4334 = vmatprep.subr.mxu0 0.0
        %4335 = vmatpush1.msra.mxu0 0.0
        %4336 = vmatprep.subr.mxu0 0.0
        %4337 = vmatpush1.msra.mxu0 0.0
        %4338 = vmatprep.subr.mxu0 0.0
        %4339 = vmatpush1.msra.mxu0 0.0
        %4340 = vmatprep.subr.mxu0 0.0
        %4341 = vmatpush1.msra.mxu0 0.0
        %4342 = vmatprep.subr.mxu0 0.0
        %4343 = vmatpush1.msra.mxu0 0.0
        %4344 = vmatprep.subr.mxu0 0.0
        %4345 = vmatpush1.msra.mxu0 0.0
        %4346 = vmatprep.mubr.f32.mxu0 0.0
        %4347 = vmatmul.mubr.f32.gmra.mrb[0].mxu0 %v266
        %v4348 = vpop.f32.mrb[0].mxu0
        %v4349 = vadd.f32 0.0, %v4348
        %v4350 = vpop.f32.mrb[0].mxu0
        %4351 = vmatprep.mubr.f32.mxu0 0.0
        %4352 = vmatmul.mubr.f32.gmra.mrb[0].mxu0 %v269
        %v4353 = vpop.f32.mrb[0].mxu0
        %v4354 = vadd.f32 0.0, %v4353
        %v4355 = vpop.f32.mrb[0].mxu0
        %4356 = vmatprep.mubr.f32.mxu0 0.0
        %4357 = vmatmul.mubr.f32.gmra.mrb[0].mxu0 %v272
        %v4358 = vpop.f32.mrb[0].mxu0
        %v4359 = vadd.f32 0.0, %v4358
        %v4360 = vpop.f32.mrb[0].mxu0
        %4361 = vmatprep.mubr.f32.mxu0 0.0
        %4362 = vmatmul.mubr.f32.gmra.mrb[0].mxu0 %v275
        %v4363 = vpop.f32.mrb[0].mxu0
        %v4364 = vadd.f32 0.0, %v4363
        %v4365 = vpop.f32.mrb[0].mxu0
        %4366 = vdwg.mxu0
        %v4368 = vsel %vm365, %v4359, 0
        %v4371 = vsel %vm365, %v4364, 0
        %4373 = vmatprep.subr.mxu0 0.0
        %4374 = vmatpush1.msra.mxu0 %v243
        %4375 = vmatprep.subr.mxu0 0.0
        %4376 = vmatpush1.msra.mxu0 %v244
        %4377 = vmatprep.subr.mxu0 0.0
        %4378 = vmatpush1.msra.mxu0 0.0
        %4379 = vmatprep.subr.mxu0 0.0
        %4380 = vmatpush1.msra.mxu0 0.0
        %4381 = vmatprep.subr.mxu0 0.0
        %4382 = vmatpush1.msra.mxu0 0.0
        %4383 = vmatprep.subr.mxu0 0.0
        %4384 = vmatpush1.msra.mxu0 0.0
        %4385 = vmatprep.subr.mxu0 0.0
        %4386 = vmatpush1.msra.mxu0 0.0
        %4387 = vmatprep.subr.mxu0 0.0
        %4388 = vmatpush1.msra.mxu0 0.0
        %4389 = vmatprep.subr.mxu0 0.0
        %4390 = vmatpush1.msra.mxu0 0.0
        %4391 = vmatprep.subr.mxu0 0.0
        %4392 = vmatpush1.msra.mxu0 0.0
        %4393 = vmatprep.subr.mxu0 0.0
        %4394 = vmatpush1.msra.mxu0 0.0
        %4395 = vmatprep.subr.mxu0 0.0
        %4396 = vmatpush1.msra.mxu0 0.0
        %4397 = vmatprep.subr.mxu0 0.0
        %4398 = vmatpush1.msra.mxu0 0.0
        %4399 = vmatprep.subr.mxu0 0.0
        %4400 = vmatpush1.msra.mxu0 0.0
        %4401 = vmatprep.subr.mxu0 0.0
        %4402 = vmatpush1.msra.mxu0 0.0
        %4403 = vmatprep.subr.mxu0 0.0
        %4404 = vmatpush1.msra.mxu0 0.0
        %4405 = vmatprep.subr.mxu0 0.0
        %4406 = vmatpush1.msra.mxu0 0.0
        %4407 = vmatprep.subr.mxu0 0.0
        %4408 = vmatpush1.msra.mxu0 0.0
        %4409 = vmatprep.subr.mxu0 0.0
        %4410 = vmatpush1.msra.mxu0 0.0
        %4411 = vmatprep.subr.mxu0 0.0
        %4412 = vmatpush1.msra.mxu0 0.0
        %4413 = vmatprep.subr.mxu0 0.0
        %4414 = vmatpush1.msra.mxu0 0.0
        %4415 = vmatprep.subr.mxu0 0.0
        %4416 = vmatpush1.msra.mxu0 0.0
        %4417 = vmatprep.subr.mxu0 0.0
        %4418 = vmatpush1.msra.mxu0 0.0
        %4419 = vmatprep.subr.mxu0 0.0
        %4420 = vmatpush1.msra.mxu0 0.0
        %4421 = vmatprep.subr.mxu0 0.0
        %4422 = vmatpush1.msra.mxu0 0.0
        %4423 = vmatprep.subr.mxu0 0.0
        %4424 = vmatpush1.msra.mxu0 0.0
        %4425 = vmatprep.subr.mxu0 0.0
        %4426 = vmatpush1.msra.mxu0 0.0
        %4427 = vmatprep.subr.mxu0 0.0
        %4428 = vmatpush1.msra.mxu0 0.0
        %4429 = vmatprep.subr.mxu0 0.0
        %4430 = vmatpush1.msra.mxu0 0.0
        %4431 = vmatprep.subr.mxu0 0.0
        %4432 = vmatpush1.msra.mxu0 0.0
        %4433 = vmatprep.subr.mxu0 0.0
        %4434 = vmatpush1.msra.mxu0 0.0
        %4435 = vmatprep.subr.mxu0 0.0
        %4436 = vmatpush1.msra.mxu0 0.0
        %4437 = vmatprep.mubr.f32.mxu0 0.0
        %4438 = vmatmul.mubr.f32.gmra.mrb[0].mxu0 %v4368
        %v4439 = vpop.f32.mrb[0].mxu0
        %v4440 = vadd.f32 0.0, %v4439
        %v4441 = vpop.f32.mrb[0].mxu0
        %4442 = vmatprep.mubr.f32.mxu0 0.0
        %4443 = vmatmul.mubr.f32.gmra.mrb[0].mxu0 %v4371
        %v4444 = vpop.f32.mrb[0].mxu0
        %v4445 = vadd.f32 0.0, %v4444
        %v4446 = vpop.f32.mrb[0].mxu0
        %4447 = vdwg.mxu0
        %v4449 = vsel %vm365, %v4349, 0
        %v4452 = vsel %vm365, %v4354, 0
        %4454 = vmatprep.subr.mxu0 0.0
        %4455 = vmatpush1.msra.mxu0 %v240
        %4456 = vmatprep.subr.mxu0 0.0
        %4457 = vmatpush1.msra.mxu0 %v241
        %4458 = vmatprep.subr.mxu0 0.0
        %4459 = vmatpush1.msra.mxu0 0.0
        %4460 = vmatprep.subr.mxu0 0.0
        %4461 = vmatpush1.msra.mxu0 0.0
        %4462 = vmatprep.subr.mxu0 0.0
        %4463 = vmatpush1.msra.mxu0 0.0
        %4464 = vmatprep.subr.mxu0 0.0
        %4465 = vmatpush1.msra.mxu0 0.0
        %4466 = vmatprep.subr.mxu0 0.0
        %4467 = vmatpush1.msra.mxu0 0.0
        %4468 = vmatprep.subr.mxu0 0.0
        %4469 = vmatpush1.msra.mxu0 0.0
        %4470 = vmatprep.subr.mxu0 0.0
        %4471 = vmatpush1.msra.mxu0 0.0
        %4472 = vmatprep.subr.mxu0 0.0
        %4473 = vmatpush1.msra.mxu0 0.0
        %4474 = vmatprep.subr.mxu0 0.0
        %4475 = vmatpush1.msra.mxu0 0.0
        %4476 = vmatprep.subr.mxu0 0.0
        %4477 = vmatpush1.msra.mxu0 0.0
        %4478 = vmatprep.subr.mxu0 0.0
        %4479 = vmatpush1.msra.mxu0 0.0
        %4480 = vmatprep.subr.mxu0 0.0
        %4481 = vmatpush1.msra.mxu0 0.0
        %4482 = vmatprep.subr.mxu0 0.0
        %4483 = vmatpush1.msra.mxu0 0.0
        %4484 = vmatprep.subr.mxu0 0.0
        %4485 = vmatpush1.msra.mxu0 0.0
        %4486 = vmatprep.subr.mxu0 0.0
        %4487 = vmatpush1.msra.mxu0 0.0
        %4488 = vmatprep.subr.mxu0 0.0
        %4489 = vmatpush1.msra.mxu0 0.0
        %4490 = vmatprep.subr.mxu0 0.0
        %4491 = vmatpush1.msra.mxu0 0.0
        %4492 = vmatprep.subr.mxu0 0.0
        %4493 = vmatpush1.msra.mxu0 0.0
        %4494 = vmatprep.subr.mxu0 0.0
        %4495 = vmatpush1.msra.mxu0 0.0
        %4496 = vmatprep.subr.mxu0 0.0
        %4497 = vmatpush1.msra.mxu0 0.0
        %4498 = vmatprep.subr.mxu0 0.0
        %4499 = vmatpush1.msra.mxu0 0.0
        %4500 = vmatprep.subr.mxu0 0.0
        %4501 = vmatpush1.msra.mxu0 0.0
        %4502 = vmatprep.subr.mxu0 0.0
        %4503 = vmatpush1.msra.mxu0 0.0
        %4504 = vmatprep.subr.mxu0 0.0
        %4505 = vmatpush1.msra.mxu0 0.0
        %4506 = vmatprep.subr.mxu0 0.0
        %4507 = vmatpush1.msra.mxu0 0.0
        %4508 = vmatprep.subr.mxu0 0.0
        %4509 = vmatpush1.msra.mxu0 0.0
        %4510 = vmatprep.subr.mxu0 0.0
        %4511 = vmatpush1.msra.mxu0 0.0
        %4512 = vmatprep.subr.mxu0 0.0
        %4513 = vmatpush1.msra.mxu0 0.0
        %4514 = vmatprep.subr.mxu0 0.0
        %4515 = vmatpush1.msra.mxu0 0.0
        %4516 = vmatprep.subr.mxu0 0.0
        %4517 = vmatpush1.msra.mxu0 0.0
        %4518 = vmatprep.mubr.f32.mxu0 0.0
        %4519 = vmatmul.mubr.f32.gmra.mrb[0].mxu0 %v4449
        %v4520 = vpop.f32.mrb[0].mxu0
        %v4521 = vadd.f32 %v4440, %v4520
        %v4522 = vpop.f32.mrb[0].mxu0
        %4523 = vmatprep.mubr.f32.mxu0 0.0
        %4524 = vmatmul.mubr.f32.gmra.mrb[0].mxu0 %v4452
        %v4525 = vpop.f32.mrb[0].mxu0
        %v4526 = vadd.f32 %v4445, %v4525
        %v4527 = vpop.f32.mrb[0].mxu0
        %4528 = vdwg.mxu0
        %v4529 = vadd.f32 %v4521, %v531
        %v4530 = vadd.f32 %v4526, %v536
        %v4531 = vmax.f32 %v4529, 0.0
        %v4532 = vmax.f32 %v4530, 0.0
        %v4534 = vcombine.high %v4531, %v4531
        %v4536 = vunpack.c.l.s4 1966171168
        %v4537 = vunpack.c.0.s8 %v4536
        %v4538 = vlaneseq
        %v4539 = vshrl.u32 %v4538, 7
        %v4540 = vsub.s32 %v4537, %v4539
        %v4541 = vrot.slane %v4531, %v4540
        %v4543 = vunpack.c.l.s4 1966171168
        %v4544 = vunpack.c.0.s8 %v4543
        %v4545 = vlaneseq
        %v4546 = vshrl.u32 %v4545, 7
        %v4547 = vsub.s32 %v4544, %v4546
        %v4548 = vrot.slane %v4534, %v4547
        %v4549 = vcombine.high %v4541, %v4541
        %v4550 = vcombine.high %v4548, %v4548
        %v4552 = vunpack.c.l.s4 1966171168
        %v4553 = vunpack.c.0.s8 %v4552
        %v4554 = vlaneseq
        %v4555 = vshrl.u32 %v4554, 7
        %v4556 = vsub.s32 %v4553, %v4555
        %v4557 = vrot.slane %v4541, %v4556
        %v4559 = vunpack.c.l.s4 1966171168
        %v4560 = vunpack.c.0.s8 %v4559
        %v4561 = vlaneseq
        %v4562 = vshrl.u32 %v4561, 7
        %v4563 = vsub.s32 %v4560, %v4562
        %v4564 = vrot.slane %v4548, %v4563
        %v4566 = vunpack.c.l.s4 1966171168
        %v4567 = vunpack.c.0.s8 %v4566
        %v4568 = vlaneseq
        %v4569 = vshrl.u32 %v4568, 7
        %v4570 = vsub.s32 %v4567, %v4569
        %v4571 = vrot.slane %v4549, %v4570
        %v4573 = vunpack.c.l.s4 1966171168
        %v4574 = vunpack.c.0.s8 %v4573
        %v4575 = vlaneseq
        %v4576 = vshrl.u32 %v4575, 7
        %v4577 = vsub.s32 %v4574, %v4576
        %v4578 = vrot.slane %v4550, %v4577
        %v4579 = vcombine.high %v4557, %v4557
        %v4580 = vcombine.high %v4564, %v4564
        %v4581 = vcombine.high %v4571, %v4571
        %v4582 = vcombine.high %v4578, %v4578
        %4591 = vst.msk [vmem:[%s233 + $0x14] sm:$0x1] %vm600, %v4557
        %4592 = vst.msk [vmem:[%s233 + $0x34] sm:$0x1] %vm600, %v4571
        %4593 = vst.msk [vmem:[%s233 + $0x54] sm:$0x1] %vm600, %v4579
        %4594 = vst.msk [vmem:[%s233 + $0x74] sm:$0x1] %vm600, %v4581
        %4595 = vst.msk [vmem:[%s233 + $0x94] sm:$0x1] %vm600, %v4564
        %4596 = vst.msk [vmem:[%s233 + $0xb4] sm:$0x1] %vm600, %v4578
        %4597 = vst.msk [vmem:[%s233 + $0xd4] sm:$0x1] %vm600, %v4580
        %4598 = vst.msk [vmem:[%s233 + $0xf4] sm:$0x1] %vm600, %v4582
        %v4600 = vcombine.high %v4532, %v4532
        %v4602 = vunpack.c.l.s4 1966171168
        %v4603 = vunpack.c.0.s8 %v4602
        %v4604 = vlaneseq
        %v4605 = vshrl.u32 %v4604, 7
        %v4606 = vsub.s32 %v4603, %v4605
        %v4607 = vrot.slane %v4532, %v4606
        %v4609 = vunpack.c.l.s4 1966171168
        %v4610 = vunpack.c.0.s8 %v4609
        %v4611 = vlaneseq
        %v4612 = vshrl.u32 %v4611, 7
        %v4613 = vsub.s32 %v4610, %v4612
        %v4614 = vrot.slane %v4600, %v4613
        %v4615 = vcombine.high %v4607, %v4607
        %v4616 = vcombine.high %v4614, %v4614
        %v4618 = vunpack.c.l.s4 1966171168
        %v4619 = vunpack.c.0.s8 %v4618
        %v4620 = vlaneseq
        %v4621 = vshrl.u32 %v4620, 7
        %v4622 = vsub.s32 %v4619, %v4621
        %v4623 = vrot.slane %v4607, %v4622
        %v4625 = vunpack.c.l.s4 1966171168
        %v4626 = vunpack.c.0.s8 %v4625
        %v4627 = vlaneseq
        %v4628 = vshrl.u32 %v4627, 7
        %v4629 = vsub.s32 %v4626, %v4628
        %v4630 = vrot.slane %v4614, %v4629
        %v4632 = vunpack.c.l.s4 1966171168
        %v4633 = vunpack.c.0.s8 %v4632
        %v4634 = vlaneseq
        %v4635 = vshrl.u32 %v4634, 7
        %v4636 = vsub.s32 %v4633, %v4635
        %v4637 = vrot.slane %v4615, %v4636
        %v4639 = vunpack.c.l.s4 1966171168
        %v4640 = vunpack.c.0.s8 %v4639
        %v4641 = vlaneseq
        %v4642 = vshrl.u32 %v4641, 7
        %v4643 = vsub.s32 %v4640, %v4642
        %v4644 = vrot.slane %v4616, %v4643
        %v4645 = vcombine.high %v4623, %v4623
        %v4646 = vcombine.high %v4630, %v4630
        %v4647 = vcombine.high %v4637, %v4637
        %v4648 = vcombine.high %v4644, %v4644
        %4657 = vst.msk [vmem:[%s233 + $0x15] sm:$0x1] %vm600, %v4623
        %4658 = vst.msk [vmem:[%s233 + $0x35] sm:$0x1] %vm600, %v4637
        %4659 = vst.msk [vmem:[%s233 + $0x55] sm:$0x1] %vm600, %v4645
        %4660 = vst.msk [vmem:[%s233 + $0x75] sm:$0x1] %vm600, %v4647
        %4661 = vst.msk [vmem:[%s233 + $0x95] sm:$0x1] %vm600, %v4630
        %4662 = vst.msk [vmem:[%s233 + $0xb5] sm:$0x1] %vm600, %v4644
        %4663 = vst.msk [vmem:[%s233 + $0xd5] sm:$0x1] %vm600, %v4646
        %4664 = vst.msk [vmem:[%s233 + $0xf5] sm:$0x1] %vm600, %v4648
        %v4665 = vld [vmem:[%s209 + $0xb] sm:$0x1]
        %v4666 = vld [vmem:[%s209 + $0x1b] sm:$0x1]
        %v4667 = vld [vmem:[%s209 + $0x2b] sm:$0x1]
        %v4668 = vld [vmem:[%s209 + $0x3b] sm:$0x1]
        %v4673 = vrot.slane %v4666, 7
        %v4674 = vsel %vm256, %v4673, %v4665
        %v4675 = vrot.slane %v4667, 6
        %v4676 = vsel %vm259, %v4675, %v4674
        %v4677 = vrot.slane %v4668, 5
        %v4678 = vsel %vm262, %v4677, %v4676
        %v4679 = vsel %vm277, %v4678, 0
        %4681 = vmatprep.subr.mxu0 0.0
        %4682 = vmatpush1.msra.mxu0 %v4679
        %4683 = vmatprep.subr.mxu0 0.0
        %4684 = vmatpush1.msra.mxu0 0.0
        %4685 = vmatprep.subr.mxu0 0.0
        %4686 = vmatpush1.msra.mxu0 0.0
        %4687 = vmatprep.subr.mxu0 0.0
        %4688 = vmatpush1.msra.mxu0 0.0
        %4689 = vmatprep.subr.mxu0 0.0
        %4690 = vmatpush1.msra.mxu0 0.0
        %4691 = vmatprep.subr.mxu0 0.0
        %4692 = vmatpush1.msra.mxu0 0.0
        %4693 = vmatprep.subr.mxu0 0.0
        %4694 = vmatpush1.msra.mxu0 0.0
        %4695 = vmatprep.subr.mxu0 0.0
        %4696 = vmatpush1.msra.mxu0 0.0
        %4697 = vmatprep.subr.mxu0 0.0
        %4698 = vmatpush1.msra.mxu0 0.0
        %4699 = vmatprep.subr.mxu0 0.0
        %4700 = vmatpush1.msra.mxu0 0.0
        %4701 = vmatprep.subr.mxu0 0.0
        %4702 = vmatpush1.msra.mxu0 0.0
        %4703 = vmatprep.subr.mxu0 0.0
        %4704 = vmatpush1.msra.mxu0 0.0
        %4705 = vmatprep.subr.mxu0 0.0
        %4706 = vmatpush1.msra.mxu0 0.0
        %4707 = vmatprep.subr.mxu0 0.0
        %4708 = vmatpush1.msra.mxu0 0.0
        %4709 = vmatprep.subr.mxu0 0.0
        %4710 = vmatpush1.msra.mxu0 0.0
        %4711 = vmatprep.subr.mxu0 0.0
        %4712 = vmatpush1.msra.mxu0 0.0
        %4713 = vmatprep.subr.mxu0 0.0
        %4714 = vmatpush1.msra.mxu0 0.0
        %4715 = vmatprep.subr.mxu0 0.0
        %4716 = vmatpush1.msra.mxu0 0.0
        %4717 = vmatprep.subr.mxu0 0.0
        %4718 = vmatpush1.msra.mxu0 0.0
        %4719 = vmatprep.subr.mxu0 0.0
        %4720 = vmatpush1.msra.mxu0 0.0
        %4721 = vmatprep.subr.mxu0 0.0
        %4722 = vmatpush1.msra.mxu0 0.0
        %4723 = vmatprep.subr.mxu0 0.0
        %4724 = vmatpush1.msra.mxu0 0.0
        %4725 = vmatprep.subr.mxu0 0.0
        %4726 = vmatpush1.msra.mxu0 0.0
        %4727 = vmatprep.subr.mxu0 0.0
        %4728 = vmatpush1.msra.mxu0 0.0
        %4729 = vmatprep.subr.mxu0 0.0
        %4730 = vmatpush1.msra.mxu0 0.0
        %4731 = vmatprep.subr.mxu0 0.0
        %4732 = vmatpush1.msra.mxu0 0.0
        %4733 = vmatprep.subr.mxu0 0.0
        %4734 = vmatpush1.msra.mxu0 0.0
        %4735 = vmatprep.subr.mxu0 0.0
        %4736 = vmatpush1.msra.mxu0 0.0
        %4737 = vmatprep.subr.mxu0 0.0
        %4738 = vmatpush1.msra.mxu0 0.0
        %4739 = vmatprep.subr.mxu0 0.0
        %4740 = vmatpush1.msra.mxu0 0.0
        %4741 = vmatprep.subr.mxu0 0.0
        %4742 = vmatpush1.msra.mxu0 0.0
        %4743 = vmatprep.subr.mxu0 0.0
        %4744 = vmatpush1.msra.mxu0 0.0
        %4745 = vmatprep.mubr.f32.mxu0 0.0
        %4746 = vmatmul.mubr.f32.gmra.mrb[0].mxu0 %v266
        %v4747 = vpop.f32.mrb[0].mxu0
        %v4748 = vadd.f32 0.0, %v4747
        %v4749 = vpop.f32.mrb[0].mxu0
        %4750 = vmatprep.mubr.f32.mxu0 0.0
        %4751 = vmatmul.mubr.f32.gmra.mrb[0].mxu0 %v269
        %v4752 = vpop.f32.mrb[0].mxu0
        %v4753 = vadd.f32 0.0, %v4752
        %v4754 = vpop.f32.mrb[0].mxu0
        %4755 = vmatprep.mubr.f32.mxu0 0.0
        %4756 = vmatmul.mubr.f32.gmra.mrb[0].mxu0 %v272
        %v4757 = vpop.f32.mrb[0].mxu0
        %v4758 = vadd.f32 0.0, %v4757
        %v4759 = vpop.f32.mrb[0].mxu0
        %4760 = vmatprep.mubr.f32.mxu0 0.0
        %4761 = vmatmul.mubr.f32.gmra.mrb[0].mxu0 %v275
        %v4762 = vpop.f32.mrb[0].mxu0
        %v4763 = vadd.f32 0.0, %v4762
        %v4764 = vpop.f32.mrb[0].mxu0
        %4765 = vdwg.mxu0
        %v4767 = vsel %vm365, %v4758, 0
        %v4770 = vsel %vm365, %v4763, 0
        %4772 = vmatprep.subr.mxu0 0.0
        %4773 = vmatpush1.msra.mxu0 %v243
        %4774 = vmatprep.subr.mxu0 0.0
        %4775 = vmatpush1.msra.mxu0 %v244
        %4776 = vmatprep.subr.mxu0 0.0
        %4777 = vmatpush1.msra.mxu0 0.0
        %4778 = vmatprep.subr.mxu0 0.0
        %4779 = vmatpush1.msra.mxu0 0.0
        %4780 = vmatprep.subr.mxu0 0.0
        %4781 = vmatpush1.msra.mxu0 0.0
        %4782 = vmatprep.subr.mxu0 0.0
        %4783 = vmatpush1.msra.mxu0 0.0
        %4784 = vmatprep.subr.mxu0 0.0
        %4785 = vmatpush1.msra.mxu0 0.0
        %4786 = vmatprep.subr.mxu0 0.0
        %4787 = vmatpush1.msra.mxu0 0.0
        %4788 = vmatprep.subr.mxu0 0.0
        %4789 = vmatpush1.msra.mxu0 0.0
        %4790 = vmatprep.subr.mxu0 0.0
        %4791 = vmatpush1.msra.mxu0 0.0
        %4792 = vmatprep.subr.mxu0 0.0
        %4793 = vmatpush1.msra.mxu0 0.0
        %4794 = vmatprep.subr.mxu0 0.0
        %4795 = vmatpush1.msra.mxu0 0.0
        %4796 = vmatprep.subr.mxu0 0.0
        %4797 = vmatpush1.msra.mxu0 0.0
        %4798 = vmatprep.subr.mxu0 0.0
        %4799 = vmatpush1.msra.mxu0 0.0
        %4800 = vmatprep.subr.mxu0 0.0
        %4801 = vmatpush1.msra.mxu0 0.0
        %4802 = vmatprep.subr.mxu0 0.0
        %4803 = vmatpush1.msra.mxu0 0.0
        %4804 = vmatprep.subr.mxu0 0.0
        %4805 = vmatpush1.msra.mxu0 0.0
        %4806 = vmatprep.subr.mxu0 0.0
        %4807 = vmatpush1.msra.mxu0 0.0
        %4808 = vmatprep.subr.mxu0 0.0
        %4809 = vmatpush1.msra.mxu0 0.0
        %4810 = vmatprep.subr.mxu0 0.0
        %4811 = vmatpush1.msra.mxu0 0.0
        %4812 = vmatprep.subr.mxu0 0.0
        %4813 = vmatpush1.msra.mxu0 0.0
        %4814 = vmatprep.subr.mxu0 0.0
        %4815 = vmatpush1.msra.mxu0 0.0
        %4816 = vmatprep.subr.mxu0 0.0
        %4817 = vmatpush1.msra.mxu0 0.0
        %4818 = vmatprep.subr.mxu0 0.0
        %4819 = vmatpush1.msra.mxu0 0.0
        %4820 = vmatprep.subr.mxu0 0.0
        %4821 = vmatpush1.msra.mxu0 0.0
        %4822 = vmatprep.subr.mxu0 0.0
        %4823 = vmatpush1.msra.mxu0 0.0
        %4824 = vmatprep.subr.mxu0 0.0
        %4825 = vmatpush1.msra.mxu0 0.0
        %4826 = vmatprep.subr.mxu0 0.0
        %4827 = vmatpush1.msra.mxu0 0.0
        %4828 = vmatprep.subr.mxu0 0.0
        %4829 = vmatpush1.msra.mxu0 0.0
        %4830 = vmatprep.subr.mxu0 0.0
        %4831 = vmatpush1.msra.mxu0 0.0
        %4832 = vmatprep.subr.mxu0 0.0
        %4833 = vmatpush1.msra.mxu0 0.0
        %4834 = vmatprep.subr.mxu0 0.0
        %4835 = vmatpush1.msra.mxu0 0.0
        %4836 = vmatprep.mubr.f32.mxu0 0.0
        %4837 = vmatmul.mubr.f32.gmra.mrb[0].mxu0 %v4767
        %v4838 = vpop.f32.mrb[0].mxu0
        %v4839 = vadd.f32 0.0, %v4838
        %v4840 = vpop.f32.mrb[0].mxu0
        %4841 = vmatprep.mubr.f32.mxu0 0.0
        %4842 = vmatmul.mubr.f32.gmra.mrb[0].mxu0 %v4770
        %v4843 = vpop.f32.mrb[0].mxu0
        %v4844 = vadd.f32 0.0, %v4843
        %v4845 = vpop.f32.mrb[0].mxu0
        %4846 = vdwg.mxu0
        %v4848 = vsel %vm365, %v4748, 0
        %v4851 = vsel %vm365, %v4753, 0
        %4853 = vmatprep.subr.mxu0 0.0
        %4854 = vmatpush1.msra.mxu0 %v240
        %4855 = vmatprep.subr.mxu0 0.0
        %4856 = vmatpush1.msra.mxu0 %v241
        %4857 = vmatprep.subr.mxu0 0.0
        %4858 = vmatpush1.msra.mxu0 0.0
        %4859 = vmatprep.subr.mxu0 0.0
        %4860 = vmatpush1.msra.mxu0 0.0
        %4861 = vmatprep.subr.mxu0 0.0
        %4862 = vmatpush1.msra.mxu0 0.0
        %4863 = vmatprep.subr.mxu0 0.0
        %4864 = vmatpush1.msra.mxu0 0.0
        %4865 = vmatprep.subr.mxu0 0.0
        %4866 = vmatpush1.msra.mxu0 0.0
        %4867 = vmatprep.subr.mxu0 0.0
        %4868 = vmatpush1.msra.mxu0 0.0
        %4869 = vmatprep.subr.mxu0 0.0
        %4870 = vmatpush1.msra.mxu0 0.0
        %4871 = vmatprep.subr.mxu0 0.0
        %4872 = vmatpush1.msra.mxu0 0.0
        %4873 = vmatprep.subr.mxu0 0.0
        %4874 = vmatpush1.msra.mxu0 0.0
        %4875 = vmatprep.subr.mxu0 0.0
        %4876 = vmatpush1.msra.mxu0 0.0
        %4877 = vmatprep.subr.mxu0 0.0
        %4878 = vmatpush1.msra.mxu0 0.0
        %4879 = vmatprep.subr.mxu0 0.0
        %4880 = vmatpush1.msra.mxu0 0.0
        %4881 = vmatprep.subr.mxu0 0.0
        %4882 = vmatpush1.msra.mxu0 0.0
        %4883 = vmatprep.subr.mxu0 0.0
        %4884 = vmatpush1.msra.mxu0 0.0
        %4885 = vmatprep.subr.mxu0 0.0
        %4886 = vmatpush1.msra.mxu0 0.0
        %4887 = vmatprep.subr.mxu0 0.0
        %4888 = vmatpush1.msra.mxu0 0.0
        %4889 = vmatprep.subr.mxu0 0.0
        %4890 = vmatpush1.msra.mxu0 0.0
        %4891 = vmatprep.subr.mxu0 0.0
        %4892 = vmatpush1.msra.mxu0 0.0
        %4893 = vmatprep.subr.mxu0 0.0
        %4894 = vmatpush1.msra.mxu0 0.0
        %4895 = vmatprep.subr.mxu0 0.0
        %4896 = vmatpush1.msra.mxu0 0.0
        %4897 = vmatprep.subr.mxu0 0.0
        %4898 = vmatpush1.msra.mxu0 0.0
        %4899 = vmatprep.subr.mxu0 0.0
        %4900 = vmatpush1.msra.mxu0 0.0
        %4901 = vmatprep.subr.mxu0 0.0
        %4902 = vmatpush1.msra.mxu0 0.0
        %4903 = vmatprep.subr.mxu0 0.0
        %4904 = vmatpush1.msra.mxu0 0.0
        %4905 = vmatprep.subr.mxu0 0.0
        %4906 = vmatpush1.msra.mxu0 0.0
        %4907 = vmatprep.subr.mxu0 0.0
        %4908 = vmatpush1.msra.mxu0 0.0
        %4909 = vmatprep.subr.mxu0 0.0
        %4910 = vmatpush1.msra.mxu0 0.0
        %4911 = vmatprep.subr.mxu0 0.0
        %4912 = vmatpush1.msra.mxu0 0.0
        %4913 = vmatprep.subr.mxu0 0.0
        %4914 = vmatpush1.msra.mxu0 0.0
        %4915 = vmatprep.subr.mxu0 0.0
        %4916 = vmatpush1.msra.mxu0 0.0
        %4917 = vmatprep.mubr.f32.mxu0 0.0
        %4918 = vmatmul.mubr.f32.gmra.mrb[0].mxu0 %v4848
        %v4919 = vpop.f32.mrb[0].mxu0
        %v4920 = vadd.f32 %v4839, %v4919
        %v4921 = vpop.f32.mrb[0].mxu0
        %4922 = vmatprep.mubr.f32.mxu0 0.0
        %4923 = vmatmul.mubr.f32.gmra.mrb[0].mxu0 %v4851
        %v4924 = vpop.f32.mrb[0].mxu0
        %v4925 = vadd.f32 %v4844, %v4924
        %v4926 = vpop.f32.mrb[0].mxu0
        %4927 = vdwg.mxu0
        %v4928 = vadd.f32 %v4920, %v531
        %v4929 = vadd.f32 %v4925, %v536
        %v4930 = vmax.f32 %v4928, 0.0
        %v4931 = vmax.f32 %v4929, 0.0
        %v4933 = vcombine.high %v4930, %v4930
        %v4935 = vunpack.c.l.s4 1966171168
        %v4936 = vunpack.c.0.s8 %v4935
        %v4937 = vlaneseq
        %v4938 = vshrl.u32 %v4937, 7
        %v4939 = vsub.s32 %v4936, %v4938
        %v4940 = vrot.slane %v4930, %v4939
        %v4942 = vunpack.c.l.s4 1966171168
        %v4943 = vunpack.c.0.s8 %v4942
        %v4944 = vlaneseq
        %v4945 = vshrl.u32 %v4944, 7
        %v4946 = vsub.s32 %v4943, %v4945
        %v4947 = vrot.slane %v4933, %v4946
        %v4948 = vcombine.high %v4940, %v4940
        %v4949 = vcombine.high %v4947, %v4947
        %v4951 = vunpack.c.l.s4 1966171168
        %v4952 = vunpack.c.0.s8 %v4951
        %v4953 = vlaneseq
        %v4954 = vshrl.u32 %v4953, 7
        %v4955 = vsub.s32 %v4952, %v4954
        %v4956 = vrot.slane %v4940, %v4955
        %v4958 = vunpack.c.l.s4 1966171168
        %v4959 = vunpack.c.0.s8 %v4958
        %v4960 = vlaneseq
        %v4961 = vshrl.u32 %v4960, 7
        %v4962 = vsub.s32 %v4959, %v4961
        %v4963 = vrot.slane %v4947, %v4962
        %v4965 = vunpack.c.l.s4 1966171168
        %v4966 = vunpack.c.0.s8 %v4965
        %v4967 = vlaneseq
        %v4968 = vshrl.u32 %v4967, 7
        %v4969 = vsub.s32 %v4966, %v4968
        %v4970 = vrot.slane %v4948, %v4969
        %v4972 = vunpack.c.l.s4 1966171168
        %v4973 = vunpack.c.0.s8 %v4972
        %v4974 = vlaneseq
        %v4975 = vshrl.u32 %v4974, 7
        %v4976 = vsub.s32 %v4973, %v4975
        %v4977 = vrot.slane %v4949, %v4976
        %v4978 = vcombine.high %v4956, %v4956
        %v4979 = vcombine.high %v4963, %v4963
        %v4980 = vcombine.high %v4970, %v4970
        %v4981 = vcombine.high %v4977, %v4977
        %4990 = vst.msk [vmem:[%s233 + $0x16] sm:$0x1] %vm600, %v4956
        %4991 = vst.msk [vmem:[%s233 + $0x36] sm:$0x1] %vm600, %v4970
        %4992 = vst.msk [vmem:[%s233 + $0x56] sm:$0x1] %vm600, %v4978
        %4993 = vst.msk [vmem:[%s233 + $0x76] sm:$0x1] %vm600, %v4980
        %4994 = vst.msk [vmem:[%s233 + $0x96] sm:$0x1] %vm600, %v4963
        %4995 = vst.msk [vmem:[%s233 + $0xb6] sm:$0x1] %vm600, %v4977
        %4996 = vst.msk [vmem:[%s233 + $0xd6] sm:$0x1] %vm600, %v4979
        %4997 = vst.msk [vmem:[%s233 + $0xf6] sm:$0x1] %vm600, %v4981
        %v4999 = vcombine.high %v4931, %v4931
        %v5001 = vunpack.c.l.s4 1966171168
        %v5002 = vunpack.c.0.s8 %v5001
        %v5003 = vlaneseq
        %v5004 = vshrl.u32 %v5003, 7
        %v5005 = vsub.s32 %v5002, %v5004
        %v5006 = vrot.slane %v4931, %v5005
        %v5008 = vunpack.c.l.s4 1966171168
        %v5009 = vunpack.c.0.s8 %v5008
        %v5010 = vlaneseq
        %v5011 = vshrl.u32 %v5010, 7
        %v5012 = vsub.s32 %v5009, %v5011
        %v5013 = vrot.slane %v4999, %v5012
        %v5014 = vcombine.high %v5006, %v5006
        %v5015 = vcombine.high %v5013, %v5013
        %v5017 = vunpack.c.l.s4 1966171168
        %v5018 = vunpack.c.0.s8 %v5017
        %v5019 = vlaneseq
        %v5020 = vshrl.u32 %v5019, 7
        %v5021 = vsub.s32 %v5018, %v5020
        %v5022 = vrot.slane %v5006, %v5021
        %v5024 = vunpack.c.l.s4 1966171168
        %v5025 = vunpack.c.0.s8 %v5024
        %v5026 = vlaneseq
        %v5027 = vshrl.u32 %v5026, 7
        %v5028 = vsub.s32 %v5025, %v5027
        %v5029 = vrot.slane %v5013, %v5028
        %v5031 = vunpack.c.l.s4 1966171168
        %v5032 = vunpack.c.0.s8 %v5031
        %v5033 = vlaneseq
        %v5034 = vshrl.u32 %v5033, 7
        %v5035 = vsub.s32 %v5032, %v5034
        %v5036 = vrot.slane %v5014, %v5035
        %v5038 = vunpack.c.l.s4 1966171168
        %v5039 = vunpack.c.0.s8 %v5038
        %v5040 = vlaneseq
        %v5041 = vshrl.u32 %v5040, 7
        %v5042 = vsub.s32 %v5039, %v5041
        %v5043 = vrot.slane %v5015, %v5042
        %v5044 = vcombine.high %v5022, %v5022
        %v5045 = vcombine.high %v5029, %v5029
        %v5046 = vcombine.high %v5036, %v5036
        %v5047 = vcombine.high %v5043, %v5043
        %5056 = vst.msk [vmem:[%s233 + $0x17] sm:$0x1] %vm600, %v5022
        %5057 = vst.msk [vmem:[%s233 + $0x37] sm:$0x1] %vm600, %v5036
        %5058 = vst.msk [vmem:[%s233 + $0x57] sm:$0x1] %vm600, %v5044
        %5059 = vst.msk [vmem:[%s233 + $0x77] sm:$0x1] %vm600, %v5046
        %5060 = vst.msk [vmem:[%s233 + $0x97] sm:$0x1] %vm600, %v5029
        %5061 = vst.msk [vmem:[%s233 + $0xb7] sm:$0x1] %vm600, %v5043
        %5062 = vst.msk [vmem:[%s233 + $0xd7] sm:$0x1] %vm600, %v5045
        %5063 = vst.msk [vmem:[%s233 + $0xf7] sm:$0x1] %vm600, %v5047
        %v5064 = vld [vmem:[%s209 + $0xc] sm:$0x1]
        %v5065 = vld [vmem:[%s209 + $0x1c] sm:$0x1]
        %v5066 = vld [vmem:[%s209 + $0x2c] sm:$0x1]
        %v5067 = vld [vmem:[%s209 + $0x3c] sm:$0x1]
        %v5072 = vrot.slane %v5065, 7
        %v5073 = vsel %vm256, %v5072, %v5064
        %v5074 = vrot.slane %v5066, 6
        %v5075 = vsel %vm259, %v5074, %v5073
        %v5076 = vrot.slane %v5067, 5
        %v5077 = vsel %vm262, %v5076, %v5075
        %v5078 = vsel %vm277, %v5077, 0
        %5080 = vmatprep.subr.mxu0 0.0
        %5081 = vmatpush1.msra.mxu0 %v5078
        %5082 = vmatprep.subr.mxu0 0.0
        %5083 = vmatpush1.msra.mxu0 0.0
        %5084 = vmatprep.subr.mxu0 0.0
        %5085 = vmatpush1.msra.mxu0 0.0
        %5086 = vmatprep.subr.mxu0 0.0
        %5087 = vmatpush1.msra.mxu0 0.0
        %5088 = vmatprep.subr.mxu0 0.0
        %5089 = vmatpush1.msra.mxu0 0.0
        %5090 = vmatprep.subr.mxu0 0.0
        %5091 = vmatpush1.msra.mxu0 0.0
        %5092 = vmatprep.subr.mxu0 0.0
        %5093 = vmatpush1.msra.mxu0 0.0
        %5094 = vmatprep.subr.mxu0 0.0
        %5095 = vmatpush1.msra.mxu0 0.0
        %5096 = vmatprep.subr.mxu0 0.0
        %5097 = vmatpush1.msra.mxu0 0.0
        %5098 = vmatprep.subr.mxu0 0.0
        %5099 = vmatpush1.msra.mxu0 0.0
        %5100 = vmatprep.subr.mxu0 0.0
        %5101 = vmatpush1.msra.mxu0 0.0
        %5102 = vmatprep.subr.mxu0 0.0
        %5103 = vmatpush1.msra.mxu0 0.0
        %5104 = vmatprep.subr.mxu0 0.0
        %5105 = vmatpush1.msra.mxu0 0.0
        %5106 = vmatprep.subr.mxu0 0.0
        %5107 = vmatpush1.msra.mxu0 0.0
        %5108 = vmatprep.subr.mxu0 0.0
        %5109 = vmatpush1.msra.mxu0 0.0
        %5110 = vmatprep.subr.mxu0 0.0
        %5111 = vmatpush1.msra.mxu0 0.0
        %5112 = vmatprep.subr.mxu0 0.0
        %5113 = vmatpush1.msra.mxu0 0.0
        %5114 = vmatprep.subr.mxu0 0.0
        %5115 = vmatpush1.msra.mxu0 0.0
        %5116 = vmatprep.subr.mxu0 0.0
        %5117 = vmatpush1.msra.mxu0 0.0
        %5118 = vmatprep.subr.mxu0 0.0
        %5119 = vmatpush1.msra.mxu0 0.0
        %5120 = vmatprep.subr.mxu0 0.0
        %5121 = vmatpush1.msra.mxu0 0.0
        %5122 = vmatprep.subr.mxu0 0.0
        %5123 = vmatpush1.msra.mxu0 0.0
        %5124 = vmatprep.subr.mxu0 0.0
        %5125 = vmatpush1.msra.mxu0 0.0
        %5126 = vmatprep.subr.mxu0 0.0
        %5127 = vmatpush1.msra.mxu0 0.0
        %5128 = vmatprep.subr.mxu0 0.0
        %5129 = vmatpush1.msra.mxu0 0.0
        %5130 = vmatprep.subr.mxu0 0.0
        %5131 = vmatpush1.msra.mxu0 0.0
        %5132 = vmatprep.subr.mxu0 0.0
        %5133 = vmatpush1.msra.mxu0 0.0
        %5134 = vmatprep.subr.mxu0 0.0
        %5135 = vmatpush1.msra.mxu0 0.0
        %5136 = vmatprep.subr.mxu0 0.0
        %5137 = vmatpush1.msra.mxu0 0.0
        %5138 = vmatprep.subr.mxu0 0.0
        %5139 = vmatpush1.msra.mxu0 0.0
        %5140 = vmatprep.subr.mxu0 0.0
        %5141 = vmatpush1.msra.mxu0 0.0
        %5142 = vmatprep.subr.mxu0 0.0
        %5143 = vmatpush1.msra.mxu0 0.0
        %5144 = vmatprep.mubr.f32.mxu0 0.0
        %5145 = vmatmul.mubr.f32.gmra.mrb[0].mxu0 %v266
        %v5146 = vpop.f32.mrb[0].mxu0
        %v5147 = vadd.f32 0.0, %v5146
        %v5148 = vpop.f32.mrb[0].mxu0
        %5149 = vmatprep.mubr.f32.mxu0 0.0
        %5150 = vmatmul.mubr.f32.gmra.mrb[0].mxu0 %v269
        %v5151 = vpop.f32.mrb[0].mxu0
        %v5152 = vadd.f32 0.0, %v5151
        %v5153 = vpop.f32.mrb[0].mxu0
        %5154 = vmatprep.mubr.f32.mxu0 0.0
        %5155 = vmatmul.mubr.f32.gmra.mrb[0].mxu0 %v272
        %v5156 = vpop.f32.mrb[0].mxu0
        %v5157 = vadd.f32 0.0, %v5156
        %v5158 = vpop.f32.mrb[0].mxu0
        %5159 = vmatprep.mubr.f32.mxu0 0.0
        %5160 = vmatmul.mubr.f32.gmra.mrb[0].mxu0 %v275
        %v5161 = vpop.f32.mrb[0].mxu0
        %v5162 = vadd.f32 0.0, %v5161
        %v5163 = vpop.f32.mrb[0].mxu0
        %5164 = vdwg.mxu0
        %v5166 = vsel %vm365, %v5157, 0
        %v5169 = vsel %vm365, %v5162, 0
        %5171 = vmatprep.subr.mxu0 0.0
        %5172 = vmatpush1.msra.mxu0 %v243
        %5173 = vmatprep.subr.mxu0 0.0
        %5174 = vmatpush1.msra.mxu0 %v244
        %5175 = vmatprep.subr.mxu0 0.0
        %5176 = vmatpush1.msra.mxu0 0.0
        %5177 = vmatprep.subr.mxu0 0.0
        %5178 = vmatpush1.msra.mxu0 0.0
        %5179 = vmatprep.subr.mxu0 0.0
        %5180 = vmatpush1.msra.mxu0 0.0
        %5181 = vmatprep.subr.mxu0 0.0
        %5182 = vmatpush1.msra.mxu0 0.0
        %5183 = vmatprep.subr.mxu0 0.0
        %5184 = vmatpush1.msra.mxu0 0.0
        %5185 = vmatprep.subr.mxu0 0.0
        %5186 = vmatpush1.msra.mxu0 0.0
        %5187 = vmatprep.subr.mxu0 0.0
        %5188 = vmatpush1.msra.mxu0 0.0
        %5189 = vmatprep.subr.mxu0 0.0
        %5190 = vmatpush1.msra.mxu0 0.0
        %5191 = vmatprep.subr.mxu0 0.0
        %5192 = vmatpush1.msra.mxu0 0.0
        %5193 = vmatprep.subr.mxu0 0.0
        %5194 = vmatpush1.msra.mxu0 0.0
        %5195 = vmatprep.subr.mxu0 0.0
        %5196 = vmatpush1.msra.mxu0 0.0
        %5197 = vmatprep.subr.mxu0 0.0
        %5198 = vmatpush1.msra.mxu0 0.0
        %5199 = vmatprep.subr.mxu0 0.0
        %5200 = vmatpush1.msra.mxu0 0.0
        %5201 = vmatprep.subr.mxu0 0.0
        %5202 = vmatpush1.msra.mxu0 0.0
        %5203 = vmatprep.subr.mxu0 0.0
        %5204 = vmatpush1.msra.mxu0 0.0
        %5205 = vmatprep.subr.mxu0 0.0
        %5206 = vmatpush1.msra.mxu0 0.0
        %5207 = vmatprep.subr.mxu0 0.0
        %5208 = vmatpush1.msra.mxu0 0.0
        %5209 = vmatprep.subr.mxu0 0.0
        %5210 = vmatpush1.msra.mxu0 0.0
        %5211 = vmatprep.subr.mxu0 0.0
        %5212 = vmatpush1.msra.mxu0 0.0
        %5213 = vmatprep.subr.mxu0 0.0
        %5214 = vmatpush1.msra.mxu0 0.0
        %5215 = vmatprep.subr.mxu0 0.0
        %5216 = vmatpush1.msra.mxu0 0.0
        %5217 = vmatprep.subr.mxu0 0.0
        %5218 = vmatpush1.msra.mxu0 0.0
        %5219 = vmatprep.subr.mxu0 0.0
        %5220 = vmatpush1.msra.mxu0 0.0
        %5221 = vmatprep.subr.mxu0 0.0
        %5222 = vmatpush1.msra.mxu0 0.0
        %5223 = vmatprep.subr.mxu0 0.0
        %5224 = vmatpush1.msra.mxu0 0.0
        %5225 = vmatprep.subr.mxu0 0.0
        %5226 = vmatpush1.msra.mxu0 0.0
        %5227 = vmatprep.subr.mxu0 0.0
        %5228 = vmatpush1.msra.mxu0 0.0
        %5229 = vmatprep.subr.mxu0 0.0
        %5230 = vmatpush1.msra.mxu0 0.0
        %5231 = vmatprep.subr.mxu0 0.0
        %5232 = vmatpush1.msra.mxu0 0.0
        %5233 = vmatprep.subr.mxu0 0.0
        %5234 = vmatpush1.msra.mxu0 0.0
        %5235 = vmatprep.mubr.f32.mxu0 0.0
        %5236 = vmatmul.mubr.f32.gmra.mrb[0].mxu0 %v5166
        %v5237 = vpop.f32.mrb[0].mxu0
        %v5238 = vadd.f32 0.0, %v5237
        %v5239 = vpop.f32.mrb[0].mxu0
        %5240 = vmatprep.mubr.f32.mxu0 0.0
        %5241 = vmatmul.mubr.f32.gmra.mrb[0].mxu0 %v5169
        %v5242 = vpop.f32.mrb[0].mxu0
        %v5243 = vadd.f32 0.0, %v5242
        %v5244 = vpop.f32.mrb[0].mxu0
        %5245 = vdwg.mxu0
        %v5247 = vsel %vm365, %v5147, 0
        %v5250 = vsel %vm365, %v5152, 0
        %5252 = vmatprep.subr.mxu0 0.0
        %5253 = vmatpush1.msra.mxu0 %v240
        %5254 = vmatprep.subr.mxu0 0.0
        %5255 = vmatpush1.msra.mxu0 %v241
        %5256 = vmatprep.subr.mxu0 0.0
        %5257 = vmatpush1.msra.mxu0 0.0
        %5258 = vmatprep.subr.mxu0 0.0
        %5259 = vmatpush1.msra.mxu0 0.0
        %5260 = vmatprep.subr.mxu0 0.0
        %5261 = vmatpush1.msra.mxu0 0.0
        %5262 = vmatprep.subr.mxu0 0.0
        %5263 = vmatpush1.msra.mxu0 0.0
        %5264 = vmatprep.subr.mxu0 0.0
        %5265 = vmatpush1.msra.mxu0 0.0
        %5266 = vmatprep.subr.mxu0 0.0
        %5267 = vmatpush1.msra.mxu0 0.0
        %5268 = vmatprep.subr.mxu0 0.0
        %5269 = vmatpush1.msra.mxu0 0.0
        %5270 = vmatprep.subr.mxu0 0.0
        %5271 = vmatpush1.msra.mxu0 0.0
        %5272 = vmatprep.subr.mxu0 0.0
        %5273 = vmatpush1.msra.mxu0 0.0
        %5274 = vmatprep.subr.mxu0 0.0
        %5275 = vmatpush1.msra.mxu0 0.0
        %5276 = vmatprep.subr.mxu0 0.0
        %5277 = vmatpush1.msra.mxu0 0.0
        %5278 = vmatprep.subr.mxu0 0.0
        %5279 = vmatpush1.msra.mxu0 0.0
        %5280 = vmatprep.subr.mxu0 0.0
        %5281 = vmatpush1.msra.mxu0 0.0
        %5282 = vmatprep.subr.mxu0 0.0
        %5283 = vmatpush1.msra.mxu0 0.0
        %5284 = vmatprep.subr.mxu0 0.0
        %5285 = vmatpush1.msra.mxu0 0.0
        %5286 = vmatprep.subr.mxu0 0.0
        %5287 = vmatpush1.msra.mxu0 0.0
        %5288 = vmatprep.subr.mxu0 0.0
        %5289 = vmatpush1.msra.mxu0 0.0
        %5290 = vmatprep.subr.mxu0 0.0
        %5291 = vmatpush1.msra.mxu0 0.0
        %5292 = vmatprep.subr.mxu0 0.0
        %5293 = vmatpush1.msra.mxu0 0.0
        %5294 = vmatprep.subr.mxu0 0.0
        %5295 = vmatpush1.msra.mxu0 0.0
        %5296 = vmatprep.subr.mxu0 0.0
        %5297 = vmatpush1.msra.mxu0 0.0
        %5298 = vmatprep.subr.mxu0 0.0
        %5299 = vmatpush1.msra.mxu0 0.0
        %5300 = vmatprep.subr.mxu0 0.0
        %5301 = vmatpush1.msra.mxu0 0.0
        %5302 = vmatprep.subr.mxu0 0.0
        %5303 = vmatpush1.msra.mxu0 0.0
        %5304 = vmatprep.subr.mxu0 0.0
        %5305 = vmatpush1.msra.mxu0 0.0
        %5306 = vmatprep.subr.mxu0 0.0
        %5307 = vmatpush1.msra.mxu0 0.0
        %5308 = vmatprep.subr.mxu0 0.0
        %5309 = vmatpush1.msra.mxu0 0.0
        %5310 = vmatprep.subr.mxu0 0.0
        %5311 = vmatpush1.msra.mxu0 0.0
        %5312 = vmatprep.subr.mxu0 0.0
        %5313 = vmatpush1.msra.mxu0 0.0
        %5314 = vmatprep.subr.mxu0 0.0
        %5315 = vmatpush1.msra.mxu0 0.0
        %5316 = vmatprep.mubr.f32.mxu0 0.0
        %5317 = vmatmul.mubr.f32.gmra.mrb[0].mxu0 %v5247
        %v5318 = vpop.f32.mrb[0].mxu0
        %v5319 = vadd.f32 %v5238, %v5318
        %v5320 = vpop.f32.mrb[0].mxu0
        %5321 = vmatprep.mubr.f32.mxu0 0.0
        %5322 = vmatmul.mubr.f32.gmra.mrb[0].mxu0 %v5250
        %v5323 = vpop.f32.mrb[0].mxu0
        %v5324 = vadd.f32 %v5243, %v5323
        %v5325 = vpop.f32.mrb[0].mxu0
        %5326 = vdwg.mxu0
        %v5327 = vadd.f32 %v5319, %v531
        %v5328 = vadd.f32 %v5324, %v536
        %v5329 = vmax.f32 %v5327, 0.0
        %v5330 = vmax.f32 %v5328, 0.0
        %v5332 = vcombine.high %v5329, %v5329
        %v5334 = vunpack.c.l.s4 1966171168
        %v5335 = vunpack.c.0.s8 %v5334
        %v5336 = vlaneseq
        %v5337 = vshrl.u32 %v5336, 7
        %v5338 = vsub.s32 %v5335, %v5337
        %v5339 = vrot.slane %v5329, %v5338
        %v5341 = vunpack.c.l.s4 1966171168
        %v5342 = vunpack.c.0.s8 %v5341
        %v5343 = vlaneseq
        %v5344 = vshrl.u32 %v5343, 7
        %v5345 = vsub.s32 %v5342, %v5344
        %v5346 = vrot.slane %v5332, %v5345
        %v5347 = vcombine.high %v5339, %v5339
        %v5348 = vcombine.high %v5346, %v5346
        %v5350 = vunpack.c.l.s4 1966171168
        %v5351 = vunpack.c.0.s8 %v5350
        %v5352 = vlaneseq
        %v5353 = vshrl.u32 %v5352, 7
        %v5354 = vsub.s32 %v5351, %v5353
        %v5355 = vrot.slane %v5339, %v5354
        %v5357 = vunpack.c.l.s4 1966171168
        %v5358 = vunpack.c.0.s8 %v5357
        %v5359 = vlaneseq
        %v5360 = vshrl.u32 %v5359, 7
        %v5361 = vsub.s32 %v5358, %v5360
        %v5362 = vrot.slane %v5346, %v5361
        %v5364 = vunpack.c.l.s4 1966171168
        %v5365 = vunpack.c.0.s8 %v5364
        %v5366 = vlaneseq
        %v5367 = vshrl.u32 %v5366, 7
        %v5368 = vsub.s32 %v5365, %v5367
        %v5369 = vrot.slane %v5347, %v5368
        %v5371 = vunpack.c.l.s4 1966171168
        %v5372 = vunpack.c.0.s8 %v5371
        %v5373 = vlaneseq
        %v5374 = vshrl.u32 %v5373, 7
        %v5375 = vsub.s32 %v5372, %v5374
        %v5376 = vrot.slane %v5348, %v5375
        %v5377 = vcombine.high %v5355, %v5355
        %v5378 = vcombine.high %v5362, %v5362
        %v5379 = vcombine.high %v5369, %v5369
        %v5380 = vcombine.high %v5376, %v5376
        %5389 = vst.msk [vmem:[%s233 + $0x18] sm:$0x1] %vm600, %v5355
        %5390 = vst.msk [vmem:[%s233 + $0x38] sm:$0x1] %vm600, %v5369
        %5391 = vst.msk [vmem:[%s233 + $0x58] sm:$0x1] %vm600, %v5377
        %5392 = vst.msk [vmem:[%s233 + $0x78] sm:$0x1] %vm600, %v5379
        %5393 = vst.msk [vmem:[%s233 + $0x98] sm:$0x1] %vm600, %v5362
        %5394 = vst.msk [vmem:[%s233 + $0xb8] sm:$0x1] %vm600, %v5376
        %5395 = vst.msk [vmem:[%s233 + $0xd8] sm:$0x1] %vm600, %v5378
        %5396 = vst.msk [vmem:[%s233 + $0xf8] sm:$0x1] %vm600, %v5380
        %v5398 = vcombine.high %v5330, %v5330
        %v5400 = vunpack.c.l.s4 1966171168
        %v5401 = vunpack.c.0.s8 %v5400
        %v5402 = vlaneseq
        %v5403 = vshrl.u32 %v5402, 7
        %v5404 = vsub.s32 %v5401, %v5403
        %v5405 = vrot.slane %v5330, %v5404
        %v5407 = vunpack.c.l.s4 1966171168
        %v5408 = vunpack.c.0.s8 %v5407
        %v5409 = vlaneseq
        %v5410 = vshrl.u32 %v5409, 7
        %v5411 = vsub.s32 %v5408, %v5410
        %v5412 = vrot.slane %v5398, %v5411
        %v5413 = vcombine.high %v5405, %v5405
        %v5414 = vcombine.high %v5412, %v5412
        %v5416 = vunpack.c.l.s4 1966171168
        %v5417 = vunpack.c.0.s8 %v5416
        %v5418 = vlaneseq
        %v5419 = vshrl.u32 %v5418, 7
        %v5420 = vsub.s32 %v5417, %v5419
        %v5421 = vrot.slane %v5405, %v5420
        %v5423 = vunpack.c.l.s4 1966171168
        %v5424 = vunpack.c.0.s8 %v5423
        %v5425 = vlaneseq
        %v5426 = vshrl.u32 %v5425, 7
        %v5427 = vsub.s32 %v5424, %v5426
        %v5428 = vrot.slane %v5412, %v5427
        %v5430 = vunpack.c.l.s4 1966171168
        %v5431 = vunpack.c.0.s8 %v5430
        %v5432 = vlaneseq
        %v5433 = vshrl.u32 %v5432, 7
        %v5434 = vsub.s32 %v5431, %v5433
        %v5435 = vrot.slane %v5413, %v5434
        %v5437 = vunpack.c.l.s4 1966171168
        %v5438 = vunpack.c.0.s8 %v5437
        %v5439 = vlaneseq
        %v5440 = vshrl.u32 %v5439, 7
        %v5441 = vsub.s32 %v5438, %v5440
        %v5442 = vrot.slane %v5414, %v5441
        %v5443 = vcombine.high %v5421, %v5421
        %v5444 = vcombine.high %v5428, %v5428
        %v5445 = vcombine.high %v5435, %v5435
        %v5446 = vcombine.high %v5442, %v5442
        %5455 = vst.msk [vmem:[%s233 + $0x19] sm:$0x1] %vm600, %v5421
        %5456 = vst.msk [vmem:[%s233 + $0x39] sm:$0x1] %vm600, %v5435
        %5457 = vst.msk [vmem:[%s233 + $0x59] sm:$0x1] %vm600, %v5443
        %5458 = vst.msk [vmem:[%s233 + $0x79] sm:$0x1] %vm600, %v5445
        %5459 = vst.msk [vmem:[%s233 + $0x99] sm:$0x1] %vm600, %v5428
        %5460 = vst.msk [vmem:[%s233 + $0xb9] sm:$0x1] %vm600, %v5442
        %5461 = vst.msk [vmem:[%s233 + $0xd9] sm:$0x1] %vm600, %v5444
        %5462 = vst.msk [vmem:[%s233 + $0xf9] sm:$0x1] %vm600, %v5446
        %v5463 = vld [vmem:[%s209 + $0xd] sm:$0x1]
        %v5464 = vld [vmem:[%s209 + $0x1d] sm:$0x1]
        %v5465 = vld [vmem:[%s209 + $0x2d] sm:$0x1]
        %v5466 = vld [vmem:[%s209 + $0x3d] sm:$0x1]
        %v5471 = vrot.slane %v5464, 7
        %v5472 = vsel %vm256, %v5471, %v5463
        %v5473 = vrot.slane %v5465, 6
        %v5474 = vsel %vm259, %v5473, %v5472
        %v5475 = vrot.slane %v5466, 5
        %v5476 = vsel %vm262, %v5475, %v5474
        %v5477 = vsel %vm277, %v5476, 0
        %5479 = vmatprep.subr.mxu0 0.0
        %5480 = vmatpush1.msra.mxu0 %v5477
        %5481 = vmatprep.subr.mxu0 0.0
        %5482 = vmatpush1.msra.mxu0 0.0
        %5483 = vmatprep.subr.mxu0 0.0
        %5484 = vmatpush1.msra.mxu0 0.0
        %5485 = vmatprep.subr.mxu0 0.0
        %5486 = vmatpush1.msra.mxu0 0.0
        %5487 = vmatprep.subr.mxu0 0.0
        %5488 = vmatpush1.msra.mxu0 0.0
        %5489 = vmatprep.subr.mxu0 0.0
        %5490 = vmatpush1.msra.mxu0 0.0
        %5491 = vmatprep.subr.mxu0 0.0
        %5492 = vmatpush1.msra.mxu0 0.0
        %5493 = vmatprep.subr.mxu0 0.0
        %5494 = vmatpush1.msra.mxu0 0.0
        %5495 = vmatprep.subr.mxu0 0.0
        %5496 = vmatpush1.msra.mxu0 0.0
        %5497 = vmatprep.subr.mxu0 0.0
        %5498 = vmatpush1.msra.mxu0 0.0
        %5499 = vmatprep.subr.mxu0 0.0
        %5500 = vmatpush1.msra.mxu0 0.0
        %5501 = vmatprep.subr.mxu0 0.0
        %5502 = vmatpush1.msra.mxu0 0.0
        %5503 = vmatprep.subr.mxu0 0.0
        %5504 = vmatpush1.msra.mxu0 0.0
        %5505 = vmatprep.subr.mxu0 0.0
        %5506 = vmatpush1.msra.mxu0 0.0
        %5507 = vmatprep.subr.mxu0 0.0
        %5508 = vmatpush1.msra.mxu0 0.0
        %5509 = vmatprep.subr.mxu0 0.0
        %5510 = vmatpush1.msra.mxu0 0.0
        %5511 = vmatprep.subr.mxu0 0.0
        %5512 = vmatpush1.msra.mxu0 0.0
        %5513 = vmatprep.subr.mxu0 0.0
        %5514 = vmatpush1.msra.mxu0 0.0
        %5515 = vmatprep.subr.mxu0 0.0
        %5516 = vmatpush1.msra.mxu0 0.0
        %5517 = vmatprep.subr.mxu0 0.0
        %5518 = vmatpush1.msra.mxu0 0.0
        %5519 = vmatprep.subr.mxu0 0.0
        %5520 = vmatpush1.msra.mxu0 0.0
        %5521 = vmatprep.subr.mxu0 0.0
        %5522 = vmatpush1.msra.mxu0 0.0
        %5523 = vmatprep.subr.mxu0 0.0
        %5524 = vmatpush1.msra.mxu0 0.0
        %5525 = vmatprep.subr.mxu0 0.0
        %5526 = vmatpush1.msra.mxu0 0.0
        %5527 = vmatprep.subr.mxu0 0.0
        %5528 = vmatpush1.msra.mxu0 0.0
        %5529 = vmatprep.subr.mxu0 0.0
        %5530 = vmatpush1.msra.mxu0 0.0
        %5531 = vmatprep.subr.mxu0 0.0
        %5532 = vmatpush1.msra.mxu0 0.0
        %5533 = vmatprep.subr.mxu0 0.0
        %5534 = vmatpush1.msra.mxu0 0.0
        %5535 = vmatprep.subr.mxu0 0.0
        %5536 = vmatpush1.msra.mxu0 0.0
        %5537 = vmatprep.subr.mxu0 0.0
        %5538 = vmatpush1.msra.mxu0 0.0
        %5539 = vmatprep.subr.mxu0 0.0
        %5540 = vmatpush1.msra.mxu0 0.0
        %5541 = vmatprep.subr.mxu0 0.0
        %5542 = vmatpush1.msra.mxu0 0.0
        %5543 = vmatprep.mubr.f32.mxu0 0.0
        %5544 = vmatmul.mubr.f32.gmra.mrb[0].mxu0 %v266
        %v5545 = vpop.f32.mrb[0].mxu0
        %v5546 = vadd.f32 0.0, %v5545
        %v5547 = vpop.f32.mrb[0].mxu0
        %5548 = vmatprep.mubr.f32.mxu0 0.0
        %5549 = vmatmul.mubr.f32.gmra.mrb[0].mxu0 %v269
        %v5550 = vpop.f32.mrb[0].mxu0
        %v5551 = vadd.f32 0.0, %v5550
        %v5552 = vpop.f32.mrb[0].mxu0
        %5553 = vmatprep.mubr.f32.mxu0 0.0
        %5554 = vmatmul.mubr.f32.gmra.mrb[0].mxu0 %v272
        %v5555 = vpop.f32.mrb[0].mxu0
        %v5556 = vadd.f32 0.0, %v5555
        %v5557 = vpop.f32.mrb[0].mxu0
        %5558 = vmatprep.mubr.f32.mxu0 0.0
        %5559 = vmatmul.mubr.f32.gmra.mrb[0].mxu0 %v275
        %v5560 = vpop.f32.mrb[0].mxu0
        %v5561 = vadd.f32 0.0, %v5560
        %v5562 = vpop.f32.mrb[0].mxu0
        %5563 = vdwg.mxu0
        %v5565 = vsel %vm365, %v5556, 0
        %v5568 = vsel %vm365, %v5561, 0
        %5570 = vmatprep.subr.mxu0 0.0
        %5571 = vmatpush1.msra.mxu0 %v243
        %5572 = vmatprep.subr.mxu0 0.0
        %5573 = vmatpush1.msra.mxu0 %v244
        %5574 = vmatprep.subr.mxu0 0.0
        %5575 = vmatpush1.msra.mxu0 0.0
        %5576 = vmatprep.subr.mxu0 0.0
        %5577 = vmatpush1.msra.mxu0 0.0
        %5578 = vmatprep.subr.mxu0 0.0
        %5579 = vmatpush1.msra.mxu0 0.0
        %5580 = vmatprep.subr.mxu0 0.0
        %5581 = vmatpush1.msra.mxu0 0.0
        %5582 = vmatprep.subr.mxu0 0.0
        %5583 = vmatpush1.msra.mxu0 0.0
        %5584 = vmatprep.subr.mxu0 0.0
        %5585 = vmatpush1.msra.mxu0 0.0
        %5586 = vmatprep.subr.mxu0 0.0
        %5587 = vmatpush1.msra.mxu0 0.0
        %5588 = vmatprep.subr.mxu0 0.0
        %5589 = vmatpush1.msra.mxu0 0.0
        %5590 = vmatprep.subr.mxu0 0.0
        %5591 = vmatpush1.msra.mxu0 0.0
        %5592 = vmatprep.subr.mxu0 0.0
        %5593 = vmatpush1.msra.mxu0 0.0
        %5594 = vmatprep.subr.mxu0 0.0
        %5595 = vmatpush1.msra.mxu0 0.0
        %5596 = vmatprep.subr.mxu0 0.0
        %5597 = vmatpush1.msra.mxu0 0.0
        %5598 = vmatprep.subr.mxu0 0.0
        %5599 = vmatpush1.msra.mxu0 0.0
        %5600 = vmatprep.subr.mxu0 0.0
        %5601 = vmatpush1.msra.mxu0 0.0
        %5602 = vmatprep.subr.mxu0 0.0
        %5603 = vmatpush1.msra.mxu0 0.0
        %5604 = vmatprep.subr.mxu0 0.0
        %5605 = vmatpush1.msra.mxu0 0.0
        %5606 = vmatprep.subr.mxu0 0.0
        %5607 = vmatpush1.msra.mxu0 0.0
        %5608 = vmatprep.subr.mxu0 0.0
        %5609 = vmatpush1.msra.mxu0 0.0
        %5610 = vmatprep.subr.mxu0 0.0
        %5611 = vmatpush1.msra.mxu0 0.0
        %5612 = vmatprep.subr.mxu0 0.0
        %5613 = vmatpush1.msra.mxu0 0.0
        %5614 = vmatprep.subr.mxu0 0.0
        %5615 = vmatpush1.msra.mxu0 0.0
        %5616 = vmatprep.subr.mxu0 0.0
        %5617 = vmatpush1.msra.mxu0 0.0
        %5618 = vmatprep.subr.mxu0 0.0
        %5619 = vmatpush1.msra.mxu0 0.0
        %5620 = vmatprep.subr.mxu0 0.0
        %5621 = vmatpush1.msra.mxu0 0.0
        %5622 = vmatprep.subr.mxu0 0.0
        %5623 = vmatpush1.msra.mxu0 0.0
        %5624 = vmatprep.subr.mxu0 0.0
        %5625 = vmatpush1.msra.mxu0 0.0
        %5626 = vmatprep.subr.mxu0 0.0
        %5627 = vmatpush1.msra.mxu0 0.0
        %5628 = vmatprep.subr.mxu0 0.0
        %5629 = vmatpush1.msra.mxu0 0.0
        %5630 = vmatprep.subr.mxu0 0.0
        %5631 = vmatpush1.msra.mxu0 0.0
        %5632 = vmatprep.subr.mxu0 0.0
        %5633 = vmatpush1.msra.mxu0 0.0
        %5634 = vmatprep.mubr.f32.mxu0 0.0
        %5635 = vmatmul.mubr.f32.gmra.mrb[0].mxu0 %v5565
        %v5636 = vpop.f32.mrb[0].mxu0
        %v5637 = vadd.f32 0.0, %v5636
        %v5638 = vpop.f32.mrb[0].mxu0
        %5639 = vmatprep.mubr.f32.mxu0 0.0
        %5640 = vmatmul.mubr.f32.gmra.mrb[0].mxu0 %v5568
        %v5641 = vpop.f32.mrb[0].mxu0
        %v5642 = vadd.f32 0.0, %v5641
        %v5643 = vpop.f32.mrb[0].mxu0
        %5644 = vdwg.mxu0
        %v5646 = vsel %vm365, %v5546, 0
        %v5649 = vsel %vm365, %v5551, 0
        %5651 = vmatprep.subr.mxu0 0.0
        %5652 = vmatpush1.msra.mxu0 %v240
        %5653 = vmatprep.subr.mxu0 0.0
        %5654 = vmatpush1.msra.mxu0 %v241
        %5655 = vmatprep.subr.mxu0 0.0
        %5656 = vmatpush1.msra.mxu0 0.0
        %5657 = vmatprep.subr.mxu0 0.0
        %5658 = vmatpush1.msra.mxu0 0.0
        %5659 = vmatprep.subr.mxu0 0.0
        %5660 = vmatpush1.msra.mxu0 0.0
        %5661 = vmatprep.subr.mxu0 0.0
        %5662 = vmatpush1.msra.mxu0 0.0
        %5663 = vmatprep.subr.mxu0 0.0
        %5664 = vmatpush1.msra.mxu0 0.0
        %5665 = vmatprep.subr.mxu0 0.0
        %5666 = vmatpush1.msra.mxu0 0.0
        %5667 = vmatprep.subr.mxu0 0.0
        %5668 = vmatpush1.msra.mxu0 0.0
        %5669 = vmatprep.subr.mxu0 0.0
        %5670 = vmatpush1.msra.mxu0 0.0
        %5671 = vmatprep.subr.mxu0 0.0
        %5672 = vmatpush1.msra.mxu0 0.0
        %5673 = vmatprep.subr.mxu0 0.0
        %5674 = vmatpush1.msra.mxu0 0.0
        %5675 = vmatprep.subr.mxu0 0.0
        %5676 = vmatpush1.msra.mxu0 0.0
        %5677 = vmatprep.subr.mxu0 0.0
        %5678 = vmatpush1.msra.mxu0 0.0
        %5679 = vmatprep.subr.mxu0 0.0
        %5680 = vmatpush1.msra.mxu0 0.0
        %5681 = vmatprep.subr.mxu0 0.0
        %5682 = vmatpush1.msra.mxu0 0.0
        %5683 = vmatprep.subr.mxu0 0.0
        %5684 = vmatpush1.msra.mxu0 0.0
        %5685 = vmatprep.subr.mxu0 0.0
        %5686 = vmatpush1.msra.mxu0 0.0
        %5687 = vmatprep.subr.mxu0 0.0
        %5688 = vmatpush1.msra.mxu0 0.0
        %5689 = vmatprep.subr.mxu0 0.0
        %5690 = vmatpush1.msra.mxu0 0.0
        %5691 = vmatprep.subr.mxu0 0.0
        %5692 = vmatpush1.msra.mxu0 0.0
        %5693 = vmatprep.subr.mxu0 0.0
        %5694 = vmatpush1.msra.mxu0 0.0
        %5695 = vmatprep.subr.mxu0 0.0
        %5696 = vmatpush1.msra.mxu0 0.0
        %5697 = vmatprep.subr.mxu0 0.0
        %5698 = vmatpush1.msra.mxu0 0.0
        %5699 = vmatprep.subr.mxu0 0.0
        %5700 = vmatpush1.msra.mxu0 0.0
        %5701 = vmatprep.subr.mxu0 0.0
        %5702 = vmatpush1.msra.mxu0 0.0
        %5703 = vmatprep.subr.mxu0 0.0
        %5704 = vmatpush1.msra.mxu0 0.0
        %5705 = vmatprep.subr.mxu0 0.0
        %5706 = vmatpush1.msra.mxu0 0.0
        %5707 = vmatprep.subr.mxu0 0.0
        %5708 = vmatpush1.msra.mxu0 0.0
        %5709 = vmatprep.subr.mxu0 0.0
        %5710 = vmatpush1.msra.mxu0 0.0
        %5711 = vmatprep.subr.mxu0 0.0
        %5712 = vmatpush1.msra.mxu0 0.0
        %5713 = vmatprep.subr.mxu0 0.0
        %5714 = vmatpush1.msra.mxu0 0.0
        %5715 = vmatprep.mubr.f32.mxu0 0.0
        %5716 = vmatmul.mubr.f32.gmra.mrb[0].mxu0 %v5646
        %v5717 = vpop.f32.mrb[0].mxu0
        %v5718 = vadd.f32 %v5637, %v5717
        %v5719 = vpop.f32.mrb[0].mxu0
        %5720 = vmatprep.mubr.f32.mxu0 0.0
        %5721 = vmatmul.mubr.f32.gmra.mrb[0].mxu0 %v5649
        %v5722 = vpop.f32.mrb[0].mxu0
        %v5723 = vadd.f32 %v5642, %v5722
        %v5724 = vpop.f32.mrb[0].mxu0
        %5725 = vdwg.mxu0
        %v5726 = vadd.f32 %v5718, %v531
        %v5727 = vadd.f32 %v5723, %v536
        %v5728 = vmax.f32 %v5726, 0.0
        %v5729 = vmax.f32 %v5727, 0.0
        %v5731 = vcombine.high %v5728, %v5728
        %v5733 = vunpack.c.l.s4 1966171168
        %v5734 = vunpack.c.0.s8 %v5733
        %v5735 = vlaneseq
        %v5736 = vshrl.u32 %v5735, 7
        %v5737 = vsub.s32 %v5734, %v5736
        %v5738 = vrot.slane %v5728, %v5737
        %v5740 = vunpack.c.l.s4 1966171168
        %v5741 = vunpack.c.0.s8 %v5740
        %v5742 = vlaneseq
        %v5743 = vshrl.u32 %v5742, 7
        %v5744 = vsub.s32 %v5741, %v5743
        %v5745 = vrot.slane %v5731, %v5744
        %v5746 = vcombine.high %v5738, %v5738
        %v5747 = vcombine.high %v5745, %v5745
        %v5749 = vunpack.c.l.s4 1966171168
        %v5750 = vunpack.c.0.s8 %v5749
        %v5751 = vlaneseq
        %v5752 = vshrl.u32 %v5751, 7
        %v5753 = vsub.s32 %v5750, %v5752
        %v5754 = vrot.slane %v5738, %v5753
        %v5756 = vunpack.c.l.s4 1966171168
        %v5757 = vunpack.c.0.s8 %v5756
        %v5758 = vlaneseq
        %v5759 = vshrl.u32 %v5758, 7
        %v5760 = vsub.s32 %v5757, %v5759
        %v5761 = vrot.slane %v5745, %v5760
        %v5763 = vunpack.c.l.s4 1966171168
        %v5764 = vunpack.c.0.s8 %v5763
        %v5765 = vlaneseq
        %v5766 = vshrl.u32 %v5765, 7
        %v5767 = vsub.s32 %v5764, %v5766
        %v5768 = vrot.slane %v5746, %v5767
        %v5770 = vunpack.c.l.s4 1966171168
        %v5771 = vunpack.c.0.s8 %v5770
        %v5772 = vlaneseq
        %v5773 = vshrl.u32 %v5772, 7
        %v5774 = vsub.s32 %v5771, %v5773
        %v5775 = vrot.slane %v5747, %v5774
        %v5776 = vcombine.high %v5754, %v5754
        %v5777 = vcombine.high %v5761, %v5761
        %v5778 = vcombine.high %v5768, %v5768
        %v5779 = vcombine.high %v5775, %v5775
        %5788 = vst.msk [vmem:[%s233 + $0x1a] sm:$0x1] %vm600, %v5754
        %5789 = vst.msk [vmem:[%s233 + $0x3a] sm:$0x1] %vm600, %v5768
        %5790 = vst.msk [vmem:[%s233 + $0x5a] sm:$0x1] %vm600, %v5776
        %5791 = vst.msk [vmem:[%s233 + $0x7a] sm:$0x1] %vm600, %v5778
        %5792 = vst.msk [vmem:[%s233 + $0x9a] sm:$0x1] %vm600, %v5761
        %5793 = vst.msk [vmem:[%s233 + $0xba] sm:$0x1] %vm600, %v5775
        %5794 = vst.msk [vmem:[%s233 + $0xda] sm:$0x1] %vm600, %v5777
        %5795 = vst.msk [vmem:[%s233 + $0xfa] sm:$0x1] %vm600, %v5779
        %v5797 = vcombine.high %v5729, %v5729
        %v5799 = vunpack.c.l.s4 1966171168
        %v5800 = vunpack.c.0.s8 %v5799
        %v5801 = vlaneseq
        %v5802 = vshrl.u32 %v5801, 7
        %v5803 = vsub.s32 %v5800, %v5802
        %v5804 = vrot.slane %v5729, %v5803
        %v5806 = vunpack.c.l.s4 1966171168
        %v5807 = vunpack.c.0.s8 %v5806
        %v5808 = vlaneseq
        %v5809 = vshrl.u32 %v5808, 7
        %v5810 = vsub.s32 %v5807, %v5809
        %v5811 = vrot.slane %v5797, %v5810
        %v5812 = vcombine.high %v5804, %v5804
        %v5813 = vcombine.high %v5811, %v5811
        %v5815 = vunpack.c.l.s4 1966171168
        %v5816 = vunpack.c.0.s8 %v5815
        %v5817 = vlaneseq
        %v5818 = vshrl.u32 %v5817, 7
        %v5819 = vsub.s32 %v5816, %v5818
        %v5820 = vrot.slane %v5804, %v5819
        %v5822 = vunpack.c.l.s4 1966171168
        %v5823 = vunpack.c.0.s8 %v5822
        %v5824 = vlaneseq
        %v5825 = vshrl.u32 %v5824, 7
        %v5826 = vsub.s32 %v5823, %v5825
        %v5827 = vrot.slane %v5811, %v5826
        %v5829 = vunpack.c.l.s4 1966171168
        %v5830 = vunpack.c.0.s8 %v5829
        %v5831 = vlaneseq
        %v5832 = vshrl.u32 %v5831, 7
        %v5833 = vsub.s32 %v5830, %v5832
        %v5834 = vrot.slane %v5812, %v5833
        %v5836 = vunpack.c.l.s4 1966171168
        %v5837 = vunpack.c.0.s8 %v5836
        %v5838 = vlaneseq
        %v5839 = vshrl.u32 %v5838, 7
        %v5840 = vsub.s32 %v5837, %v5839
        %v5841 = vrot.slane %v5813, %v5840
        %v5842 = vcombine.high %v5820, %v5820
        %v5843 = vcombine.high %v5827, %v5827
        %v5844 = vcombine.high %v5834, %v5834
        %v5845 = vcombine.high %v5841, %v5841
        %5854 = vst.msk [vmem:[%s233 + $0x1b] sm:$0x1] %vm600, %v5820
        %5855 = vst.msk [vmem:[%s233 + $0x3b] sm:$0x1] %vm600, %v5834
        %5856 = vst.msk [vmem:[%s233 + $0x5b] sm:$0x1] %vm600, %v5842
        %5857 = vst.msk [vmem:[%s233 + $0x7b] sm:$0x1] %vm600, %v5844
        %5858 = vst.msk [vmem:[%s233 + $0x9b] sm:$0x1] %vm600, %v5827
        %5859 = vst.msk [vmem:[%s233 + $0xbb] sm:$0x1] %vm600, %v5841
        %5860 = vst.msk [vmem:[%s233 + $0xdb] sm:$0x1] %vm600, %v5843
        %5861 = vst.msk [vmem:[%s233 + $0xfb] sm:$0x1] %vm600, %v5845
        %v5862 = vld [vmem:[%s209 + $0xe] sm:$0x1]
        %v5863 = vld [vmem:[%s209 + $0x1e] sm:$0x1]
        %v5864 = vld [vmem:[%s209 + $0x2e] sm:$0x1]
        %v5865 = vld [vmem:[%s209 + $0x3e] sm:$0x1]
        %v5870 = vrot.slane %v5863, 7
        %v5871 = vsel %vm256, %v5870, %v5862
        %v5872 = vrot.slane %v5864, 6
        %v5873 = vsel %vm259, %v5872, %v5871
        %v5874 = vrot.slane %v5865, 5
        %v5875 = vsel %vm262, %v5874, %v5873
        %v5876 = vsel %vm277, %v5875, 0
        %5878 = vmatprep.subr.mxu0 0.0
        %5879 = vmatpush1.msra.mxu0 %v5876
        %5880 = vmatprep.subr.mxu0 0.0
        %5881 = vmatpush1.msra.mxu0 0.0
        %5882 = vmatprep.subr.mxu0 0.0
        %5883 = vmatpush1.msra.mxu0 0.0
        %5884 = vmatprep.subr.mxu0 0.0
        %5885 = vmatpush1.msra.mxu0 0.0
        %5886 = vmatprep.subr.mxu0 0.0
        %5887 = vmatpush1.msra.mxu0 0.0
        %5888 = vmatprep.subr.mxu0 0.0
        %5889 = vmatpush1.msra.mxu0 0.0
        %5890 = vmatprep.subr.mxu0 0.0
        %5891 = vmatpush1.msra.mxu0 0.0
        %5892 = vmatprep.subr.mxu0 0.0
        %5893 = vmatpush1.msra.mxu0 0.0
        %5894 = vmatprep.subr.mxu0 0.0
        %5895 = vmatpush1.msra.mxu0 0.0
        %5896 = vmatprep.subr.mxu0 0.0
        %5897 = vmatpush1.msra.mxu0 0.0
        %5898 = vmatprep.subr.mxu0 0.0
        %5899 = vmatpush1.msra.mxu0 0.0
        %5900 = vmatprep.subr.mxu0 0.0
        %5901 = vmatpush1.msra.mxu0 0.0
        %5902 = vmatprep.subr.mxu0 0.0
        %5903 = vmatpush1.msra.mxu0 0.0
        %5904 = vmatprep.subr.mxu0 0.0
        %5905 = vmatpush1.msra.mxu0 0.0
        %5906 = vmatprep.subr.mxu0 0.0
        %5907 = vmatpush1.msra.mxu0 0.0
        %5908 = vmatprep.subr.mxu0 0.0
        %5909 = vmatpush1.msra.mxu0 0.0
        %5910 = vmatprep.subr.mxu0 0.0
        %5911 = vmatpush1.msra.mxu0 0.0
        %5912 = vmatprep.subr.mxu0 0.0
        %5913 = vmatpush1.msra.mxu0 0.0
        %5914 = vmatprep.subr.mxu0 0.0
        %5915 = vmatpush1.msra.mxu0 0.0
        %5916 = vmatprep.subr.mxu0 0.0
        %5917 = vmatpush1.msra.mxu0 0.0
        %5918 = vmatprep.subr.mxu0 0.0
        %5919 = vmatpush1.msra.mxu0 0.0
        %5920 = vmatprep.subr.mxu0 0.0
        %5921 = vmatpush1.msra.mxu0 0.0
        %5922 = vmatprep.subr.mxu0 0.0
        %5923 = vmatpush1.msra.mxu0 0.0
        %5924 = vmatprep.subr.mxu0 0.0
        %5925 = vmatpush1.msra.mxu0 0.0
        %5926 = vmatprep.subr.mxu0 0.0
        %5927 = vmatpush1.msra.mxu0 0.0
        %5928 = vmatprep.subr.mxu0 0.0
        %5929 = vmatpush1.msra.mxu0 0.0
        %5930 = vmatprep.subr.mxu0 0.0
        %5931 = vmatpush1.msra.mxu0 0.0
        %5932 = vmatprep.subr.mxu0 0.0
        %5933 = vmatpush1.msra.mxu0 0.0
        %5934 = vmatprep.subr.mxu0 0.0
        %5935 = vmatpush1.msra.mxu0 0.0
        %5936 = vmatprep.subr.mxu0 0.0
        %5937 = vmatpush1.msra.mxu0 0.0
        %5938 = vmatprep.subr.mxu0 0.0
        %5939 = vmatpush1.msra.mxu0 0.0
        %5940 = vmatprep.subr.mxu0 0.0
        %5941 = vmatpush1.msra.mxu0 0.0
        %5942 = vmatprep.mubr.f32.mxu0 0.0
        %5943 = vmatmul.mubr.f32.gmra.mrb[0].mxu0 %v266
        %v5944 = vpop.f32.mrb[0].mxu0
        %v5945 = vadd.f32 0.0, %v5944
        %v5946 = vpop.f32.mrb[0].mxu0
        %5947 = vmatprep.mubr.f32.mxu0 0.0
        %5948 = vmatmul.mubr.f32.gmra.mrb[0].mxu0 %v269
        %v5949 = vpop.f32.mrb[0].mxu0
        %v5950 = vadd.f32 0.0, %v5949
        %v5951 = vpop.f32.mrb[0].mxu0
        %5952 = vmatprep.mubr.f32.mxu0 0.0
        %5953 = vmatmul.mubr.f32.gmra.mrb[0].mxu0 %v272
        %v5954 = vpop.f32.mrb[0].mxu0
        %v5955 = vadd.f32 0.0, %v5954
        %v5956 = vpop.f32.mrb[0].mxu0
        %5957 = vmatprep.mubr.f32.mxu0 0.0
        %5958 = vmatmul.mubr.f32.gmra.mrb[0].mxu0 %v275
        %v5959 = vpop.f32.mrb[0].mxu0
        %v5960 = vadd.f32 0.0, %v5959
        %v5961 = vpop.f32.mrb[0].mxu0
        %5962 = vdwg.mxu0
        %v5964 = vsel %vm365, %v5955, 0
        %v5967 = vsel %vm365, %v5960, 0
        %5969 = vmatprep.subr.mxu0 0.0
        %5970 = vmatpush1.msra.mxu0 %v243
        %5971 = vmatprep.subr.mxu0 0.0
        %5972 = vmatpush1.msra.mxu0 %v244
        %5973 = vmatprep.subr.mxu0 0.0
        %5974 = vmatpush1.msra.mxu0 0.0
        %5975 = vmatprep.subr.mxu0 0.0
        %5976 = vmatpush1.msra.mxu0 0.0
        %5977 = vmatprep.subr.mxu0 0.0
        %5978 = vmatpush1.msra.mxu0 0.0
        %5979 = vmatprep.subr.mxu0 0.0
        %5980 = vmatpush1.msra.mxu0 0.0
        %5981 = vmatprep.subr.mxu0 0.0
        %5982 = vmatpush1.msra.mxu0 0.0
        %5983 = vmatprep.subr.mxu0 0.0
        %5984 = vmatpush1.msra.mxu0 0.0
        %5985 = vmatprep.subr.mxu0 0.0
        %5986 = vmatpush1.msra.mxu0 0.0
        %5987 = vmatprep.subr.mxu0 0.0
        %5988 = vmatpush1.msra.mxu0 0.0
        %5989 = vmatprep.subr.mxu0 0.0
        %5990 = vmatpush1.msra.mxu0 0.0
        %5991 = vmatprep.subr.mxu0 0.0
        %5992 = vmatpush1.msra.mxu0 0.0
        %5993 = vmatprep.subr.mxu0 0.0
        %5994 = vmatpush1.msra.mxu0 0.0
        %5995 = vmatprep.subr.mxu0 0.0
        %5996 = vmatpush1.msra.mxu0 0.0
        %5997 = vmatprep.subr.mxu0 0.0
        %5998 = vmatpush1.msra.mxu0 0.0
        %5999 = vmatprep.subr.mxu0 0.0
        %6000 = vmatpush1.msra.mxu0 0.0
        %6001 = vmatprep.subr.mxu0 0.0
        %6002 = vmatpush1.msra.mxu0 0.0
        %6003 = vmatprep.subr.mxu0 0.0
        %6004 = vmatpush1.msra.mxu0 0.0
        %6005 = vmatprep.subr.mxu0 0.0
        %6006 = vmatpush1.msra.mxu0 0.0
        %6007 = vmatprep.subr.mxu0 0.0
        %6008 = vmatpush1.msra.mxu0 0.0
        %6009 = vmatprep.subr.mxu0 0.0
        %6010 = vmatpush1.msra.mxu0 0.0
        %6011 = vmatprep.subr.mxu0 0.0
        %6012 = vmatpush1.msra.mxu0 0.0
        %6013 = vmatprep.subr.mxu0 0.0
        %6014 = vmatpush1.msra.mxu0 0.0
        %6015 = vmatprep.subr.mxu0 0.0
        %6016 = vmatpush1.msra.mxu0 0.0
        %6017 = vmatprep.subr.mxu0 0.0
        %6018 = vmatpush1.msra.mxu0 0.0
        %6019 = vmatprep.subr.mxu0 0.0
        %6020 = vmatpush1.msra.mxu0 0.0
        %6021 = vmatprep.subr.mxu0 0.0
        %6022 = vmatpush1.msra.mxu0 0.0
        %6023 = vmatprep.subr.mxu0 0.0
        %6024 = vmatpush1.msra.mxu0 0.0
        %6025 = vmatprep.subr.mxu0 0.0
        %6026 = vmatpush1.msra.mxu0 0.0
        %6027 = vmatprep.subr.mxu0 0.0
        %6028 = vmatpush1.msra.mxu0 0.0
        %6029 = vmatprep.subr.mxu0 0.0
        %6030 = vmatpush1.msra.mxu0 0.0
        %6031 = vmatprep.subr.mxu0 0.0
        %6032 = vmatpush1.msra.mxu0 0.0
        %6033 = vmatprep.mubr.f32.mxu0 0.0
        %6034 = vmatmul.mubr.f32.gmra.mrb[0].mxu0 %v5964
        %v6035 = vpop.f32.mrb[0].mxu0
        %v6036 = vadd.f32 0.0, %v6035
        %v6037 = vpop.f32.mrb[0].mxu0
        %6038 = vmatprep.mubr.f32.mxu0 0.0
        %6039 = vmatmul.mubr.f32.gmra.mrb[0].mxu0 %v5967
        %v6040 = vpop.f32.mrb[0].mxu0
        %v6041 = vadd.f32 0.0, %v6040
        %v6042 = vpop.f32.mrb[0].mxu0
        %6043 = vdwg.mxu0
        %v6045 = vsel %vm365, %v5945, 0
        %v6048 = vsel %vm365, %v5950, 0
        %6050 = vmatprep.subr.mxu0 0.0
        %6051 = vmatpush1.msra.mxu0 %v240
        %6052 = vmatprep.subr.mxu0 0.0
        %6053 = vmatpush1.msra.mxu0 %v241
        %6054 = vmatprep.subr.mxu0 0.0
        %6055 = vmatpush1.msra.mxu0 0.0
        %6056 = vmatprep.subr.mxu0 0.0
        %6057 = vmatpush1.msra.mxu0 0.0
        %6058 = vmatprep.subr.mxu0 0.0
        %6059 = vmatpush1.msra.mxu0 0.0
        %6060 = vmatprep.subr.mxu0 0.0
        %6061 = vmatpush1.msra.mxu0 0.0
        %6062 = vmatprep.subr.mxu0 0.0
        %6063 = vmatpush1.msra.mxu0 0.0
        %6064 = vmatprep.subr.mxu0 0.0
        %6065 = vmatpush1.msra.mxu0 0.0
        %6066 = vmatprep.subr.mxu0 0.0
        %6067 = vmatpush1.msra.mxu0 0.0
        %6068 = vmatprep.subr.mxu0 0.0
        %6069 = vmatpush1.msra.mxu0 0.0
        %6070 = vmatprep.subr.mxu0 0.0
        %6071 = vmatpush1.msra.mxu0 0.0
        %6072 = vmatprep.subr.mxu0 0.0
        %6073 = vmatpush1.msra.mxu0 0.0
        %6074 = vmatprep.subr.mxu0 0.0
        %6075 = vmatpush1.msra.mxu0 0.0
        %6076 = vmatprep.subr.mxu0 0.0
        %6077 = vmatpush1.msra.mxu0 0.0
        %6078 = vmatprep.subr.mxu0 0.0
        %6079 = vmatpush1.msra.mxu0 0.0
        %6080 = vmatprep.subr.mxu0 0.0
        %6081 = vmatpush1.msra.mxu0 0.0
        %6082 = vmatprep.subr.mxu0 0.0
        %6083 = vmatpush1.msra.mxu0 0.0
        %6084 = vmatprep.subr.mxu0 0.0
        %6085 = vmatpush1.msra.mxu0 0.0
        %6086 = vmatprep.subr.mxu0 0.0
        %6087 = vmatpush1.msra.mxu0 0.0
        %6088 = vmatprep.subr.mxu0 0.0
        %6089 = vmatpush1.msra.mxu0 0.0
        %6090 = vmatprep.subr.mxu0 0.0
        %6091 = vmatpush1.msra.mxu0 0.0
        %6092 = vmatprep.subr.mxu0 0.0
        %6093 = vmatpush1.msra.mxu0 0.0
        %6094 = vmatprep.subr.mxu0 0.0
        %6095 = vmatpush1.msra.mxu0 0.0
        %6096 = vmatprep.subr.mxu0 0.0
        %6097 = vmatpush1.msra.mxu0 0.0
        %6098 = vmatprep.subr.mxu0 0.0
        %6099 = vmatpush1.msra.mxu0 0.0
        %6100 = vmatprep.subr.mxu0 0.0
        %6101 = vmatpush1.msra.mxu0 0.0
        %6102 = vmatprep.subr.mxu0 0.0
        %6103 = vmatpush1.msra.mxu0 0.0
        %6104 = vmatprep.subr.mxu0 0.0
        %6105 = vmatpush1.msra.mxu0 0.0
        %6106 = vmatprep.subr.mxu0 0.0
        %6107 = vmatpush1.msra.mxu0 0.0
        %6108 = vmatprep.subr.mxu0 0.0
        %6109 = vmatpush1.msra.mxu0 0.0
        %6110 = vmatprep.subr.mxu0 0.0
        %6111 = vmatpush1.msra.mxu0 0.0
        %6112 = vmatprep.subr.mxu0 0.0
        %6113 = vmatpush1.msra.mxu0 0.0
        %6114 = vmatprep.mubr.f32.mxu0 0.0
        %6115 = vmatmul.mubr.f32.gmra.mrb[0].mxu0 %v6045
        %v6116 = vpop.f32.mrb[0].mxu0
        %v6117 = vadd.f32 %v6036, %v6116
        %v6118 = vpop.f32.mrb[0].mxu0
        %6119 = vmatprep.mubr.f32.mxu0 0.0
        %6120 = vmatmul.mubr.f32.gmra.mrb[0].mxu0 %v6048
        %v6121 = vpop.f32.mrb[0].mxu0
        %v6122 = vadd.f32 %v6041, %v6121
        %v6123 = vpop.f32.mrb[0].mxu0
        %6124 = vdwg.mxu0
        %v6125 = vadd.f32 %v6117, %v531
        %v6126 = vadd.f32 %v6122, %v536
        %v6127 = vmax.f32 %v6125, 0.0
        %v6128 = vmax.f32 %v6126, 0.0
        %v6130 = vcombine.high %v6127, %v6127
        %v6132 = vunpack.c.l.s4 1966171168
        %v6133 = vunpack.c.0.s8 %v6132
        %v6134 = vlaneseq
        %v6135 = vshrl.u32 %v6134, 7
        %v6136 = vsub.s32 %v6133, %v6135
        %v6137 = vrot.slane %v6127, %v6136
        %v6139 = vunpack.c.l.s4 1966171168
        %v6140 = vunpack.c.0.s8 %v6139
        %v6141 = vlaneseq
        %v6142 = vshrl.u32 %v6141, 7
        %v6143 = vsub.s32 %v6140, %v6142
        %v6144 = vrot.slane %v6130, %v6143
        %v6145 = vcombine.high %v6137, %v6137
        %v6146 = vcombine.high %v6144, %v6144
        %v6148 = vunpack.c.l.s4 1966171168
        %v6149 = vunpack.c.0.s8 %v6148
        %v6150 = vlaneseq
        %v6151 = vshrl.u32 %v6150, 7
        %v6152 = vsub.s32 %v6149, %v6151
        %v6153 = vrot.slane %v6137, %v6152
        %v6155 = vunpack.c.l.s4 1966171168
        %v6156 = vunpack.c.0.s8 %v6155
        %v6157 = vlaneseq
        %v6158 = vshrl.u32 %v6157, 7
        %v6159 = vsub.s32 %v6156, %v6158
        %v6160 = vrot.slane %v6144, %v6159
        %v6162 = vunpack.c.l.s4 1966171168
        %v6163 = vunpack.c.0.s8 %v6162
        %v6164 = vlaneseq
        %v6165 = vshrl.u32 %v6164, 7
        %v6166 = vsub.s32 %v6163, %v6165
        %v6167 = vrot.slane %v6145, %v6166
        %v6169 = vunpack.c.l.s4 1966171168
        %v6170 = vunpack.c.0.s8 %v6169
        %v6171 = vlaneseq
        %v6172 = vshrl.u32 %v6171, 7
        %v6173 = vsub.s32 %v6170, %v6172
        %v6174 = vrot.slane %v6146, %v6173
        %v6175 = vcombine.high %v6153, %v6153
        %v6176 = vcombine.high %v6160, %v6160
        %v6177 = vcombine.high %v6167, %v6167
        %v6178 = vcombine.high %v6174, %v6174
        %6187 = vst.msk [vmem:[%s233 + $0x1c] sm:$0x1] %vm600, %v6153
        %6188 = vst.msk [vmem:[%s233 + $0x3c] sm:$0x1] %vm600, %v6167
        %6189 = vst.msk [vmem:[%s233 + $0x5c] sm:$0x1] %vm600, %v6175
        %6190 = vst.msk [vmem:[%s233 + $0x7c] sm:$0x1] %vm600, %v6177
        %6191 = vst.msk [vmem:[%s233 + $0x9c] sm:$0x1] %vm600, %v6160
        %6192 = vst.msk [vmem:[%s233 + $0xbc] sm:$0x1] %vm600, %v6174
        %6193 = vst.msk [vmem:[%s233 + $0xdc] sm:$0x1] %vm600, %v6176
        %6194 = vst.msk [vmem:[%s233 + $0xfc] sm:$0x1] %vm600, %v6178
        %v6196 = vcombine.high %v6128, %v6128
        %v6198 = vunpack.c.l.s4 1966171168
        %v6199 = vunpack.c.0.s8 %v6198
        %v6200 = vlaneseq
        %v6201 = vshrl.u32 %v6200, 7
        %v6202 = vsub.s32 %v6199, %v6201
        %v6203 = vrot.slane %v6128, %v6202
        %v6205 = vunpack.c.l.s4 1966171168
        %v6206 = vunpack.c.0.s8 %v6205
        %v6207 = vlaneseq
        %v6208 = vshrl.u32 %v6207, 7
        %v6209 = vsub.s32 %v6206, %v6208
        %v6210 = vrot.slane %v6196, %v6209
        %v6211 = vcombine.high %v6203, %v6203
        %v6212 = vcombine.high %v6210, %v6210
        %v6214 = vunpack.c.l.s4 1966171168
        %v6215 = vunpack.c.0.s8 %v6214
        %v6216 = vlaneseq
        %v6217 = vshrl.u32 %v6216, 7
        %v6218 = vsub.s32 %v6215, %v6217
        %v6219 = vrot.slane %v6203, %v6218
        %v6221 = vunpack.c.l.s4 1966171168
        %v6222 = vunpack.c.0.s8 %v6221
        %v6223 = vlaneseq
        %v6224 = vshrl.u32 %v6223, 7
        %v6225 = vsub.s32 %v6222, %v6224
        %v6226 = vrot.slane %v6210, %v6225
        %v6228 = vunpack.c.l.s4 1966171168
        %v6229 = vunpack.c.0.s8 %v6228
        %v6230 = vlaneseq
        %v6231 = vshrl.u32 %v6230, 7
        %v6232 = vsub.s32 %v6229, %v6231
        %v6233 = vrot.slane %v6211, %v6232
        %v6235 = vunpack.c.l.s4 1966171168
        %v6236 = vunpack.c.0.s8 %v6235
        %v6237 = vlaneseq
        %v6238 = vshrl.u32 %v6237, 7
        %v6239 = vsub.s32 %v6236, %v6238
        %v6240 = vrot.slane %v6212, %v6239
        %v6241 = vcombine.high %v6219, %v6219
        %v6242 = vcombine.high %v6226, %v6226
        %v6243 = vcombine.high %v6233, %v6233
        %v6244 = vcombine.high %v6240, %v6240
        %6253 = vst.msk [vmem:[%s233 + $0x1d] sm:$0x1] %vm600, %v6219
        %6254 = vst.msk [vmem:[%s233 + $0x3d] sm:$0x1] %vm600, %v6233
        %6255 = vst.msk [vmem:[%s233 + $0x5d] sm:$0x1] %vm600, %v6241
        %6256 = vst.msk [vmem:[%s233 + $0x7d] sm:$0x1] %vm600, %v6243
        %6257 = vst.msk [vmem:[%s233 + $0x9d] sm:$0x1] %vm600, %v6226
        %6258 = vst.msk [vmem:[%s233 + $0xbd] sm:$0x1] %vm600, %v6240
        %6259 = vst.msk [vmem:[%s233 + $0xdd] sm:$0x1] %vm600, %v6242
        %6260 = vst.msk [vmem:[%s233 + $0xfd] sm:$0x1] %vm600, %v6244
        %v6261 = vld [vmem:[%s209 + $0xf] sm:$0x1]
        %v6262 = vld [vmem:[%s209 + $0x1f] sm:$0x1]
        %v6263 = vld [vmem:[%s209 + $0x2f] sm:$0x1]
        %v6264 = vld [vmem:[%s209 + $0x3f] sm:$0x1]
        %v6269 = vrot.slane %v6262, 7
        %v6270 = vsel %vm256, %v6269, %v6261
        %v6271 = vrot.slane %v6263, 6
        %v6272 = vsel %vm259, %v6271, %v6270
        %v6273 = vrot.slane %v6264, 5
        %v6274 = vsel %vm262, %v6273, %v6272
        %v6275 = vsel %vm277, %v6274, 0
        %6277 = vmatprep.subr.mxu0 0.0
        %6278 = vmatpush1.msra.mxu0 %v6275
        %6279 = vmatprep.subr.mxu0 0.0
        %6280 = vmatpush1.msra.mxu0 0.0
        %6281 = vmatprep.subr.mxu0 0.0
        %6282 = vmatpush1.msra.mxu0 0.0
        %6283 = vmatprep.subr.mxu0 0.0
        %6284 = vmatpush1.msra.mxu0 0.0
        %6285 = vmatprep.subr.mxu0 0.0
        %6286 = vmatpush1.msra.mxu0 0.0
        %6287 = vmatprep.subr.mxu0 0.0
        %6288 = vmatpush1.msra.mxu0 0.0
        %6289 = vmatprep.subr.mxu0 0.0
        %6290 = vmatpush1.msra.mxu0 0.0
        %6291 = vmatprep.subr.mxu0 0.0
        %6292 = vmatpush1.msra.mxu0 0.0
        %6293 = vmatprep.subr.mxu0 0.0
        %6294 = vmatpush1.msra.mxu0 0.0
        %6295 = vmatprep.subr.mxu0 0.0
        %6296 = vmatpush1.msra.mxu0 0.0
        %6297 = vmatprep.subr.mxu0 0.0
        %6298 = vmatpush1.msra.mxu0 0.0
        %6299 = vmatprep.subr.mxu0 0.0
        %6300 = vmatpush1.msra.mxu0 0.0
        %6301 = vmatprep.subr.mxu0 0.0
        %6302 = vmatpush1.msra.mxu0 0.0
        %6303 = vmatprep.subr.mxu0 0.0
        %6304 = vmatpush1.msra.mxu0 0.0
        %6305 = vmatprep.subr.mxu0 0.0
        %6306 = vmatpush1.msra.mxu0 0.0
        %6307 = vmatprep.subr.mxu0 0.0
        %6308 = vmatpush1.msra.mxu0 0.0
        %6309 = vmatprep.subr.mxu0 0.0
        %6310 = vmatpush1.msra.mxu0 0.0
        %6311 = vmatprep.subr.mxu0 0.0
        %6312 = vmatpush1.msra.mxu0 0.0
        %6313 = vmatprep.subr.mxu0 0.0
        %6314 = vmatpush1.msra.mxu0 0.0
        %6315 = vmatprep.subr.mxu0 0.0
        %6316 = vmatpush1.msra.mxu0 0.0
        %6317 = vmatprep.subr.mxu0 0.0
        %6318 = vmatpush1.msra.mxu0 0.0
        %6319 = vmatprep.subr.mxu0 0.0
        %6320 = vmatpush1.msra.mxu0 0.0
        %6321 = vmatprep.subr.mxu0 0.0
        %6322 = vmatpush1.msra.mxu0 0.0
        %6323 = vmatprep.subr.mxu0 0.0
        %6324 = vmatpush1.msra.mxu0 0.0
        %6325 = vmatprep.subr.mxu0 0.0
        %6326 = vmatpush1.msra.mxu0 0.0
        %6327 = vmatprep.subr.mxu0 0.0
        %6328 = vmatpush1.msra.mxu0 0.0
        %6329 = vmatprep.subr.mxu0 0.0
        %6330 = vmatpush1.msra.mxu0 0.0
        %6331 = vmatprep.subr.mxu0 0.0
        %6332 = vmatpush1.msra.mxu0 0.0
        %6333 = vmatprep.subr.mxu0 0.0
        %6334 = vmatpush1.msra.mxu0 0.0
        %6335 = vmatprep.subr.mxu0 0.0
        %6336 = vmatpush1.msra.mxu0 0.0
        %6337 = vmatprep.subr.mxu0 0.0
        %6338 = vmatpush1.msra.mxu0 0.0
        %6339 = vmatprep.subr.mxu0 0.0
        %6340 = vmatpush1.msra.mxu0 0.0
        %6341 = vmatprep.mubr.f32.mxu0 0.0
        %6342 = vmatmul.mubr.f32.gmra.mrb[0].mxu0 %v266
        %v6343 = vpop.f32.mrb[0].mxu0
        %v6344 = vadd.f32 0.0, %v6343
        %v6345 = vpop.f32.mrb[0].mxu0
        %6346 = vmatprep.mubr.f32.mxu0 0.0
        %6347 = vmatmul.mubr.f32.gmra.mrb[0].mxu0 %v269
        %v6348 = vpop.f32.mrb[0].mxu0
        %v6349 = vadd.f32 0.0, %v6348
        %v6350 = vpop.f32.mrb[0].mxu0
        %6351 = vmatprep.mubr.f32.mxu0 0.0
        %6352 = vmatmul.mubr.f32.gmra.mrb[0].mxu0 %v272
        %v6353 = vpop.f32.mrb[0].mxu0
        %v6354 = vadd.f32 0.0, %v6353
        %v6355 = vpop.f32.mrb[0].mxu0
        %6356 = vmatprep.mubr.f32.mxu0 0.0
        %6357 = vmatmul.mubr.f32.gmra.mrb[0].mxu0 %v275
        %v6358 = vpop.f32.mrb[0].mxu0
        %v6359 = vadd.f32 0.0, %v6358
        %v6360 = vpop.f32.mrb[0].mxu0
        %6361 = vdwg.mxu0
        %v6363 = vsel %vm365, %v6354, 0
        %v6366 = vsel %vm365, %v6359, 0
        %6368 = vmatprep.subr.mxu0 0.0
        %6369 = vmatpush1.msra.mxu0 %v243
        %6370 = vmatprep.subr.mxu0 0.0
        %6371 = vmatpush1.msra.mxu0 %v244
        %6372 = vmatprep.subr.mxu0 0.0
        %6373 = vmatpush1.msra.mxu0 0.0
        %6374 = vmatprep.subr.mxu0 0.0
        %6375 = vmatpush1.msra.mxu0 0.0
        %6376 = vmatprep.subr.mxu0 0.0
        %6377 = vmatpush1.msra.mxu0 0.0
        %6378 = vmatprep.subr.mxu0 0.0
        %6379 = vmatpush1.msra.mxu0 0.0
        %6380 = vmatprep.subr.mxu0 0.0
        %6381 = vmatpush1.msra.mxu0 0.0
        %6382 = vmatprep.subr.mxu0 0.0
        %6383 = vmatpush1.msra.mxu0 0.0
        %6384 = vmatprep.subr.mxu0 0.0
        %6385 = vmatpush1.msra.mxu0 0.0
        %6386 = vmatprep.subr.mxu0 0.0
        %6387 = vmatpush1.msra.mxu0 0.0
        %6388 = vmatprep.subr.mxu0 0.0
        %6389 = vmatpush1.msra.mxu0 0.0
        %6390 = vmatprep.subr.mxu0 0.0
        %6391 = vmatpush1.msra.mxu0 0.0
        %6392 = vmatprep.subr.mxu0 0.0
        %6393 = vmatpush1.msra.mxu0 0.0
        %6394 = vmatprep.subr.mxu0 0.0
        %6395 = vmatpush1.msra.mxu0 0.0
        %6396 = vmatprep.subr.mxu0 0.0
        %6397 = vmatpush1.msra.mxu0 0.0
        %6398 = vmatprep.subr.mxu0 0.0
        %6399 = vmatpush1.msra.mxu0 0.0
        %6400 = vmatprep.subr.mxu0 0.0
        %6401 = vmatpush1.msra.mxu0 0.0
        %6402 = vmatprep.subr.mxu0 0.0
        %6403 = vmatpush1.msra.mxu0 0.0
        %6404 = vmatprep.subr.mxu0 0.0
        %6405 = vmatpush1.msra.mxu0 0.0
        %6406 = vmatprep.subr.mxu0 0.0
        %6407 = vmatpush1.msra.mxu0 0.0
        %6408 = vmatprep.subr.mxu0 0.0
        %6409 = vmatpush1.msra.mxu0 0.0
        %6410 = vmatprep.subr.mxu0 0.0
        %6411 = vmatpush1.msra.mxu0 0.0
        %6412 = vmatprep.subr.mxu0 0.0
        %6413 = vmatpush1.msra.mxu0 0.0
        %6414 = vmatprep.subr.mxu0 0.0
        %6415 = vmatpush1.msra.mxu0 0.0
        %6416 = vmatprep.subr.mxu0 0.0
        %6417 = vmatpush1.msra.mxu0 0.0
        %6418 = vmatprep.subr.mxu0 0.0
        %6419 = vmatpush1.msra.mxu0 0.0
        %6420 = vmatprep.subr.mxu0 0.0
        %6421 = vmatpush1.msra.mxu0 0.0
        %6422 = vmatprep.subr.mxu0 0.0
        %6423 = vmatpush1.msra.mxu0 0.0
        %6424 = vmatprep.subr.mxu0 0.0
        %6425 = vmatpush1.msra.mxu0 0.0
        %6426 = vmatprep.subr.mxu0 0.0
        %6427 = vmatpush1.msra.mxu0 0.0
        %6428 = vmatprep.subr.mxu0 0.0
        %6429 = vmatpush1.msra.mxu0 0.0
        %6430 = vmatprep.subr.mxu0 0.0
        %6431 = vmatpush1.msra.mxu0 0.0
        %6432 = vmatprep.mubr.f32.mxu0 0.0
        %6433 = vmatmul.mubr.f32.gmra.mrb[0].mxu0 %v6363
        %v6434 = vpop.f32.mrb[0].mxu0
        %v6435 = vadd.f32 0.0, %v6434
        %v6436 = vpop.f32.mrb[0].mxu0
        %6437 = vmatprep.mubr.f32.mxu0 0.0
        %6438 = vmatmul.mubr.f32.gmra.mrb[0].mxu0 %v6366
        %v6439 = vpop.f32.mrb[0].mxu0
        %v6440 = vadd.f32 0.0, %v6439
        %v6441 = vpop.f32.mrb[0].mxu0
        %6442 = vdwg.mxu0
        %v6444 = vsel %vm365, %v6344, 0
        %v6447 = vsel %vm365, %v6349, 0
        %6449 = vmatprep.subr.mxu0 0.0
        %6450 = vmatpush1.msra.mxu0 %v240
        %6451 = vmatprep.subr.mxu0 0.0
        %6452 = vmatpush1.msra.mxu0 %v241
        %6453 = vmatprep.subr.mxu0 0.0
        %6454 = vmatpush1.msra.mxu0 0.0
        %6455 = vmatprep.subr.mxu0 0.0
        %6456 = vmatpush1.msra.mxu0 0.0
        %6457 = vmatprep.subr.mxu0 0.0
        %6458 = vmatpush1.msra.mxu0 0.0
        %6459 = vmatprep.subr.mxu0 0.0
        %6460 = vmatpush1.msra.mxu0 0.0
        %6461 = vmatprep.subr.mxu0 0.0
        %6462 = vmatpush1.msra.mxu0 0.0
        %6463 = vmatprep.subr.mxu0 0.0
        %6464 = vmatpush1.msra.mxu0 0.0
        %6465 = vmatprep.subr.mxu0 0.0
        %6466 = vmatpush1.msra.mxu0 0.0
        %6467 = vmatprep.subr.mxu0 0.0
        %6468 = vmatpush1.msra.mxu0 0.0
        %6469 = vmatprep.subr.mxu0 0.0
        %6470 = vmatpush1.msra.mxu0 0.0
        %6471 = vmatprep.subr.mxu0 0.0
        %6472 = vmatpush1.msra.mxu0 0.0
        %6473 = vmatprep.subr.mxu0 0.0
        %6474 = vmatpush1.msra.mxu0 0.0
        %6475 = vmatprep.subr.mxu0 0.0
        %6476 = vmatpush1.msra.mxu0 0.0
        %6477 = vmatprep.subr.mxu0 0.0
        %6478 = vmatpush1.msra.mxu0 0.0
        %6479 = vmatprep.subr.mxu0 0.0
        %6480 = vmatpush1.msra.mxu0 0.0
        %6481 = vmatprep.subr.mxu0 0.0
        %6482 = vmatpush1.msra.mxu0 0.0
        %6483 = vmatprep.subr.mxu0 0.0
        %6484 = vmatpush1.msra.mxu0 0.0
        %6485 = vmatprep.subr.mxu0 0.0
        %6486 = vmatpush1.msra.mxu0 0.0
        %6487 = vmatprep.subr.mxu0 0.0
        %6488 = vmatpush1.msra.mxu0 0.0
        %6489 = vmatprep.subr.mxu0 0.0
        %6490 = vmatpush1.msra.mxu0 0.0
        %6491 = vmatprep.subr.mxu0 0.0
        %6492 = vmatpush1.msra.mxu0 0.0
        %6493 = vmatprep.subr.mxu0 0.0
        %6494 = vmatpush1.msra.mxu0 0.0
        %6495 = vmatprep.subr.mxu0 0.0
        %6496 = vmatpush1.msra.mxu0 0.0
        %6497 = vmatprep.subr.mxu0 0.0
        %6498 = vmatpush1.msra.mxu0 0.0
        %6499 = vmatprep.subr.mxu0 0.0
        %6500 = vmatpush1.msra.mxu0 0.0
        %6501 = vmatprep.subr.mxu0 0.0
        %6502 = vmatpush1.msra.mxu0 0.0
        %6503 = vmatprep.subr.mxu0 0.0
        %6504 = vmatpush1.msra.mxu0 0.0
        %6505 = vmatprep.subr.mxu0 0.0
        %6506 = vmatpush1.msra.mxu0 0.0
        %6507 = vmatprep.subr.mxu0 0.0
        %6508 = vmatpush1.msra.mxu0 0.0
        %6509 = vmatprep.subr.mxu0 0.0
        %6510 = vmatpush1.msra.mxu0 0.0
        %6511 = vmatprep.subr.mxu0 0.0
        %6512 = vmatpush1.msra.mxu0 0.0
        %6513 = vmatprep.mubr.f32.mxu0 0.0
        %6514 = vmatmul.mubr.f32.gmra.mrb[0].mxu0 %v6444
        %v6515 = vpop.f32.mrb[0].mxu0
        %v6516 = vadd.f32 %v6435, %v6515
        %v6517 = vpop.f32.mrb[0].mxu0
        %6518 = vmatprep.mubr.f32.mxu0 0.0
        %6519 = vmatmul.mubr.f32.gmra.mrb[0].mxu0 %v6447
        %v6520 = vpop.f32.mrb[0].mxu0
        %v6521 = vadd.f32 %v6440, %v6520
        %v6522 = vpop.f32.mrb[0].mxu0
        %6523 = vdwg.mxu0
        %v6524 = vadd.f32 %v6516, %v531
        %v6525 = vadd.f32 %v6521, %v536
        %v6526 = vmax.f32 %v6524, 0.0
        %v6527 = vmax.f32 %v6525, 0.0
        %v6529 = vcombine.high %v6526, %v6526
        %v6531 = vunpack.c.l.s4 1966171168
        %v6532 = vunpack.c.0.s8 %v6531
        %v6533 = vlaneseq
        %v6534 = vshrl.u32 %v6533, 7
        %v6535 = vsub.s32 %v6532, %v6534
        %v6536 = vrot.slane %v6526, %v6535
        %v6538 = vunpack.c.l.s4 1966171168
        %v6539 = vunpack.c.0.s8 %v6538
        %v6540 = vlaneseq
        %v6541 = vshrl.u32 %v6540, 7
        %v6542 = vsub.s32 %v6539, %v6541
        %v6543 = vrot.slane %v6529, %v6542
        %v6544 = vcombine.high %v6536, %v6536
        %v6545 = vcombine.high %v6543, %v6543
        %v6547 = vunpack.c.l.s4 1966171168
        %v6548 = vunpack.c.0.s8 %v6547
        %v6549 = vlaneseq
        %v6550 = vshrl.u32 %v6549, 7
        %v6551 = vsub.s32 %v6548, %v6550
        %v6552 = vrot.slane %v6536, %v6551
        %v6554 = vunpack.c.l.s4 1966171168
        %v6555 = vunpack.c.0.s8 %v6554
        %v6556 = vlaneseq
        %v6557 = vshrl.u32 %v6556, 7
        %v6558 = vsub.s32 %v6555, %v6557
        %v6559 = vrot.slane %v6543, %v6558
        %v6561 = vunpack.c.l.s4 1966171168
        %v6562 = vunpack.c.0.s8 %v6561
        %v6563 = vlaneseq
        %v6564 = vshrl.u32 %v6563, 7
        %v6565 = vsub.s32 %v6562, %v6564
        %v6566 = vrot.slane %v6544, %v6565
        %v6568 = vunpack.c.l.s4 1966171168
        %v6569 = vunpack.c.0.s8 %v6568
        %v6570 = vlaneseq
        %v6571 = vshrl.u32 %v6570, 7
        %v6572 = vsub.s32 %v6569, %v6571
        %v6573 = vrot.slane %v6545, %v6572
        %v6574 = vcombine.high %v6552, %v6552
        %v6575 = vcombine.high %v6559, %v6559
        %v6576 = vcombine.high %v6566, %v6566
        %v6577 = vcombine.high %v6573, %v6573
        %6586 = vst.msk [vmem:[%s233 + $0x1e] sm:$0x1] %vm600, %v6552
        %6587 = vst.msk [vmem:[%s233 + $0x3e] sm:$0x1] %vm600, %v6566
        %6588 = vst.msk [vmem:[%s233 + $0x5e] sm:$0x1] %vm600, %v6574
        %6589 = vst.msk [vmem:[%s233 + $0x7e] sm:$0x1] %vm600, %v6576
        %6590 = vst.msk [vmem:[%s233 + $0x9e] sm:$0x1] %vm600, %v6559
        %6591 = vst.msk [vmem:[%s233 + $0xbe] sm:$0x1] %vm600, %v6573
        %6592 = vst.msk [vmem:[%s233 + $0xde] sm:$0x1] %vm600, %v6575
        %6593 = vst.msk [vmem:[%s233 + $0xfe] sm:$0x1] %vm600, %v6577
        %v6595 = vcombine.high %v6527, %v6527
        %v6597 = vunpack.c.l.s4 1966171168
        %v6598 = vunpack.c.0.s8 %v6597
        %v6599 = vlaneseq
        %v6600 = vshrl.u32 %v6599, 7
        %v6601 = vsub.s32 %v6598, %v6600
        %v6602 = vrot.slane %v6527, %v6601
        %v6604 = vunpack.c.l.s4 1966171168
        %v6605 = vunpack.c.0.s8 %v6604
        %v6606 = vlaneseq
        %v6607 = vshrl.u32 %v6606, 7
        %v6608 = vsub.s32 %v6605, %v6607
        %v6609 = vrot.slane %v6595, %v6608
        %v6610 = vcombine.high %v6602, %v6602
        %v6611 = vcombine.high %v6609, %v6609
        %v6613 = vunpack.c.l.s4 1966171168
        %v6614 = vunpack.c.0.s8 %v6613
        %v6615 = vlaneseq
        %v6616 = vshrl.u32 %v6615, 7
        %v6617 = vsub.s32 %v6614, %v6616
        %v6618 = vrot.slane %v6602, %v6617
        %v6620 = vunpack.c.l.s4 1966171168
        %v6621 = vunpack.c.0.s8 %v6620
        %v6622 = vlaneseq
        %v6623 = vshrl.u32 %v6622, 7
        %v6624 = vsub.s32 %v6621, %v6623
        %v6625 = vrot.slane %v6609, %v6624
        %v6627 = vunpack.c.l.s4 1966171168
        %v6628 = vunpack.c.0.s8 %v6627
        %v6629 = vlaneseq
        %v6630 = vshrl.u32 %v6629, 7
        %v6631 = vsub.s32 %v6628, %v6630
        %v6632 = vrot.slane %v6610, %v6631
        %v6634 = vunpack.c.l.s4 1966171168
        %v6635 = vunpack.c.0.s8 %v6634
        %v6636 = vlaneseq
        %v6637 = vshrl.u32 %v6636, 7
        %v6638 = vsub.s32 %v6635, %v6637
        %v6639 = vrot.slane %v6611, %v6638
        %v6640 = vcombine.high %v6618, %v6618
        %v6641 = vcombine.high %v6625, %v6625
        %v6642 = vcombine.high %v6632, %v6632
        %v6643 = vcombine.high %v6639, %v6639
        %6652 = vst.msk [vmem:[%s233 + $0x1f] sm:$0x1] %vm600, %v6618
        %6653 = vst.msk [vmem:[%s233 + $0x3f] sm:$0x1] %vm600, %v6632
        %6654 = vst.msk [vmem:[%s233 + $0x5f] sm:$0x1] %vm600, %v6640
        %6655 = vst.msk [vmem:[%s233 + $0x7f] sm:$0x1] %vm600, %v6642
        %6656 = vst.msk [vmem:[%s233 + $0x9f] sm:$0x1] %vm600, %v6625
        %6657 = vst.msk [vmem:[%s233 + $0xbf] sm:$0x1] %vm600, %v6639
        %6658 = vst.msk [vmem:[%s233 + $0xdf] sm:$0x1] %vm600, %v6641
        %6659 = vst.msk [vmem:[%s233 + $0xff] sm:$0x1] %vm600, %v6643
        %s6660 = sand.u32 %s134, 1
        %s6661 = scalar_lea.sflag [#allocation4], %s6660
        %s6662 = sand.u32 %s134, 1
        %s6663 = smul.addr %s6662, 256
        %s6664 = scalar_lea.vmem [#allocation5], %s6663
        // Predicated region
        $region41: #{tpu_custom_call.1} parent=35 // pred_check
          %p6665 = pneg %p144
        $region42: #{tpu_custom_call.1} parent=35 // pred_check_branch
          %6667 = sbr.rel (%p6665) target = $region44
        $region43: #{tpu_custom_call.1} parent=35 // pred_region
          %s6668 = smul.u32 4, %s26
          %s6670 = ssub.s32 4096, 4096
          %6671 = vsyncadd %s6661, %s6670
          %s6672 = smul.addr %s25, 32
          %s6673 = sadd.s32 %s6668, %s6672
          %s6674 = smul.addr %s6673, 128
          %s6675 = scalar_lea.hbm %s4, %s6674
          %s6676 = sshll.u32 %s6664, 4
          %s6677 = int_to_ptr.vmem [resolvable:$true] %s6676
          %6682 = dma.vmem_to_hbm [thread:$0]  %s6677, 4096, %s6675, %s6661, 128, 128, 8
        $region44: #{tpu_custom_call.1} parent=35 // pred_fallthru
          _
      $region36: #{tpu_custom_call.1} parent=5 // pred_fallthru
        _
      %p6683 = scmp.le.s32.totalorder 2, %s16
      // Predicated region
      $region45: #{tpu_custom_call.1} parent=5 // pred_check
        %p6684 = pneg %p6683
      $region46: #{tpu_custom_call.1} parent=5 // pred_check_branch
        %6686 = sbr.rel (%p6684) target = $region48
      $region47: #{tpu_custom_call.1} parent=5 // pred_region
        %s6687 = ssub.s32 %s16, 2
        // Predicated region
        $region49: #{tpu_custom_call.1} parent=47 // pred_check
          %p6688 = pneg %p150
        $region50: #{tpu_custom_call.1} parent=47 // pred_check_branch
          %6690 = sbr.rel (%p6688) target = $region52
        $region51: #{tpu_custom_call.1} parent=47 // pred_region
          %s6691 = sand.u32 %s135, 1
          %s6692 = scalar_lea.sflag [#allocation4], %s6691
          %s6693 = sand.u32 %s135, 1
          %s6694 = smul.addr %s6693, 256
          %s6695 = scalar_lea.vmem [#allocation5], %s6694
          %6696 = dma.done %s6692, 4096
        $region52: #{tpu_custom_call.1} parent=47 // pred_fallthru
          _
      $region48: #{tpu_custom_call.1} parent=5 // pred_fallthru
        _
    $region6: #{tpu_custom_call.1} parent=1 // loop_footer
      %s20 = sadd.s32 1, %s16
    $region7: #{tpu_custom_call.1} parent=1 // loop_footer_branch
      %15 = sbr.rel target = $region3
    $region8: #{tpu_custom_call.1} parent=1 // loop_exit
      _
    %6697 = vsyncpa [#allocation3], 1
    %s6698 = scalar_lea.sflag [#allocation3], 1
    %6699 = vsyncpa %s6698, 1
    %6700 = vsyncpa [#allocation4], 1
    %s6701 = scalar_lea.sflag [#allocation4], 1
    %6702 = vsyncpa %s6701, 1

</llo_original>
